<compile_context>
chip_gen: v7x
topology: tpu7x:2x2x1
jax: 0.10.0
libtpu: 0.0.40
codegen_flags: <defaults>
</compile_context>

<pallas_src>
import functools

import jax
import jax.numpy as jnp
from jax import lax
from jax.experimental import pallas as pl
from jax.experimental.pallas import tpu as pltpu

LANE = 128
_BN_EPS = 1e-5
_SLOPE = 0.2


@functools.lru_cache(maxsize=1)
def _vmem_limit_bytes():
    """Generation-aware VMEM budget (v7x: 64 MiB/TC, v5e/v6e: 128 MiB)."""
    try:
        cap = int(getattr(pltpu.get_tpu_info(), "vmem_capacity_bytes", 0))
    except Exception:
        cap = 0
    if cap <= 0:
        return 48 * 1024 * 1024
    return int(min(cap * 3 // 4, 96 * 1024 * 1024))


def _compiler_params():
    return pltpu.CompilerParams(dimension_semantics=("parallel",),
                                vmem_limit_bytes=_vmem_limit_bytes())


# ----------------------------------------------------------------------------
# Kernels
# ----------------------------------------------------------------------------
def _conv_acc(x_ref, w_ref, *, K, S, Ho, Wo):
    """k x k conv for one image as K*(K//S) bf16 MXU dots accumulated in f32.

    x_ref : (1, Hq, S, Wq, S*Cin)   phase-decomposed, zero-padded input (bf16)
    w_ref : (K, K//S, S*Cin, Cout)  weight slabs with (kw-phase, cin) lane-folded (bf16)
    """
    A = K // S
    SC, Cout = w_ref.shape[2], w_ref.shape[3]
    rows = Ho * Wo
    acc = jnp.zeros((rows, Cout), jnp.float32)
    for kh in range(K):
        ah, ph = kh // S, kh % S
        for aw in range(A):
            tap = x_ref[0, pl.ds(ah, Ho), ph, pl.ds(aw, Wo), :]      # (Ho, Wo, S*Cin)
            acc = acc + jnp.dot(tap.reshape(rows, SC), w_ref[kh, aw],
                                preferred_element_type=jnp.float32)
    return acc


def _conv_bias_act_kernel(x_ref, w_ref, b_ref, o_ref, *, K, S, Ho, Wo, lrelu):
    """Fused conv + bias (+ LeakyReLU) for non-BatchNorm layers."""
    acc = _conv_acc(x_ref, w_ref, K=K, S=S, Ho=Ho, Wo=Wo) + b_ref[...]
    if lrelu:
        acc = jnp.where(acc >= 0, acc, _SLOPE * acc)
    o_ref[0] = acc.astype(o_ref.dtype)


def _conv_stats_kernel(x_ref, w_ref, y_ref, s_ref, *, K, S, Ho, Wo):
    """Fused conv + per-image partial BN statistics (sum, sum of squares)."""
    acc = _conv_acc(x_ref, w_ref, K=K, S=S, Ho=Ho, Wo=Wo)
    y_ref[0] = acc.astype(y_ref.dtype)
    s = jnp.sum(acc, axis=0, keepdims=True)
    ss = jnp.sum(acc * acc, axis=0, keepdims=True)
    s_ref[0] = jnp.concatenate([s, ss], axis=0)


def _bn_act_kernel(y_ref, sc_ref, sh_ref, o_ref):
    """Apply y*scale + shift (folded BatchNorm) + LeakyReLU; store bf16."""
    v = y_ref[0] * sc_ref[...] + sh_ref[...]
    v = jnp.where(v >= 0, v, _SLOPE * v)
    o_ref[0] = v.astype(o_ref.dtype)


# ----------------------------------------------------------------------------
# Per-layer wrapper (pad / phase-fold + pallas_call wiring)
# ----------------------------------------------------------------------------
def _phase_fold(x, K, S, pad):
    """Zero-pad and fold stride phases: (N,H,W,C) -> (N, Hq, S, Wq, S*C)."""
    N, H, W, C = x.shape
    Ho = (H + 2 * pad - K) // S + 1
    Wo = (W + 2 * pad - K) // S + 1
    assert Ho > 0 and Wo > 0, "spatial size too small for this layer stack"
    Hp, Wp = H + 2 * pad, W + 2 * pad
    eh, ew = (-Hp) % S, (-Wp) % S
    xp = jnp.pad(x, ((0, 0), (pad, pad + eh), (pad, pad + ew), (0, 0)))
    Hq, Wq = (Hp + eh) // S, (Wp + ew) // S
    return xp.reshape(N, Hq, S, Wq, S * C), Ho, Wo, Hq, Wq


def conv_layer(x, lc, lp):
    """One fused layer: conv(+bias+LReLU), or conv -> exact batch BN -> LReLU."""
    N, _, _, Cin = x.shape
    K, S, pad, Cout = lc["K"], lc["S"], lc["pad"], lc["Cout"]
    A = K // S
    x5, Ho, Wo, Hq, Wq = _phase_fold(x, K, S, pad)
    R = Ho * Wo
    SC = S * Cin

    # TODO(synk): for very large images add halo-duplicated row tiling (grid over Ho);
    #             per-image blocks are amply sufficient at these sizes.
    x_spec = pl.BlockSpec((1, Hq, S, Wq, SC), lambda n: (n, 0, 0, 0, 0))
    w_spec = pl.BlockSpec((K, A, SC, Cout), lambda n: (0, 0, 0, 0))
    vec_spec = pl.BlockSpec((1, Cout), lambda n: (0, 0))
    out_spec = pl.BlockSpec((1, R, Cout), lambda n: (n, 0, 0))

    if not lc["bn"]:
        out = pl.pallas_call(
            functools.partial(_conv_bias_act_kernel, K=K, S=S, Ho=Ho, Wo=Wo,
                              lrelu=lc["lrelu"]),
            out_shape=jax.ShapeDtypeStruct((N, R, Cout), lc["out_dtype"]),
            grid=(N,),
            in_specs=[x_spec, w_spec, vec_spec],
            out_specs=out_spec,
            compiler_params=_compiler_params(),
        )(x5, lp["slab"], lp["bias"])
        return out.reshape(N, Ho, Wo, Cout)

    # Pass 1: conv + per-image partial sums / sums-of-squares (exact batch stats).
    y, stats = pl.pallas_call(
        functools.partial(_conv_stats_kernel, K=K, S=S, Ho=Ho, Wo=Wo),
        out_shape=(jax.ShapeDtypeStruct((N, R, Cout), jnp.float32),
                   jax.ShapeDtypeStruct((N, 2, Cout), jnp.float32)),
        grid=(N,),
        in_specs=[x_spec, w_spec],
        out_specs=(out_spec, pl.BlockSpec((1, 2, Cout), lambda n: (n, 0, 0))),
        compiler_params=_compiler_params(),
    )(x5, lp["slab"])

    # Finalize BatchNorm2d statistics (training-mode forward, biased variance):
    # a tiny (N,2,C) XLA reduce, then fold into a single per-channel scale/shift.
    cnt = float(N * R)
    mean = jnp.sum(stats[:, 0, :], axis=0) / cnt
    var = jnp.sum(stats[:, 1, :], axis=0) / cnt - mean * mean
    scale = lp["gamma"][0] * lax.rsqrt(var + _BN_EPS)
    shift = lp["beta"][0] - mean * scale

    # Pass 2: normalize + LeakyReLU, store bf16 activations.
    out = pl.pallas_call(
        _bn_act_kernel,
        out_shape=jax.ShapeDtypeStruct((N, R, Cout), jnp.bfloat16),
        grid=(N,),
        in_specs=[out_spec, vec_spec, vec_spec],
        out_specs=pl.BlockSpec((1, R, Cout), lambda n: (n, 0, 0)),
        compiler_params=_compiler_params(),
    )(y, scale.reshape(1, Cout), shift.reshape(1, Cout))
    return out.reshape(N, Ho, Wo, Cout)


def _im2col_stem(x, K, S, pad):
    """Wrapper-side im2col of the 3-channel stem -> a dense depth K*K*C '1x1 conv'."""
    N, H, W, C = x.shape
    Ho = (H + 2 * pad - K) // S + 1
    Wo = (W + 2 * pad - K) // S + 1
    xp = jnp.pad(x, ((0, 0), (pad, pad), (pad, pad), (0, 0)))
    cols = [xp[:, kh:kh + S * Ho:S, kw:kw + S * Wo:S, :]
            for kh in range(K) for kw in range(K)]
    return jnp.concatenate(cols, axis=-1)          # (N, Ho, Wo, K*K*C)


# ----------------------------------------------------------------------------
# Discriminator configuration, torch-equivalent synthetic params, packed params.
# ----------------------------------------------------------------------------
def make_discriminator(key, *, input_nc=3, ndf=16, n_layers=3, kw=4):
    cfgs = [dict(cin=input_nc, cout=ndf, stride=2, bn=False, lrelu=True, kw=kw)]
    nf_mult = 1
    for n in range(1, n_layers):
        nf_prev, nf_mult = nf_mult, min(2 ** n, 8)
        cfgs.append(dict(cin=ndf * nf_prev, cout=ndf * nf_mult, stride=2,
                         bn=True, lrelu=True, kw=kw))
    nf_prev, nf_mult = nf_mult, min(2 ** n_layers, 8)
    cfgs.append(dict(cin=ndf * nf_prev, cout=ndf * nf_mult, stride=1,
                     bn=True, lrelu=True, kw=kw))
    cfgs.append(dict(cin=ndf * nf_mult, cout=1, stride=1, bn=False, lrelu=False, kw=kw))

    params = []
    for cfg in cfgs:
        key, k_w, k_b, k_g = jax.random.split(key, 4)
        w = 0.02 * jax.random.normal(k_w, (kw, kw, cfg["cin"], cfg["cout"]),
                                     jnp.float32)                 # _init_weights: N(0, .02)
        if cfg["bn"]:
            b = jnp.zeros((cfg["cout"],), jnp.float32)            # use_bias=False for BN convs
            gamma = 1.0 + 0.02 * jax.random.normal(k_g, (cfg["cout"],), jnp.float32)
            beta = jnp.zeros((cfg["cout"],), jnp.float32)
        else:
            bound = 1.0 / (cfg["cin"] * kw * kw) ** 0.5           # torch default bias init
            b = jax.random.uniform(k_b, (cfg["cout"],), jnp.float32, -bound, bound)
            gamma = beta = None
        params.append(dict(w=w, b=b, gamma=gamma, beta=beta))
    return cfgs, params


def build_pallas_layers(cfgs, params):
    """Static per-layer configs (closed over by jit) + array-only params (jit args)."""
    lcfgs, lparams = [], []
    nlayers = len(cfgs)
    for li, (cfg, p) in enumerate(zip(cfgs, params)):
        K0, S0, cin, cout = cfg["kw"], cfg["stride"], cfg["cin"], cfg["cout"]
        w = p["w"]
        if li == 0:
            # stem (Cin=3): wrapper-side im2col -> dense depth K*K*Cin 1x1 conv
            K, S, pad, cin_eff = 1, 1, 0, K0 * K0 * cin
            w = w.reshape(1, 1, cin_eff, cout)
            stem = (K0, S0, 1)
        else:
            K, S, pad, cin_eff = K0, S0, 1, cin
            stem = None
        cout_eff = cout
        if li == nlayers - 1:
            # pad the single logit channel to a full 128-lane tile (lane-dense output)
            cout_eff = LANE
            w = jnp.zeros(w.shape[:3] + (cout_eff,), w.dtype).at[..., :cout].set(w)
        A = K // S
        slab = w.reshape(K, A, S, cin_eff, cout_eff).reshape(K, A, S * cin_eff, cout_eff)
        lp = dict(slab=slab.astype(jnp.bfloat16))
        if cfg["bn"]:
            lp["gamma"] = p["gamma"].reshape(1, cout).astype(jnp.float32)
            lp["beta"] = p["beta"].reshape(1, cout).astype(jnp.float32)
        else:
            b = p["b"]
            if cout_eff != cout:
                b = jnp.zeros((cout_eff,), jnp.float32).at[:cout].set(b)
            lp["bias"] = b.reshape(1, cout_eff).astype(jnp.float32)
        lcfgs.append(dict(K=K, S=S, pad=pad, Cin=cin_eff, Cout=cout_eff,
                          cout_real=cout, bn=cfg["bn"], lrelu=cfg["lrelu"], stem=stem,
                          out_dtype=(jnp.float32 if li == nlayers - 1 else jnp.bfloat16)))
        lparams.append(lp)
    return lcfgs, lparams


# ----------------------------------------------------------------------------
# Forward (Pallas) and pure-JAX f32 reference.
# ----------------------------------------------------------------------------
def discriminator_forward(x_nchw, lcfgs, lparams):
    x = jnp.transpose(x_nchw, (0, 2, 3, 1)).astype(jnp.bfloat16)   # NCHW -> NHWC, bf16
    for lc, lp in zip(lcfgs, lparams):
        if lc["stem"] is not None:
            x = _im2col_stem(x, *lc["stem"])
        x = conv_layer(x, lc, lp)
    x = x[..., :lcfgs[-1]["cout_real"]].astype(jnp.float32)        # drop logit-lane padding
    return jnp.transpose(x, (0, 3, 1, 2))                          # NHWC -> NCHW


def discriminator_reference(x_nchw, cfgs, params):
    x = jnp.transpose(x_nchw, (0, 2, 3, 1))
    for cfg, p in zip(cfgs, params):
        y = lax.conv_general_dilated(
            x, p["w"], (cfg["stride"], cfg["stride"]), ((1, 1), (1, 1)),
            dimension_numbers=("NHWC", "HWIO", "NHWC")) + p["b"]
        if cfg["bn"]:
            mean = jnp.mean(y, axis=(0, 1, 2), keepdims=True)
            var = jnp.mean((y - mean) ** 2, axis=(0, 1, 2), keepdims=True)
            y = (y - mean) * lax.rsqrt(var + _BN_EPS) * p["gamma"] + p["beta"]
        if cfg["lrelu"]:
            y = jnp.where(y >= 0, y, _SLOPE * y)
        x = y
    return jnp.transpose(x, (0, 3, 1, 2))


if __name__ == "__main__":
    key = jax.random.PRNGKey(0)
    key, k_x, k_p = jax.random.split(key, 3)

    # input_nc=3 as in the module; ndf shrunk to 16 and spatial=32 so that all five
    # conv layers (three stride-2 + two stride-1, k=4) have valid outputs.
    x = jax.random.normal(k_x, (2, 3, 32, 32), jnp.float32)
    cfgs, params = make_discriminator(k_p, input_nc=3, ndf=16, n_layers=3, kw=4)
    lcfgs, lparams = build_pallas_layers(cfgs, params)

    fwd = jax.jit(lambda xx, pp: discriminator_forward(xx, lcfgs, pp))
    out = jax.block_until_ready(fwd(x, lparams))

    ref = jax.block_until_ready(discriminator_reference(x, cfgs, params))
    assert out.shape == ref.shape == (2, 1, 2, 2), out.shape
    assert bool(jnp.all(jnp.isfinite(out)))
    max_err = float(jnp.max(jnp.abs(out - ref)))
    # bf16 MXU operands / bf16 activation storage vs. the f32 reference -> relaxed tol
    assert bool(jnp.allclose(out, ref, rtol=5e-2, atol=5e-2)), max_err

    print("KERNEL_OK")
</pallas_src>

<mosaic_0001>
module attributes {stable_mosaic.version = 11 : i64} {
  func.func @_conv_bias_act_kernel(%arg0: i32, %arg1: memref<1x16x1x16x48xbf16, #tpu.memory_space<vmem>>, %arg2: memref<1x1x48x16xbf16, #tpu.memory_space<vmem>>, %arg3: memref<1x16xf32, #tpu.memory_space<vmem>>, %arg4: memref<1x256x16xbf16, #tpu.memory_space<vmem>>) attributes {dimension_semantics = [#tpu.dimension_semantics<parallel>], iteration_bounds = array<i64: 2>, scalar_prefetch = 0 : i64, scratch_operands = 0 : i64, tpu.core_type = #tpu.core_type<tc>, window_params = [{transform_indices = @transform_0, window_bounds = array<i64: 1, 16, 1, 16, 48>}, {pipeline_mode = #tpu.pipeline_mode<synchronous>, transform_indices = @transform_1, window_bounds = array<i64: 1, 1, 48, 16>}, {pipeline_mode = #tpu.pipeline_mode<synchronous>, transform_indices = @transform_2, window_bounds = array<i64: 1, 16>}, {transform_indices = @transform_3, window_bounds = array<i64: 1, 256, 16>}]} {
    %cst = arith.constant 0.000000e+00 : f32
    %0 = vector.broadcast %cst : f32 to vector<256x16xf32>
    %c0 = arith.constant 0 : index
    %c0_0 = arith.constant 0 : index
    %c0_1 = arith.constant 0 : index
    %c0_2 = arith.constant 0 : index
    %c0_3 = arith.constant 0 : index
    %1 = vector.load %arg1[%c0, %c0_0, %c0_1, %c0_2, %c0_3] : memref<1x16x1x16x48xbf16, #tpu.memory_space<vmem>>, vector<1x16x1x16x48xbf16>
    %2 = vector.shape_cast %1 : vector<1x16x1x16x48xbf16> to vector<16x16x48xbf16>
    %3 = vector.shape_cast %2 : vector<16x16x48xbf16> to vector<256x48xbf16>
    %c0_4 = arith.constant 0 : index
    %c0_5 = arith.constant 0 : index
    %c0_6 = arith.constant 0 : index
    %c0_7 = arith.constant 0 : index
    %4 = vector.load %arg2[%c0_4, %c0_5, %c0_6, %c0_7] : memref<1x1x48x16xbf16, #tpu.memory_space<vmem>>, vector<1x1x48x16xbf16>
    %5 = vector.shape_cast %4 : vector<1x1x48x16xbf16> to vector<48x16xbf16>
    %cst_8 = arith.constant dense<0.000000e+00> : vector<256x16xf32>
    %6 = tpu.matmul %3, %5, %cst_8 {dimension_numbers = #tpu.dot_dimension_numbers<[1], [0], [0], [1], [0, 0, 1, 1], [], []>} : vector<256x48xbf16>, vector<48x16xbf16>, vector<256x16xf32> -> vector<256x16xf32>
    %7 = arith.addf %0, %6 : vector<256x16xf32>
    %c0_9 = arith.constant 0 : index
    %c0_10 = arith.constant 0 : index
    %8 = vector.load %arg3[%c0_9, %c0_10] : memref<1x16xf32, #tpu.memory_space<vmem>>, vector<1x16xf32>
    %9 = vector.broadcast %8 : vector<1x16xf32> to vector<256x16xf32>
    %10 = arith.addf %7, %9 : vector<256x16xf32>
    %cst_11 = arith.constant 0.000000e+00 : f32
    %11 = vector.broadcast %cst_11 : f32 to vector<256x16xf32>
    %12 = arith.cmpf oge, %10, %11 : vector<256x16xf32>
    %cst_12 = arith.constant 2.000000e-01 : f32
    %13 = vector.broadcast %cst_12 : f32 to vector<256x16xf32>
    %14 = arith.mulf %13, %10 : vector<256x16xf32>
    %15 = arith.select %12, %10, %14 : vector<256x16xi1>, vector<256x16xf32>
    %16 = arith.truncf %15 : vector<256x16xf32> to vector<256x16xbf16>
    %c0_13 = arith.constant 0 : index
    %c0_14 = arith.constant 0 : index
    %c0_15 = arith.constant 0 : index
    %17 = vector.load %arg4[%c0_13, %c0_14, %c0_15] : memref<1x256x16xbf16, #tpu.memory_space<vmem>>, vector<1x256x16xbf16>
    %18 = vector.shape_cast %17 : vector<1x256x16xbf16> to vector<256x16xbf16>
    %19 = vector.shape_cast %16 : vector<256x16xbf16> to vector<1x256x16xbf16>
    tpu.vector_store %arg4[%c0_13, %c0_14, %c0_15], %19 {strides = array<i32>} : memref<1x256x16xbf16, #tpu.memory_space<vmem>>, vector<1x256x16xbf16>,
    return
  }
  func.func @transform_0(%arg0: i32) -> (i32, i32, i32, i32, i32) {
    %c0_i32 = arith.constant 0 : i32
    %c0_i32_0 = arith.constant 0 : i32
    %c0_i32_1 = arith.constant 0 : i32
    %c0_i32_2 = arith.constant 0 : i32
    %c0_i32_3 = arith.constant 0 : i32
    return %arg0, %c0_i32, %c0_i32_0, %c0_i32_1, %c0_i32_2 : i32, i32, i32, i32, i32
  }
  func.func @transform_1(%arg0: i32) -> (i32, i32, i32, i32) {
    %c0_i32 = arith.constant 0 : i32
    %c0_i32_0 = arith.constant 0 : i32
    %c0_i32_1 = arith.constant 0 : i32
    %c0_i32_2 = arith.constant 0 : i32
    %c0_i32_3 = arith.constant 0 : i32
    return %c0_i32, %c0_i32_0, %c0_i32_1, %c0_i32_2 : i32, i32, i32, i32
  }
  func.func @transform_2(%arg0: i32) -> (i32, i32) {
    %c0_i32 = arith.constant 0 : i32
    %c0_i32_0 = arith.constant 0 : i32
    %c0_i32_1 = arith.constant 0 : i32
    return %c0_i32, %c0_i32_0 : i32, i32
  }
  func.func @transform_3(%arg0: i32) -> (i32, i32, i32) {
    %c0_i32 = arith.constant 0 : i32
    %c0_i32_0 = arith.constant 0 : i32
    %c0_i32_1 = arith.constant 0 : i32
    return %arg0, %c0_i32, %c0_i32_0 : i32, i32, i32
  }
}

module attributes {stable_mosaic.version = 11 : i64} {
  func.func @_conv_stats_kernel(%arg0: i32, %arg1: memref<1x9x2x9x32xbf16, #tpu.memory_space<vmem>>, %arg2: memref<4x2x32x32xbf16, #tpu.memory_space<vmem>>, %arg3: memref<1x64x32xf32, #tpu.memory_space<vmem>>, %arg4: memref<1x2x32xf32, #tpu.memory_space<vmem>>) attributes {dimension_semantics = [#tpu.dimension_semantics<parallel>], iteration_bounds = array<i64: 2>, scalar_prefetch = 0 : i64, scratch_operands = 0 : i64, tpu.core_type = #tpu.core_type<tc>, window_params = [{transform_indices = @transform_0, window_bounds = array<i64: 1, 9, 2, 9, 32>}, {pipeline_mode = #tpu.pipeline_mode<synchronous>, transform_indices = @transform_1, window_bounds = array<i64: 4, 2, 32, 32>}, {transform_indices = @transform_2, window_bounds = array<i64: 1, 64, 32>}, {transform_indices = @transform_3, window_bounds = array<i64: 1, 2, 32>}]} {
    %cst = arith.constant 0.000000e+00 : f32
    %0 = vector.broadcast %cst : f32 to vector<64x32xf32>
    %c0 = arith.constant 0 : index
    %c0_0 = arith.constant 0 : index
    %c0_1 = arith.constant 0 : index
    %c0_2 = arith.constant 0 : index
    %c0_3 = arith.constant 0 : index
    %1 = vector.load %arg1[%c0, %c0_0, %c0_1, %c0_2, %c0_3] : memref<1x9x2x9x32xbf16, #tpu.memory_space<vmem>>, vector<1x8x1x8x32xbf16>
    %2 = vector.shape_cast %1 : vector<1x8x1x8x32xbf16> to vector<8x8x32xbf16>
    %3 = vector.shape_cast %2 : vector<8x8x32xbf16> to vector<64x32xbf16>
    %c0_4 = arith.constant 0 : index
    %c0_5 = arith.constant 0 : index
    %c0_6 = arith.constant 0 : index
    %c0_7 = arith.constant 0 : index
    %4 = vector.load %arg2[%c0_4, %c0_5, %c0_6, %c0_7] : memref<4x2x32x32xbf16, #tpu.memory_space<vmem>>, vector<1x1x32x32xbf16>
    %5 = vector.shape_cast %4 : vector<1x1x32x32xbf16> to vector<32x32xbf16>
    %cst_8 = arith.constant dense<0.000000e+00> : vector<64x32xf32>
    %6 = tpu.matmul %3, %5, %cst_8 {dimension_numbers = #tpu.dot_dimension_numbers<[1], [0], [0], [1], [0, 0, 1, 1], [], []>} : vector<64x32xbf16>, vector<32x32xbf16>, vector<64x32xf32> -> vector<64x32xf32>
    %7 = arith.addf %0, %6 : vector<64x32xf32>
    %c0_9 = arith.constant 0 : index
    %c0_10 = arith.constant 0 : index
    %c0_11 = arith.constant 0 : index
    %c1 = arith.constant 1 : index
    %c0_12 = arith.constant 0 : index
    %8 = vector.load %arg1[%c0_9, %c0_10, %c0_11, %c1, %c0_12] : memref<1x9x2x9x32xbf16, #tpu.memory_space<vmem>>, vector<1x8x1x8x32xbf16>
    %9 = vector.shape_cast %8 : vector<1x8x1x8x32xbf16> to vector<8x8x32xbf16>
    %10 = vector.shape_cast %9 : vector<8x8x32xbf16> to vector<64x32xbf16>
    %c0_13 = arith.constant 0 : index
    %c1_14 = arith.constant 1 : index
    %c0_15 = arith.constant 0 : index
    %c0_16 = arith.constant 0 : index
    %11 = vector.load %arg2[%c0_13, %c1_14, %c0_15, %c0_16] : memref<4x2x32x32xbf16, #tpu.memory_space<vmem>>, vector<1x1x32x32xbf16>
    %12 = vector.shape_cast %11 : vector<1x1x32x32xbf16> to vector<32x32xbf16>
    %cst_17 = arith.constant dense<0.000000e+00> : vector<64x32xf32>
    %13 = tpu.matmul %10, %12, %cst_17 {dimension_numbers = #tpu.dot_dimension_numbers<[1], [0], [0], [1], [0, 0, 1, 1], [], []>} : vector<64x32xbf16>, vector<32x32xbf16>, vector<64x32xf32> -> vector<64x32xf32>
    %14 = arith.addf %7, %13 : vector<64x32xf32>
    %c0_18 = arith.constant 0 : index
    %c0_19 = arith.constant 0 : index
    %c1_20 = arith.constant 1 : index
    %c0_21 = arith.constant 0 : index
    %c0_22 = arith.constant 0 : index
    %15 = vector.load %arg1[%c0_18, %c0_19, %c1_20, %c0_21, %c0_22] : memref<1x9x2x9x32xbf16, #tpu.memory_space<vmem>>, vector<1x8x1x8x32xbf16>
    %16 = vector.shape_cast %15 : vector<1x8x1x8x32xbf16> to vector<8x8x32xbf16>
    %17 = vector.shape_cast %16 : vector<8x8x32xbf16> to vector<64x32xbf16>
    %c1_23 = arith.constant 1 : index
    %c0_24 = arith.constant 0 : index
    %c0_25 = arith.constant 0 : index
    %c0_26 = arith.constant 0 : index
    %18 = vector.load %arg2[%c1_23, %c0_24, %c0_25, %c0_26] : memref<4x2x32x32xbf16, #tpu.memory_space<vmem>>, vector<1x1x32x32xbf16>
    %19 = vector.shape_cast %18 : vector<1x1x32x32xbf16> to vector<32x32xbf16>
    %cst_27 = arith.constant dense<0.000000e+00> : vector<64x32xf32>
    %20 = tpu.matmul %17, %19, %cst_27 {dimension_numbers = #tpu.dot_dimension_numbers<[1], [0], [0], [1], [0, 0, 1, 1], [], []>} : vector<64x32xbf16>, vector<32x32xbf16>, vector<64x32xf32> -> vector<64x32xf32>
    %21 = arith.addf %14, %20 : vector<64x32xf32>
    %c0_28 = arith.constant 0 : index
    %c0_29 = arith.constant 0 : index
    %c1_30 = arith.constant 1 : index
    %c1_31 = arith.constant 1 : index
    %c0_32 = arith.constant 0 : index
    %22 = vector.load %arg1[%c0_28, %c0_29, %c1_30, %c1_31, %c0_32] : memref<1x9x2x9x32xbf16, #tpu.memory_space<vmem>>, vector<1x8x1x8x32xbf16>
    %23 = vector.shape_cast %22 : vector<1x8x1x8x32xbf16> to vector<8x8x32xbf16>
    %24 = vector.shape_cast %23 : vector<8x8x32xbf16> to vector<64x32xbf16>
    %c1_33 = arith.constant 1 : index
    %c1_34 = arith.constant 1 : index
    %c0_35 = arith.constant 0 : index
    %c0_36 = arith.constant 0 : index
    %25 = vector.load %arg2[%c1_33, %c1_34, %c0_35, %c0_36] : memref<4x2x32x32xbf16, #tpu.memory_space<vmem>>, vector<1x1x32x32xbf16>
    %26 = vector.shape_cast %25 : vector<1x1x32x32xbf16> to vector<32x32xbf16>
    %cst_37 = arith.constant dense<0.000000e+00> : vector<64x32xf32>
    %27 = tpu.matmul %24, %26, %cst_37 {dimension_numbers = #tpu.dot_dimension_numbers<[1], [0], [0], [1], [0, 0, 1, 1], [], []>} : vector<64x32xbf16>, vector<32x32xbf16>, vector<64x32xf32> -> vector<64x32xf32>
    %28 = arith.addf %21, %27 : vector<64x32xf32>
    %c0_38 = arith.constant 0 : index
    %c1_39 = arith.constant 1 : index
    %c0_40 = arith.constant 0 : index
    %c0_41 = arith.constant 0 : index
    %c0_42 = arith.constant 0 : index
    %29 = vector.load %arg1[%c0_38, %c1_39, %c0_40, %c0_41, %c0_42] : memref<1x9x2x9x32xbf16, #tpu.memory_space<vmem>>, vector<1x8x1x8x32xbf16>
    %30 = vector.shape_cast %29 : vector<1x8x1x8x32xbf16> to vector<8x8x32xbf16>
    %31 = vector.shape_cast %30 : vector<8x8x32xbf16> to vector<64x32xbf16>
    %c2 = arith.constant 2 : index
    %c0_43 = arith.constant 0 : index
    %c0_44 = arith.constant 0 : index
    %c0_45 = arith.constant 0 : index
    %32 = vector.load %arg2[%c2, %c0_43, %c0_44, %c0_45] : memref<4x2x32x32xbf16, #tpu.memory_space<vmem>>, vector<1x1x32x32xbf16>
    %33 = vector.shape_cast %32 : vector<1x1x32x32xbf16> to vector<32x32xbf16>
    %cst_46 = arith.constant dense<0.000000e+00> : vector<64x32xf32>
    %34 = tpu.matmul %31, %33, %cst_46 {dimension_numbers = #tpu.dot_dimension_numbers<[1], [0], [0], [1], [0, 0, 1, 1], [], []>} : vector<64x32xbf16>, vector<32x32xbf16>, vector<64x32xf32> -> vector<64x32xf32>
    %35 = arith.addf %28, %34 : vector<64x32xf32>
    %c0_47 = arith.constant 0 : index
    %c1_48 = arith.constant 1 : index
    %c0_49 = arith.constant 0 : index
    %c1_50 = arith.constant 1 : index
    %c0_51 = arith.constant 0 : index
    %36 = vector.load %arg1[%c0_47, %c1_48, %c0_49, %c1_50, %c0_51] : memref<1x9x2x9x32xbf16, #tpu.memory_space<vmem>>, vector<1x8x1x8x32xbf16>
    %37 = vector.shape_cast %36 : vector<1x8x1x8x32xbf16> to vector<8x8x32xbf16>
    %38 = vector.shape_cast %37 : vector<8x8x32xbf16> to vector<64x32xbf16>
    %c2_52 = arith.constant 2 : index
    %c1_53 = arith.constant 1 : index
    %c0_54 = arith.constant 0 : index
    %c0_55 = arith.constant 0 : index
    %39 = vector.load %arg2[%c2_52, %c1_53, %c0_54, %c0_55] : memref<4x2x32x32xbf16, #tpu.memory_space<vmem>>, vector<1x1x32x32xbf16>
    %40 = vector.shape_cast %39 : vector<1x1x32x32xbf16> to vector<32x32xbf16>
    %cst_56 = arith.constant dense<0.000000e+00> : vector<64x32xf32>
    %41 = tpu.matmul %38, %40, %cst_56 {dimension_numbers = #tpu.dot_dimension_numbers<[1], [0], [0], [1], [0, 0, 1, 1], [], []>} : vector<64x32xbf16>, vector<32x32xbf16>, vector<64x32xf32> -> vector<64x32xf32>
    %42 = arith.addf %35, %41 : vector<64x32xf32>
    %c0_57 = arith.constant 0 : index
    %c1_58 = arith.constant 1 : index
    %c1_59 = arith.constant 1 : index
    %c0_60 = arith.constant 0 : index
    %c0_61 = arith.constant 0 : index
    %43 = vector.load %arg1[%c0_57, %c1_58, %c1_59, %c0_60, %c0_61] : memref<1x9x2x9x32xbf16, #tpu.memory_space<vmem>>, vector<1x8x1x8x32xbf16>
    %44 = vector.shape_cast %43 : vector<1x8x1x8x32xbf16> to vector<8x8x32xbf16>
    %45 = vector.shape_cast %44 : vector<8x8x32xbf16> to vector<64x32xbf16>
    %c3 = arith.constant 3 : index
    %c0_62 = arith.constant 0 : index
    %c0_63 = arith.constant 0 : index
    %c0_64 = arith.constant 0 : index
    %46 = vector.load %arg2[%c3, %c0_62, %c0_63, %c0_64] : memref<4x2x32x32xbf16, #tpu.memory_space<vmem>>, vector<1x1x32x32xbf16>
    %47 = vector.shape_cast %46 : vector<1x1x32x32xbf16> to vector<32x32xbf16>
    %cst_65 = arith.constant dense<0.000000e+00> : vector<64x32xf32>
    %48 = tpu.matmul %45, %47, %cst_65 {dimension_numbers = #tpu.dot_dimension_numbers<[1], [0], [0], [1], [0, 0, 1, 1], [], []>} : vector<64x32xbf16>, vector<32x32xbf16>, vector<64x32xf32> -> vector<64x32xf32>
    %49 = arith.addf %42, %48 : vector<64x32xf32>
    %c0_66 = arith.constant 0 : index
    %c1_67 = arith.constant 1 : index
    %c1_68 = arith.constant 1 : index
    %c1_69 = arith.constant 1 : index
    %c0_70 = arith.constant 0 : index
    %50 = vector.load %arg1[%c0_66, %c1_67, %c1_68, %c1_69, %c0_70] : memref<1x9x2x9x32xbf16, #tpu.memory_space<vmem>>, vector<1x8x1x8x32xbf16>
    %51 = vector.shape_cast %50 : vector<1x8x1x8x32xbf16> to vector<8x8x32xbf16>
    %52 = vector.shape_cast %51 : vector<8x8x32xbf16> to vector<64x32xbf16>
    %c3_71 = arith.constant 3 : index
    %c1_72 = arith.constant 1 : index
    %c0_73 = arith.constant 0 : index
    %c0_74 = arith.constant 0 : index
    %53 = vector.load %arg2[%c3_71, %c1_72, %c0_73, %c0_74] : memref<4x2x32x32xbf16, #tpu.memory_space<vmem>>, vector<1x1x32x32xbf16>
    %54 = vector.shape_cast %53 : vector<1x1x32x32xbf16> to vector<32x32xbf16>
    %cst_75 = arith.constant dense<0.000000e+00> : vector<64x32xf32>
    %55 = tpu.matmul %52, %54, %cst_75 {dimension_numbers = #tpu.dot_dimension_numbers<[1], [0], [0], [1], [0, 0, 1, 1], [], []>} : vector<64x32xbf16>, vector<32x32xbf16>, vector<64x32xf32> -> vector<64x32xf32>
    %56 = arith.addf %49, %55 : vector<64x32xf32>
    %c0_76 = arith.constant 0 : index
    %c0_77 = arith.constant 0 : index
    %c0_78 = arith.constant 0 : index
    %57 = vector.load %arg3[%c0_76, %c0_77, %c0_78] : memref<1x64x32xf32, #tpu.memory_space<vmem>>, vector<1x64x32xf32>
    %58 = vector.shape_cast %57 : vector<1x64x32xf32> to vector<64x32xf32>
    %59 = vector.shape_cast %56 : vector<64x32xf32> to vector<1x64x32xf32>
    tpu.vector_store %arg3[%c0_76, %c0_77, %c0_78], %59 {strides = array<i32>} : memref<1x64x32xf32, #tpu.memory_space<vmem>>, vector<1x64x32xf32>,
    %cst_79 = arith.constant dense<0.000000e+00> : vector<32xf32>
    %60 = vector.multi_reduction <add>, %56, %cst_79 [0] : vector<64x32xf32> to vector<32xf32>
    %61 = vector.shape_cast %60 : vector<32xf32> to vector<1x32xf32>
    %62 = arith.mulf %56, %56 : vector<64x32xf32>
    %cst_80 = arith.constant dense<0.000000e+00> : vector<32xf32>
    %63 = vector.multi_reduction <add>, %62, %cst_80 [0] : vector<64x32xf32> to vector<32xf32>
    %64 = vector.shape_cast %63 : vector<32xf32> to vector<1x32xf32>
    %65 = tpu.concatenate %61, %64 in 0 : vector<1x32xf32>, vector<1x32xf32> -> vector<2x32xf32>
    %c0_81 = arith.constant 0 : index
    %c0_82 = arith.constant 0 : index
    %c0_83 = arith.constant 0 : index
    %66 = vector.load %arg4[%c0_81, %c0_82, %c0_83] : memref<1x2x32xf32, #tpu.memory_space<vmem>>, vector<1x2x32xf32>
    %67 = vector.shape_cast %66 : vector<1x2x32xf32> to vector<2x32xf32>
    %68 = vector.shape_cast %65 : vector<2x32xf32> to vector<1x2x32xf32>
    tpu.vector_store %arg4[%c0_81, %c0_82, %c0_83], %68 {strides = array<i32>} : memref<1x2x32xf32, #tpu.memory_space<vmem>>, vector<1x2x32xf32>,
    return
  }
  func.func @transform_0(%arg0: i32) -> (i32, i32, i32, i32, i32) {
    %c0_i32 = arith.constant 0 : i32
    %c0_i32_0 = arith.constant 0 : i32
    %c0_i32_1 = arith.constant 0 : i32
    %c0_i32_2 = arith.constant 0 : i32
    %c0_i32_3 = arith.constant 0 : i32
    return %arg0, %c0_i32, %c0_i32_0, %c0_i32_1, %c0_i32_2 : i32, i32, i32, i32, i32
  }
  func.func @transform_1(%arg0: i32) -> (i32, i32, i32, i32) {
    %c0_i32 = arith.constant 0 : i32
    %c0_i32_0 = arith.constant 0 : i32
    %c0_i32_1 = arith.constant 0 : i32
    %c0_i32_2 = arith.constant 0 : i32
    %c0_i32_3 = arith.constant 0 : i32
    return %c0_i32, %c0_i32_0, %c0_i32_1, %c0_i32_2 : i32, i32, i32, i32
  }
  func.func @transform_2(%arg0: i32) -> (i32, i32, i32) {
    %c0_i32 = arith.constant 0 : i32
    %c0_i32_0 = arith.constant 0 : i32
    %c0_i32_1 = arith.constant 0 : i32
    return %arg0, %c0_i32, %c0_i32_0 : i32, i32, i32
  }
  func.func @transform_3(%arg0: i32) -> (i32, i32, i32) {
    %c0_i32 = arith.constant 0 : i32
    %c0_i32_0 = arith.constant 0 : i32
    %c0_i32_1 = arith.constant 0 : i32
    return %arg0, %c0_i32, %c0_i32_0 : i32, i32, i32
  }
}

module attributes {stable_mosaic.version = 11 : i64} {
  func.func @_bn_act_kernel(%arg0: i32, %arg1: memref<1x64x32xf32, #tpu.memory_space<vmem>>, %arg2: memref<1x32xf32, #tpu.memory_space<vmem>>, %arg3: memref<1x32xf32, #tpu.memory_space<vmem>>, %arg4: memref<1x64x32xbf16, #tpu.memory_space<vmem>>) attributes {dimension_semantics = [#tpu.dimension_semantics<parallel>], iteration_bounds = array<i64: 2>, scalar_prefetch = 0 : i64, scratch_operands = 0 : i64, tpu.core_type = #tpu.core_type<tc>, window_params = [{transform_indices = @transform_0, window_bounds = array<i64: 1, 64, 32>}, {pipeline_mode = #tpu.pipeline_mode<synchronous>, transform_indices = @transform_1, window_bounds = array<i64: 1, 32>}, {pipeline_mode = #tpu.pipeline_mode<synchronous>, transform_indices = @transform_2, window_bounds = array<i64: 1, 32>}, {transform_indices = @transform_3, window_bounds = array<i64: 1, 64, 32>}]} {
    %c0 = arith.constant 0 : index
    %c0_0 = arith.constant 0 : index
    %c0_1 = arith.constant 0 : index
    %0 = vector.load %arg1[%c0, %c0_0, %c0_1] : memref<1x64x32xf32, #tpu.memory_space<vmem>>, vector<1x64x32xf32>
    %1 = vector.shape_cast %0 : vector<1x64x32xf32> to vector<64x32xf32>
    %c0_2 = arith.constant 0 : index
    %c0_3 = arith.constant 0 : index
    %2 = vector.load %arg2[%c0_2, %c0_3] : memref<1x32xf32, #tpu.memory_space<vmem>>, vector<1x32xf32>
    %3 = vector.broadcast %2 : vector<1x32xf32> to vector<64x32xf32>
    %4 = arith.mulf %1, %3 : vector<64x32xf32>
    %c0_4 = arith.constant 0 : index
    %c0_5 = arith.constant 0 : index
    %5 = vector.load %arg3[%c0_4, %c0_5] : memref<1x32xf32, #tpu.memory_space<vmem>>, vector<1x32xf32>
    %6 = vector.broadcast %5 : vector<1x32xf32> to vector<64x32xf32>
    %7 = arith.addf %4, %6 : vector<64x32xf32>
    %cst = arith.constant 0.000000e+00 : f32
    %8 = vector.broadcast %cst : f32 to vector<64x32xf32>
    %9 = arith.cmpf oge, %7, %8 : vector<64x32xf32>
    %cst_6 = arith.constant 2.000000e-01 : f32
    %10 = vector.broadcast %cst_6 : f32 to vector<64x32xf32>
    %11 = arith.mulf %10, %7 : vector<64x32xf32>
    %12 = arith.select %9, %7, %11 : vector<64x32xi1>, vector<64x32xf32>
    %13 = arith.truncf %12 : vector<64x32xf32> to vector<64x32xbf16>
    %c0_7 = arith.constant 0 : index
    %c0_8 = arith.constant 0 : index
    %c0_9 = arith.constant 0 : index
    %14 = vector.load %arg4[%c0_7, %c0_8, %c0_9] : memref<1x64x32xbf16, #tpu.memory_space<vmem>>, vector<1x64x32xbf16>
    %15 = vector.shape_cast %14 : vector<1x64x32xbf16> to vector<64x32xbf16>
    %16 = vector.shape_cast %13 : vector<64x32xbf16> to vector<1x64x32xbf16>
    tpu.vector_store %arg4[%c0_7, %c0_8, %c0_9], %16 {strides = array<i32>} : memref<1x64x32xbf16, #tpu.memory_space<vmem>>, vector<1x64x32xbf16>,
    return
  }
  func.func @transform_0(%arg0: i32) -> (i32, i32, i32) {
    %c0_i32 = arith.constant 0 : i32
    %c0_i32_0 = arith.constant 0 : i32
    %c0_i32_1 = arith.constant 0 : i32
    return %arg0, %c0_i32, %c0_i32_0 : i32, i32, i32
  }
  func.func @transform_1(%arg0: i32) -> (i32, i32) {
    %c0_i32 = arith.constant 0 : i32
    %c0_i32_0 = arith.constant 0 : i32
    %c0_i32_1 = arith.constant 0 : i32
    return %c0_i32, %c0_i32_0 : i32, i32
  }
  func.func @transform_2(%arg0: i32) -> (i32, i32) {
    %c0_i32 = arith.constant 0 : i32
    %c0_i32_0 = arith.constant 0 : i32
    %c0_i32_1 = arith.constant 0 : i32
    return %c0_i32, %c0_i32_0 : i32, i32
  }
  func.func @transform_3(%arg0: i32) -> (i32, i32, i32) {
    %c0_i32 = arith.constant 0 : i32
    %c0_i32_0 = arith.constant 0 : i32
    %c0_i32_1 = arith.constant 0 : i32
    return %arg0, %c0_i32, %c0_i32_0 : i32, i32, i32
  }
}

module attributes {stable_mosaic.version = 11 : i64} {
  func.func @_conv_stats_kernel(%arg0: i32, %arg1: memref<1x5x2x5x64xbf16, #tpu.memory_space<vmem>>, %arg2: memref<4x2x64x64xbf16, #tpu.memory_space<vmem>>, %arg3: memref<1x16x64xf32, #tpu.memory_space<vmem>>, %arg4: memref<1x2x64xf32, #tpu.memory_space<vmem>>) attributes {dimension_semantics = [#tpu.dimension_semantics<parallel>], iteration_bounds = array<i64: 2>, scalar_prefetch = 0 : i64, scratch_operands = 0 : i64, tpu.core_type = #tpu.core_type<tc>, window_params = [{transform_indices = @transform_0, window_bounds = array<i64: 1, 5, 2, 5, 64>}, {pipeline_mode = #tpu.pipeline_mode<synchronous>, transform_indices = @transform_1, window_bounds = array<i64: 4, 2, 64, 64>}, {transform_indices = @transform_2, window_bounds = array<i64: 1, 16, 64>}, {transform_indices = @transform_3, window_bounds = array<i64: 1, 2, 64>}]} {
    %cst = arith.constant 0.000000e+00 : f32
    %0 = vector.broadcast %cst : f32 to vector<16x64xf32>
    %c0 = arith.constant 0 : index
    %c0_0 = arith.constant 0 : index
    %c0_1 = arith.constant 0 : index
    %c0_2 = arith.constant 0 : index
    %c0_3 = arith.constant 0 : index
    %1 = vector.load %arg1[%c0, %c0_0, %c0_1, %c0_2, %c0_3] : memref<1x5x2x5x64xbf16, #tpu.memory_space<vmem>>, vector<1x4x1x4x64xbf16>
    %2 = vector.shape_cast %1 : vector<1x4x1x4x64xbf16> to vector<4x4x64xbf16>
    %3 = vector.shape_cast %2 : vector<4x4x64xbf16> to vector<16x64xbf16>
    %c0_4 = arith.constant 0 : index
    %c0_5 = arith.constant 0 : index
    %c0_6 = arith.constant 0 : index
    %c0_7 = arith.constant 0 : index
    %4 = vector.load %arg2[%c0_4, %c0_5, %c0_6, %c0_7] : memref<4x2x64x64xbf16, #tpu.memory_space<vmem>>, vector<1x1x64x64xbf16>
    %5 = vector.shape_cast %4 : vector<1x1x64x64xbf16> to vector<64x64xbf16>
    %cst_8 = arith.constant dense<0.000000e+00> : vector<16x64xf32>
    %6 = tpu.matmul %3, %5, %cst_8 {dimension_numbers = #tpu.dot_dimension_numbers<[1], [0], [0], [1], [0, 0, 1, 1], [], []>} : vector<16x64xbf16>, vector<64x64xbf16>, vector<16x64xf32> -> vector<16x64xf32>
    %7 = arith.addf %0, %6 : vector<16x64xf32>
    %c0_9 = arith.constant 0 : index
    %c0_10 = arith.constant 0 : index
    %c0_11 = arith.constant 0 : index
    %c1 = arith.constant 1 : index
    %c0_12 = arith.constant 0 : index
    %8 = vector.load %arg1[%c0_9, %c0_10, %c0_11, %c1, %c0_12] : memref<1x5x2x5x64xbf16, #tpu.memory_space<vmem>>, vector<1x4x1x4x64xbf16>
    %9 = vector.shape_cast %8 : vector<1x4x1x4x64xbf16> to vector<4x4x64xbf16>
    %10 = vector.shape_cast %9 : vector<4x4x64xbf16> to vector<16x64xbf16>
    %c0_13 = arith.constant 0 : index
    %c1_14 = arith.constant 1 : index
    %c0_15 = arith.constant 0 : index
    %c0_16 = arith.constant 0 : index
    %11 = vector.load %arg2[%c0_13, %c1_14, %c0_15, %c0_16] : memref<4x2x64x64xbf16, #tpu.memory_space<vmem>>, vector<1x1x64x64xbf16>
    %12 = vector.shape_cast %11 : vector<1x1x64x64xbf16> to vector<64x64xbf16>
    %cst_17 = arith.constant dense<0.000000e+00> : vector<16x64xf32>
    %13 = tpu.matmul %10, %12, %cst_17 {dimension_numbers = #tpu.dot_dimension_numbers<[1], [0], [0], [1], [0, 0, 1, 1], [], []>} : vector<16x64xbf16>, vector<64x64xbf16>, vector<16x64xf32> -> vector<16x64xf32>
    %14 = arith.addf %7, %13 : vector<16x64xf32>
    %c0_18 = arith.constant 0 : index
    %c0_19 = arith.constant 0 : index
    %c1_20 = arith.constant 1 : index
    %c0_21 = arith.constant 0 : index
    %c0_22 = arith.constant 0 : index
    %15 = vector.load %arg1[%c0_18, %c0_19, %c1_20, %c0_21, %c0_22] : memref<1x5x2x5x64xbf16, #tpu.memory_space<vmem>>, vector<1x4x1x4x64xbf16>
    %16 = vector.shape_cast %15 : vector<1x4x1x4x64xbf16> to vector<4x4x64xbf16>
    %17 = vector.shape_cast %16 : vector<4x4x64xbf16> to vector<16x64xbf16>
    %c1_23 = arith.constant 1 : index
    %c0_24 = arith.constant 0 : index
    %c0_25 = arith.constant 0 : index
    %c0_26 = arith.constant 0 : index
    %18 = vector.load %arg2[%c1_23, %c0_24, %c0_25, %c0_26] : memref<4x2x64x64xbf16, #tpu.memory_space<vmem>>, vector<1x1x64x64xbf16>
    %19 = vector.shape_cast %18 : vector<1x1x64x64xbf16> to vector<64x64xbf16>
    %cst_27 = arith.constant dense<0.000000e+00> : vector<16x64xf32>
    %20 = tpu.matmul %17, %19, %cst_27 {dimension_numbers = #tpu.dot_dimension_numbers<[1], [0], [0], [1], [0, 0, 1, 1], [], []>} : vector<16x64xbf16>, vector<64x64xbf16>, vector<16x64xf32> -> vector<16x64xf32>
    %21 = arith.addf %14, %20 : vector<16x64xf32>
    %c0_28 = arith.constant 0 : index
    %c0_29 = arith.constant 0 : index
    %c1_30 = arith.constant 1 : index
    %c1_31 = arith.constant 1 : index
    %c0_32 = arith.constant 0 : index
    %22 = vector.load %arg1[%c0_28, %c0_29, %c1_30, %c1_31, %c0_32] : memref<1x5x2x5x64xbf16, #tpu.memory_space<vmem>>, vector<1x4x1x4x64xbf16>
    %23 = vector.shape_cast %22 : vector<1x4x1x4x64xbf16> to vector<4x4x64xbf16>
    %24 = vector.shape_cast %23 : vector<4x4x64xbf16> to vector<16x64xbf16>
    %c1_33 = arith.constant 1 : index
    %c1_34 = arith.constant 1 : index
    %c0_35 = arith.constant 0 : index
    %c0_36 = arith.constant 0 : index
    %25 = vector.load %arg2[%c1_33, %c1_34, %c0_35, %c0_36] : memref<4x2x64x64xbf16, #tpu.memory_space<vmem>>, vector<1x1x64x64xbf16>
    %26 = vector.shape_cast %25 : vector<1x1x64x64xbf16> to vector<64x64xbf16>
    %cst_37 = arith.constant dense<0.000000e+00> : vector<16x64xf32>
    %27 = tpu.matmul %24, %26, %cst_37 {dimension_numbers = #tpu.dot_dimension_numbers<[1], [0], [0], [1], [0, 0, 1, 1], [], []>} : vector<16x64xbf16>, vector<64x64xbf16>, vector<16x64xf32> -> vector<16x64xf32>
    %28 = arith.addf %21, %27 : vector<16x64xf32>
    %c0_38 = arith.constant 0 : index
    %c1_39 = arith.constant 1 : index
    %c0_40 = arith.constant 0 : index
    %c0_41 = arith.constant 0 : index
    %c0_42 = arith.constant 0 : index
    %29 = vector.load %arg1[%c0_38, %c1_39, %c0_40, %c0_41, %c0_42] : memref<1x5x2x5x64xbf16, #tpu.memory_space<vmem>>, vector<1x4x1x4x64xbf16>
    %30 = vector.shape_cast %29 : vector<1x4x1x4x64xbf16> to vector<4x4x64xbf16>
    %31 = vector.shape_cast %30 : vector<4x4x64xbf16> to vector<16x64xbf16>
    %c2 = arith.constant 2 : index
    %c0_43 = arith.constant 0 : index
    %c0_44 = arith.constant 0 : index
    %c0_45 = arith.constant 0 : index
    %32 = vector.load %arg2[%c2, %c0_43, %c0_44, %c0_45] : memref<4x2x64x64xbf16, #tpu.memory_space<vmem>>, vector<1x1x64x64xbf16>
    %33 = vector.shape_cast %32 : vector<1x1x64x64xbf16> to vector<64x64xbf16>
    %cst_46 = arith.constant dense<0.000000e+00> : vector<16x64xf32>
    %34 = tpu.matmul %31, %33, %cst_46 {dimension_numbers = #tpu.dot_dimension_numbers<[1], [0], [0], [1], [0, 0, 1, 1], [], []>} : vector<16x64xbf16>, vector<64x64xbf16>, vector<16x64xf32> -> vector<16x64xf32>
    %35 = arith.addf %28, %34 : vector<16x64xf32>
    %c0_47 = arith.constant 0 : index
    %c1_48 = arith.constant 1 : index
    %c0_49 = arith.constant 0 : index
    %c1_50 = arith.constant 1 : index
    %c0_51 = arith.constant 0 : index
    %36 = vector.load %arg1[%c0_47, %c1_48, %c0_49, %c1_50, %c0_51] : memref<1x5x2x5x64xbf16, #tpu.memory_space<vmem>>, vector<1x4x1x4x64xbf16>
    %37 = vector.shape_cast %36 : vector<1x4x1x4x64xbf16> to vector<4x4x64xbf16>
    %38 = vector.shape_cast %37 : vector<4x4x64xbf16> to vector<16x64xbf16>
    %c2_52 = arith.constant 2 : index
    %c1_53 = arith.constant 1 : index
    %c0_54 = arith.constant 0 : index
    %c0_55 = arith.constant 0 : index
    %39 = vector.load %arg2[%c2_52, %c1_53, %c0_54, %c0_55] : memref<4x2x64x64xbf16, #tpu.memory_space<vmem>>, vector<1x1x64x64xbf16>
    %40 = vector.shape_cast %39 : vector<1x1x64x64xbf16> to vector<64x64xbf16>
    %cst_56 = arith.constant dense<0.000000e+00> : vector<16x64xf32>
    %41 = tpu.matmul %38, %40, %cst_56 {dimension_numbers = #tpu.dot_dimension_numbers<[1], [0], [0], [1], [0, 0, 1, 1], [], []>} : vector<16x64xbf16>, vector<64x64xbf16>, vector<16x64xf32> -> vector<16x64xf32>
    %42 = arith.addf %35, %41 : vector<16x64xf32>
    %c0_57 = arith.constant 0 : index
    %c1_58 = arith.constant 1 : index
    %c1_59 = arith.constant 1 : index
    %c0_60 = arith.constant 0 : index
    %c0_61 = arith.constant 0 : index
    %43 = vector.load %arg1[%c0_57, %c1_58, %c1_59, %c0_60, %c0_61] : memref<1x5x2x5x64xbf16, #tpu.memory_space<vmem>>, vector<1x4x1x4x64xbf16>
    %44 = vector.shape_cast %43 : vector<1x4x1x4x64xbf16> to vector<4x4x64xbf16>
    %45 = vector.shape_cast %44 : vector<4x4x64xbf16> to vector<16x64xbf16>
    %c3 = arith.constant 3 : index
    %c0_62 = arith.constant 0 : index
    %c0_63 = arith.constant 0 : index
    %c0_64 = arith.constant 0 : index
    %46 = vector.load %arg2[%c3, %c0_62, %c0_63, %c0_64] : memref<4x2x64x64xbf16, #tpu.memory_space<vmem>>, vector<1x1x64x64xbf16>
    %47 = vector.shape_cast %46 : vector<1x1x64x64xbf16> to vector<64x64xbf16>
    %cst_65 = arith.constant dense<0.000000e+00> : vector<16x64xf32>
    %48 = tpu.matmul %45, %47, %cst_65 {dimension_numbers = #tpu.dot_dimension_numbers<[1], [0], [0], [1], [0, 0, 1, 1], [], []>} : vector<16x64xbf16>, vector<64x64xbf16>, vector<16x64xf32> -> vector<16x64xf32>
    %49 = arith.addf %42, %48 : vector<16x64xf32>
    %c0_66 = arith.constant 0 : index
    %c1_67 = arith.constant 1 : index
    %c1_68 = arith.constant 1 : index
    %c1_69 = arith.constant 1 : index
    %c0_70 = arith.constant 0 : index
    %50 = vector.load %arg1[%c0_66, %c1_67, %c1_68, %c1_69, %c0_70] : memref<1x5x2x5x64xbf16, #tpu.memory_space<vmem>>, vector<1x4x1x4x64xbf16>
    %51 = vector.shape_cast %50 : vector<1x4x1x4x64xbf16> to vector<4x4x64xbf16>
    %52 = vector.shape_cast %51 : vector<4x4x64xbf16> to vector<16x64xbf16>
    %c3_71 = arith.constant 3 : index
    %c1_72 = arith.constant 1 : index
    %c0_73 = arith.constant 0 : index
    %c0_74 = arith.constant 0 : index
    %53 = vector.load %arg2[%c3_71, %c1_72, %c0_73, %c0_74] : memref<4x2x64x64xbf16, #tpu.memory_space<vmem>>, vector<1x1x64x64xbf16>
    %54 = vector.shape_cast %53 : vector<1x1x64x64xbf16> to vector<64x64xbf16>
    %cst_75 = arith.constant dense<0.000000e+00> : vector<16x64xf32>
    %55 = tpu.matmul %52, %54, %cst_75 {dimension_numbers = #tpu.dot_dimension_numbers<[1], [0], [0], [1], [0, 0, 1, 1], [], []>} : vector<16x64xbf16>, vector<64x64xbf16>, vector<16x64xf32> -> vector<16x64xf32>
    %56 = arith.addf %49, %55 : vector<16x64xf32>
    %c0_76 = arith.constant 0 : index
    %c0_77 = arith.constant 0 : index
    %c0_78 = arith.constant 0 : index
    %57 = vector.load %arg3[%c0_76, %c0_77, %c0_78] : memref<1x16x64xf32, #tpu.memory_space<vmem>>, vector<1x16x64xf32>
    %58 = vector.shape_cast %57 : vector<1x16x64xf32> to vector<16x64xf32>
    %59 = vector.shape_cast %56 : vector<16x64xf32> to vector<1x16x64xf32>
    tpu.vector_store %arg3[%c0_76, %c0_77, %c0_78], %59 {strides = array<i32>} : memref<1x16x64xf32, #tpu.memory_space<vmem>>, vector<1x16x64xf32>,
    %cst_79 = arith.constant dense<0.000000e+00> : vector<64xf32>
    %60 = vector.multi_reduction <add>, %56, %cst_79 [0] : vector<16x64xf32> to vector<64xf32>
    %61 = vector.shape_cast %60 : vector<64xf32> to vector<1x64xf32>
    %62 = arith.mulf %56, %56 : vector<16x64xf32>
    %cst_80 = arith.constant dense<0.000000e+00> : vector<64xf32>
    %63 = vector.multi_reduction <add>, %62, %cst_80 [0] : vector<16x64xf32> to vector<64xf32>
    %64 = vector.shape_cast %63 : vector<64xf32> to vector<1x64xf32>
    %65 = tpu.concatenate %61, %64 in 0 : vector<1x64xf32>, vector<1x64xf32> -> vector<2x64xf32>
    %c0_81 = arith.constant 0 : index
    %c0_82 = arith.constant 0 : index
    %c0_83 = arith.constant 0 : index
    %66 = vector.load %arg4[%c0_81, %c0_82, %c0_83] : memref<1x2x64xf32, #tpu.memory_space<vmem>>, vector<1x2x64xf32>
    %67 = vector.shape_cast %66 : vector<1x2x64xf32> to vector<2x64xf32>
    %68 = vector.shape_cast %65 : vector<2x64xf32> to vector<1x2x64xf32>
    tpu.vector_store %arg4[%c0_81, %c0_82, %c0_83], %68 {strides = array<i32>} : memref<1x2x64xf32, #tpu.memory_space<vmem>>, vector<1x2x64xf32>,
    return
  }
  func.func @transform_0(%arg0: i32) -> (i32, i32, i32, i32, i32) {
    %c0_i32 = arith.constant 0 : i32
    %c0_i32_0 = arith.constant 0 : i32
    %c0_i32_1 = arith.constant 0 : i32
    %c0_i32_2 = arith.constant 0 : i32
    %c0_i32_3 = arith.constant 0 : i32
    return %arg0, %c0_i32, %c0_i32_0, %c0_i32_1, %c0_i32_2 : i32, i32, i32, i32, i32
  }
  func.func @transform_1(%arg0: i32) -> (i32, i32, i32, i32) {
    %c0_i32 = arith.constant 0 : i32
    %c0_i32_0 = arith.constant 0 : i32
    %c0_i32_1 = arith.constant 0 : i32
    %c0_i32_2 = arith.constant 0 : i32
    %c0_i32_3 = arith.constant 0 : i32
    return %c0_i32, %c0_i32_0, %c0_i32_1, %c0_i32_2 : i32, i32, i32, i32
  }
  func.func @transform_2(%arg0: i32) -> (i32, i32, i32) {
    %c0_i32 = arith.constant 0 : i32
    %c0_i32_0 = arith.constant 0 : i32
    %c0_i32_1 = arith.constant 0 : i32
    return %arg0, %c0_i32, %c0_i32_0 : i32, i32, i32
  }
  func.func @transform_3(%arg0: i32) -> (i32, i32, i32) {
    %c0_i32 = arith.constant 0 : i32
    %c0_i32_0 = arith.constant 0 : i32
    %c0_i32_1 = arith.constant 0 : i32
    return %arg0, %c0_i32, %c0_i32_0 : i32, i32, i32
  }
}

module attributes {stable_mosaic.version = 11 : i64} {
  func.func @_conv_stats_kernel(%arg0: i32, %arg1: memref<1x6x1x6x64xbf16, #tpu.memory_space<vmem>>, %arg2: memref<4x4x64x128xbf16, #tpu.memory_space<vmem>>, %arg3: memref<1x9x128xf32, #tpu.memory_space<vmem>>, %arg4: memref<1x2x128xf32, #tpu.memory_space<vmem>>) attributes {dimension_semantics = [#tpu.dimension_semantics<parallel>], iteration_bounds = array<i64: 2>, scalar_prefetch = 0 : i64, scratch_operands = 0 : i64, tpu.core_type = #tpu.core_type<tc>, window_params = [{transform_indices = @transform_0, window_bounds = array<i64: 1, 6, 1, 6, 64>}, {pipeline_mode = #tpu.pipeline_mode<synchronous>, transform_indices = @transform_1, window_bounds = array<i64: 4, 4, 64, 128>}, {transform_indices = @transform_2, window_bounds = array<i64: 1, 9, 128>}, {transform_indices = @transform_3, window_bounds = array<i64: 1, 2, 128>}]} {
    %cst = arith.constant 0.000000e+00 : f32
    %0 = vector.broadcast %cst : f32 to vector<9x128xf32>
    %c0 = arith.constant 0 : index
    %c0_0 = arith.constant 0 : index
    %c0_1 = arith.constant 0 : index
    %c0_2 = arith.constant 0 : index
    %c0_3 = arith.constant 0 : index
    %1 = vector.load %arg1[%c0, %c0_0, %c0_1, %c0_2, %c0_3] : memref<1x6x1x6x64xbf16, #tpu.memory_space<vmem>>, vector<1x3x1x3x64xbf16>
    %2 = vector.shape_cast %1 : vector<1x3x1x3x64xbf16> to vector<3x3x64xbf16>
    %3 = vector.shape_cast %2 : vector<3x3x64xbf16> to vector<9x64xbf16>
    %c0_4 = arith.constant 0 : index
    %c0_5 = arith.constant 0 : index
    %c0_6 = arith.constant 0 : index
    %c0_7 = arith.constant 0 : index
    %4 = vector.load %arg2[%c0_4, %c0_5, %c0_6, %c0_7] : memref<4x4x64x128xbf16, #tpu.memory_space<vmem>>, vector<1x1x64x128xbf16>
    %5 = vector.shape_cast %4 : vector<1x1x64x128xbf16> to vector<64x128xbf16>
    %cst_8 = arith.constant dense<0.000000e+00> : vector<9x128xf32>
    %6 = tpu.matmul %3, %5, %cst_8 {dimension_numbers = #tpu.dot_dimension_numbers<[1], [0], [0], [1], [0, 0, 1, 1], [], []>} : vector<9x64xbf16>, vector<64x128xbf16>, vector<9x128xf32> -> vector<9x128xf32>
    %7 = arith.addf %0, %6 : vector<9x128xf32>
    %c0_9 = arith.constant 0 : index
    %c0_10 = arith.constant 0 : index
    %c0_11 = arith.constant 0 : index
    %c1 = arith.constant 1 : index
    %c0_12 = arith.constant 0 : index
    %8 = vector.load %arg1[%c0_9, %c0_10, %c0_11, %c1, %c0_12] : memref<1x6x1x6x64xbf16, #tpu.memory_space<vmem>>, vector<1x3x1x3x64xbf16>
    %9 = vector.shape_cast %8 : vector<1x3x1x3x64xbf16> to vector<3x3x64xbf16>
    %10 = vector.shape_cast %9 : vector<3x3x64xbf16> to vector<9x64xbf16>
    %c0_13 = arith.constant 0 : index
    %c1_14 = arith.constant 1 : index
    %c0_15 = arith.constant 0 : index
    %c0_16 = arith.constant 0 : index
    %11 = vector.load %arg2[%c0_13, %c1_14, %c0_15, %c0_16] : memref<4x4x64x128xbf16, #tpu.memory_space<vmem>>, vector<1x1x64x128xbf16>
    %12 = vector.shape_cast %11 : vector<1x1x64x128xbf16> to vector<64x128xbf16>
    %cst_17 = arith.constant dense<0.000000e+00> : vector<9x128xf32>
    %13 = tpu.matmul %10, %12, %cst_17 {dimension_numbers = #tpu.dot_dimension_numbers<[1], [0], [0], [1], [0, 0, 1, 1], [], []>} : vector<9x64xbf16>, vector<64x128xbf16>, vector<9x128xf32> -> vector<9x128xf32>
    %14 = arith.addf %7, %13 : vector<9x128xf32>
    %c0_18 = arith.constant 0 : index
    %c0_19 = arith.constant 0 : index
    %c0_20 = arith.constant 0 : index
    %c2 = arith.constant 2 : index
    %c0_21 = arith.constant 0 : index
    %15 = vector.load %arg1[%c0_18, %c0_19, %c0_20, %c2, %c0_21] : memref<1x6x1x6x64xbf16, #tpu.memory_space<vmem>>, vector<1x3x1x3x64xbf16>
    %16 = vector.shape_cast %15 : vector<1x3x1x3x64xbf16> to vector<3x3x64xbf16>
    %17 = vector.shape_cast %16 : vector<3x3x64xbf16> to vector<9x64xbf16>
    %c0_22 = arith.constant 0 : index
    %c2_23 = arith.constant 2 : index
    %c0_24 = arith.constant 0 : index
    %c0_25 = arith.constant 0 : index
    %18 = vector.load %arg2[%c0_22, %c2_23, %c0_24, %c0_25] : memref<4x4x64x128xbf16, #tpu.memory_space<vmem>>, vector<1x1x64x128xbf16>
    %19 = vector.shape_cast %18 : vector<1x1x64x128xbf16> to vector<64x128xbf16>
    %cst_26 = arith.constant dense<0.000000e+00> : vector<9x128xf32>
    %20 = tpu.matmul %17, %19, %cst_26 {dimension_numbers = #tpu.dot_dimension_numbers<[1], [0], [0], [1], [0, 0, 1, 1], [], []>} : vector<9x64xbf16>, vector<64x128xbf16>, vector<9x128xf32> -> vector<9x128xf32>
    %21 = arith.addf %14, %20 : vector<9x128xf32>
    %c0_27 = arith.constant 0 : index
    %c0_28 = arith.constant 0 : index
    %c0_29 = arith.constant 0 : index
    %c3 = arith.constant 3 : index
    %c0_30 = arith.constant 0 : index
    %22 = vector.load %arg1[%c0_27, %c0_28, %c0_29, %c3, %c0_30] : memref<1x6x1x6x64xbf16, #tpu.memory_space<vmem>>, vector<1x3x1x3x64xbf16>
    %23 = vector.shape_cast %22 : vector<1x3x1x3x64xbf16> to vector<3x3x64xbf16>
    %24 = vector.shape_cast %23 : vector<3x3x64xbf16> to vector<9x64xbf16>
    %c0_31 = arith.constant 0 : index
    %c3_32 = arith.constant 3 : index
    %c0_33 = arith.constant 0 : index
    %c0_34 = arith.constant 0 : index
    %25 = vector.load %arg2[%c0_31, %c3_32, %c0_33, %c0_34] : memref<4x4x64x128xbf16, #tpu.memory_space<vmem>>, vector<1x1x64x128xbf16>
    %26 = vector.shape_cast %25 : vector<1x1x64x128xbf16> to vector<64x128xbf16>
    %cst_35 = arith.constant dense<0.000000e+00> : vector<9x128xf32>
    %27 = tpu.matmul %24, %26, %cst_35 {dimension_numbers = #tpu.dot_dimension_numbers<[1], [0], [0], [1], [0, 0, 1, 1], [], []>} : vector<9x64xbf16>, vector<64x128xbf16>, vector<9x128xf32> -> vector<9x128xf32>
    %28 = arith.addf %21, %27 : vector<9x128xf32>
    %c0_36 = arith.constant 0 : index
    %c1_37 = arith.constant 1 : index
    %c0_38 = arith.constant 0 : index
    %c0_39 = arith.constant 0 : index
    %c0_40 = arith.constant 0 : index
    %29 = vector.load %arg1[%c0_36, %c1_37, %c0_38, %c0_39, %c0_40] : memref<1x6x1x6x64xbf16, #tpu.memory_space<vmem>>, vector<1x3x1x3x64xbf16>
    %30 = vector.shape_cast %29 : vector<1x3x1x3x64xbf16> to vector<3x3x64xbf16>
    %31 = vector.shape_cast %30 : vector<3x3x64xbf16> to vector<9x64xbf16>
    %c1_41 = arith.constant 1 : index
    %c0_42 = arith.constant 0 : index
    %c0_43 = arith.constant 0 : index
    %c0_44 = arith.constant 0 : index
    %32 = vector.load %arg2[%c1_41, %c0_42, %c0_43, %c0_44] : memref<4x4x64x128xbf16, #tpu.memory_space<vmem>>, vector<1x1x64x128xbf16>
    %33 = vector.shape_cast %32 : vector<1x1x64x128xbf16> to vector<64x128xbf16>
    %cst_45 = arith.constant dense<0.000000e+00> : vector<9x128xf32>
    %34 = tpu.matmul %31, %33, %cst_45 {dimension_numbers = #tpu.dot_dimension_numbers<[1], [0], [0], [1], [0, 0, 1, 1], [], []>} : vector<9x64xbf16>, vector<64x128xbf16>, vector<9x128xf32> -> vector<9x128xf32>
    %35 = arith.addf %28, %34 : vector<9x128xf32>
    %c0_46 = arith.constant 0 : index
    %c1_47 = arith.constant 1 : index
    %c0_48 = arith.constant 0 : index
    %c1_49 = arith.constant 1 : index
    %c0_50 = arith.constant 0 : index
    %36 = vector.load %arg1[%c0_46, %c1_47, %c0_48, %c1_49, %c0_50] : memref<1x6x1x6x64xbf16, #tpu.memory_space<vmem>>, vector<1x3x1x3x64xbf16>
    %37 = vector.shape_cast %36 : vector<1x3x1x3x64xbf16> to vector<3x3x64xbf16>
    %38 = vector.shape_cast %37 : vector<3x3x64xbf16> to vector<9x64xbf16>
    %c1_51 = arith.constant 1 : index
    %c1_52 = arith.constant 1 : index
    %c0_53 = arith.constant 0 : index
    %c0_54 = arith.constant 0 : index
    %39 = vector.load %arg2[%c1_51, %c1_52, %c0_53, %c0_54] : memref<4x4x64x128xbf16, #tpu.memory_space<vmem>>, vector<1x1x64x128xbf16>
    %40 = vector.shape_cast %39 : vector<1x1x64x128xbf16> to vector<64x128xbf16>
    %cst_55 = arith.constant dense<0.000000e+00> : vector<9x128xf32>
    %41 = tpu.matmul %38, %40, %cst_55 {dimension_numbers = #tpu.dot_dimension_numbers<[1], [0], [0], [1], [0, 0, 1, 1], [], []>} : vector<9x64xbf16>, vector<64x128xbf16>, vector<9x128xf32> -> vector<9x128xf32>
    %42 = arith.addf %35, %41 : vector<9x128xf32>
    %c0_56 = arith.constant 0 : index
    %c1_57 = arith.constant 1 : index
    %c0_58 = arith.constant 0 : index
    %c2_59 = arith.constant 2 : index
    %c0_60 = arith.constant 0 : index
    %43 = vector.load %arg1[%c0_56, %c1_57, %c0_58, %c2_59, %c0_60] : memref<1x6x1x6x64xbf16, #tpu.memory_space<vmem>>, vector<1x3x1x3x64xbf16>
    %44 = vector.shape_cast %43 : vector<1x3x1x3x64xbf16> to vector<3x3x64xbf16>
    %45 = vector.shape_cast %44 : vector<3x3x64xbf16> to vector<9x64xbf16>
    %c1_61 = arith.constant 1 : index
    %c2_62 = arith.constant 2 : index
    %c0_63 = arith.constant 0 : index
    %c0_64 = arith.constant 0 : index
    %46 = vector.load %arg2[%c1_61, %c2_62, %c0_63, %c0_64] : memref<4x4x64x128xbf16, #tpu.memory_space<vmem>>, vector<1x1x64x128xbf16>
    %47 = vector.shape_cast %46 : vector<1x1x64x128xbf16> to vector<64x128xbf16>
    %cst_65 = arith.constant dense<0.000000e+00> : vector<9x128xf32>
    %48 = tpu.matmul %45, %47, %cst_65 {dimension_numbers = #tpu.dot_dimension_numbers<[1], [0], [0], [1], [0, 0, 1, 1], [], []>} : vector<9x64xbf16>, vector<64x128xbf16>, vector<9x128xf32> -> vector<9x128xf32>
    %49 = arith.addf %42, %48 : vector<9x128xf32>
    %c0_66 = arith.constant 0 : index
    %c1_67 = arith.constant 1 : index
    %c0_68 = arith.constant 0 : index
    %c3_69 = arith.constant 3 : index
    %c0_70 = arith.constant 0 : index
    %50 = vector.load %arg1[%c0_66, %c1_67, %c0_68, %c3_69, %c0_70] : memref<1x6x1x6x64xbf16, #tpu.memory_space<vmem>>, vector<1x3x1x3x64xbf16>
    %51 = vector.shape_cast %50 : vector<1x3x1x3x64xbf16> to vector<3x3x64xbf16>
    %52 = vector.shape_cast %51 : vector<3x3x64xbf16> to vector<9x64xbf16>
    %c1_71 = arith.constant 1 : index
    %c3_72 = arith.constant 3 : index
    %c0_73 = arith.constant 0 : index
    %c0_74 = arith.constant 0 : index
    %53 = vector.load %arg2[%c1_71, %c3_72, %c0_73, %c0_74] : memref<4x4x64x128xbf16, #tpu.memory_space<vmem>>, vector<1x1x64x128xbf16>
    %54 = vector.shape_cast %53 : vector<1x1x64x128xbf16> to vector<64x128xbf16>
    %cst_75 = arith.constant dense<0.000000e+00> : vector<9x128xf32>
    %55 = tpu.matmul %52, %54, %cst_75 {dimension_numbers = #tpu.dot_dimension_numbers<[1], [0], [0], [1], [0, 0, 1, 1], [], []>} : vector<9x64xbf16>, vector<64x128xbf16>, vector<9x128xf32> -> vector<9x128xf32>
    %56 = arith.addf %49, %55 : vector<9x128xf32>
    %c0_76 = arith.constant 0 : index
    %c2_77 = arith.constant 2 : index
    %c0_78 = arith.constant 0 : index
    %c0_79 = arith.constant 0 : index
    %c0_80 = arith.constant 0 : index
    %57 = vector.load %arg1[%c0_76, %c2_77, %c0_78, %c0_79, %c0_80] : memref<1x6x1x6x64xbf16, #tpu.memory_space<vmem>>, vector<1x3x1x3x64xbf16>
    %58 = vector.shape_cast %57 : vector<1x3x1x3x64xbf16> to vector<3x3x64xbf16>
    %59 = vector.shape_cast %58 : vector<3x3x64xbf16> to vector<9x64xbf16>
    %c2_81 = arith.constant 2 : index
    %c0_82 = arith.constant 0 : index
    %c0_83 = arith.constant 0 : index
    %c0_84 = arith.constant 0 : index
    %60 = vector.load %arg2[%c2_81, %c0_82, %c0_83, %c0_84] : memref<4x4x64x128xbf16, #tpu.memory_space<vmem>>, vector<1x1x64x128xbf16>
    %61 = vector.shape_cast %60 : vector<1x1x64x128xbf16> to vector<64x128xbf16>
    %cst_85 = arith.constant dense<0.000000e+00> : vector<9x128xf32>
    %62 = tpu.matmul %59, %61, %cst_85 {dimension_numbers = #tpu.dot_dimension_numbers<[1], [0], [0], [1], [0, 0, 1, 1], [], []>} : vector<9x64xbf16>, vector<64x128xbf16>, vector<9x128xf32> -> vector<9x128xf32>
    %63 = arith.addf %56, %62 : vector<9x128xf32>
    %c0_86 = arith.constant 0 : index
    %c2_87 = arith.constant 2 : index
    %c0_88 = arith.constant 0 : index
    %c1_89 = arith.constant 1 : index
    %c0_90 = arith.constant 0 : index
    %64 = vector.load %arg1[%c0_86, %c2_87, %c0_88, %c1_89, %c0_90] : memref<1x6x1x6x64xbf16, #tpu.memory_space<vmem>>, vector<1x3x1x3x64xbf16>
    %65 = vector.shape_cast %64 : vector<1x3x1x3x64xbf16> to vector<3x3x64xbf16>
    %66 = vector.shape_cast %65 : vector<3x3x64xbf16> to vector<9x64xbf16>
    %c2_91 = arith.constant 2 : index
    %c1_92 = arith.constant 1 : index
    %c0_93 = arith.constant 0 : index
    %c0_94 = arith.constant 0 : index
    %67 = vector.load %arg2[%c2_91, %c1_92, %c0_93, %c0_94] : memref<4x4x64x128xbf16, #tpu.memory_space<vmem>>, vector<1x1x64x128xbf16>
    %68 = vector.shape_cast %67 : vector<1x1x64x128xbf16> to vector<64x128xbf16>
    %cst_95 = arith.constant dense<0.000000e+00> : vector<9x128xf32>
    %69 = tpu.matmul %66, %68, %cst_95 {dimension_numbers = #tpu.dot_dimension_numbers<[1], [0], [0], [1], [0, 0, 1, 1], [], []>} : vector<9x64xbf16>, vector<64x128xbf16>, vector<9x128xf32> -> vector<9x128xf32>
    %70 = arith.addf %63, %69 : vector<9x128xf32>
    %c0_96 = arith.constant 0 : index
    %c2_97 = arith.constant 2 : index
    %c0_98 = arith.constant 0 : index
    %c2_99 = arith.constant 2 : index
    %c0_100 = arith.constant 0 : index
    %71 = vector.load %arg1[%c0_96, %c2_97, %c0_98, %c2_99, %c0_100] : memref<1x6x1x6x64xbf16, #tpu.memory_space<vmem>>, vector<1x3x1x3x64xbf16>
    %72 = vector.shape_cast %71 : vector<1x3x1x3x64xbf16> to vector<3x3x64xbf16>
    %73 = vector.shape_cast %72 : vector<3x3x64xbf16> to vector<9x64xbf16>
    %c2_101 = arith.constant 2 : index
    %c2_102 = arith.constant 2 : index
    %c0_103 = arith.constant 0 : index
    %c0_104 = arith.constant 0 : index
    %74 = vector.load %arg2[%c2_101, %c2_102, %c0_103, %c0_104] : memref<4x4x64x128xbf16, #tpu.memory_space<vmem>>, vector<1x1x64x128xbf16>
    %75 = vector.shape_cast %74 : vector<1x1x64x128xbf16> to vector<64x128xbf16>
    %cst_105 = arith.constant dense<0.000000e+00> : vector<9x128xf32>
    %76 = tpu.matmul %73, %75, %cst_105 {dimension_numbers = #tpu.dot_dimension_numbers<[1], [0], [0], [1], [0, 0, 1, 1], [], []>} : vector<9x64xbf16>, vector<64x128xbf16>, vector<9x128xf32> -> vector<9x128xf32>
    %77 = arith.addf %70, %76 : vector<9x128xf32>
    %c0_106 = arith.constant 0 : index
    %c2_107 = arith.constant 2 : index
    %c0_108 = arith.constant 0 : index
    %c3_109 = arith.constant 3 : index
    %c0_110 = arith.constant 0 : index
    %78 = vector.load %arg1[%c0_106, %c2_107, %c0_108, %c3_109, %c0_110] : memref<1x6x1x6x64xbf16, #tpu.memory_space<vmem>>, vector<1x3x1x3x64xbf16>
    %79 = vector.shape_cast %78 : vector<1x3x1x3x64xbf16> to vector<3x3x64xbf16>
    %80 = vector.shape_cast %79 : vector<3x3x64xbf16> to vector<9x64xbf16>
    %c2_111 = arith.constant 2 : index
    %c3_112 = arith.constant 3 : index
    %c0_113 = arith.constant 0 : index
    %c0_114 = arith.constant 0 : index
    %81 = vector.load %arg2[%c2_111, %c3_112, %c0_113, %c0_114] : memref<4x4x64x128xbf16, #tpu.memory_space<vmem>>, vector<1x1x64x128xbf16>
    %82 = vector.shape_cast %81 : vector<1x1x64x128xbf16> to vector<64x128xbf16>
    %cst_115 = arith.constant dense<0.000000e+00> : vector<9x128xf32>
    %83 = tpu.matmul %80, %82, %cst_115 {dimension_numbers = #tpu.dot_dimension_numbers<[1], [0], [0], [1], [0, 0, 1, 1], [], []>} : vector<9x64xbf16>, vector<64x128xbf16>, vector<9x128xf32> -> vector<9x128xf32>
    %84 = arith.addf %77, %83 : vector<9x128xf32>
    %c0_116 = arith.constant 0 : index
    %c3_117 = arith.constant 3 : index
    %c0_118 = arith.constant 0 : index
    %c0_119 = arith.constant 0 : index
    %c0_120 = arith.constant 0 : index
    %85 = vector.load %arg1[%c0_116, %c3_117, %c0_118, %c0_119, %c0_120] : memref<1x6x1x6x64xbf16, #tpu.memory_space<vmem>>, vector<1x3x1x3x64xbf16>
    %86 = vector.shape_cast %85 : vector<1x3x1x3x64xbf16> to vector<3x3x64xbf16>
    %87 = vector.shape_cast %86 : vector<3x3x64xbf16> to vector<9x64xbf16>
    %c3_121 = arith.constant 3 : index
    %c0_122 = arith.constant 0 : index
    %c0_123 = arith.constant 0 : index
    %c0_124 = arith.constant 0 : index
    %88 = vector.load %arg2[%c3_121, %c0_122, %c0_123, %c0_124] : memref<4x4x64x128xbf16, #tpu.memory_space<vmem>>, vector<1x1x64x128xbf16>
    %89 = vector.shape_cast %88 : vector<1x1x64x128xbf16> to vector<64x128xbf16>
    %cst_125 = arith.constant dense<0.000000e+00> : vector<9x128xf32>
    %90 = tpu.matmul %87, %89, %cst_125 {dimension_numbers = #tpu.dot_dimension_numbers<[1], [0], [0], [1], [0, 0, 1, 1], [], []>} : vector<9x64xbf16>, vector<64x128xbf16>, vector<9x128xf32> -> vector<9x128xf32>
    %91 = arith.addf %84, %90 : vector<9x128xf32>
    %c0_126 = arith.constant 0 : index
    %c3_127 = arith.constant 3 : index
    %c0_128 = arith.constant 0 : index
    %c1_129 = arith.constant 1 : index
    %c0_130 = arith.constant 0 : index
    %92 = vector.load %arg1[%c0_126, %c3_127, %c0_128, %c1_129, %c0_130] : memref<1x6x1x6x64xbf16, #tpu.memory_space<vmem>>, vector<1x3x1x3x64xbf16>
    %93 = vector.shape_cast %92 : vector<1x3x1x3x64xbf16> to vector<3x3x64xbf16>
    %94 = vector.shape_cast %93 : vector<3x3x64xbf16> to vector<9x64xbf16>
    %c3_131 = arith.constant 3 : index
    %c1_132 = arith.constant 1 : index
    %c0_133 = arith.constant 0 : index
    %c0_134 = arith.constant 0 : index
    %95 = vector.load %arg2[%c3_131, %c1_132, %c0_133, %c0_134] : memref<4x4x64x128xbf16, #tpu.memory_space<vmem>>, vector<1x1x64x128xbf16>
    %96 = vector.shape_cast %95 : vector<1x1x64x128xbf16> to vector<64x128xbf16>
    %cst_135 = arith.constant dense<0.000000e+00> : vector<9x128xf32>
    %97 = tpu.matmul %94, %96, %cst_135 {dimension_numbers = #tpu.dot_dimension_numbers<[1], [0], [0], [1], [0, 0, 1, 1], [], []>} : vector<9x64xbf16>, vector<64x128xbf16>, vector<9x128xf32> -> vector<9x128xf32>
    %98 = arith.addf %91, %97 : vector<9x128xf32>
    %c0_136 = arith.constant 0 : index
    %c3_137 = arith.constant 3 : index
    %c0_138 = arith.constant 0 : index
    %c2_139 = arith.constant 2 : index
    %c0_140 = arith.constant 0 : index
    %99 = vector.load %arg1[%c0_136, %c3_137, %c0_138, %c2_139, %c0_140] : memref<1x6x1x6x64xbf16, #tpu.memory_space<vmem>>, vector<1x3x1x3x64xbf16>
    %100 = vector.shape_cast %99 : vector<1x3x1x3x64xbf16> to vector<3x3x64xbf16>
    %101 = vector.shape_cast %100 : vector<3x3x64xbf16> to vector<9x64xbf16>
    %c3_141 = arith.constant 3 : index
    %c2_142 = arith.constant 2 : index
    %c0_143 = arith.constant 0 : index
    %c0_144 = arith.constant 0 : index
    %102 = vector.load %arg2[%c3_141, %c2_142, %c0_143, %c0_144] : memref<4x4x64x128xbf16, #tpu.memory_space<vmem>>, vector<1x1x64x128xbf16>
    %103 = vector.shape_cast %102 : vector<1x1x64x128xbf16> to vector<64x128xbf16>
    %cst_145 = arith.constant dense<0.000000e+00> : vector<9x128xf32>
    %104 = tpu.matmul %101, %103, %cst_145 {dimension_numbers = #tpu.dot_dimension_numbers<[1], [0], [0], [1], [0, 0, 1, 1], [], []>} : vector<9x64xbf16>, vector<64x128xbf16>, vector<9x128xf32> -> vector<9x128xf32>
    %105 = arith.addf %98, %104 : vector<9x128xf32>
    %c0_146 = arith.constant 0 : index
    %c3_147 = arith.constant 3 : index
    %c0_148 = arith.constant 0 : index
    %c3_149 = arith.constant 3 : index
    %c0_150 = arith.constant 0 : index
    %106 = vector.load %arg1[%c0_146, %c3_147, %c0_148, %c3_149, %c0_150] : memref<1x6x1x6x64xbf16, #tpu.memory_space<vmem>>, vector<1x3x1x3x64xbf16>
    %107 = vector.shape_cast %106 : vector<1x3x1x3x64xbf16> to vector<3x3x64xbf16>
    %108 = vector.shape_cast %107 : vector<3x3x64xbf16> to vector<9x64xbf16>
    %c3_151 = arith.constant 3 : index
    %c3_152 = arith.constant 3 : index
    %c0_153 = arith.constant 0 : index
    %c0_154 = arith.constant 0 : index
    %109 = vector.load %arg2[%c3_151, %c3_152, %c0_153, %c0_154] : memref<4x4x64x128xbf16, #tpu.memory_space<vmem>>, vector<1x1x64x128xbf16>
    %110 = vector.shape_cast %109 : vector<1x1x64x128xbf16> to vector<64x128xbf16>
    %cst_155 = arith.constant dense<0.000000e+00> : vector<9x128xf32>
    %111 = tpu.matmul %108, %110, %cst_155 {dimension_numbers = #tpu.dot_dimension_numbers<[1], [0], [0], [1], [0, 0, 1, 1], [], []>} : vector<9x64xbf16>, vector<64x128xbf16>, vector<9x128xf32> -> vector<9x128xf32>
    %112 = arith.addf %105, %111 : vector<9x128xf32>
    %c0_156 = arith.constant 0 : index
    %c0_157 = arith.constant 0 : index
    %c0_158 = arith.constant 0 : index
    %113 = vector.load %arg3[%c0_156, %c0_157, %c0_158] : memref<1x9x128xf32, #tpu.memory_space<vmem>>, vector<1x9x128xf32>
    %114 = vector.shape_cast %113 : vector<1x9x128xf32> to vector<9x128xf32>
    %115 = vector.shape_cast %112 : vector<9x128xf32> to vector<1x9x128xf32>
    tpu.vector_store %arg3[%c0_156, %c0_157, %c0_158], %115 {strides = array<i32>} : memref<1x9x128xf32, #tpu.memory_space<vmem>>, vector<1x9x128xf32>,
    %cst_159 = arith.constant dense<0.000000e+00> : vector<128xf32>
    %116 = vector.multi_reduction <add>, %112, %cst_159 [0] : vector<9x128xf32> to vector<128xf32>
    %117 = vector.shape_cast %116 : vector<128xf32> to vector<1x128xf32>
    %118 = arith.mulf %112, %112 : vector<9x128xf32>
    %cst_160 = arith.constant dense<0.000000e+00> : vector<128xf32>
    %119 = vector.multi_reduction <add>, %118, %cst_160 [0] : vector<9x128xf32> to vector<128xf32>
    %120 = vector.shape_cast %119 : vector<128xf32> to vector<1x128xf32>
    %121 = tpu.concatenate %117, %120 in 0 : vector<1x128xf32>, vector<1x128xf32> -> vector<2x128xf32>
    %c0_161 = arith.constant 0 : index
    %c0_162 = arith.constant 0 : index
    %c0_163 = arith.constant 0 : index
    %122 = vector.load %arg4[%c0_161, %c0_162, %c0_163] : memref<1x2x128xf32, #tpu.memory_space<vmem>>, vector<1x2x128xf32>
    %123 = vector.shape_cast %122 : vector<1x2x128xf32> to vector<2x128xf32>
    %124 = vector.shape_cast %121 : vector<2x128xf32> to vector<1x2x128xf32>
    tpu.vector_store %arg4[%c0_161, %c0_162, %c0_163], %124 {strides = array<i32>} : memref<1x2x128xf32, #tpu.memory_space<vmem>>, vector<1x2x128xf32>,
    return
  }
  func.func @transform_0(%arg0: i32) -> (i32, i32, i32, i32, i32) {
    %c0_i32 = arith.constant 0 : i32
    %c0_i32_0 = arith.constant 0 : i32
    %c0_i32_1 = arith.constant 0 : i32
    %c0_i32_2 = arith.constant 0 : i32
    %c0_i32_3 = arith.constant 0 : i32
    return %arg0, %c0_i32, %c0_i32_0, %c0_i32_1, %c0_i32_2 : i32, i32, i32, i32, i32
  }
  func.func @transform_1(%arg0: i32) -> (i32, i32, i32, i32) {
    %c0_i32 = arith.constant 0 : i32
    %c0_i32_0 = arith.constant 0 : i32
    %c0_i32_1 = arith.constant 0 : i32
    %c0_i32_2 = arith.constant 0 : i32
    %c0_i32_3 = arith.constant 0 : i32
    return %c0_i32, %c0_i32_0, %c0_i32_1, %c0_i32_2 : i32, i32, i32, i32
  }
  func.func @transform_2(%arg0: i32) -> (i32, i32, i32) {
    %c0_i32 = arith.constant 0 : i32
    %c0_i32_0 = arith.constant 0 : i32
    %c0_i32_1 = arith.constant 0 : i32
    return %arg0, %c0_i32, %c0_i32_0 : i32, i32, i32
  }
  func.func @transform_3(%arg0: i32) -> (i32, i32, i32) {
    %c0_i32 = arith.constant 0 : i32
    %c0_i32_0 = arith.constant 0 : i32
    %c0_i32_1 = arith.constant 0 : i32
    return %arg0, %c0_i32, %c0_i32_0 : i32, i32, i32
  }
}

module attributes {stable_mosaic.version = 11 : i64} {
  func.func @_bn_act_kernel(%arg0: i32, %arg1: memref<1x16x64xf32, #tpu.memory_space<vmem>>, %arg2: memref<1x64xf32, #tpu.memory_space<vmem>>, %arg3: memref<1x64xf32, #tpu.memory_space<vmem>>, %arg4: memref<1x16x64xbf16, #tpu.memory_space<vmem>>) attributes {dimension_semantics = [#tpu.dimension_semantics<parallel>], iteration_bounds = array<i64: 2>, scalar_prefetch = 0 : i64, scratch_operands = 0 : i64, tpu.core_type = #tpu.core_type<tc>, window_params = [{transform_indices = @transform_0, window_bounds = array<i64: 1, 16, 64>}, {pipeline_mode = #tpu.pipeline_mode<synchronous>, transform_indices = @transform_1, window_bounds = array<i64: 1, 64>}, {pipeline_mode = #tpu.pipeline_mode<synchronous>, transform_indices = @transform_2, window_bounds = array<i64: 1, 64>}, {transform_indices = @transform_3, window_bounds = array<i64: 1, 16, 64>}]} {
    %c0 = arith.constant 0 : index
    %c0_0 = arith.constant 0 : index
    %c0_1 = arith.constant 0 : index
    %0 = vector.load %arg1[%c0, %c0_0, %c0_1] : memref<1x16x64xf32, #tpu.memory_space<vmem>>, vector<1x16x64xf32>
    %1 = vector.shape_cast %0 : vector<1x16x64xf32> to vector<16x64xf32>
    %c0_2 = arith.constant 0 : index
    %c0_3 = arith.constant 0 : index
    %2 = vector.load %arg2[%c0_2, %c0_3] : memref<1x64xf32, #tpu.memory_space<vmem>>, vector<1x64xf32>
    %3 = vector.broadcast %2 : vector<1x64xf32> to vector<16x64xf32>
    %4 = arith.mulf %1, %3 : vector<16x64xf32>
    %c0_4 = arith.constant 0 : index
    %c0_5 = arith.constant 0 : index
    %5 = vector.load %arg3[%c0_4, %c0_5] : memref<1x64xf32, #tpu.memory_space<vmem>>, vector<1x64xf32>
    %6 = vector.broadcast %5 : vector<1x64xf32> to vector<16x64xf32>
    %7 = arith.addf %4, %6 : vector<16x64xf32>
    %cst = arith.constant 0.000000e+00 : f32
    %8 = vector.broadcast %cst : f32 to vector<16x64xf32>
    %9 = arith.cmpf oge, %7, %8 : vector<16x64xf32>
    %cst_6 = arith.constant 2.000000e-01 : f32
    %10 = vector.broadcast %cst_6 : f32 to vector<16x64xf32>
    %11 = arith.mulf %10, %7 : vector<16x64xf32>
    %12 = arith.select %9, %7, %11 : vector<16x64xi1>, vector<16x64xf32>
    %13 = arith.truncf %12 : vector<16x64xf32> to vector<16x64xbf16>
    %c0_7 = arith.constant 0 : index
    %c0_8 = arith.constant 0 : index
    %c0_9 = arith.constant 0 : index
    %14 = vector.load %arg4[%c0_7, %c0_8, %c0_9] : memref<1x16x64xbf16, #tpu.memory_space<vmem>>, vector<1x16x64xbf16>
    %15 = vector.shape_cast %14 : vector<1x16x64xbf16> to vector<16x64xbf16>
    %16 = vector.shape_cast %13 : vector<16x64xbf16> to vector<1x16x64xbf16>
    tpu.vector_store %arg4[%c0_7, %c0_8, %c0_9], %16 {strides = array<i32>} : memref<1x16x64xbf16, #tpu.memory_space<vmem>>, vector<1x16x64xbf16>,
    return
  }
  func.func @transform_0(%arg0: i32) -> (i32, i32, i32) {
    %c0_i32 = arith.constant 0 : i32
    %c0_i32_0 = arith.constant 0 : i32
    %c0_i32_1 = arith.constant 0 : i32
    return %arg0, %c0_i32, %c0_i32_0 : i32, i32, i32
  }
  func.func @transform_1(%arg0: i32) -> (i32, i32) {
    %c0_i32 = arith.constant 0 : i32
    %c0_i32_0 = arith.constant 0 : i32
    %c0_i32_1 = arith.constant 0 : i32
    return %c0_i32, %c0_i32_0 : i32, i32
  }
  func.func @transform_2(%arg0: i32) -> (i32, i32) {
    %c0_i32 = arith.constant 0 : i32
    %c0_i32_0 = arith.constant 0 : i32
    %c0_i32_1 = arith.constant 0 : i32
    return %c0_i32, %c0_i32_0 : i32, i32
  }
  func.func @transform_3(%arg0: i32) -> (i32, i32, i32) {
    %c0_i32 = arith.constant 0 : i32
    %c0_i32_0 = arith.constant 0 : i32
    %c0_i32_1 = arith.constant 0 : i32
    return %arg0, %c0_i32, %c0_i32_0 : i32, i32, i32
  }
}

module attributes {stable_mosaic.version = 11 : i64} {
  func.func @_bn_act_kernel(%arg0: i32, %arg1: memref<1x9x128xf32, #tpu.memory_space<vmem>>, %arg2: memref<1x128xf32, #tpu.memory_space<vmem>>, %arg3: memref<1x128xf32, #tpu.memory_space<vmem>>, %arg4: memref<1x9x128xbf16, #tpu.memory_space<vmem>>) attributes {dimension_semantics = [#tpu.dimension_semantics<parallel>], iteration_bounds = array<i64: 2>, scalar_prefetch = 0 : i64, scratch_operands = 0 : i64, tpu.core_type = #tpu.core_type<tc>, window_params = [{transform_indices = @transform_0, window_bounds = array<i64: 1, 9, 128>}, {pipeline_mode = #tpu.pipeline_mode<synchronous>, transform_indices = @transform_1, window_bounds = array<i64: 1, 128>}, {pipeline_mode = #tpu.pipeline_mode<synchronous>, transform_indices = @transform_2, window_bounds = array<i64: 1, 128>}, {transform_indices = @transform_3, window_bounds = array<i64: 1, 9, 128>}]} {
    %c0 = arith.constant 0 : index
    %c0_0 = arith.constant 0 : index
    %c0_1 = arith.constant 0 : index
    %0 = vector.load %arg1[%c0, %c0_0, %c0_1] : memref<1x9x128xf32, #tpu.memory_space<vmem>>, vector<1x9x128xf32>
    %1 = vector.shape_cast %0 : vector<1x9x128xf32> to vector<9x128xf32>
    %c0_2 = arith.constant 0 : index
    %c0_3 = arith.constant 0 : index
    %2 = vector.load %arg2[%c0_2, %c0_3] : memref<1x128xf32, #tpu.memory_space<vmem>>, vector<1x128xf32>
    %3 = vector.broadcast %2 : vector<1x128xf32> to vector<9x128xf32>
    %4 = arith.mulf %1, %3 : vector<9x128xf32>
    %c0_4 = arith.constant 0 : index
    %c0_5 = arith.constant 0 : index
    %5 = vector.load %arg3[%c0_4, %c0_5] : memref<1x128xf32, #tpu.memory_space<vmem>>, vector<1x128xf32>
    %6 = vector.broadcast %5 : vector<1x128xf32> to vector<9x128xf32>
    %7 = arith.addf %4, %6 : vector<9x128xf32>
    %cst = arith.constant 0.000000e+00 : f32
    %8 = vector.broadcast %cst : f32 to vector<9x128xf32>
    %9 = arith.cmpf oge, %7, %8 : vector<9x128xf32>
    %cst_6 = arith.constant 2.000000e-01 : f32
    %10 = vector.broadcast %cst_6 : f32 to vector<9x128xf32>
    %11 = arith.mulf %10, %7 : vector<9x128xf32>
    %12 = arith.select %9, %7, %11 : vector<9x128xi1>, vector<9x128xf32>
    %13 = arith.truncf %12 : vector<9x128xf32> to vector<9x128xbf16>
    %c0_7 = arith.constant 0 : index
    %c0_8 = arith.constant 0 : index
    %c0_9 = arith.constant 0 : index
    %14 = vector.load %arg4[%c0_7, %c0_8, %c0_9] : memref<1x9x128xbf16, #tpu.memory_space<vmem>>, vector<1x9x128xbf16>
    %15 = vector.shape_cast %14 : vector<1x9x128xbf16> to vector<9x128xbf16>
    %16 = vector.shape_cast %13 : vector<9x128xbf16> to vector<1x9x128xbf16>
    tpu.vector_store %arg4[%c0_7, %c0_8, %c0_9], %16 {strides = array<i32>} : memref<1x9x128xbf16, #tpu.memory_space<vmem>>, vector<1x9x128xbf16>,
    return
  }
  func.func @transform_0(%arg0: i32) -> (i32, i32, i32) {
    %c0_i32 = arith.constant 0 : i32
    %c0_i32_0 = arith.constant 0 : i32
    %c0_i32_1 = arith.constant 0 : i32
    return %arg0, %c0_i32, %c0_i32_0 : i32, i32, i32
  }
  func.func @transform_1(%arg0: i32) -> (i32, i32) {
    %c0_i32 = arith.constant 0 : i32
    %c0_i32_0 = arith.constant 0 : i32
    %c0_i32_1 = arith.constant 0 : i32
    return %c0_i32, %c0_i32_0 : i32, i32
  }
  func.func @transform_2(%arg0: i32) -> (i32, i32) {
    %c0_i32 = arith.constant 0 : i32
    %c0_i32_0 = arith.constant 0 : i32
    %c0_i32_1 = arith.constant 0 : i32
    return %c0_i32, %c0_i32_0 : i32, i32
  }
  func.func @transform_3(%arg0: i32) -> (i32, i32, i32) {
    %c0_i32 = arith.constant 0 : i32
    %c0_i32_0 = arith.constant 0 : i32
    %c0_i32_1 = arith.constant 0 : i32
    return %arg0, %c0_i32, %c0_i32_0 : i32, i32, i32
  }
}

module attributes {stable_mosaic.version = 11 : i64} {
  func.func @_conv_bias_act_kernel(%arg0: i32, %arg1: memref<1x5x1x5x128xbf16, #tpu.memory_space<vmem>>, %arg2: memref<4x4x128x128xbf16, #tpu.memory_space<vmem>>, %arg3: memref<1x128xf32, #tpu.memory_space<vmem>>, %arg4: memref<1x4x128xf32, #tpu.memory_space<vmem>>) attributes {dimension_semantics = [#tpu.dimension_semantics<parallel>], iteration_bounds = array<i64: 2>, scalar_prefetch = 0 : i64, scratch_operands = 0 : i64, tpu.core_type = #tpu.core_type<tc>, window_params = [{transform_indices = @transform_0, window_bounds = array<i64: 1, 5, 1, 5, 128>}, {pipeline_mode = #tpu.pipeline_mode<synchronous>, transform_indices = @transform_1, window_bounds = array<i64: 4, 4, 128, 128>}, {pipeline_mode = #tpu.pipeline_mode<synchronous>, transform_indices = @transform_2, window_bounds = array<i64: 1, 128>}, {transform_indices = @transform_3, window_bounds = array<i64: 1, 4, 128>}]} {
    %cst = arith.constant 0.000000e+00 : f32
    %0 = vector.broadcast %cst : f32 to vector<4x128xf32>
    %c0 = arith.constant 0 : index
    %c0_0 = arith.constant 0 : index
    %c0_1 = arith.constant 0 : index
    %c0_2 = arith.constant 0 : index
    %c0_3 = arith.constant 0 : index
    %1 = vector.load %arg1[%c0, %c0_0, %c0_1, %c0_2, %c0_3] : memref<1x5x1x5x128xbf16, #tpu.memory_space<vmem>>, vector<1x2x1x2x128xbf16>
    %2 = vector.shape_cast %1 : vector<1x2x1x2x128xbf16> to vector<2x2x128xbf16>
    %3 = vector.shape_cast %2 : vector<2x2x128xbf16> to vector<4x128xbf16>
    %c0_4 = arith.constant 0 : index
    %c0_5 = arith.constant 0 : index
    %c0_6 = arith.constant 0 : index
    %c0_7 = arith.constant 0 : index
    %4 = vector.load %arg2[%c0_4, %c0_5, %c0_6, %c0_7] : memref<4x4x128x128xbf16, #tpu.memory_space<vmem>>, vector<1x1x128x128xbf16>
    %5 = vector.shape_cast %4 : vector<1x1x128x128xbf16> to vector<128x128xbf16>
    %cst_8 = arith.constant dense<0.000000e+00> : vector<4x128xf32>
    %6 = tpu.matmul %3, %5, %cst_8 {dimension_numbers = #tpu.dot_dimension_numbers<[1], [0], [0], [1], [0, 0, 1, 1], [], []>} : vector<4x128xbf16>, vector<128x128xbf16>, vector<4x128xf32> -> vector<4x128xf32>
    %7 = arith.addf %0, %6 : vector<4x128xf32>
    %c0_9 = arith.constant 0 : index
    %c0_10 = arith.constant 0 : index
    %c0_11 = arith.constant 0 : index
    %c1 = arith.constant 1 : index
    %c0_12 = arith.constant 0 : index
    %8 = vector.load %arg1[%c0_9, %c0_10, %c0_11, %c1, %c0_12] : memref<1x5x1x5x128xbf16, #tpu.memory_space<vmem>>, vector<1x2x1x2x128xbf16>
    %9 = vector.shape_cast %8 : vector<1x2x1x2x128xbf16> to vector<2x2x128xbf16>
    %10 = vector.shape_cast %9 : vector<2x2x128xbf16> to vector<4x128xbf16>
    %c0_13 = arith.constant 0 : index
    %c1_14 = arith.constant 1 : index
    %c0_15 = arith.constant 0 : index
    %c0_16 = arith.constant 0 : index
    %11 = vector.load %arg2[%c0_13, %c1_14, %c0_15, %c0_16] : memref<4x4x128x128xbf16, #tpu.memory_space<vmem>>, vector<1x1x128x128xbf16>
    %12 = vector.shape_cast %11 : vector<1x1x128x128xbf16> to vector<128x128xbf16>
    %cst_17 = arith.constant dense<0.000000e+00> : vector<4x128xf32>
    %13 = tpu.matmul %10, %12, %cst_17 {dimension_numbers = #tpu.dot_dimension_numbers<[1], [0], [0], [1], [0, 0, 1, 1], [], []>} : vector<4x128xbf16>, vector<128x128xbf16>, vector<4x128xf32> -> vector<4x128xf32>
    %14 = arith.addf %7, %13 : vector<4x128xf32>
    %c0_18 = arith.constant 0 : index
    %c0_19 = arith.constant 0 : index
    %c0_20 = arith.constant 0 : index
    %c2 = arith.constant 2 : index
    %c0_21 = arith.constant 0 : index
    %15 = vector.load %arg1[%c0_18, %c0_19, %c0_20, %c2, %c0_21] : memref<1x5x1x5x128xbf16, #tpu.memory_space<vmem>>, vector<1x2x1x2x128xbf16>
    %16 = vector.shape_cast %15 : vector<1x2x1x2x128xbf16> to vector<2x2x128xbf16>
    %17 = vector.shape_cast %16 : vector<2x2x128xbf16> to vector<4x128xbf16>
    %c0_22 = arith.constant 0 : index
    %c2_23 = arith.constant 2 : index
    %c0_24 = arith.constant 0 : index
    %c0_25 = arith.constant 0 : index
    %18 = vector.load %arg2[%c0_22, %c2_23, %c0_24, %c0_25] : memref<4x4x128x128xbf16, #tpu.memory_space<vmem>>, vector<1x1x128x128xbf16>
    %19 = vector.shape_cast %18 : vector<1x1x128x128xbf16> to vector<128x128xbf16>
    %cst_26 = arith.constant dense<0.000000e+00> : vector<4x128xf32>
    %20 = tpu.matmul %17, %19, %cst_26 {dimension_numbers = #tpu.dot_dimension_numbers<[1], [0], [0], [1], [0, 0, 1, 1], [], []>} : vector<4x128xbf16>, vector<128x128xbf16>, vector<4x128xf32> -> vector<4x128xf32>
    %21 = arith.addf %14, %20 : vector<4x128xf32>
    %c0_27 = arith.constant 0 : index
    %c0_28 = arith.constant 0 : index
    %c0_29 = arith.constant 0 : index
    %c3 = arith.constant 3 : index
    %c0_30 = arith.constant 0 : index
    %22 = vector.load %arg1[%c0_27, %c0_28, %c0_29, %c3, %c0_30] : memref<1x5x1x5x128xbf16, #tpu.memory_space<vmem>>, vector<1x2x1x2x128xbf16>
    %23 = vector.shape_cast %22 : vector<1x2x1x2x128xbf16> to vector<2x2x128xbf16>
    %24 = vector.shape_cast %23 : vector<2x2x128xbf16> to vector<4x128xbf16>
    %c0_31 = arith.constant 0 : index
    %c3_32 = arith.constant 3 : index
    %c0_33 = arith.constant 0 : index
    %c0_34 = arith.constant 0 : index
    %25 = vector.load %arg2[%c0_31, %c3_32, %c0_33, %c0_34] : memref<4x4x128x128xbf16, #tpu.memory_space<vmem>>, vector<1x1x128x128xbf16>
    %26 = vector.shape_cast %25 : vector<1x1x128x128xbf16> to vector<128x128xbf16>
    %cst_35 = arith.constant dense<0.000000e+00> : vector<4x128xf32>
    %27 = tpu.matmul %24, %26, %cst_35 {dimension_numbers = #tpu.dot_dimension_numbers<[1], [0], [0], [1], [0, 0, 1, 1], [], []>} : vector<4x128xbf16>, vector<128x128xbf16>, vector<4x128xf32> -> vector<4x128xf32>
    %28 = arith.addf %21, %27 : vector<4x128xf32>
    %c0_36 = arith.constant 0 : index
    %c1_37 = arith.constant 1 : index
    %c0_38 = arith.constant 0 : index
    %c0_39 = arith.constant 0 : index
    %c0_40 = arith.constant 0 : index
    %29 = vector.load %arg1[%c0_36, %c1_37, %c0_38, %c0_39, %c0_40] : memref<1x5x1x5x128xbf16, #tpu.memory_space<vmem>>, vector<1x2x1x2x128xbf16>
    %30 = vector.shape_cast %29 : vector<1x2x1x2x128xbf16> to vector<2x2x128xbf16>
    %31 = vector.shape_cast %30 : vector<2x2x128xbf16> to vector<4x128xbf16>
    %c1_41 = arith.constant 1 : index
    %c0_42 = arith.constant 0 : index
    %c0_43 = arith.constant 0 : index
    %c0_44 = arith.constant 0 : index
    %32 = vector.load %arg2[%c1_41, %c0_42, %c0_43, %c0_44] : memref<4x4x128x128xbf16, #tpu.memory_space<vmem>>, vector<1x1x128x128xbf16>
    %33 = vector.shape_cast %32 : vector<1x1x128x128xbf16> to vector<128x128xbf16>
    %cst_45 = arith.constant dense<0.000000e+00> : vector<4x128xf32>
    %34 = tpu.matmul %31, %33, %cst_45 {dimension_numbers = #tpu.dot_dimension_numbers<[1], [0], [0], [1], [0, 0, 1, 1], [], []>} : vector<4x128xbf16>, vector<128x128xbf16>, vector<4x128xf32> -> vector<4x128xf32>
    %35 = arith.addf %28, %34 : vector<4x128xf32>
    %c0_46 = arith.constant 0 : index
    %c1_47 = arith.constant 1 : index
    %c0_48 = arith.constant 0 : index
    %c1_49 = arith.constant 1 : index
    %c0_50 = arith.constant 0 : index
    %36 = vector.load %arg1[%c0_46, %c1_47, %c0_48, %c1_49, %c0_50] : memref<1x5x1x5x128xbf16, #tpu.memory_space<vmem>>, vector<1x2x1x2x128xbf16>
    %37 = vector.shape_cast %36 : vector<1x2x1x2x128xbf16> to vector<2x2x128xbf16>
    %38 = vector.shape_cast %37 : vector<2x2x128xbf16> to vector<4x128xbf16>
    %c1_51 = arith.constant 1 : index
    %c1_52 = arith.constant 1 : index
    %c0_53 = arith.constant 0 : index
    %c0_54 = arith.constant 0 : index
    %39 = vector.load %arg2[%c1_51, %c1_52, %c0_53, %c0_54] : memref<4x4x128x128xbf16, #tpu.memory_space<vmem>>, vector<1x1x128x128xbf16>
    %40 = vector.shape_cast %39 : vector<1x1x128x128xbf16> to vector<128x128xbf16>
    %cst_55 = arith.constant dense<0.000000e+00> : vector<4x128xf32>
    %41 = tpu.matmul %38, %40, %cst_55 {dimension_numbers = #tpu.dot_dimension_numbers<[1], [0], [0], [1], [0, 0, 1, 1], [], []>} : vector<4x128xbf16>, vector<128x128xbf16>, vector<4x128xf32> -> vector<4x128xf32>
    %42 = arith.addf %35, %41 : vector<4x128xf32>
    %c0_56 = arith.constant 0 : index
    %c1_57 = arith.constant 1 : index
    %c0_58 = arith.constant 0 : index
    %c2_59 = arith.constant 2 : index
    %c0_60 = arith.constant 0 : index
    %43 = vector.load %arg1[%c0_56, %c1_57, %c0_58, %c2_59, %c0_60] : memref<1x5x1x5x128xbf16, #tpu.memory_space<vmem>>, vector<1x2x1x2x128xbf16>
    %44 = vector.shape_cast %43 : vector<1x2x1x2x128xbf16> to vector<2x2x128xbf16>
    %45 = vector.shape_cast %44 : vector<2x2x128xbf16> to vector<4x128xbf16>
    %c1_61 = arith.constant 1 : index
    %c2_62 = arith.constant 2 : index
    %c0_63 = arith.constant 0 : index
    %c0_64 = arith.constant 0 : index
    %46 = vector.load %arg2[%c1_61, %c2_62, %c0_63, %c0_64] : memref<4x4x128x128xbf16, #tpu.memory_space<vmem>>, vector<1x1x128x128xbf16>
    %47 = vector.shape_cast %46 : vector<1x1x128x128xbf16> to vector<128x128xbf16>
    %cst_65 = arith.constant dense<0.000000e+00> : vector<4x128xf32>
    %48 = tpu.matmul %45, %47, %cst_65 {dimension_numbers = #tpu.dot_dimension_numbers<[1], [0], [0], [1], [0, 0, 1, 1], [], []>} : vector<4x128xbf16>, vector<128x128xbf16>, vector<4x128xf32> -> vector<4x128xf32>
    %49 = arith.addf %42, %48 : vector<4x128xf32>
    %c0_66 = arith.constant 0 : index
    %c1_67 = arith.constant 1 : index
    %c0_68 = arith.constant 0 : index
    %c3_69 = arith.constant 3 : index
    %c0_70 = arith.constant 0 : index
    %50 = vector.load %arg1[%c0_66, %c1_67, %c0_68, %c3_69, %c0_70] : memref<1x5x1x5x128xbf16, #tpu.memory_space<vmem>>, vector<1x2x1x2x128xbf16>
    %51 = vector.shape_cast %50 : vector<1x2x1x2x128xbf16> to vector<2x2x128xbf16>
    %52 = vector.shape_cast %51 : vector<2x2x128xbf16> to vector<4x128xbf16>
    %c1_71 = arith.constant 1 : index
    %c3_72 = arith.constant 3 : index
    %c0_73 = arith.constant 0 : index
    %c0_74 = arith.constant 0 : index
    %53 = vector.load %arg2[%c1_71, %c3_72, %c0_73, %c0_74] : memref<4x4x128x128xbf16, #tpu.memory_space<vmem>>, vector<1x1x128x128xbf16>
    %54 = vector.shape_cast %53 : vector<1x1x128x128xbf16> to vector<128x128xbf16>
    %cst_75 = arith.constant dense<0.000000e+00> : vector<4x128xf32>
    %55 = tpu.matmul %52, %54, %cst_75 {dimension_numbers = #tpu.dot_dimension_numbers<[1], [0], [0], [1], [0, 0, 1, 1], [], []>} : vector<4x128xbf16>, vector<128x128xbf16>, vector<4x128xf32> -> vector<4x128xf32>
    %56 = arith.addf %49, %55 : vector<4x128xf32>
    %c0_76 = arith.constant 0 : index
    %c2_77 = arith.constant 2 : index
    %c0_78 = arith.constant 0 : index
    %c0_79 = arith.constant 0 : index
    %c0_80 = arith.constant 0 : index
    %57 = vector.load %arg1[%c0_76, %c2_77, %c0_78, %c0_79, %c0_80] : memref<1x5x1x5x128xbf16, #tpu.memory_space<vmem>>, vector<1x2x1x2x128xbf16>
    %58 = vector.shape_cast %57 : vector<1x2x1x2x128xbf16> to vector<2x2x128xbf16>
    %59 = vector.shape_cast %58 : vector<2x2x128xbf16> to vector<4x128xbf16>
    %c2_81 = arith.constant 2 : index
    %c0_82 = arith.constant 0 : index
    %c0_83 = arith.constant 0 : index
    %c0_84 = arith.constant 0 : index
    %60 = vector.load %arg2[%c2_81, %c0_82, %c0_83, %c0_84] : memref<4x4x128x128xbf16, #tpu.memory_space<vmem>>, vector<1x1x128x128xbf16>
    %61 = vector.shape_cast %60 : vector<1x1x128x128xbf16> to vector<128x128xbf16>
    %cst_85 = arith.constant dense<0.000000e+00> : vector<4x128xf32>
    %62 = tpu.matmul %59, %61, %cst_85 {dimension_numbers = #tpu.dot_dimension_numbers<[1], [0], [0], [1], [0, 0, 1, 1], [], []>} : vector<4x128xbf16>, vector<128x128xbf16>, vector<4x128xf32> -> vector<4x128xf32>
    %63 = arith.addf %56, %62 : vector<4x128xf32>
    %c0_86 = arith.constant 0 : index
    %c2_87 = arith.constant 2 : index
    %c0_88 = arith.constant 0 : index
    %c1_89 = arith.constant 1 : index
    %c0_90 = arith.constant 0 : index
    %64 = vector.load %arg1[%c0_86, %c2_87, %c0_88, %c1_89, %c0_90] : memref<1x5x1x5x128xbf16, #tpu.memory_space<vmem>>, vector<1x2x1x2x128xbf16>
    %65 = vector.shape_cast %64 : vector<1x2x1x2x128xbf16> to vector<2x2x128xbf16>
    %66 = vector.shape_cast %65 : vector<2x2x128xbf16> to vector<4x128xbf16>
    %c2_91 = arith.constant 2 : index
    %c1_92 = arith.constant 1 : index
    %c0_93 = arith.constant 0 : index
    %c0_94 = arith.constant 0 : index
    %67 = vector.load %arg2[%c2_91, %c1_92, %c0_93, %c0_94] : memref<4x4x128x128xbf16, #tpu.memory_space<vmem>>, vector<1x1x128x128xbf16>
    %68 = vector.shape_cast %67 : vector<1x1x128x128xbf16> to vector<128x128xbf16>
    %cst_95 = arith.constant dense<0.000000e+00> : vector<4x128xf32>
    %69 = tpu.matmul %66, %68, %cst_95 {dimension_numbers = #tpu.dot_dimension_numbers<[1], [0], [0], [1], [0, 0, 1, 1], [], []>} : vector<4x128xbf16>, vector<128x128xbf16>, vector<4x128xf32> -> vector<4x128xf32>
    %70 = arith.addf %63, %69 : vector<4x128xf32>
    %c0_96 = arith.constant 0 : index
    %c2_97 = arith.constant 2 : index
    %c0_98 = arith.constant 0 : index
    %c2_99 = arith.constant 2 : index
    %c0_100 = arith.constant 0 : index
    %71 = vector.load %arg1[%c0_96, %c2_97, %c0_98, %c2_99, %c0_100] : memref<1x5x1x5x128xbf16, #tpu.memory_space<vmem>>, vector<1x2x1x2x128xbf16>
    %72 = vector.shape_cast %71 : vector<1x2x1x2x128xbf16> to vector<2x2x128xbf16>
    %73 = vector.shape_cast %72 : vector<2x2x128xbf16> to vector<4x128xbf16>
    %c2_101 = arith.constant 2 : index
    %c2_102 = arith.constant 2 : index
    %c0_103 = arith.constant 0 : index
    %c0_104 = arith.constant 0 : index
    %74 = vector.load %arg2[%c2_101, %c2_102, %c0_103, %c0_104] : memref<4x4x128x128xbf16, #tpu.memory_space<vmem>>, vector<1x1x128x128xbf16>
    %75 = vector.shape_cast %74 : vector<1x1x128x128xbf16> to vector<128x128xbf16>
    %cst_105 = arith.constant dense<0.000000e+00> : vector<4x128xf32>
    %76 = tpu.matmul %73, %75, %cst_105 {dimension_numbers = #tpu.dot_dimension_numbers<[1], [0], [0], [1], [0, 0, 1, 1], [], []>} : vector<4x128xbf16>, vector<128x128xbf16>, vector<4x128xf32> -> vector<4x128xf32>
    %77 = arith.addf %70, %76 : vector<4x128xf32>
    %c0_106 = arith.constant 0 : index
    %c2_107 = arith.constant 2 : index
    %c0_108 = arith.constant 0 : index
    %c3_109 = arith.constant 3 : index
    %c0_110 = arith.constant 0 : index
    %78 = vector.load %arg1[%c0_106, %c2_107, %c0_108, %c3_109, %c0_110] : memref<1x5x1x5x128xbf16, #tpu.memory_space<vmem>>, vector<1x2x1x2x128xbf16>
    %79 = vector.shape_cast %78 : vector<1x2x1x2x128xbf16> to vector<2x2x128xbf16>
    %80 = vector.shape_cast %79 : vector<2x2x128xbf16> to vector<4x128xbf16>
    %c2_111 = arith.constant 2 : index
    %c3_112 = arith.constant 3 : index
    %c0_113 = arith.constant 0 : index
    %c0_114 = arith.constant 0 : index
    %81 = vector.load %arg2[%c2_111, %c3_112, %c0_113, %c0_114] : memref<4x4x128x128xbf16, #tpu.memory_space<vmem>>, vector<1x1x128x128xbf16>
    %82 = vector.shape_cast %81 : vector<1x1x128x128xbf16> to vector<128x128xbf16>
    %cst_115 = arith.constant dense<0.000000e+00> : vector<4x128xf32>
    %83 = tpu.matmul %80, %82, %cst_115 {dimension_numbers = #tpu.dot_dimension_numbers<[1], [0], [0], [1], [0, 0, 1, 1], [], []>} : vector<4x128xbf16>, vector<128x128xbf16>, vector<4x128xf32> -> vector<4x128xf32>
    %84 = arith.addf %77, %83 : vector<4x128xf32>
    %c0_116 = arith.constant 0 : index
    %c3_117 = arith.constant 3 : index
    %c0_118 = arith.constant 0 : index
    %c0_119 = arith.constant 0 : index
    %c0_120 = arith.constant 0 : index
    %85 = vector.load %arg1[%c0_116, %c3_117, %c0_118, %c0_119, %c0_120] : memref<1x5x1x5x128xbf16, #tpu.memory_space<vmem>>, vector<1x2x1x2x128xbf16>
    %86 = vector.shape_cast %85 : vector<1x2x1x2x128xbf16> to vector<2x2x128xbf16>
    %87 = vector.shape_cast %86 : vector<2x2x128xbf16> to vector<4x128xbf16>
    %c3_121 = arith.constant 3 : index
    %c0_122 = arith.constant 0 : index
    %c0_123 = arith.constant 0 : index
    %c0_124 = arith.constant 0 : index
    %88 = vector.load %arg2[%c3_121, %c0_122, %c0_123, %c0_124] : memref<4x4x128x128xbf16, #tpu.memory_space<vmem>>, vector<1x1x128x128xbf16>
    %89 = vector.shape_cast %88 : vector<1x1x128x128xbf16> to vector<128x128xbf16>
    %cst_125 = arith.constant dense<0.000000e+00> : vector<4x128xf32>
    %90 = tpu.matmul %87, %89, %cst_125 {dimension_numbers = #tpu.dot_dimension_numbers<[1], [0], [0], [1], [0, 0, 1, 1], [], []>} : vector<4x128xbf16>, vector<128x128xbf16>, vector<4x128xf32> -> vector<4x128xf32>
    %91 = arith.addf %84, %90 : vector<4x128xf32>
    %c0_126 = arith.constant 0 : index
    %c3_127 = arith.constant 3 : index
    %c0_128 = arith.constant 0 : index
    %c1_129 = arith.constant 1 : index
    %c0_130 = arith.constant 0 : index
    %92 = vector.load %arg1[%c0_126, %c3_127, %c0_128, %c1_129, %c0_130] : memref<1x5x1x5x128xbf16, #tpu.memory_space<vmem>>, vector<1x2x1x2x128xbf16>
    %93 = vector.shape_cast %92 : vector<1x2x1x2x128xbf16> to vector<2x2x128xbf16>
    %94 = vector.shape_cast %93 : vector<2x2x128xbf16> to vector<4x128xbf16>
    %c3_131 = arith.constant 3 : index
    %c1_132 = arith.constant 1 : index
    %c0_133 = arith.constant 0 : index
    %c0_134 = arith.constant 0 : index
    %95 = vector.load %arg2[%c3_131, %c1_132, %c0_133, %c0_134] : memref<4x4x128x128xbf16, #tpu.memory_space<vmem>>, vector<1x1x128x128xbf16>
    %96 = vector.shape_cast %95 : vector<1x1x128x128xbf16> to vector<128x128xbf16>
    %cst_135 = arith.constant dense<0.000000e+00> : vector<4x128xf32>
    %97 = tpu.matmul %94, %96, %cst_135 {dimension_numbers = #tpu.dot_dimension_numbers<[1], [0], [0], [1], [0, 0, 1, 1], [], []>} : vector<4x128xbf16>, vector<128x128xbf16>, vector<4x128xf32> -> vector<4x128xf32>
    %98 = arith.addf %91, %97 : vector<4x128xf32>
    %c0_136 = arith.constant 0 : index
    %c3_137 = arith.constant 3 : index
    %c0_138 = arith.constant 0 : index
    %c2_139 = arith.constant 2 : index
    %c0_140 = arith.constant 0 : index
    %99 = vector.load %arg1[%c0_136, %c3_137, %c0_138, %c2_139, %c0_140] : memref<1x5x1x5x128xbf16, #tpu.memory_space<vmem>>, vector<1x2x1x2x128xbf16>
    %100 = vector.shape_cast %99 : vector<1x2x1x2x128xbf16> to vector<2x2x128xbf16>
    %101 = vector.shape_cast %100 : vector<2x2x128xbf16> to vector<4x128xbf16>
    %c3_141 = arith.constant 3 : index
    %c2_142 = arith.constant 2 : index
    %c0_143 = arith.constant 0 : index
    %c0_144 = arith.constant 0 : index
    %102 = vector.load %arg2[%c3_141, %c2_142, %c0_143, %c0_144] : memref<4x4x128x128xbf16, #tpu.memory_space<vmem>>, vector<1x1x128x128xbf16>
    %103 = vector.shape_cast %102 : vector<1x1x128x128xbf16> to vector<128x128xbf16>
    %cst_145 = arith.constant dense<0.000000e+00> : vector<4x128xf32>
    %104 = tpu.matmul %101, %103, %cst_145 {dimension_numbers = #tpu.dot_dimension_numbers<[1], [0], [0], [1], [0, 0, 1, 1], [], []>} : vector<4x128xbf16>, vector<128x128xbf16>, vector<4x128xf32> -> vector<4x128xf32>
    %105 = arith.addf %98, %104 : vector<4x128xf32>
    %c0_146 = arith.constant 0 : index
    %c3_147 = arith.constant 3 : index
    %c0_148 = arith.constant 0 : index
    %c3_149 = arith.constant 3 : index
    %c0_150 = arith.constant 0 : index
    %106 = vector.load %arg1[%c0_146, %c3_147, %c0_148, %c3_149, %c0_150] : memref<1x5x1x5x128xbf16, #tpu.memory_space<vmem>>, vector<1x2x1x2x128xbf16>
    %107 = vector.shape_cast %106 : vector<1x2x1x2x128xbf16> to vector<2x2x128xbf16>
    %108 = vector.shape_cast %107 : vector<2x2x128xbf16> to vector<4x128xbf16>
    %c3_151 = arith.constant 3 : index
    %c3_152 = arith.constant 3 : index
    %c0_153 = arith.constant 0 : index
    %c0_154 = arith.constant 0 : index
    %109 = vector.load %arg2[%c3_151, %c3_152, %c0_153, %c0_154] : memref<4x4x128x128xbf16, #tpu.memory_space<vmem>>, vector<1x1x128x128xbf16>
    %110 = vector.shape_cast %109 : vector<1x1x128x128xbf16> to vector<128x128xbf16>
    %cst_155 = arith.constant dense<0.000000e+00> : vector<4x128xf32>
    %111 = tpu.matmul %108, %110, %cst_155 {dimension_numbers = #tpu.dot_dimension_numbers<[1], [0], [0], [1], [0, 0, 1, 1], [], []>} : vector<4x128xbf16>, vector<128x128xbf16>, vector<4x128xf32> -> vector<4x128xf32>
    %112 = arith.addf %105, %111 : vector<4x128xf32>
    %c0_156 = arith.constant 0 : index
    %c0_157 = arith.constant 0 : index
    %113 = vector.load %arg3[%c0_156, %c0_157] : memref<1x128xf32, #tpu.memory_space<vmem>>, vector<1x128xf32>
    %114 = vector.broadcast %113 : vector<1x128xf32> to vector<4x128xf32>
    %115 = arith.addf %112, %114 : vector<4x128xf32>
    %c0_158 = arith.constant 0 : index
    %c0_159 = arith.constant 0 : index
    %c0_160 = arith.constant 0 : index
    %116 = vector.load %arg4[%c0_158, %c0_159, %c0_160] : memref<1x4x128xf32, #tpu.memory_space<vmem>>, vector<1x4x128xf32>
    %117 = vector.shape_cast %116 : vector<1x4x128xf32> to vector<4x128xf32>
    %118 = vector.shape_cast %115 : vector<4x128xf32> to vector<1x4x128xf32>
    tpu.vector_store %arg4[%c0_158, %c0_159, %c0_160], %118 {strides = array<i32>} : memref<1x4x128xf32, #tpu.memory_space<vmem>>, vector<1x4x128xf32>,
    return
  }
  func.func @transform_0(%arg0: i32) -> (i32, i32, i32, i32, i32) {
    %c0_i32 = arith.constant 0 : i32
    %c0_i32_0 = arith.constant 0 : i32
    %c0_i32_1 = arith.constant 0 : i32
    %c0_i32_2 = arith.constant 0 : i32
    %c0_i32_3 = arith.constant 0 : i32
    return %arg0, %c0_i32, %c0_i32_0, %c0_i32_1, %c0_i32_2 : i32, i32, i32, i32, i32
  }
  func.func @transform_1(%arg0: i32) -> (i32, i32, i32, i32) {
    %c0_i32 = arith.constant 0 : i32
    %c0_i32_0 = arith.constant 0 : i32
    %c0_i32_1 = arith.constant 0 : i32
    %c0_i32_2 = arith.constant 0 : i32
    %c0_i32_3 = arith.constant 0 : i32
    return %c0_i32, %c0_i32_0, %c0_i32_1, %c0_i32_2 : i32, i32, i32, i32
  }
  func.func @transform_2(%arg0: i32) -> (i32, i32) {
    %c0_i32 = arith.constant 0 : i32
    %c0_i32_0 = arith.constant 0 : i32
    %c0_i32_1 = arith.constant 0 : i32
    return %c0_i32, %c0_i32_0 : i32, i32
  }
  func.func @transform_3(%arg0: i32) -> (i32, i32, i32) {
    %c0_i32 = arith.constant 0 : i32
    %c0_i32_0 = arith.constant 0 : i32
    %c0_i32_1 = arith.constant 0 : i32
    return %arg0, %c0_i32, %c0_i32_0 : i32, i32, i32
  }
}

</mosaic_0001>

<llo_original>
// kernel: _lambda_.8
$region0: #{_lambda_.8}
  #allocation0 [shape = 'u32[]', space=smem, size = 0x4, offset = 0x4, fixed_abs, tag = 'smem constant byte address 0x4 - core index']
  #allocation1 [shape = 'u32[144,128]{1,0:T(1,128)}', space=vmem, size = 0x12000, scoped, tag = 'internal scratch']
  %s0 = inlined_call_operand.vmem [shape: bf16[2,16,1,16,48], index: 0, kind: input, shape index: {}]
  %s1 = inlined_call_operand.vmem [shape: bf16[1,1,48,16], index: 1, kind: input, shape index: {}]
  %s2 = inlined_call_operand.vmem [shape: f32[1,16], index: 2, kind: input, shape index: {}]
  %s3 = inlined_call_operand.vmem [shape: bf16[2,256,16], index: 3, kind: output, shape index: {}]
  %s4 = sld [smem:[#allocation0]]
  $region45: #{_lambda_.8} parent=0
    _
  %s6 = ssub.s32 1, %s4
  %s7 = scalar_select 0, %s6, %s4
  loop: start=0, step=1, limit=4
  $region2: #{_lambda_.8} parent=0 // loop_pre_header
    _
  $region3: #{_lambda_.8} parent=0 // loop_header
    %s9 = sphi 0, %s13
    %p10 = scmp.ge.s32.totalorder %s9, 4
    %s19 = sphi 0, %s21
    %s22 = sphi 0, %s19
    %s23 = sphi 0, %s22
    %s39 = sphi 0, %s23
    %s43 = sphi 0, %s43
    %s45 = sphi 0, %s43
    %s46 = sphi 0, %s45
    %s60 = sphi 0, %s46
    %s64 = sphi 0, %s64
    %s66 = sphi 0, %s64
    %s67 = sphi 0, %s66
    %s81 = sphi 0, %s67
    %s87 = sphi 0, %s89
    %s90 = sphi 0, %s87
    %s91 = sphi 0, %s90
    %s107 = sphi 0, %s91
  $region4: #{_lambda_.8} parent=0 // loop_header_branch
    %12 = sbr.rel (%p10) target = $region8
  $region5: #{_lambda_.8} parent=0 // loop_body
    %s14 = ssub.s32 %s9, 1
    %s15 = ssub.s32 %s9, 2
    %s16 = sadd.s32 %s9, 1
    %s17 = ssub.s32 %s9, %s16
    %p18 = scmp.eq.s32.totalorder %s17, 0
    %s20 = sadd.s32 %s19, 1
    %s21 = scalar_select %p18, %s19, %s20
    %p24 = pneg %p18
    %p25 = scmp.eq.s32.totalorder %s9, 1
    %p26 = por %p24, %p25
    %p27 = scmp.ne.s32.totalorder %s19, %s22
    %p28 = scmp.eq.s32.totalorder %s9, 0
    %p29 = por %p27, %p28
    %p30 = scmp.ne.s32.totalorder %s19, %s22
    %p31 = scmp.eq.s32.totalorder %s14, 1
    %p32 = por %p30, %p31
    %p33 = scmp.ne.s32.totalorder %s22, %s23
    %p34 = scmp.eq.s32.totalorder %s14, 0
    %p35 = por %p33, %p34
    %p36 = scmp.ne.s32.totalorder %s22, %s23
    %p37 = scmp.eq.s32.totalorder %s15, 1
    %p38 = por %p36, %p37
    %p40 = scmp.ne.s32.totalorder %s23, %s39
    %p41 = scmp.eq.s32.totalorder %s15, 0
    %p42 = por %p40, %p41
    %s44 = sadd.s32 %s43, 1
    %p47 = scmp.eq.s32.totalorder %s9, 1
    %p48 = scmp.ne.s32.totalorder %s43, %s45
    %p49 = scmp.eq.s32.totalorder %s9, 0
    %p50 = por %p48, %p49
    %p51 = scmp.ne.s32.totalorder %s43, %s45
    %p52 = scmp.eq.s32.totalorder %s14, 1
    %p53 = por %p51, %p52
    %p54 = scmp.ne.s32.totalorder %s45, %s46
    %p55 = scmp.eq.s32.totalorder %s14, 0
    %p56 = por %p54, %p55
    %p57 = scmp.ne.s32.totalorder %s45, %s46
    %p58 = scmp.eq.s32.totalorder %s15, 1
    %p59 = por %p57, %p58
    %p61 = scmp.ne.s32.totalorder %s46, %s60
    %p62 = scmp.eq.s32.totalorder %s15, 0
    %p63 = por %p61, %p62
    %s65 = sadd.s32 %s64, 1
    %p68 = scmp.eq.s32.totalorder %s9, 1
    %p69 = scmp.ne.s32.totalorder %s64, %s66
    %p70 = scmp.eq.s32.totalorder %s9, 0
    %p71 = por %p69, %p70
    %p72 = scmp.ne.s32.totalorder %s64, %s66
    %p73 = scmp.eq.s32.totalorder %s14, 1
    %p74 = por %p72, %p73
    %p75 = scmp.ne.s32.totalorder %s66, %s67
    %p76 = scmp.eq.s32.totalorder %s14, 0
    %p77 = por %p75, %p76
    %p78 = scmp.ne.s32.totalorder %s66, %s67
    %p79 = scmp.eq.s32.totalorder %s15, 1
    %p80 = por %p78, %p79
    %p82 = scmp.ne.s32.totalorder %s67, %s81
    %p83 = scmp.eq.s32.totalorder %s15, 0
    %p84 = por %p82, %p83
    %s85 = ssub.s32 %s9, %s16
    %p86 = scmp.eq.s32.totalorder %s85, 0
    %s88 = sadd.s32 %s87, 1
    %s89 = scalar_select %p86, %s87, %s88
    %p92 = pneg %p86
    %p93 = scmp.eq.s32.totalorder %s9, 1
    %p94 = por %p92, %p93
    %p95 = scmp.ne.s32.totalorder %s87, %s90
    %p96 = scmp.eq.s32.totalorder %s9, 0
    %p97 = por %p95, %p96
    %p98 = scmp.ne.s32.totalorder %s87, %s90
    %p99 = scmp.eq.s32.totalorder %s14, 1
    %p100 = por %p98, %p99
    %p101 = scmp.ne.s32.totalorder %s90, %s91
    %p102 = scmp.eq.s32.totalorder %s14, 0
    %p103 = por %p101, %p102
    %p104 = scmp.ne.s32.totalorder %s90, %s91
    %p105 = scmp.eq.s32.totalorder %s15, 1
    %p106 = por %p104, %p105
    %p108 = scmp.ne.s32.totalorder %s91, %s107
    %p109 = scmp.eq.s32.totalorder %s15, 0
    %p110 = por %p108, %p109
    %p111 = scmp.le.s32.totalorder 1, %s9
    %p112 = scmp.lt.s32.totalorder %s9, 3
    %p113 = pnand %p111, %p112
    %p114 = pneg %p113
    // Predicated region
    $region9: #{_lambda_.8} parent=5 // pred_check
      _
    $region10: #{_lambda_.8} parent=5 // pred_check_branch
      %116 = sbr.rel (%p113) target = $region12
    $region11: #{_lambda_.8} parent=5 // pred_region
      %s117 = ssub.s32 %s9, 1
      // Predicated region
      $region13: #{_lambda_.8} parent=11 // pred_check
        %p118 = pneg %p56
      $region14: #{_lambda_.8} parent=11 // pred_check_branch
        %120 = sbr.rel (%p118) target = $region16
      $region15: #{_lambda_.8} parent=11 // pred_region
        _
      $region16: #{_lambda_.8} parent=11 // pred_fallthru
        _
      // Predicated region
      $region17: #{_lambda_.8} parent=11 // pred_check
        %p121 = pneg %p77
      $region18: #{_lambda_.8} parent=11 // pred_check_branch
        %123 = sbr.rel (%p121) target = $region20
      $region19: #{_lambda_.8} parent=11 // pred_region
        _
      $region20: #{_lambda_.8} parent=11 // pred_fallthru
        _
    $region12: #{_lambda_.8} parent=5 // pred_fallthru
      _
    %p124 = scmp.lt.s32.totalorder %s9, 2
    // Predicated region
    $region21: #{_lambda_.8} parent=5 // pred_check
      %p125 = pneg %p124
    $region22: #{_lambda_.8} parent=5 // pred_check_branch
      %127 = sbr.rel (%p125) target = $region24
    $region23: #{_lambda_.8} parent=5 // pred_region
      // Predicated region
      $region25: #{_lambda_.8} parent=23 // pred_check
        %p128 = pneg %p29
      $region26: #{_lambda_.8} parent=23 // pred_check_branch
        %130 = sbr.rel (%p128) target = $region28
      $region27: #{_lambda_.8} parent=23 // pred_region
        %p131 = scmp.lt.s32.totalorder %s9, 1
        %s132 = scalar_select %p131, %s9, 1
        %s133 = smul.addr %s132, 32
        %s134 = smul.addr %s133, 4
        %s135 = scalar_lea.vmem %s0, %s134
      $region28: #{_lambda_.8} parent=23 // pred_fallthru
        _
    $region24: #{_lambda_.8} parent=5 // pred_fallthru
      _
    %p136 = scmp.le.s32.totalorder 1, %s9
    %p137 = scmp.lt.s32.totalorder %s9, 3
    %p138 = pnand %p136, %p137
    %p139 = pneg %p138
    // Predicated region
    $region29: #{_lambda_.8} parent=5 // pred_check
      _
    $region30: #{_lambda_.8} parent=5 // pred_check_branch
      %141 = sbr.rel (%p138) target = $region32
    $region31: #{_lambda_.8} parent=5 // pred_region
      %s142 = ssub.s32 %s9, 1
      %p143 = scmp.lt.s32.totalorder %s14, 1
      %s144 = scalar_select %p143, %s14, 1
      %s145 = smul.addr %s144, 32
      %s146 = smul.addr %s145, 4
      %s147 = scalar_lea.vmem %s0, %s146
      %p148 = pneg %p35
      %p149 = pneg %p32
      %p150 = pneg %p56
      %p151 = pneg %p53
      %p152 = pneg %p77
      %p153 = pneg %p74
      %p154 = pneg %p103
      %p155 = pneg %p100
      %p156 = scmp.lt.s32.totalorder %s14, 1
      %s157 = scalar_select %p156, %s14, 1
      %s158 = smul.addr %s157, 32
      %s159 = smul.addr %s158, 4
      %s160 = scalar_lea.vmem %s3, %s159
      %p161 = scmp.lt.s32.totalorder %s14, 1
      %s162 = scalar_select %p161, %s14, 1
      %s163 = smul.addr %s162, 32
      %s164 = smul.addr %s163, 4
      %s165 = scalar_lea.vmem %s0, %s164
      %p166 = scmp.lt.s32.totalorder %s14, 1
      %s167 = scalar_select %p166, %s14, 1
      %s168 = smul.addr %s167, 32
      %s169 = smul.addr %s168, 4
      %s170 = scalar_lea.vmem %s3, %s169
      %v172 = vld [vmem:[%s165] sm:$0xf]
      %v173 = vld [vmem:[%s165 + $0x4] sm:$0xf]
      %v174 = vld [vmem:[%s165 + $0x8] sm:$0xf]
      %v175 = vld [vmem:[%s165 + $0xc] sm:$0xf]
      %v176 = vld [vmem:[%s165 + $0x10] sm:$0xf]
      %v177 = vld [vmem:[%s165 + $0x14] sm:$0xf]
      %v178 = vld [vmem:[%s165 + $0x18] sm:$0xf]
      %v179 = vld [vmem:[%s165 + $0x1c] sm:$0xf]
      %v180 = vld [vmem:[%s165 + $0x20] sm:$0xf]
      %v181 = vld [vmem:[%s165 + $0x24] sm:$0xf]
      %v182 = vld [vmem:[%s165 + $0x28] sm:$0xf]
      %v183 = vld [vmem:[%s165 + $0x2c] sm:$0xf]
      %v184 = vld [vmem:[%s165 + $0x30] sm:$0xf]
      %v185 = vld [vmem:[%s165 + $0x34] sm:$0xf]
      %v186 = vld [vmem:[%s165 + $0x38] sm:$0xf]
      %v187 = vld [vmem:[%s165 + $0x3c] sm:$0xf]
      %v188 = vld [vmem:[%s165 + $0x40] sm:$0xf]
      %v189 = vld [vmem:[%s165 + $0x44] sm:$0xf]
      %v190 = vld [vmem:[%s165 + $0x48] sm:$0xf]
      %v191 = vld [vmem:[%s165 + $0x4c] sm:$0xf]
      %v192 = vld [vmem:[%s165 + $0x50] sm:$0xf]
      %v193 = vld [vmem:[%s165 + $0x54] sm:$0xf]
      %v194 = vld [vmem:[%s165 + $0x58] sm:$0xf]
      %v195 = vld [vmem:[%s165 + $0x5c] sm:$0xf]
      %v196 = vld [vmem:[%s165 + $0x60] sm:$0xf]
      %v197 = vld [vmem:[%s165 + $0x64] sm:$0xf]
      %v198 = vld [vmem:[%s165 + $0x68] sm:$0xf]
      %v199 = vld [vmem:[%s165 + $0x6c] sm:$0xf]
      %v200 = vld [vmem:[%s165 + $0x70] sm:$0xf]
      %v201 = vld [vmem:[%s165 + $0x74] sm:$0xf]
      %v202 = vld [vmem:[%s165 + $0x78] sm:$0xf]
      %v203 = vld [vmem:[%s165 + $0x7c] sm:$0xf]
      %v204 = vld [vmem:[%s1] sm:$0xf]
      %v205 = vld [vmem:[%s1 + $0x4] sm:$0xf]
      %v206 = vld [vmem:[%s1 + $0x8] sm:$0xf]
      %v207 = vld [vmem:[%s1 + $0xc] sm:$0xf]
      %v208 = vld [vmem:[%s1 + $0x10] sm:$0xf]
      %v209 = vld [vmem:[%s1 + $0x14] sm:$0xf]
      %v210 = vld [vmem:[%s2] sm:$0x1]
      %v212 = vlaneseq
      %v213 = vshrl.u32 %v212, 7
      %v214 = vsub.s32 0, %v213
      %v215 = vrot.slane %v210, %v214
      %v249 = vunpack.c.l.b16 %v172
      %v250 = vunpack.c.l.b16 %v173
      %v251 = vunpack.c.l.b16 %v174
      %v252 = vunpack.c.l.b16 %v175
      %v253 = vunpack.c.l.b16 %v176
      %v254 = vunpack.c.l.b16 %v177
      %v255 = vunpack.c.l.b16 %v178
      %v256 = vunpack.c.l.b16 %v179
      %v257 = vunpack.c.l.b16 %v180
      %v258 = vunpack.c.l.b16 %v181
      %v259 = vunpack.c.l.b16 %v182
      %v260 = vunpack.c.l.b16 %v183
      %v261 = vunpack.c.l.b16 %v184
      %v262 = vunpack.c.l.b16 %v185
      %v263 = vunpack.c.l.b16 %v186
      %v264 = vunpack.c.l.b16 %v187
      %v265 = vunpack.c.l.b16 %v188
      %v266 = vunpack.c.l.b16 %v189
      %v267 = vunpack.c.l.b16 %v190
      %v268 = vunpack.c.l.b16 %v191
      %v269 = vunpack.c.l.b16 %v192
      %v270 = vunpack.c.l.b16 %v193
      %v271 = vunpack.c.l.b16 %v194
      %v272 = vunpack.c.l.b16 %v195
      %v273 = vunpack.c.l.b16 %v196
      %v274 = vunpack.c.l.b16 %v197
      %v275 = vunpack.c.l.b16 %v198
      %v276 = vunpack.c.l.b16 %v199
      %v277 = vunpack.c.l.b16 %v200
      %v278 = vunpack.c.l.b16 %v201
      %v279 = vunpack.c.l.b16 %v202
      %v280 = vunpack.c.l.b16 %v203
      %v281 = vpack.c.b16 %v250, %v249
      %v282 = vpack.c.b16 %v252, %v251
      %v283 = vpack.c.b16 %v254, %v253
      %v284 = vpack.c.b16 %v256, %v255
      %v285 = vpack.c.b16 %v258, %v257
      %v286 = vpack.c.b16 %v260, %v259
      %v287 = vpack.c.b16 %v262, %v261
      %v288 = vpack.c.b16 %v264, %v263
      %v289 = vpack.c.b16 %v266, %v265
      %v290 = vpack.c.b16 %v268, %v267
      %v291 = vpack.c.b16 %v270, %v269
      %v292 = vpack.c.b16 %v272, %v271
      %v293 = vpack.c.b16 %v274, %v273
      %v294 = vpack.c.b16 %v276, %v275
      %v295 = vpack.c.b16 %v278, %v277
      %v296 = vpack.c.b16 %v280, %v279
      %v303 = vunpack.c.l.b16 %v204
      %v304 = vunpack.c.l.b16 %v205
      %v305 = vunpack.c.l.b16 %v206
      %v306 = vunpack.c.l.b16 %v207
      %v307 = vunpack.c.l.b16 %v208
      %v308 = vunpack.c.l.b16 %v209
      %v309 = vpack.c.b16 %v304, %v303
      %v310 = vpack.c.b16 %v306, %v305
      %v311 = vpack.c.b16 %v308, %v307
      %vm315 = vcmask 392192
      %v317 = vsel %vm315, %v281, 0
      %v320 = vsel %vm315, %v282, 0
      %v323 = vsel %vm315, %v283, 0
      %v326 = vsel %vm315, %v284, 0
      %v329 = vsel %vm315, %v285, 0
      %v332 = vsel %vm315, %v286, 0
      %v335 = vsel %vm315, %v287, 0
      %v338 = vsel %vm315, %v288, 0
      %v341 = vsel %vm315, %v289, 0
      %v344 = vsel %vm315, %v290, 0
      %v347 = vsel %vm315, %v291, 0
      %v350 = vsel %vm315, %v292, 0
      %v353 = vsel %vm315, %v293, 0
      %v356 = vsel %vm315, %v294, 0
      %v359 = vsel %vm315, %v295, 0
      %v362 = vsel %vm315, %v296, 0
      %364 = vmatprep.subr.bf16.mxu0 0
      %365 = vmatpush1.bf16.msra.mxu0 %v309
      %366 = vmatprep.subr.bf16.mxu0 0
      %367 = vmatpush1.bf16.msra.mxu0 %v310
      %368 = vmatprep.subr.bf16.mxu0 0
      %369 = vmatpush1.bf16.msra.mxu0 %v311
      %370 = vmatprep.subr.bf16.mxu0 0
      %371 = vmatpush1.bf16.msra.mxu0 0
      %372 = vmatprep.subr.bf16.mxu0 0
      %373 = vmatpush1.bf16.msra.mxu0 0
      %374 = vmatprep.subr.bf16.mxu0 0
      %375 = vmatpush1.bf16.msra.mxu0 0
      %376 = vmatprep.subr.bf16.mxu0 0
      %377 = vmatpush1.bf16.msra.mxu0 0
      %378 = vmatprep.subr.bf16.mxu0 0
      %379 = vmatpush1.bf16.msra.mxu0 0
      %380 = vmatprep.subr.bf16.mxu0 0
      %381 = vmatpush1.bf16.msra.mxu0 0
      %382 = vmatprep.subr.bf16.mxu0 0
      %383 = vmatpush1.bf16.msra.mxu0 0
      %384 = vmatprep.subr.bf16.mxu0 0
      %385 = vmatpush1.bf16.msra.mxu0 0
      %386 = vmatprep.subr.bf16.mxu0 0
      %387 = vmatpush1.bf16.msra.mxu0 0
      %388 = vmatprep.subr.bf16.mxu0 0
      %389 = vmatpush1.bf16.msra.mxu0 0
      %390 = vmatprep.subr.bf16.mxu0 0
      %391 = vmatpush1.bf16.msra.mxu0 0
      %392 = vmatprep.subr.bf16.mxu0 0
      %393 = vmatpush1.bf16.msra.mxu0 0
      %394 = vmatprep.subr.bf16.mxu0 0
      %395 = vmatpush1.bf16.msra.mxu0 0
      %396 = vmatprep.mubr.bf16.mxu0 0
      %397 = vmatmul.mubr.bf16.gmra.mrb[0].mxu0 %v317
      %v398 = vpop.f32.mrb[0].mxu0
      %v399 = vadd.f32 %v215, %v398
      %v400 = vpop.f32.mrb[0].mxu0
      %v401 = vpop.f32.mrb[0].mxu0
      %v402 = vadd.f32 %v215, %v401
      %v403 = vpop.f32.mrb[0].mxu0
      %404 = vmatprep.mubr.bf16.mxu0 0
      %405 = vmatmul.mubr.bf16.gmra.mrb[0].mxu0 %v320
      %v406 = vpop.f32.mrb[0].mxu0
      %v407 = vadd.f32 %v215, %v406
      %v408 = vpop.f32.mrb[0].mxu0
      %v409 = vpop.f32.mrb[0].mxu0
      %v410 = vadd.f32 %v215, %v409
      %v411 = vpop.f32.mrb[0].mxu0
      %412 = vmatprep.mubr.bf16.mxu0 0
      %413 = vmatmul.mubr.bf16.gmra.mrb[0].mxu0 %v323
      %v414 = vpop.f32.mrb[0].mxu0
      %v415 = vadd.f32 %v215, %v414
      %v416 = vpop.f32.mrb[0].mxu0
      %v417 = vpop.f32.mrb[0].mxu0
      %v418 = vadd.f32 %v215, %v417
      %v419 = vpop.f32.mrb[0].mxu0
      %420 = vmatprep.mubr.bf16.mxu0 0
      %421 = vmatmul.mubr.bf16.gmra.mrb[0].mxu0 %v326
      %v422 = vpop.f32.mrb[0].mxu0
      %v423 = vadd.f32 %v215, %v422
      %v424 = vpop.f32.mrb[0].mxu0
      %v425 = vpop.f32.mrb[0].mxu0
      %v426 = vadd.f32 %v215, %v425
      %v427 = vpop.f32.mrb[0].mxu0
      %428 = vmatprep.mubr.bf16.mxu0 0
      %429 = vmatmul.mubr.bf16.gmra.mrb[0].mxu0 %v329
      %v430 = vpop.f32.mrb[0].mxu0
      %v431 = vadd.f32 %v215, %v430
      %v432 = vpop.f32.mrb[0].mxu0
      %v433 = vpop.f32.mrb[0].mxu0
      %v434 = vadd.f32 %v215, %v433
      %v435 = vpop.f32.mrb[0].mxu0
      %436 = vmatprep.mubr.bf16.mxu0 0
      %437 = vmatmul.mubr.bf16.gmra.mrb[0].mxu0 %v332
      %v438 = vpop.f32.mrb[0].mxu0
      %v439 = vadd.f32 %v215, %v438
      %v440 = vpop.f32.mrb[0].mxu0
      %v441 = vpop.f32.mrb[0].mxu0
      %v442 = vadd.f32 %v215, %v441
      %v443 = vpop.f32.mrb[0].mxu0
      %444 = vmatprep.mubr.bf16.mxu0 0
      %445 = vmatmul.mubr.bf16.gmra.mrb[0].mxu0 %v335
      %v446 = vpop.f32.mrb[0].mxu0
      %v447 = vadd.f32 %v215, %v446
      %v448 = vpop.f32.mrb[0].mxu0
      %v449 = vpop.f32.mrb[0].mxu0
      %v450 = vadd.f32 %v215, %v449
      %v451 = vpop.f32.mrb[0].mxu0
      %452 = vmatprep.mubr.bf16.mxu0 0
      %453 = vmatmul.mubr.bf16.gmra.mrb[0].mxu0 %v338
      %v454 = vpop.f32.mrb[0].mxu0
      %v455 = vadd.f32 %v215, %v454
      %v456 = vpop.f32.mrb[0].mxu0
      %v457 = vpop.f32.mrb[0].mxu0
      %v458 = vadd.f32 %v215, %v457
      %v459 = vpop.f32.mrb[0].mxu0
      %460 = vmatprep.mubr.bf16.mxu0 0
      %461 = vmatmul.mubr.bf16.gmra.mrb[0].mxu0 %v341
      %v462 = vpop.f32.mrb[0].mxu0
      %v463 = vadd.f32 %v215, %v462
      %v464 = vpop.f32.mrb[0].mxu0
      %v465 = vpop.f32.mrb[0].mxu0
      %v466 = vadd.f32 %v215, %v465
      %v467 = vpop.f32.mrb[0].mxu0
      %468 = vmatprep.mubr.bf16.mxu0 0
      %469 = vmatmul.mubr.bf16.gmra.mrb[0].mxu0 %v344
      %v470 = vpop.f32.mrb[0].mxu0
      %v471 = vadd.f32 %v215, %v470
      %v472 = vpop.f32.mrb[0].mxu0
      %v473 = vpop.f32.mrb[0].mxu0
      %v474 = vadd.f32 %v215, %v473
      %v475 = vpop.f32.mrb[0].mxu0
      %476 = vmatprep.mubr.bf16.mxu0 0
      %477 = vmatmul.mubr.bf16.gmra.mrb[0].mxu0 %v347
      %v478 = vpop.f32.mrb[0].mxu0
      %v479 = vadd.f32 %v215, %v478
      %v480 = vpop.f32.mrb[0].mxu0
      %v481 = vpop.f32.mrb[0].mxu0
      %v482 = vadd.f32 %v215, %v481
      %v483 = vpop.f32.mrb[0].mxu0
      %484 = vmatprep.mubr.bf16.mxu0 0
      %485 = vmatmul.mubr.bf16.gmra.mrb[0].mxu0 %v350
      %v486 = vpop.f32.mrb[0].mxu0
      %v487 = vadd.f32 %v215, %v486
      %v488 = vpop.f32.mrb[0].mxu0
      %v489 = vpop.f32.mrb[0].mxu0
      %v490 = vadd.f32 %v215, %v489
      %v491 = vpop.f32.mrb[0].mxu0
      %492 = vmatprep.mubr.bf16.mxu0 0
      %493 = vmatmul.mubr.bf16.gmra.mrb[0].mxu0 %v353
      %v494 = vpop.f32.mrb[0].mxu0
      %v495 = vadd.f32 %v215, %v494
      %v496 = vpop.f32.mrb[0].mxu0
      %v497 = vpop.f32.mrb[0].mxu0
      %v498 = vadd.f32 %v215, %v497
      %v499 = vpop.f32.mrb[0].mxu0
      %500 = vmatprep.mubr.bf16.mxu0 0
      %501 = vmatmul.mubr.bf16.gmra.mrb[0].mxu0 %v356
      %v502 = vpop.f32.mrb[0].mxu0
      %v503 = vadd.f32 %v215, %v502
      %v504 = vpop.f32.mrb[0].mxu0
      %v505 = vpop.f32.mrb[0].mxu0
      %v506 = vadd.f32 %v215, %v505
      %v507 = vpop.f32.mrb[0].mxu0
      %508 = vmatprep.mubr.bf16.mxu0 0
      %509 = vmatmul.mubr.bf16.gmra.mrb[0].mxu0 %v359
      %v510 = vpop.f32.mrb[0].mxu0
      %v511 = vadd.f32 %v215, %v510
      %v512 = vpop.f32.mrb[0].mxu0
      %v513 = vpop.f32.mrb[0].mxu0
      %v514 = vadd.f32 %v215, %v513
      %v515 = vpop.f32.mrb[0].mxu0
      %516 = vmatprep.mubr.bf16.mxu0 0
      %517 = vmatmul.mubr.bf16.gmra.mrb[0].mxu0 %v362
      %v518 = vpop.f32.mrb[0].mxu0
      %v519 = vadd.f32 %v215, %v518
      %v520 = vpop.f32.mrb[0].mxu0
      %v521 = vpop.f32.mrb[0].mxu0
      %v522 = vadd.f32 %v215, %v521
      %v523 = vpop.f32.mrb[0].mxu0
      %524 = vdwg.mxu0
      %vm525 = vcmp.ge.f32.partialorder %v399, 0.0
      %vm526 = vcmp.ge.f32.partialorder %v402, 0.0
      %vm527 = vcmp.ge.f32.partialorder %v407, 0.0
      %vm528 = vcmp.ge.f32.partialorder %v410, 0.0
      %vm529 = vcmp.ge.f32.partialorder %v415, 0.0
      %vm530 = vcmp.ge.f32.partialorder %v418, 0.0
      %vm531 = vcmp.ge.f32.partialorder %v423, 0.0
      %vm532 = vcmp.ge.f32.partialorder %v426, 0.0
      %vm533 = vcmp.ge.f32.partialorder %v431, 0.0
      %vm534 = vcmp.ge.f32.partialorder %v434, 0.0
      %vm535 = vcmp.ge.f32.partialorder %v439, 0.0
      %vm536 = vcmp.ge.f32.partialorder %v442, 0.0
      %vm537 = vcmp.ge.f32.partialorder %v447, 0.0
      %vm538 = vcmp.ge.f32.partialorder %v450, 0.0
      %vm539 = vcmp.ge.f32.partialorder %v455, 0.0
      %vm540 = vcmp.ge.f32.partialorder %v458, 0.0
      %vm541 = vcmp.ge.f32.partialorder %v463, 0.0
      %vm542 = vcmp.ge.f32.partialorder %v466, 0.0
      %vm543 = vcmp.ge.f32.partialorder %v471, 0.0
      %vm544 = vcmp.ge.f32.partialorder %v474, 0.0
      %vm545 = vcmp.ge.f32.partialorder %v479, 0.0
      %vm546 = vcmp.ge.f32.partialorder %v482, 0.0
      %vm547 = vcmp.ge.f32.partialorder %v487, 0.0
      %vm548 = vcmp.ge.f32.partialorder %v490, 0.0
      %vm549 = vcmp.ge.f32.partialorder %v495, 0.0
      %vm550 = vcmp.ge.f32.partialorder %v498, 0.0
      %vm551 = vcmp.ge.f32.partialorder %v503, 0.0
      %vm552 = vcmp.ge.f32.partialorder %v506, 0.0
      %vm553 = vcmp.ge.f32.partialorder %v511, 0.0
      %vm554 = vcmp.ge.f32.partialorder %v514, 0.0
      %vm555 = vcmp.ge.f32.partialorder %v519, 0.0
      %vm556 = vcmp.ge.f32.partialorder %v522, 0.0
      %v557 = vmul.f32 %v399, 0.2
      %v558 = vmul.f32 %v402, 0.2
      %v559 = vmul.f32 %v407, 0.2
      %v560 = vmul.f32 %v410, 0.2
      %v561 = vmul.f32 %v415, 0.2
      %v562 = vmul.f32 %v418, 0.2
      %v563 = vmul.f32 %v423, 0.2
      %v564 = vmul.f32 %v426, 0.2
      %v565 = vmul.f32 %v431, 0.2
      %v566 = vmul.f32 %v434, 0.2
      %v567 = vmul.f32 %v439, 0.2
      %v568 = vmul.f32 %v442, 0.2
      %v569 = vmul.f32 %v447, 0.2
      %v570 = vmul.f32 %v450, 0.2
      %v571 = vmul.f32 %v455, 0.2
      %v572 = vmul.f32 %v458, 0.2
      %v573 = vmul.f32 %v463, 0.2
      %v574 = vmul.f32 %v466, 0.2
      %v575 = vmul.f32 %v471, 0.2
      %v576 = vmul.f32 %v474, 0.2
      %v577 = vmul.f32 %v479, 0.2
      %v578 = vmul.f32 %v482, 0.2
      %v579 = vmul.f32 %v487, 0.2
      %v580 = vmul.f32 %v490, 0.2
      %v581 = vmul.f32 %v495, 0.2
      %v582 = vmul.f32 %v498, 0.2
      %v583 = vmul.f32 %v503, 0.2
      %v584 = vmul.f32 %v506, 0.2
      %v585 = vmul.f32 %v511, 0.2
      %v586 = vmul.f32 %v514, 0.2
      %v587 = vmul.f32 %v519, 0.2
      %v588 = vmul.f32 %v522, 0.2
      %v589 = vsel %vm525, %v399, %v557
      %v590 = vsel %vm526, %v402, %v558
      %v591 = vsel %vm527, %v407, %v559
      %v592 = vsel %vm528, %v410, %v560
      %v593 = vsel %vm529, %v415, %v561
      %v594 = vsel %vm530, %v418, %v562
      %v595 = vsel %vm531, %v423, %v563
      %v596 = vsel %vm532, %v426, %v564
      %v597 = vsel %vm533, %v431, %v565
      %v598 = vsel %vm534, %v434, %v566
      %v599 = vsel %vm535, %v439, %v567
      %v600 = vsel %vm536, %v442, %v568
      %v601 = vsel %vm537, %v447, %v569
      %v602 = vsel %vm538, %v450, %v570
      %v603 = vsel %vm539, %v455, %v571
      %v604 = vsel %vm540, %v458, %v572
      %v605 = vsel %vm541, %v463, %v573
      %v606 = vsel %vm542, %v466, %v574
      %v607 = vsel %vm543, %v471, %v575
      %v608 = vsel %vm544, %v474, %v576
      %v609 = vsel %vm545, %v479, %v577
      %v610 = vsel %vm546, %v482, %v578
      %v611 = vsel %vm547, %v487, %v579
      %v612 = vsel %vm548, %v490, %v580
      %v613 = vsel %vm549, %v495, %v581
      %v614 = vsel %vm550, %v498, %v582
      %v615 = vsel %vm551, %v503, %v583
      %v616 = vsel %vm552, %v506, %v584
      %v617 = vsel %vm553, %v511, %v585
      %v618 = vsel %vm554, %v514, %v586
      %v619 = vsel %vm555, %v519, %v587
      %v620 = vsel %vm556, %v522, %v588
      %v621 = vpack.c.bf16 %v590, %v589
      %v622 = vpack.c.bf16 %v592, %v591
      %v623 = vpack.c.bf16 %v594, %v593
      %v624 = vpack.c.bf16 %v596, %v595
      %v625 = vpack.c.bf16 %v598, %v597
      %v626 = vpack.c.bf16 %v600, %v599
      %v627 = vpack.c.bf16 %v602, %v601
      %v628 = vpack.c.bf16 %v604, %v603
      %v629 = vpack.c.bf16 %v606, %v605
      %v630 = vpack.c.bf16 %v608, %v607
      %v631 = vpack.c.bf16 %v610, %v609
      %v632 = vpack.c.bf16 %v612, %v611
      %v633 = vpack.c.bf16 %v614, %v613
      %v634 = vpack.c.bf16 %v616, %v615
      %v635 = vpack.c.bf16 %v618, %v617
      %v636 = vpack.c.bf16 %v620, %v619
      %v653 = vunpack.c.l.b16 %v621
      %v654 = vunpack.c.h.b16 %v621
      %v655 = vunpack.c.l.b16 %v622
      %v656 = vunpack.c.h.b16 %v622
      %v657 = vunpack.c.l.b16 %v623
      %v658 = vunpack.c.h.b16 %v623
      %v659 = vunpack.c.l.b16 %v624
      %v660 = vunpack.c.h.b16 %v624
      %v661 = vunpack.c.l.b16 %v625
      %v662 = vunpack.c.h.b16 %v625
      %v663 = vunpack.c.l.b16 %v626
      %v664 = vunpack.c.h.b16 %v626
      %v665 = vunpack.c.l.b16 %v627
      %v666 = vunpack.c.h.b16 %v627
      %v667 = vunpack.c.l.b16 %v628
      %v668 = vunpack.c.h.b16 %v628
      %v669 = vunpack.c.l.b16 %v629
      %v670 = vunpack.c.h.b16 %v629
      %v671 = vunpack.c.l.b16 %v630
      %v672 = vunpack.c.h.b16 %v630
      %v673 = vunpack.c.l.b16 %v631
      %v674 = vunpack.c.h.b16 %v631
      %v675 = vunpack.c.l.b16 %v632
      %v676 = vunpack.c.h.b16 %v632
      %v677 = vunpack.c.l.b16 %v633
      %v678 = vunpack.c.h.b16 %v633
      %v679 = vunpack.c.l.b16 %v634
      %v680 = vunpack.c.h.b16 %v634
      %v681 = vunpack.c.l.b16 %v635
      %v682 = vunpack.c.h.b16 %v635
      %v683 = vunpack.c.l.b16 %v636
      %v684 = vunpack.c.h.b16 %v636
      %v685 = vpack.c.b16 %v653, %v653
      %v686 = vpack.c.b16 %v654, %v654
      %v687 = vpack.c.b16 %v655, %v655
      %v688 = vpack.c.b16 %v656, %v656
      %v689 = vpack.c.b16 %v657, %v657
      %v690 = vpack.c.b16 %v658, %v658
      %v691 = vpack.c.b16 %v659, %v659
      %v692 = vpack.c.b16 %v660, %v660
      %v693 = vpack.c.b16 %v661, %v661
      %v694 = vpack.c.b16 %v662, %v662
      %v695 = vpack.c.b16 %v663, %v663
      %v696 = vpack.c.b16 %v664, %v664
      %v697 = vpack.c.b16 %v665, %v665
      %v698 = vpack.c.b16 %v666, %v666
      %v699 = vpack.c.b16 %v667, %v667
      %v700 = vpack.c.b16 %v668, %v668
      %v701 = vpack.c.b16 %v669, %v669
      %v702 = vpack.c.b16 %v670, %v670
      %v703 = vpack.c.b16 %v671, %v671
      %v704 = vpack.c.b16 %v672, %v672
      %v705 = vpack.c.b16 %v673, %v673
      %v706 = vpack.c.b16 %v674, %v674
      %v707 = vpack.c.b16 %v675, %v675
      %v708 = vpack.c.b16 %v676, %v676
      %v709 = vpack.c.b16 %v677, %v677
      %v710 = vpack.c.b16 %v678, %v678
      %v711 = vpack.c.b16 %v679, %v679
      %v712 = vpack.c.b16 %v680, %v680
      %v713 = vpack.c.b16 %v681, %v681
      %v714 = vpack.c.b16 %v682, %v682
      %v715 = vpack.c.b16 %v683, %v683
      %v716 = vpack.c.b16 %v684, %v684
      %vm749 = vcmask 125952
      %750 = vst.msk [vmem:[%s170] sm:$0xf] %vm749, %v685
      %751 = vst.msk [vmem:[%s170 + $0x4] sm:$0xf] %vm749, %v686
      %752 = vst.msk [vmem:[%s170 + $0x8] sm:$0xf] %vm749, %v687
      %753 = vst.msk [vmem:[%s170 + $0xc] sm:$0xf] %vm749, %v688
      %754 = vst.msk [vmem:[%s170 + $0x10] sm:$0xf] %vm749, %v689
      %755 = vst.msk [vmem:[%s170 + $0x14] sm:$0xf] %vm749, %v690
      %756 = vst.msk [vmem:[%s170 + $0x18] sm:$0xf] %vm749, %v691
      %757 = vst.msk [vmem:[%s170 + $0x1c] sm:$0xf] %vm749, %v692
      %758 = vst.msk [vmem:[%s170 + $0x20] sm:$0xf] %vm749, %v693
      %759 = vst.msk [vmem:[%s170 + $0x24] sm:$0xf] %vm749, %v694
      %760 = vst.msk [vmem:[%s170 + $0x28] sm:$0xf] %vm749, %v695
      %761 = vst.msk [vmem:[%s170 + $0x2c] sm:$0xf] %vm749, %v696
      %762 = vst.msk [vmem:[%s170 + $0x30] sm:$0xf] %vm749, %v697
      %763 = vst.msk [vmem:[%s170 + $0x34] sm:$0xf] %vm749, %v698
      %764 = vst.msk [vmem:[%s170 + $0x38] sm:$0xf] %vm749, %v699
      %765 = vst.msk [vmem:[%s170 + $0x3c] sm:$0xf] %vm749, %v700
      %766 = vst.msk [vmem:[%s170 + $0x40] sm:$0xf] %vm749, %v701
      %767 = vst.msk [vmem:[%s170 + $0x44] sm:$0xf] %vm749, %v702
      %768 = vst.msk [vmem:[%s170 + $0x48] sm:$0xf] %vm749, %v703
      %769 = vst.msk [vmem:[%s170 + $0x4c] sm:$0xf] %vm749, %v704
      %770 = vst.msk [vmem:[%s170 + $0x50] sm:$0xf] %vm749, %v705
      %771 = vst.msk [vmem:[%s170 + $0x54] sm:$0xf] %vm749, %v706
      %772 = vst.msk [vmem:[%s170 + $0x58] sm:$0xf] %vm749, %v707
      %773 = vst.msk [vmem:[%s170 + $0x5c] sm:$0xf] %vm749, %v708
      %774 = vst.msk [vmem:[%s170 + $0x60] sm:$0xf] %vm749, %v709
      %775 = vst.msk [vmem:[%s170 + $0x64] sm:$0xf] %vm749, %v710
      %776 = vst.msk [vmem:[%s170 + $0x68] sm:$0xf] %vm749, %v711
      %777 = vst.msk [vmem:[%s170 + $0x6c] sm:$0xf] %vm749, %v712
      %778 = vst.msk [vmem:[%s170 + $0x70] sm:$0xf] %vm749, %v713
      %779 = vst.msk [vmem:[%s170 + $0x74] sm:$0xf] %vm749, %v714
      %780 = vst.msk [vmem:[%s170 + $0x78] sm:$0xf] %vm749, %v715
      %781 = vst.msk [vmem:[%s170 + $0x7c] sm:$0xf] %vm749, %v716
      %p782 = scmp.lt.s32.totalorder %s14, 1
      %s783 = scalar_select %p782, %s14, 1
      %s784 = smul.addr %s783, 32
      %s785 = smul.addr %s784, 4
      %s786 = scalar_lea.vmem %s3, %s785
      // Predicated region
      $region33: #{_lambda_.8} parent=31 // pred_check
        %p787 = pneg %p100
      $region34: #{_lambda_.8} parent=31 // pred_check_branch
        %789 = sbr.rel (%p787) target = $region36
      $region35: #{_lambda_.8} parent=31 // pred_region
        _
      $region36: #{_lambda_.8} parent=31 // pred_fallthru
        _
    $region32: #{_lambda_.8} parent=5 // pred_fallthru
      _
    %p790 = scmp.le.s32.totalorder 2, %s9
    // Predicated region
    $region37: #{_lambda_.8} parent=5 // pred_check
      %p791 = pneg %p790
    $region38: #{_lambda_.8} parent=5 // pred_check_branch
      %793 = sbr.rel (%p791) target = $region40
    $region39: #{_lambda_.8} parent=5 // pred_region
      %s794 = ssub.s32 %s9, 2
      // Predicated region
      $region41: #{_lambda_.8} parent=39 // pred_check
        %p795 = pneg %p106
      $region42: #{_lambda_.8} parent=39 // pred_check_branch
        %797 = sbr.rel (%p795) target = $region44
      $region43: #{_lambda_.8} parent=39 // pred_region
        %p798 = scmp.lt.s32.totalorder %s15, 1
        %s799 = scalar_select %p798, %s15, 1
        %s800 = smul.addr %s799, 32
        %s801 = smul.addr %s800, 4
        %s802 = scalar_lea.vmem %s3, %s801
      $region44: #{_lambda_.8} parent=39 // pred_fallthru
        _
    $region40: #{_lambda_.8} parent=5 // pred_fallthru
      _
  $region6: #{_lambda_.8} parent=0 // loop_footer
    %s13 = sadd.s32 1, %s9
  $region7: #{_lambda_.8} parent=0 // loop_footer_branch
    %8 = sbr.rel target = $region3
  $region8: #{_lambda_.8} parent=0 // loop_exit
    _

// kernel: _lambda_.10
$region0: #{_lambda_.10}
  #allocation0 [shape = 'u32[]', space=smem, size = 0x4, offset = 0x4, fixed_abs, tag = 'smem constant byte address 0x4 - core index']
  #allocation1 [shape = 'u32[144,128]{1,0:T(1,128)}', space=vmem, size = 0x12000, scoped, tag = 'internal scratch']
  %s0 = inlined_call_operand.vmem [shape: f32[2,64,32], index: 0, kind: input, shape index: {}]
  %s1 = inlined_call_operand.vmem [shape: f32[1,32], index: 1, kind: input, shape index: {}]
  %s2 = inlined_call_operand.vmem [shape: f32[1,32], index: 2, kind: input, shape index: {}]
  %s3 = inlined_call_operand.vmem [shape: bf16[2,64,32], index: 3, kind: output, shape index: {}]
  %s4 = sld [smem:[#allocation0]]
  $region45: #{_lambda_.10} parent=0
    _
  %s6 = ssub.s32 1, %s4
  %s7 = scalar_select 0, %s6, %s4
  loop: start=0, step=1, limit=4
  $region2: #{_lambda_.10} parent=0 // loop_pre_header
    _
  $region3: #{_lambda_.10} parent=0 // loop_header
    %s9 = sphi 0, %s13
    %p10 = scmp.ge.s32.totalorder %s9, 4
    %s19 = sphi 0, %s21
    %s22 = sphi 0, %s19
    %s23 = sphi 0, %s22
    %s39 = sphi 0, %s23
    %s43 = sphi 0, %s43
    %s45 = sphi 0, %s43
    %s46 = sphi 0, %s45
    %s60 = sphi 0, %s46
    %s64 = sphi 0, %s64
    %s66 = sphi 0, %s64
    %s67 = sphi 0, %s66
    %s81 = sphi 0, %s67
    %s87 = sphi 0, %s89
    %s90 = sphi 0, %s87
    %s91 = sphi 0, %s90
    %s107 = sphi 0, %s91
  $region4: #{_lambda_.10} parent=0 // loop_header_branch
    %12 = sbr.rel (%p10) target = $region8
  $region5: #{_lambda_.10} parent=0 // loop_body
    %s14 = ssub.s32 %s9, 1
    %s15 = ssub.s32 %s9, 2
    %s16 = sadd.s32 %s9, 1
    %s17 = ssub.s32 %s9, %s16
    %p18 = scmp.eq.s32.totalorder %s17, 0
    %s20 = sadd.s32 %s19, 1
    %s21 = scalar_select %p18, %s19, %s20
    %p24 = pneg %p18
    %p25 = scmp.eq.s32.totalorder %s9, 1
    %p26 = por %p24, %p25
    %p27 = scmp.ne.s32.totalorder %s19, %s22
    %p28 = scmp.eq.s32.totalorder %s9, 0
    %p29 = por %p27, %p28
    %p30 = scmp.ne.s32.totalorder %s19, %s22
    %p31 = scmp.eq.s32.totalorder %s14, 1
    %p32 = por %p30, %p31
    %p33 = scmp.ne.s32.totalorder %s22, %s23
    %p34 = scmp.eq.s32.totalorder %s14, 0
    %p35 = por %p33, %p34
    %p36 = scmp.ne.s32.totalorder %s22, %s23
    %p37 = scmp.eq.s32.totalorder %s15, 1
    %p38 = por %p36, %p37
    %p40 = scmp.ne.s32.totalorder %s23, %s39
    %p41 = scmp.eq.s32.totalorder %s15, 0
    %p42 = por %p40, %p41
    %s44 = sadd.s32 %s43, 1
    %p47 = scmp.eq.s32.totalorder %s9, 1
    %p48 = scmp.ne.s32.totalorder %s43, %s45
    %p49 = scmp.eq.s32.totalorder %s9, 0
    %p50 = por %p48, %p49
    %p51 = scmp.ne.s32.totalorder %s43, %s45
    %p52 = scmp.eq.s32.totalorder %s14, 1
    %p53 = por %p51, %p52
    %p54 = scmp.ne.s32.totalorder %s45, %s46
    %p55 = scmp.eq.s32.totalorder %s14, 0
    %p56 = por %p54, %p55
    %p57 = scmp.ne.s32.totalorder %s45, %s46
    %p58 = scmp.eq.s32.totalorder %s15, 1
    %p59 = por %p57, %p58
    %p61 = scmp.ne.s32.totalorder %s46, %s60
    %p62 = scmp.eq.s32.totalorder %s15, 0
    %p63 = por %p61, %p62
    %s65 = sadd.s32 %s64, 1
    %p68 = scmp.eq.s32.totalorder %s9, 1
    %p69 = scmp.ne.s32.totalorder %s64, %s66
    %p70 = scmp.eq.s32.totalorder %s9, 0
    %p71 = por %p69, %p70
    %p72 = scmp.ne.s32.totalorder %s64, %s66
    %p73 = scmp.eq.s32.totalorder %s14, 1
    %p74 = por %p72, %p73
    %p75 = scmp.ne.s32.totalorder %s66, %s67
    %p76 = scmp.eq.s32.totalorder %s14, 0
    %p77 = por %p75, %p76
    %p78 = scmp.ne.s32.totalorder %s66, %s67
    %p79 = scmp.eq.s32.totalorder %s15, 1
    %p80 = por %p78, %p79
    %p82 = scmp.ne.s32.totalorder %s67, %s81
    %p83 = scmp.eq.s32.totalorder %s15, 0
    %p84 = por %p82, %p83
    %s85 = ssub.s32 %s9, %s16
    %p86 = scmp.eq.s32.totalorder %s85, 0
    %s88 = sadd.s32 %s87, 1
    %s89 = scalar_select %p86, %s87, %s88
    %p92 = pneg %p86
    %p93 = scmp.eq.s32.totalorder %s9, 1
    %p94 = por %p92, %p93
    %p95 = scmp.ne.s32.totalorder %s87, %s90
    %p96 = scmp.eq.s32.totalorder %s9, 0
    %p97 = por %p95, %p96
    %p98 = scmp.ne.s32.totalorder %s87, %s90
    %p99 = scmp.eq.s32.totalorder %s14, 1
    %p100 = por %p98, %p99
    %p101 = scmp.ne.s32.totalorder %s90, %s91
    %p102 = scmp.eq.s32.totalorder %s14, 0
    %p103 = por %p101, %p102
    %p104 = scmp.ne.s32.totalorder %s90, %s91
    %p105 = scmp.eq.s32.totalorder %s15, 1
    %p106 = por %p104, %p105
    %p108 = scmp.ne.s32.totalorder %s91, %s107
    %p109 = scmp.eq.s32.totalorder %s15, 0
    %p110 = por %p108, %p109
    %p111 = scmp.le.s32.totalorder 1, %s9
    %p112 = scmp.lt.s32.totalorder %s9, 3
    %p113 = pnand %p111, %p112
    %p114 = pneg %p113
    // Predicated region
    $region9: #{_lambda_.10} parent=5 // pred_check
      _
    $region10: #{_lambda_.10} parent=5 // pred_check_branch
      %116 = sbr.rel (%p113) target = $region12
    $region11: #{_lambda_.10} parent=5 // pred_region
      %s117 = ssub.s32 %s9, 1
      // Predicated region
      $region13: #{_lambda_.10} parent=11 // pred_check
        %p118 = pneg %p56
      $region14: #{_lambda_.10} parent=11 // pred_check_branch
        %120 = sbr.rel (%p118) target = $region16
      $region15: #{_lambda_.10} parent=11 // pred_region
        _
      $region16: #{_lambda_.10} parent=11 // pred_fallthru
        _
      // Predicated region
      $region17: #{_lambda_.10} parent=11 // pred_check
        %p121 = pneg %p77
      $region18: #{_lambda_.10} parent=11 // pred_check_branch
        %123 = sbr.rel (%p121) target = $region20
      $region19: #{_lambda_.10} parent=11 // pred_region
        _
      $region20: #{_lambda_.10} parent=11 // pred_fallthru
        _
    $region12: #{_lambda_.10} parent=5 // pred_fallthru
      _
    %p124 = scmp.lt.s32.totalorder %s9, 2
    // Predicated region
    $region21: #{_lambda_.10} parent=5 // pred_check
      %p125 = pneg %p124
    $region22: #{_lambda_.10} parent=5 // pred_check_branch
      %127 = sbr.rel (%p125) target = $region24
    $region23: #{_lambda_.10} parent=5 // pred_region
      // Predicated region
      $region25: #{_lambda_.10} parent=23 // pred_check
        %p128 = pneg %p29
      $region26: #{_lambda_.10} parent=23 // pred_check_branch
        %130 = sbr.rel (%p128) target = $region28
      $region27: #{_lambda_.10} parent=23 // pred_region
        %p131 = scmp.lt.s32.totalorder %s9, 1
        %s132 = scalar_select %p131, %s9, 1
        %s133 = smul.addr %s132, 8
        %s134 = smul.addr %s133, 8
        %s135 = scalar_lea.vmem %s0, %s134
      $region28: #{_lambda_.10} parent=23 // pred_fallthru
        _
    $region24: #{_lambda_.10} parent=5 // pred_fallthru
      _
    %p136 = scmp.le.s32.totalorder 1, %s9
    %p137 = scmp.lt.s32.totalorder %s9, 3
    %p138 = pnand %p136, %p137
    %p139 = pneg %p138
    // Predicated region
    $region29: #{_lambda_.10} parent=5 // pred_check
      _
    $region30: #{_lambda_.10} parent=5 // pred_check_branch
      %141 = sbr.rel (%p138) target = $region32
    $region31: #{_lambda_.10} parent=5 // pred_region
      %s142 = ssub.s32 %s9, 1
      %p143 = scmp.lt.s32.totalorder %s14, 1
      %s144 = scalar_select %p143, %s14, 1
      %s145 = smul.addr %s144, 8
      %s146 = smul.addr %s145, 8
      %s147 = scalar_lea.vmem %s0, %s146
      %p148 = pneg %p35
      %p149 = pneg %p32
      %p150 = pneg %p56
      %p151 = pneg %p53
      %p152 = pneg %p77
      %p153 = pneg %p74
      %p154 = pneg %p103
      %p155 = pneg %p100
      %p156 = scmp.lt.s32.totalorder %s14, 1
      %s157 = scalar_select %p156, %s14, 1
      %s158 = smul.addr %s157, 8
      %s159 = smul.addr %s158, 4
      %s160 = scalar_lea.vmem %s3, %s159
      %p161 = scmp.lt.s32.totalorder %s14, 1
      %s162 = scalar_select %p161, %s14, 1
      %s163 = smul.addr %s162, 8
      %s164 = smul.addr %s163, 8
      %s165 = scalar_lea.vmem %s0, %s164
      %p166 = scmp.lt.s32.totalorder %s14, 1
      %s167 = scalar_select %p166, %s14, 1
      %s168 = smul.addr %s167, 8
      %s169 = smul.addr %s168, 4
      %s170 = scalar_lea.vmem %s3, %s169
      %v171 = vld [vmem:[%s165] sm:$0xff]
      %v172 = vld [vmem:[%s165 + $0x8] sm:$0xff]
      %v173 = vld [vmem:[%s165 + $0x10] sm:$0xff]
      %v174 = vld [vmem:[%s165 + $0x18] sm:$0xff]
      %v175 = vld [vmem:[%s165 + $0x20] sm:$0xff]
      %v176 = vld [vmem:[%s165 + $0x28] sm:$0xff]
      %v177 = vld [vmem:[%s165 + $0x30] sm:$0xff]
      %v178 = vld [vmem:[%s165 + $0x38] sm:$0xff]
      %v179 = vld [vmem:[%s1] sm:$0x1]
      %v181 = vlaneseq
      %v182 = vshrl.u32 %v181, 7
      %v183 = vsub.s32 0, %v182
      %v184 = vrot.slane %v179, %v183
      %v186 = vmul.f32 %v171, %v184
      %v187 = vmul.f32 %v172, %v184
      %v188 = vmul.f32 %v173, %v184
      %v189 = vmul.f32 %v174, %v184
      %v190 = vmul.f32 %v175, %v184
      %v191 = vmul.f32 %v176, %v184
      %v192 = vmul.f32 %v177, %v184
      %v193 = vmul.f32 %v178, %v184
      %v194 = vld [vmem:[%s2] sm:$0x1]
      %v196 = vlaneseq
      %v197 = vshrl.u32 %v196, 7
      %v198 = vsub.s32 0, %v197
      %v199 = vrot.slane %v194, %v198
      %v201 = vadd.f32 %v186, %v199
      %v202 = vadd.f32 %v187, %v199
      %v203 = vadd.f32 %v188, %v199
      %v204 = vadd.f32 %v189, %v199
      %v205 = vadd.f32 %v190, %v199
      %v206 = vadd.f32 %v191, %v199
      %v207 = vadd.f32 %v192, %v199
      %v208 = vadd.f32 %v193, %v199
      %vm209 = vcmp.ge.f32.partialorder %v201, 0.0
      %vm210 = vcmp.ge.f32.partialorder %v202, 0.0
      %vm211 = vcmp.ge.f32.partialorder %v203, 0.0
      %vm212 = vcmp.ge.f32.partialorder %v204, 0.0
      %vm213 = vcmp.ge.f32.partialorder %v205, 0.0
      %vm214 = vcmp.ge.f32.partialorder %v206, 0.0
      %vm215 = vcmp.ge.f32.partialorder %v207, 0.0
      %vm216 = vcmp.ge.f32.partialorder %v208, 0.0
      %v217 = vmul.f32 %v201, 0.2
      %v218 = vmul.f32 %v202, 0.2
      %v219 = vmul.f32 %v203, 0.2
      %v220 = vmul.f32 %v204, 0.2
      %v221 = vmul.f32 %v205, 0.2
      %v222 = vmul.f32 %v206, 0.2
      %v223 = vmul.f32 %v207, 0.2
      %v224 = vmul.f32 %v208, 0.2
      %v225 = vsel %vm209, %v201, %v217
      %v226 = vsel %vm210, %v202, %v218
      %v227 = vsel %vm211, %v203, %v219
      %v228 = vsel %vm212, %v204, %v220
      %v229 = vsel %vm213, %v205, %v221
      %v230 = vsel %vm214, %v206, %v222
      %v231 = vsel %vm215, %v207, %v223
      %v232 = vsel %vm216, %v208, %v224
      %v233 = vpack.c.bf16 %v226, %v225
      %v234 = vpack.c.bf16 %v228, %v227
      %v235 = vpack.c.bf16 %v230, %v229
      %v236 = vpack.c.bf16 %v232, %v231
      %v241 = vunpack.c.l.b16 %v233
      %v242 = vunpack.c.h.b16 %v233
      %v243 = vunpack.c.l.b16 %v234
      %v244 = vunpack.c.h.b16 %v234
      %v245 = vunpack.c.l.b16 %v235
      %v246 = vunpack.c.h.b16 %v235
      %v247 = vunpack.c.l.b16 %v236
      %v248 = vunpack.c.h.b16 %v236
      %v249 = vpack.c.b16 %v241, %v241
      %v250 = vpack.c.b16 %v242, %v242
      %v251 = vpack.c.b16 %v243, %v243
      %v252 = vpack.c.b16 %v244, %v244
      %v253 = vpack.c.b16 %v245, %v245
      %v254 = vpack.c.b16 %v246, %v246
      %v255 = vpack.c.b16 %v247, %v247
      %v256 = vpack.c.b16 %v248, %v248
      %vm265 = vcmask 257024
      %266 = vst.msk [vmem:[%s170] sm:$0xf] %vm265, %v249
      %267 = vst.msk [vmem:[%s170 + $0x4] sm:$0xf] %vm265, %v250
      %268 = vst.msk [vmem:[%s170 + $0x8] sm:$0xf] %vm265, %v251
      %269 = vst.msk [vmem:[%s170 + $0xc] sm:$0xf] %vm265, %v252
      %270 = vst.msk [vmem:[%s170 + $0x10] sm:$0xf] %vm265, %v253
      %271 = vst.msk [vmem:[%s170 + $0x14] sm:$0xf] %vm265, %v254
      %272 = vst.msk [vmem:[%s170 + $0x18] sm:$0xf] %vm265, %v255
      %273 = vst.msk [vmem:[%s170 + $0x1c] sm:$0xf] %vm265, %v256
      %p274 = scmp.lt.s32.totalorder %s14, 1
      %s275 = scalar_select %p274, %s14, 1
      %s276 = smul.addr %s275, 8
      %s277 = smul.addr %s276, 4
      %s278 = scalar_lea.vmem %s3, %s277
      // Predicated region
      $region33: #{_lambda_.10} parent=31 // pred_check
        %p279 = pneg %p100
      $region34: #{_lambda_.10} parent=31 // pred_check_branch
        %281 = sbr.rel (%p279) target = $region36
      $region35: #{_lambda_.10} parent=31 // pred_region
        _
      $region36: #{_lambda_.10} parent=31 // pred_fallthru
        _
    $region32: #{_lambda_.10} parent=5 // pred_fallthru
      _
    %p282 = scmp.le.s32.totalorder 2, %s9
    // Predicated region
    $region37: #{_lambda_.10} parent=5 // pred_check
      %p283 = pneg %p282
    $region38: #{_lambda_.10} parent=5 // pred_check_branch
      %285 = sbr.rel (%p283) target = $region40
    $region39: #{_lambda_.10} parent=5 // pred_region
      %s286 = ssub.s32 %s9, 2
      // Predicated region
      $region41: #{_lambda_.10} parent=39 // pred_check
        %p287 = pneg %p106
      $region42: #{_lambda_.10} parent=39 // pred_check_branch
        %289 = sbr.rel (%p287) target = $region44
      $region43: #{_lambda_.10} parent=39 // pred_region
        %p290 = scmp.lt.s32.totalorder %s15, 1
        %s291 = scalar_select %p290, %s15, 1
        %s292 = smul.addr %s291, 8
        %s293 = smul.addr %s292, 4
        %s294 = scalar_lea.vmem %s3, %s293
      $region44: #{_lambda_.10} parent=39 // pred_fallthru
        _
    $region40: #{_lambda_.10} parent=5 // pred_fallthru
      _
  $region6: #{_lambda_.10} parent=0 // loop_footer
    %s13 = sadd.s32 1, %s9
  $region7: #{_lambda_.10} parent=0 // loop_footer_branch
    %8 = sbr.rel target = $region3
  $region8: #{_lambda_.10} parent=0 // loop_exit
    _

// kernel: _lambda_.9
$region0: #{_lambda_.9}
  #allocation0 [shape = 'u32[]', space=smem, size = 0x4, offset = 0x4, fixed_abs, tag = 'smem constant byte address 0x4 - core index']
  #allocation1 [shape = 'u32[144,128]{1,0:T(1,128)}', space=vmem, size = 0x12000, scoped, tag = 'internal scratch']
  %s0 = inlined_call_operand.vmem [shape: bf16[2,9,2,9,32], index: 0, kind: input, shape index: {}]
  %s1 = inlined_call_operand.vmem [shape: bf16[4,2,32,32], index: 1, kind: input, shape index: {}]
  %s2 = inlined_call_operand.vmem [shape: f32[2,64,32], index: 2, kind: output, shape index: {0}]
  %s3 = inlined_call_operand.vmem [shape: f32[2,2,32], index: 3, kind: output, shape index: {1}]
  %4 = xla_tuple %s2, %s3
  %s5 = sld [smem:[#allocation0]]
  $region49: #{_lambda_.9} parent=0
    _
  %s7 = ssub.s32 1, %s5
  %s8 = scalar_select 0, %s7, %s5
  loop: start=0, step=1, limit=4
  $region2: #{_lambda_.9} parent=0 // loop_pre_header
    _
  $region3: #{_lambda_.9} parent=0 // loop_header
    %s10 = sphi 0, %s14
    %p11 = scmp.ge.s32.totalorder %s10, 4
    %s20 = sphi 0, %s22
    %s23 = sphi 0, %s20
    %s24 = sphi 0, %s23
    %s40 = sphi 0, %s24
    %s44 = sphi 0, %s44
    %s46 = sphi 0, %s44
    %s47 = sphi 0, %s46
    %s61 = sphi 0, %s47
    %s67 = sphi 0, %s69
    %s70 = sphi 0, %s67
    %s71 = sphi 0, %s70
    %s87 = sphi 0, %s71
    %s93 = sphi 0, %s95
    %s96 = sphi 0, %s93
    %s97 = sphi 0, %s96
    %s113 = sphi 0, %s97
  $region4: #{_lambda_.9} parent=0 // loop_header_branch
    %13 = sbr.rel (%p11) target = $region8
  $region5: #{_lambda_.9} parent=0 // loop_body
    %s15 = ssub.s32 %s10, 1
    %s16 = ssub.s32 %s10, 2
    %s17 = sadd.s32 %s10, 1
    %s18 = ssub.s32 %s10, %s17
    %p19 = scmp.eq.s32.totalorder %s18, 0
    %s21 = sadd.s32 %s20, 1
    %s22 = scalar_select %p19, %s20, %s21
    %p25 = pneg %p19
    %p26 = scmp.eq.s32.totalorder %s10, 1
    %p27 = por %p25, %p26
    %p28 = scmp.ne.s32.totalorder %s20, %s23
    %p29 = scmp.eq.s32.totalorder %s10, 0
    %p30 = por %p28, %p29
    %p31 = scmp.ne.s32.totalorder %s20, %s23
    %p32 = scmp.eq.s32.totalorder %s15, 1
    %p33 = por %p31, %p32
    %p34 = scmp.ne.s32.totalorder %s23, %s24
    %p35 = scmp.eq.s32.totalorder %s15, 0
    %p36 = por %p34, %p35
    %p37 = scmp.ne.s32.totalorder %s23, %s24
    %p38 = scmp.eq.s32.totalorder %s16, 1
    %p39 = por %p37, %p38
    %p41 = scmp.ne.s32.totalorder %s24, %s40
    %p42 = scmp.eq.s32.totalorder %s16, 0
    %p43 = por %p41, %p42
    %s45 = sadd.s32 %s44, 1
    %p48 = scmp.eq.s32.totalorder %s10, 1
    %p49 = scmp.ne.s32.totalorder %s44, %s46
    %p50 = scmp.eq.s32.totalorder %s10, 0
    %p51 = por %p49, %p50
    %p52 = scmp.ne.s32.totalorder %s44, %s46
    %p53 = scmp.eq.s32.totalorder %s15, 1
    %p54 = por %p52, %p53
    %p55 = scmp.ne.s32.totalorder %s46, %s47
    %p56 = scmp.eq.s32.totalorder %s15, 0
    %p57 = por %p55, %p56
    %p58 = scmp.ne.s32.totalorder %s46, %s47
    %p59 = scmp.eq.s32.totalorder %s16, 1
    %p60 = por %p58, %p59
    %p62 = scmp.ne.s32.totalorder %s47, %s61
    %p63 = scmp.eq.s32.totalorder %s16, 0
    %p64 = por %p62, %p63
    %s65 = ssub.s32 %s10, %s17
    %p66 = scmp.eq.s32.totalorder %s65, 0
    %s68 = sadd.s32 %s67, 1
    %s69 = scalar_select %p66, %s67, %s68
    %p72 = pneg %p66
    %p73 = scmp.eq.s32.totalorder %s10, 1
    %p74 = por %p72, %p73
    %p75 = scmp.ne.s32.totalorder %s67, %s70
    %p76 = scmp.eq.s32.totalorder %s10, 0
    %p77 = por %p75, %p76
    %p78 = scmp.ne.s32.totalorder %s67, %s70
    %p79 = scmp.eq.s32.totalorder %s15, 1
    %p80 = por %p78, %p79
    %p81 = scmp.ne.s32.totalorder %s70, %s71
    %p82 = scmp.eq.s32.totalorder %s15, 0
    %p83 = por %p81, %p82
    %p84 = scmp.ne.s32.totalorder %s70, %s71
    %p85 = scmp.eq.s32.totalorder %s16, 1
    %p86 = por %p84, %p85
    %p88 = scmp.ne.s32.totalorder %s71, %s87
    %p89 = scmp.eq.s32.totalorder %s16, 0
    %p90 = por %p88, %p89
    %s91 = ssub.s32 %s10, %s17
    %p92 = scmp.eq.s32.totalorder %s91, 0
    %s94 = sadd.s32 %s93, 1
    %s95 = scalar_select %p92, %s93, %s94
    %p98 = pneg %p92
    %p99 = scmp.eq.s32.totalorder %s10, 1
    %p100 = por %p98, %p99
    %p101 = scmp.ne.s32.totalorder %s93, %s96
    %p102 = scmp.eq.s32.totalorder %s10, 0
    %p103 = por %p101, %p102
    %p104 = scmp.ne.s32.totalorder %s93, %s96
    %p105 = scmp.eq.s32.totalorder %s15, 1
    %p106 = por %p104, %p105
    %p107 = scmp.ne.s32.totalorder %s96, %s97
    %p108 = scmp.eq.s32.totalorder %s15, 0
    %p109 = por %p107, %p108
    %p110 = scmp.ne.s32.totalorder %s96, %s97
    %p111 = scmp.eq.s32.totalorder %s16, 1
    %p112 = por %p110, %p111
    %p114 = scmp.ne.s32.totalorder %s97, %s113
    %p115 = scmp.eq.s32.totalorder %s16, 0
    %p116 = por %p114, %p115
    %p117 = scmp.le.s32.totalorder 1, %s10
    %p118 = scmp.lt.s32.totalorder %s10, 3
    %p119 = pnand %p117, %p118
    %p120 = pneg %p119
    // Predicated region
    $region9: #{_lambda_.9} parent=5 // pred_check
      _
    $region10: #{_lambda_.9} parent=5 // pred_check_branch
      %122 = sbr.rel (%p119) target = $region12
    $region11: #{_lambda_.9} parent=5 // pred_region
      %s123 = ssub.s32 %s10, 1
      // Predicated region
      $region13: #{_lambda_.9} parent=11 // pred_check
        %p124 = pneg %p57
      $region14: #{_lambda_.9} parent=11 // pred_check_branch
        %126 = sbr.rel (%p124) target = $region16
      $region15: #{_lambda_.9} parent=11 // pred_region
        _
      $region16: #{_lambda_.9} parent=11 // pred_fallthru
        _
    $region12: #{_lambda_.9} parent=5 // pred_fallthru
      _
    %p127 = scmp.lt.s32.totalorder %s10, 2
    // Predicated region
    $region17: #{_lambda_.9} parent=5 // pred_check
      %p128 = pneg %p127
    $region18: #{_lambda_.9} parent=5 // pred_check_branch
      %130 = sbr.rel (%p128) target = $region20
    $region19: #{_lambda_.9} parent=5 // pred_region
      // Predicated region
      $region21: #{_lambda_.9} parent=19 // pred_check
        %p131 = pneg %p30
      $region22: #{_lambda_.9} parent=19 // pred_check_branch
        %133 = sbr.rel (%p131) target = $region24
      $region23: #{_lambda_.9} parent=19 // pred_region
        %p134 = scmp.lt.s32.totalorder %s10, 1
        %s135 = scalar_select %p134, %s10, 1
        %s136 = smul.addr %s135, 36
        %s137 = smul.addr %s136, 4
        %s138 = scalar_lea.vmem %s0, %s137
      $region24: #{_lambda_.9} parent=19 // pred_fallthru
        _
    $region20: #{_lambda_.9} parent=5 // pred_fallthru
      _
    %p139 = scmp.le.s32.totalorder 1, %s10
    %p140 = scmp.lt.s32.totalorder %s10, 3
    %p141 = pnand %p139, %p140
    %p142 = pneg %p141
    // Predicated region
    $region25: #{_lambda_.9} parent=5 // pred_check
      _
    $region26: #{_lambda_.9} parent=5 // pred_check_branch
      %144 = sbr.rel (%p141) target = $region28
    $region27: #{_lambda_.9} parent=5 // pred_region
      %s145 = ssub.s32 %s10, 1
      %p146 = scmp.lt.s32.totalorder %s15, 1
      %s147 = scalar_select %p146, %s15, 1
      %s148 = smul.addr %s147, 36
      %s149 = smul.addr %s148, 4
      %s150 = scalar_lea.vmem %s0, %s149
      %p151 = pneg %p36
      %p152 = pneg %p33
      %p153 = pneg %p57
      %p154 = pneg %p54
      %p155 = pneg %p83
      %p156 = pneg %p80
      %p157 = scmp.lt.s32.totalorder %s15, 1
      %s158 = scalar_select %p157, %s15, 1
      %s159 = smul.addr %s158, 8
      %s160 = smul.addr %s159, 8
      %s161 = scalar_lea.vmem %s2, %s160
      %p162 = pneg %p109
      %p163 = pneg %p106
      %p164 = scmp.lt.s32.totalorder %s15, 1
      %s165 = scalar_select %p164, %s15, 1
      %s166 = smul.addr %s165, 2
      %s167 = scalar_lea.vmem %s3, %s166
      %p168 = scmp.lt.s32.totalorder %s15, 1
      %s169 = scalar_select %p168, %s15, 1
      %s170 = smul.addr %s169, 36
      %s171 = smul.addr %s170, 4
      %s172 = scalar_lea.vmem %s0, %s171
      %p173 = scmp.lt.s32.totalorder %s15, 1
      %s174 = scalar_select %p173, %s15, 1
      %s175 = smul.addr %s174, 8
      %s176 = smul.addr %s175, 8
      %s177 = scalar_lea.vmem %s2, %s176
      %p178 = scmp.lt.s32.totalorder %s15, 1
      %s179 = scalar_select %p178, %s15, 1
      %s180 = smul.addr %s179, 2
      %s181 = scalar_lea.vmem %s3, %s180
      %v183 = vld [vmem:[%s172] sm:$0xf]
      %v184 = vld [vmem:[%s172 + $0x10] sm:$0xf]
      %v185 = vld [vmem:[%s172 + $0x20] sm:$0xf]
      %v186 = vld [vmem:[%s172 + $0x30] sm:$0xf]
      %v187 = vld [vmem:[%s172 + $0x40] sm:$0xf]
      %v188 = vld [vmem:[%s172 + $0x50] sm:$0xf]
      %v189 = vld [vmem:[%s172 + $0x60] sm:$0xf]
      %v190 = vld [vmem:[%s172 + $0x70] sm:$0xf]
      %v191 = vld [vmem:[%s1] sm:$0xf]
      %v192 = vld [vmem:[%s1 + $0x4] sm:$0xf]
      %v193 = vld [vmem:[%s1 + $0x8] sm:$0xf]
      %v194 = vld [vmem:[%s1 + $0xc] sm:$0xf]
      %v195 = vld [vmem:[%s172 + $0x4] sm:$0x1]
      %v196 = vld [vmem:[%s172 + $0x14] sm:$0x1]
      %v197 = vld [vmem:[%s172 + $0x24] sm:$0x1]
      %v198 = vld [vmem:[%s172 + $0x34] sm:$0x1]
      %v199 = vld [vmem:[%s172 + $0x44] sm:$0x1]
      %v200 = vld [vmem:[%s172 + $0x54] sm:$0x1]
      %v201 = vld [vmem:[%s172 + $0x64] sm:$0x1]
      %v202 = vld [vmem:[%s172 + $0x74] sm:$0x1]
      %vm203 = vsmask.f32 3328
      %vm204 = vsmask.f32 7440
      %vm205 = vmor %vm203, %vm204
      %v207 = vshrl.u32 %v183, 16
      %v209 = vrot.slane %v207, 4
      %v210 = vshll.u32 %v183, 16
      %v212 = vrot.slane %v210, 5
      %v213 = vor.u32 %v209, %v212
      %v214 = vrot.slane %v213, 4
      %v216 = vshll.u32 %v195, 16
      %v218 = vrot.slane %v216, 5
      %v219 = vsel %vm205, %v214, %v218
      %v221 = vshrl.u32 %v184, 16
      %v223 = vrot.slane %v221, 4
      %v224 = vshll.u32 %v184, 16
      %v226 = vrot.slane %v224, 5
      %v227 = vor.u32 %v223, %v226
      %v228 = vrot.slane %v227, 4
      %v230 = vshll.u32 %v196, 16
      %v232 = vrot.slane %v230, 5
      %v233 = vsel %vm205, %v228, %v232
      %v235 = vshrl.u32 %v185, 16
      %v237 = vrot.slane %v235, 4
      %v238 = vshll.u32 %v185, 16
      %v240 = vrot.slane %v238, 5
      %v241 = vor.u32 %v237, %v240
      %v242 = vrot.slane %v241, 4
      %v244 = vshll.u32 %v197, 16
      %v246 = vrot.slane %v244, 5
      %v247 = vsel %vm205, %v242, %v246
      %v249 = vshrl.u32 %v186, 16
      %v251 = vrot.slane %v249, 4
      %v252 = vshll.u32 %v186, 16
      %v254 = vrot.slane %v252, 5
      %v255 = vor.u32 %v251, %v254
      %v256 = vrot.slane %v255, 4
      %v258 = vshll.u32 %v198, 16
      %v260 = vrot.slane %v258, 5
      %v261 = vsel %vm205, %v256, %v260
      %v263 = vshrl.u32 %v187, 16
      %v265 = vrot.slane %v263, 4
      %v266 = vshll.u32 %v187, 16
      %v268 = vrot.slane %v266, 5
      %v269 = vor.u32 %v265, %v268
      %v270 = vrot.slane %v269, 4
      %v272 = vshll.u32 %v199, 16
      %v274 = vrot.slane %v272, 5
      %v275 = vsel %vm205, %v270, %v274
      %v277 = vshrl.u32 %v188, 16
      %v279 = vrot.slane %v277, 4
      %v280 = vshll.u32 %v188, 16
      %v282 = vrot.slane %v280, 5
      %v283 = vor.u32 %v279, %v282
      %v284 = vrot.slane %v283, 4
      %v286 = vshll.u32 %v200, 16
      %v288 = vrot.slane %v286, 5
      %v289 = vsel %vm205, %v284, %v288
      %v291 = vshrl.u32 %v189, 16
      %v293 = vrot.slane %v291, 4
      %v294 = vshll.u32 %v189, 16
      %v296 = vrot.slane %v294, 5
      %v297 = vor.u32 %v293, %v296
      %v298 = vrot.slane %v297, 4
      %v300 = vshll.u32 %v201, 16
      %v302 = vrot.slane %v300, 5
      %v303 = vsel %vm205, %v298, %v302
      %v305 = vshrl.u32 %v190, 16
      %v307 = vrot.slane %v305, 4
      %v308 = vshll.u32 %v190, 16
      %v310 = vrot.slane %v308, 5
      %v311 = vor.u32 %v307, %v310
      %v312 = vrot.slane %v311, 4
      %v314 = vshll.u32 %v202, 16
      %v316 = vrot.slane %v314, 5
      %v317 = vsel %vm205, %v312, %v316
      %s318 = scalar_lea.vmem %s1, 16
      %v319 = vld [vmem:[%s318] sm:$0xf]
      %v320 = vld [vmem:[%s318 + $0x4] sm:$0xf]
      %v321 = vld [vmem:[%s318 + $0x8] sm:$0xf]
      %v322 = vld [vmem:[%s318 + $0xc] sm:$0xf]
      %v323 = vunpack.c.l.b16 %v219
      %v324 = vunpack.c.l.b16 %v233
      %v325 = vunpack.c.l.b16 %v247
      %v326 = vunpack.c.l.b16 %v261
      %v327 = vunpack.c.l.b16 %v275
      %v328 = vunpack.c.l.b16 %v289
      %v329 = vunpack.c.l.b16 %v303
      %v330 = vunpack.c.l.b16 %v317
      %v331 = vpack.c.b16 %v324, %v323
      %v332 = vpack.c.b16 %v326, %v325
      %v333 = vpack.c.b16 %v328, %v327
      %v334 = vpack.c.b16 %v330, %v329
      %v339 = vunpack.c.l.b16 %v319
      %v340 = vunpack.c.l.b16 %v320
      %v341 = vunpack.c.l.b16 %v321
      %v342 = vunpack.c.l.b16 %v322
      %v343 = vpack.c.b16 %v340, %v339
      %v344 = vpack.c.b16 %v342, %v341
      %vm347 = vcmask 261120
      %v349 = vsel %vm347, %v331, 0
      %v352 = vsel %vm347, %v332, 0
      %v355 = vsel %vm347, %v333, 0
      %v358 = vsel %vm347, %v334, 0
      %360 = vmatprep.subr.bf16.mxu0 0
      %361 = vmatpush1.bf16.msra.mxu0 %v343
      %362 = vmatprep.subr.bf16.mxu0 0
      %363 = vmatpush1.bf16.msra.mxu0 %v344
      %364 = vmatprep.subr.bf16.mxu0 0
      %365 = vmatpush1.bf16.msra.mxu0 0
      %366 = vmatprep.subr.bf16.mxu0 0
      %367 = vmatpush1.bf16.msra.mxu0 0
      %368 = vmatprep.subr.bf16.mxu0 0
      %369 = vmatpush1.bf16.msra.mxu0 0
      %370 = vmatprep.subr.bf16.mxu0 0
      %371 = vmatpush1.bf16.msra.mxu0 0
      %372 = vmatprep.subr.bf16.mxu0 0
      %373 = vmatpush1.bf16.msra.mxu0 0
      %374 = vmatprep.subr.bf16.mxu0 0
      %375 = vmatpush1.bf16.msra.mxu0 0
      %376 = vmatprep.subr.bf16.mxu0 0
      %377 = vmatpush1.bf16.msra.mxu0 0
      %378 = vmatprep.subr.bf16.mxu0 0
      %379 = vmatpush1.bf16.msra.mxu0 0
      %380 = vmatprep.subr.bf16.mxu0 0
      %381 = vmatpush1.bf16.msra.mxu0 0
      %382 = vmatprep.subr.bf16.mxu0 0
      %383 = vmatpush1.bf16.msra.mxu0 0
      %384 = vmatprep.subr.bf16.mxu0 0
      %385 = vmatpush1.bf16.msra.mxu0 0
      %386 = vmatprep.subr.bf16.mxu0 0
      %387 = vmatpush1.bf16.msra.mxu0 0
      %388 = vmatprep.subr.bf16.mxu0 0
      %389 = vmatpush1.bf16.msra.mxu0 0
      %390 = vmatprep.subr.bf16.mxu0 0
      %391 = vmatpush1.bf16.msra.mxu0 0
      %392 = vmatprep.mubr.bf16.mxu0 0
      %393 = vmatmul.mubr.bf16.gmra.mrb[0].mxu0 %v349
      %v394 = vpop.f32.mrb[0].mxu0
      %v395 = vadd.f32 0.0, %v394
      %v396 = vpop.f32.mrb[0].mxu0
      %v397 = vpop.f32.mrb[0].mxu0
      %v398 = vadd.f32 0.0, %v397
      %v399 = vpop.f32.mrb[0].mxu0
      %400 = vmatprep.mubr.bf16.mxu0 0
      %401 = vmatmul.mubr.bf16.gmra.mrb[0].mxu0 %v352
      %v402 = vpop.f32.mrb[0].mxu0
      %v403 = vadd.f32 0.0, %v402
      %v404 = vpop.f32.mrb[0].mxu0
      %v405 = vpop.f32.mrb[0].mxu0
      %v406 = vadd.f32 0.0, %v405
      %v407 = vpop.f32.mrb[0].mxu0
      %408 = vmatprep.mubr.bf16.mxu0 0
      %409 = vmatmul.mubr.bf16.gmra.mrb[0].mxu0 %v355
      %v410 = vpop.f32.mrb[0].mxu0
      %v411 = vadd.f32 0.0, %v410
      %v412 = vpop.f32.mrb[0].mxu0
      %v413 = vpop.f32.mrb[0].mxu0
      %v414 = vadd.f32 0.0, %v413
      %v415 = vpop.f32.mrb[0].mxu0
      %416 = vmatprep.mubr.bf16.mxu0 0
      %417 = vmatmul.mubr.bf16.gmra.mrb[0].mxu0 %v358
      %v418 = vpop.f32.mrb[0].mxu0
      %v419 = vadd.f32 0.0, %v418
      %v420 = vpop.f32.mrb[0].mxu0
      %v421 = vpop.f32.mrb[0].mxu0
      %v422 = vadd.f32 0.0, %v421
      %v423 = vpop.f32.mrb[0].mxu0
      %424 = vdwg.mxu0
      %v433 = vunpack.c.l.b16 %v183
      %v434 = vunpack.c.l.b16 %v184
      %v435 = vunpack.c.l.b16 %v185
      %v436 = vunpack.c.l.b16 %v186
      %v437 = vunpack.c.l.b16 %v187
      %v438 = vunpack.c.l.b16 %v188
      %v439 = vunpack.c.l.b16 %v189
      %v440 = vunpack.c.l.b16 %v190
      %v441 = vpack.c.b16 %v434, %v433
      %v442 = vpack.c.b16 %v436, %v435
      %v443 = vpack.c.b16 %v438, %v437
      %v444 = vpack.c.b16 %v440, %v439
      %v449 = vunpack.c.l.b16 %v191
      %v450 = vunpack.c.l.b16 %v192
      %v451 = vunpack.c.l.b16 %v193
      %v452 = vunpack.c.l.b16 %v194
      %v453 = vpack.c.b16 %v450, %v449
      %v454 = vpack.c.b16 %v452, %v451
      %v458 = vsel %vm347, %v441, 0
      %v461 = vsel %vm347, %v442, 0
      %v464 = vsel %vm347, %v443, 0
      %v467 = vsel %vm347, %v444, 0
      %469 = vmatprep.subr.bf16.mxu0 0
      %470 = vmatpush1.bf16.msra.mxu0 %v453
      %471 = vmatprep.subr.bf16.mxu0 0
      %472 = vmatpush1.bf16.msra.mxu0 %v454
      %473 = vmatprep.subr.bf16.mxu0 0
      %474 = vmatpush1.bf16.msra.mxu0 0
      %475 = vmatprep.subr.bf16.mxu0 0
      %476 = vmatpush1.bf16.msra.mxu0 0
      %477 = vmatprep.subr.bf16.mxu0 0
      %478 = vmatpush1.bf16.msra.mxu0 0
      %479 = vmatprep.subr.bf16.mxu0 0
      %480 = vmatpush1.bf16.msra.mxu0 0
      %481 = vmatprep.subr.bf16.mxu0 0
      %482 = vmatpush1.bf16.msra.mxu0 0
      %483 = vmatprep.subr.bf16.mxu0 0
      %484 = vmatpush1.bf16.msra.mxu0 0
      %485 = vmatprep.subr.bf16.mxu0 0
      %486 = vmatpush1.bf16.msra.mxu0 0
      %487 = vmatprep.subr.bf16.mxu0 0
      %488 = vmatpush1.bf16.msra.mxu0 0
      %489 = vmatprep.subr.bf16.mxu0 0
      %490 = vmatpush1.bf16.msra.mxu0 0
      %491 = vmatprep.subr.bf16.mxu0 0
      %492 = vmatpush1.bf16.msra.mxu0 0
      %493 = vmatprep.subr.bf16.mxu0 0
      %494 = vmatpush1.bf16.msra.mxu0 0
      %495 = vmatprep.subr.bf16.mxu0 0
      %496 = vmatpush1.bf16.msra.mxu0 0
      %497 = vmatprep.subr.bf16.mxu0 0
      %498 = vmatpush1.bf16.msra.mxu0 0
      %499 = vmatprep.subr.bf16.mxu0 0
      %500 = vmatpush1.bf16.msra.mxu0 0
      %501 = vmatprep.mubr.bf16.mxu0 0
      %502 = vmatmul.mubr.bf16.gmra.mrb[0].mxu0 %v458
      %v503 = vpop.f32.mrb[0].mxu0
      %v504 = vadd.f32 %v395, %v503
      %v505 = vpop.f32.mrb[0].mxu0
      %v506 = vpop.f32.mrb[0].mxu0
      %v507 = vadd.f32 %v398, %v506
      %v508 = vpop.f32.mrb[0].mxu0
      %509 = vmatprep.mubr.bf16.mxu0 0
      %510 = vmatmul.mubr.bf16.gmra.mrb[0].mxu0 %v461
      %v511 = vpop.f32.mrb[0].mxu0
      %v512 = vadd.f32 %v403, %v511
      %v513 = vpop.f32.mrb[0].mxu0
      %v514 = vpop.f32.mrb[0].mxu0
      %v515 = vadd.f32 %v406, %v514
      %v516 = vpop.f32.mrb[0].mxu0
      %517 = vmatprep.mubr.bf16.mxu0 0
      %518 = vmatmul.mubr.bf16.gmra.mrb[0].mxu0 %v464
      %v519 = vpop.f32.mrb[0].mxu0
      %v520 = vadd.f32 %v411, %v519
      %v521 = vpop.f32.mrb[0].mxu0
      %v522 = vpop.f32.mrb[0].mxu0
      %v523 = vadd.f32 %v414, %v522
      %v524 = vpop.f32.mrb[0].mxu0
      %525 = vmatprep.mubr.bf16.mxu0 0
      %526 = vmatmul.mubr.bf16.gmra.mrb[0].mxu0 %v467
      %v527 = vpop.f32.mrb[0].mxu0
      %v528 = vadd.f32 %v419, %v527
      %v529 = vpop.f32.mrb[0].mxu0
      %v530 = vpop.f32.mrb[0].mxu0
      %v531 = vadd.f32 %v422, %v530
      %v532 = vpop.f32.mrb[0].mxu0
      %533 = vdwg.mxu0
      %s534 = scalar_lea.vmem %s172, 8
      %v535 = vld [vmem:[%s534] sm:$0xf]
      %v536 = vld [vmem:[%s534 + $0x10] sm:$0xf]
      %v537 = vld [vmem:[%s534 + $0x20] sm:$0xf]
      %v538 = vld [vmem:[%s534 + $0x30] sm:$0xf]
      %v539 = vld [vmem:[%s534 + $0x40] sm:$0xf]
      %v540 = vld [vmem:[%s534 + $0x50] sm:$0xf]
      %v541 = vld [vmem:[%s534 + $0x60] sm:$0xf]
      %v542 = vld [vmem:[%s534 + $0x70] sm:$0xf]
      %s543 = scalar_lea.vmem %s1, 32
      %v544 = vld [vmem:[%s543] sm:$0xf]
      %v545 = vld [vmem:[%s543 + $0x4] sm:$0xf]
      %v546 = vld [vmem:[%s543 + $0x8] sm:$0xf]
      %v547 = vld [vmem:[%s543 + $0xc] sm:$0xf]
      %v556 = vunpack.c.l.b16 %v535
      %v557 = vunpack.c.l.b16 %v536
      %v558 = vunpack.c.l.b16 %v537
      %v559 = vunpack.c.l.b16 %v538
      %v560 = vunpack.c.l.b16 %v539
      %v561 = vunpack.c.l.b16 %v540
      %v562 = vunpack.c.l.b16 %v541
      %v563 = vunpack.c.l.b16 %v542
      %v564 = vpack.c.b16 %v557, %v556
      %v565 = vpack.c.b16 %v559, %v558
      %v566 = vpack.c.b16 %v561, %v560
      %v567 = vpack.c.b16 %v563, %v562
      %v572 = vunpack.c.l.b16 %v544
      %v573 = vunpack.c.l.b16 %v545
      %v574 = vunpack.c.l.b16 %v546
      %v575 = vunpack.c.l.b16 %v547
      %v576 = vpack.c.b16 %v573, %v572
      %v577 = vpack.c.b16 %v575, %v574
      %v581 = vsel %vm347, %v564, 0
      %v584 = vsel %vm347, %v565, 0
      %v587 = vsel %vm347, %v566, 0
      %v590 = vsel %vm347, %v567, 0
      %592 = vmatprep.subr.bf16.mxu0 0
      %593 = vmatpush1.bf16.msra.mxu0 %v576
      %594 = vmatprep.subr.bf16.mxu0 0
      %595 = vmatpush1.bf16.msra.mxu0 %v577
      %596 = vmatprep.subr.bf16.mxu0 0
      %597 = vmatpush1.bf16.msra.mxu0 0
      %598 = vmatprep.subr.bf16.mxu0 0
      %599 = vmatpush1.bf16.msra.mxu0 0
      %600 = vmatprep.subr.bf16.mxu0 0
      %601 = vmatpush1.bf16.msra.mxu0 0
      %602 = vmatprep.subr.bf16.mxu0 0
      %603 = vmatpush1.bf16.msra.mxu0 0
      %604 = vmatprep.subr.bf16.mxu0 0
      %605 = vmatpush1.bf16.msra.mxu0 0
      %606 = vmatprep.subr.bf16.mxu0 0
      %607 = vmatpush1.bf16.msra.mxu0 0
      %608 = vmatprep.subr.bf16.mxu0 0
      %609 = vmatpush1.bf16.msra.mxu0 0
      %610 = vmatprep.subr.bf16.mxu0 0
      %611 = vmatpush1.bf16.msra.mxu0 0
      %612 = vmatprep.subr.bf16.mxu0 0
      %613 = vmatpush1.bf16.msra.mxu0 0
      %614 = vmatprep.subr.bf16.mxu0 0
      %615 = vmatpush1.bf16.msra.mxu0 0
      %616 = vmatprep.subr.bf16.mxu0 0
      %617 = vmatpush1.bf16.msra.mxu0 0
      %618 = vmatprep.subr.bf16.mxu0 0
      %619 = vmatpush1.bf16.msra.mxu0 0
      %620 = vmatprep.subr.bf16.mxu0 0
      %621 = vmatpush1.bf16.msra.mxu0 0
      %622 = vmatprep.subr.bf16.mxu0 0
      %623 = vmatpush1.bf16.msra.mxu0 0
      %624 = vmatprep.mubr.bf16.mxu0 0
      %625 = vmatmul.mubr.bf16.gmra.mrb[0].mxu0 %v581
      %v626 = vpop.f32.mrb[0].mxu0
      %v627 = vadd.f32 0.0, %v626
      %v628 = vpop.f32.mrb[0].mxu0
      %v629 = vpop.f32.mrb[0].mxu0
      %v630 = vadd.f32 0.0, %v629
      %v631 = vpop.f32.mrb[0].mxu0
      %632 = vmatprep.mubr.bf16.mxu0 0
      %633 = vmatmul.mubr.bf16.gmra.mrb[0].mxu0 %v584
      %v634 = vpop.f32.mrb[0].mxu0
      %v635 = vadd.f32 0.0, %v634
      %v636 = vpop.f32.mrb[0].mxu0
      %v637 = vpop.f32.mrb[0].mxu0
      %v638 = vadd.f32 0.0, %v637
      %v639 = vpop.f32.mrb[0].mxu0
      %640 = vmatprep.mubr.bf16.mxu0 0
      %641 = vmatmul.mubr.bf16.gmra.mrb[0].mxu0 %v587
      %v642 = vpop.f32.mrb[0].mxu0
      %v643 = vadd.f32 0.0, %v642
      %v644 = vpop.f32.mrb[0].mxu0
      %v645 = vpop.f32.mrb[0].mxu0
      %v646 = vadd.f32 0.0, %v645
      %v647 = vpop.f32.mrb[0].mxu0
      %648 = vmatprep.mubr.bf16.mxu0 0
      %649 = vmatmul.mubr.bf16.gmra.mrb[0].mxu0 %v590
      %v650 = vpop.f32.mrb[0].mxu0
      %v651 = vadd.f32 0.0, %v650
      %v652 = vpop.f32.mrb[0].mxu0
      %v653 = vpop.f32.mrb[0].mxu0
      %v654 = vadd.f32 0.0, %v653
      %v655 = vpop.f32.mrb[0].mxu0
      %656 = vdwg.mxu0
      %v657 = vadd.f32 %v504, %v627
      %v658 = vadd.f32 %v507, %v630
      %v659 = vadd.f32 %v512, %v635
      %v660 = vadd.f32 %v515, %v638
      %v661 = vadd.f32 %v520, %v643
      %v662 = vadd.f32 %v523, %v646
      %v663 = vadd.f32 %v528, %v651
      %v664 = vadd.f32 %v531, %v654
      %v665 = vld [vmem:[%s534] sm:$0xf]
      %v666 = vld [vmem:[%s534 + $0x4] sm:$0x1]
      %v667 = vld [vmem:[%s534 + $0x10] sm:$0xf]
      %v668 = vld [vmem:[%s534 + $0x14] sm:$0x1]
      %v669 = vld [vmem:[%s534 + $0x20] sm:$0xf]
      %v670 = vld [vmem:[%s534 + $0x24] sm:$0x1]
      %v671 = vld [vmem:[%s534 + $0x30] sm:$0xf]
      %v672 = vld [vmem:[%s534 + $0x34] sm:$0x1]
      %v673 = vld [vmem:[%s534 + $0x40] sm:$0xf]
      %v674 = vld [vmem:[%s534 + $0x44] sm:$0x1]
      %v675 = vld [vmem:[%s534 + $0x50] sm:$0xf]
      %v676 = vld [vmem:[%s534 + $0x54] sm:$0x1]
      %v677 = vld [vmem:[%s534 + $0x60] sm:$0xf]
      %v678 = vld [vmem:[%s534 + $0x64] sm:$0x1]
      %v679 = vld [vmem:[%s534 + $0x70] sm:$0xf]
      %v680 = vld [vmem:[%s534 + $0x74] sm:$0x1]
      %v682 = vshrl.u32 %v665, 16
      %v684 = vrot.slane %v682, 4
      %v685 = vshll.u32 %v665, 16
      %v687 = vrot.slane %v685, 5
      %v688 = vor.u32 %v684, %v687
      %v689 = vrot.slane %v688, 4
      %v691 = vshll.u32 %v666, 16
      %v693 = vrot.slane %v691, 5
      %v694 = vsel %vm205, %v689, %v693
      %v696 = vshrl.u32 %v667, 16
      %v698 = vrot.slane %v696, 4
      %v699 = vshll.u32 %v667, 16
      %v701 = vrot.slane %v699, 5
      %v702 = vor.u32 %v698, %v701
      %v703 = vrot.slane %v702, 4
      %v705 = vshll.u32 %v668, 16
      %v707 = vrot.slane %v705, 5
      %v708 = vsel %vm205, %v703, %v707
      %v710 = vshrl.u32 %v669, 16
      %v712 = vrot.slane %v710, 4
      %v713 = vshll.u32 %v669, 16
      %v715 = vrot.slane %v713, 5
      %v716 = vor.u32 %v712, %v715
      %v717 = vrot.slane %v716, 4
      %v719 = vshll.u32 %v670, 16
      %v721 = vrot.slane %v719, 5
      %v722 = vsel %vm205, %v717, %v721
      %v724 = vshrl.u32 %v671, 16
      %v726 = vrot.slane %v724, 4
      %v727 = vshll.u32 %v671, 16
      %v729 = vrot.slane %v727, 5
      %v730 = vor.u32 %v726, %v729
      %v731 = vrot.slane %v730, 4
      %v733 = vshll.u32 %v672, 16
      %v735 = vrot.slane %v733, 5
      %v736 = vsel %vm205, %v731, %v735
      %v738 = vshrl.u32 %v673, 16
      %v740 = vrot.slane %v738, 4
      %v741 = vshll.u32 %v673, 16
      %v743 = vrot.slane %v741, 5
      %v744 = vor.u32 %v740, %v743
      %v745 = vrot.slane %v744, 4
      %v747 = vshll.u32 %v674, 16
      %v749 = vrot.slane %v747, 5
      %v750 = vsel %vm205, %v745, %v749
      %v752 = vshrl.u32 %v675, 16
      %v754 = vrot.slane %v752, 4
      %v755 = vshll.u32 %v675, 16
      %v757 = vrot.slane %v755, 5
      %v758 = vor.u32 %v754, %v757
      %v759 = vrot.slane %v758, 4
      %v761 = vshll.u32 %v676, 16
      %v763 = vrot.slane %v761, 5
      %v764 = vsel %vm205, %v759, %v763
      %v766 = vshrl.u32 %v677, 16
      %v768 = vrot.slane %v766, 4
      %v769 = vshll.u32 %v677, 16
      %v771 = vrot.slane %v769, 5
      %v772 = vor.u32 %v768, %v771
      %v773 = vrot.slane %v772, 4
      %v775 = vshll.u32 %v678, 16
      %v777 = vrot.slane %v775, 5
      %v778 = vsel %vm205, %v773, %v777
      %v780 = vshrl.u32 %v679, 16
      %v782 = vrot.slane %v780, 4
      %v783 = vshll.u32 %v679, 16
      %v785 = vrot.slane %v783, 5
      %v786 = vor.u32 %v782, %v785
      %v787 = vrot.slane %v786, 4
      %v789 = vshll.u32 %v680, 16
      %v791 = vrot.slane %v789, 5
      %v792 = vsel %vm205, %v787, %v791
      %s793 = scalar_lea.vmem %s1, 48
      %v794 = vld [vmem:[%s793] sm:$0xf]
      %v795 = vld [vmem:[%s793 + $0x4] sm:$0xf]
      %v796 = vld [vmem:[%s793 + $0x8] sm:$0xf]
      %v797 = vld [vmem:[%s793 + $0xc] sm:$0xf]
      %v798 = vunpack.c.l.b16 %v694
      %v799 = vunpack.c.l.b16 %v708
      %v800 = vunpack.c.l.b16 %v722
      %v801 = vunpack.c.l.b16 %v736
      %v802 = vunpack.c.l.b16 %v750
      %v803 = vunpack.c.l.b16 %v764
      %v804 = vunpack.c.l.b16 %v778
      %v805 = vunpack.c.l.b16 %v792
      %v806 = vpack.c.b16 %v799, %v798
      %v807 = vpack.c.b16 %v801, %v800
      %v808 = vpack.c.b16 %v803, %v802
      %v809 = vpack.c.b16 %v805, %v804
      %v814 = vunpack.c.l.b16 %v794
      %v815 = vunpack.c.l.b16 %v795
      %v816 = vunpack.c.l.b16 %v796
      %v817 = vunpack.c.l.b16 %v797
      %v818 = vpack.c.b16 %v815, %v814
      %v819 = vpack.c.b16 %v817, %v816
      %v823 = vsel %vm347, %v806, 0
      %v826 = vsel %vm347, %v807, 0
      %v829 = vsel %vm347, %v808, 0
      %v832 = vsel %vm347, %v809, 0
      %834 = vmatprep.subr.bf16.mxu0 0
      %835 = vmatpush1.bf16.msra.mxu0 %v818
      %836 = vmatprep.subr.bf16.mxu0 0
      %837 = vmatpush1.bf16.msra.mxu0 %v819
      %838 = vmatprep.subr.bf16.mxu0 0
      %839 = vmatpush1.bf16.msra.mxu0 0
      %840 = vmatprep.subr.bf16.mxu0 0
      %841 = vmatpush1.bf16.msra.mxu0 0
      %842 = vmatprep.subr.bf16.mxu0 0
      %843 = vmatpush1.bf16.msra.mxu0 0
      %844 = vmatprep.subr.bf16.mxu0 0
      %845 = vmatpush1.bf16.msra.mxu0 0
      %846 = vmatprep.subr.bf16.mxu0 0
      %847 = vmatpush1.bf16.msra.mxu0 0
      %848 = vmatprep.subr.bf16.mxu0 0
      %849 = vmatpush1.bf16.msra.mxu0 0
      %850 = vmatprep.subr.bf16.mxu0 0
      %851 = vmatpush1.bf16.msra.mxu0 0
      %852 = vmatprep.subr.bf16.mxu0 0
      %853 = vmatpush1.bf16.msra.mxu0 0
      %854 = vmatprep.subr.bf16.mxu0 0
      %855 = vmatpush1.bf16.msra.mxu0 0
      %856 = vmatprep.subr.bf16.mxu0 0
      %857 = vmatpush1.bf16.msra.mxu0 0
      %858 = vmatprep.subr.bf16.mxu0 0
      %859 = vmatpush1.bf16.msra.mxu0 0
      %860 = vmatprep.subr.bf16.mxu0 0
      %861 = vmatpush1.bf16.msra.mxu0 0
      %862 = vmatprep.subr.bf16.mxu0 0
      %863 = vmatpush1.bf16.msra.mxu0 0
      %864 = vmatprep.subr.bf16.mxu0 0
      %865 = vmatpush1.bf16.msra.mxu0 0
      %866 = vmatprep.mubr.bf16.mxu0 0
      %867 = vmatmul.mubr.bf16.gmra.mrb[0].mxu0 %v823
      %v868 = vpop.f32.mrb[0].mxu0
      %v869 = vadd.f32 0.0, %v868
      %v870 = vpop.f32.mrb[0].mxu0
      %v871 = vpop.f32.mrb[0].mxu0
      %v872 = vadd.f32 0.0, %v871
      %v873 = vpop.f32.mrb[0].mxu0
      %874 = vmatprep.mubr.bf16.mxu0 0
      %875 = vmatmul.mubr.bf16.gmra.mrb[0].mxu0 %v826
      %v876 = vpop.f32.mrb[0].mxu0
      %v877 = vadd.f32 0.0, %v876
      %v878 = vpop.f32.mrb[0].mxu0
      %v879 = vpop.f32.mrb[0].mxu0
      %v880 = vadd.f32 0.0, %v879
      %v881 = vpop.f32.mrb[0].mxu0
      %882 = vmatprep.mubr.bf16.mxu0 0
      %883 = vmatmul.mubr.bf16.gmra.mrb[0].mxu0 %v829
      %v884 = vpop.f32.mrb[0].mxu0
      %v885 = vadd.f32 0.0, %v884
      %v886 = vpop.f32.mrb[0].mxu0
      %v887 = vpop.f32.mrb[0].mxu0
      %v888 = vadd.f32 0.0, %v887
      %v889 = vpop.f32.mrb[0].mxu0
      %890 = vmatprep.mubr.bf16.mxu0 0
      %891 = vmatmul.mubr.bf16.gmra.mrb[0].mxu0 %v832
      %v892 = vpop.f32.mrb[0].mxu0
      %v893 = vadd.f32 0.0, %v892
      %v894 = vpop.f32.mrb[0].mxu0
      %v895 = vpop.f32.mrb[0].mxu0
      %v896 = vadd.f32 0.0, %v895
      %v897 = vpop.f32.mrb[0].mxu0
      %898 = vdwg.mxu0
      %v899 = vadd.f32 %v657, %v869
      %v900 = vadd.f32 %v658, %v872
      %v901 = vadd.f32 %v659, %v877
      %v902 = vadd.f32 %v660, %v880
      %v903 = vadd.f32 %v661, %v885
      %v904 = vadd.f32 %v662, %v888
      %v905 = vadd.f32 %v663, %v893
      %v906 = vadd.f32 %v664, %v896
      %s907 = scalar_lea.vmem %s172, 16
      %v908 = vld [vmem:[%s907] sm:$0xf]
      %v909 = vld [vmem:[%s907 + $0x10] sm:$0xf]
      %v910 = vld [vmem:[%s907 + $0x20] sm:$0xf]
      %v911 = vld [vmem:[%s907 + $0x30] sm:$0xf]
      %v912 = vld [vmem:[%s907 + $0x40] sm:$0xf]
      %v913 = vld [vmem:[%s907 + $0x50] sm:$0xf]
      %v914 = vld [vmem:[%s907 + $0x60] sm:$0xf]
      %v915 = vld [vmem:[%s907 + $0x70] sm:$0xf]
      %s916 = scalar_lea.vmem %s1, 64
      %v917 = vld [vmem:[%s916] sm:$0xf]
      %v918 = vld [vmem:[%s916 + $0x4] sm:$0xf]
      %v919 = vld [vmem:[%s916 + $0x8] sm:$0xf]
      %v920 = vld [vmem:[%s916 + $0xc] sm:$0xf]
      %v929 = vunpack.c.l.b16 %v908
      %v930 = vunpack.c.l.b16 %v909
      %v931 = vunpack.c.l.b16 %v910
      %v932 = vunpack.c.l.b16 %v911
      %v933 = vunpack.c.l.b16 %v912
      %v934 = vunpack.c.l.b16 %v913
      %v935 = vunpack.c.l.b16 %v914
      %v936 = vunpack.c.l.b16 %v915
      %v937 = vpack.c.b16 %v930, %v929
      %v938 = vpack.c.b16 %v932, %v931
      %v939 = vpack.c.b16 %v934, %v933
      %v940 = vpack.c.b16 %v936, %v935
      %v945 = vunpack.c.l.b16 %v917
      %v946 = vunpack.c.l.b16 %v918
      %v947 = vunpack.c.l.b16 %v919
      %v948 = vunpack.c.l.b16 %v920
      %v949 = vpack.c.b16 %v946, %v945
      %v950 = vpack.c.b16 %v948, %v947
      %v954 = vsel %vm347, %v937, 0
      %v957 = vsel %vm347, %v938, 0
      %v960 = vsel %vm347, %v939, 0
      %v963 = vsel %vm347, %v940, 0
      %965 = vmatprep.subr.bf16.mxu0 0
      %966 = vmatpush1.bf16.msra.mxu0 %v949
      %967 = vmatprep.subr.bf16.mxu0 0
      %968 = vmatpush1.bf16.msra.mxu0 %v950
      %969 = vmatprep.subr.bf16.mxu0 0
      %970 = vmatpush1.bf16.msra.mxu0 0
      %971 = vmatprep.subr.bf16.mxu0 0
      %972 = vmatpush1.bf16.msra.mxu0 0
      %973 = vmatprep.subr.bf16.mxu0 0
      %974 = vmatpush1.bf16.msra.mxu0 0
      %975 = vmatprep.subr.bf16.mxu0 0
      %976 = vmatpush1.bf16.msra.mxu0 0
      %977 = vmatprep.subr.bf16.mxu0 0
      %978 = vmatpush1.bf16.msra.mxu0 0
      %979 = vmatprep.subr.bf16.mxu0 0
      %980 = vmatpush1.bf16.msra.mxu0 0
      %981 = vmatprep.subr.bf16.mxu0 0
      %982 = vmatpush1.bf16.msra.mxu0 0
      %983 = vmatprep.subr.bf16.mxu0 0
      %984 = vmatpush1.bf16.msra.mxu0 0
      %985 = vmatprep.subr.bf16.mxu0 0
      %986 = vmatpush1.bf16.msra.mxu0 0
      %987 = vmatprep.subr.bf16.mxu0 0
      %988 = vmatpush1.bf16.msra.mxu0 0
      %989 = vmatprep.subr.bf16.mxu0 0
      %990 = vmatpush1.bf16.msra.mxu0 0
      %991 = vmatprep.subr.bf16.mxu0 0
      %992 = vmatpush1.bf16.msra.mxu0 0
      %993 = vmatprep.subr.bf16.mxu0 0
      %994 = vmatpush1.bf16.msra.mxu0 0
      %995 = vmatprep.subr.bf16.mxu0 0
      %996 = vmatpush1.bf16.msra.mxu0 0
      %997 = vmatprep.mubr.bf16.mxu0 0
      %998 = vmatmul.mubr.bf16.gmra.mrb[0].mxu0 %v954
      %v999 = vpop.f32.mrb[0].mxu0
      %v1000 = vadd.f32 0.0, %v999
      %v1001 = vpop.f32.mrb[0].mxu0
      %v1002 = vpop.f32.mrb[0].mxu0
      %v1003 = vadd.f32 0.0, %v1002
      %v1004 = vpop.f32.mrb[0].mxu0
      %1005 = vmatprep.mubr.bf16.mxu0 0
      %1006 = vmatmul.mubr.bf16.gmra.mrb[0].mxu0 %v957
      %v1007 = vpop.f32.mrb[0].mxu0
      %v1008 = vadd.f32 0.0, %v1007
      %v1009 = vpop.f32.mrb[0].mxu0
      %v1010 = vpop.f32.mrb[0].mxu0
      %v1011 = vadd.f32 0.0, %v1010
      %v1012 = vpop.f32.mrb[0].mxu0
      %1013 = vmatprep.mubr.bf16.mxu0 0
      %1014 = vmatmul.mubr.bf16.gmra.mrb[0].mxu0 %v960
      %v1015 = vpop.f32.mrb[0].mxu0
      %v1016 = vadd.f32 0.0, %v1015
      %v1017 = vpop.f32.mrb[0].mxu0
      %v1018 = vpop.f32.mrb[0].mxu0
      %v1019 = vadd.f32 0.0, %v1018
      %v1020 = vpop.f32.mrb[0].mxu0
      %1021 = vmatprep.mubr.bf16.mxu0 0
      %1022 = vmatmul.mubr.bf16.gmra.mrb[0].mxu0 %v963
      %v1023 = vpop.f32.mrb[0].mxu0
      %v1024 = vadd.f32 0.0, %v1023
      %v1025 = vpop.f32.mrb[0].mxu0
      %v1026 = vpop.f32.mrb[0].mxu0
      %v1027 = vadd.f32 0.0, %v1026
      %v1028 = vpop.f32.mrb[0].mxu0
      %1029 = vdwg.mxu0
      %v1030 = vadd.f32 %v899, %v1000
      %v1031 = vadd.f32 %v900, %v1003
      %v1032 = vadd.f32 %v901, %v1008
      %v1033 = vadd.f32 %v902, %v1011
      %v1034 = vadd.f32 %v903, %v1016
      %v1035 = vadd.f32 %v904, %v1019
      %v1036 = vadd.f32 %v905, %v1024
      %v1037 = vadd.f32 %v906, %v1027
      %v1038 = vld [vmem:[%s907] sm:$0xf]
      %v1039 = vld [vmem:[%s907 + $0x4] sm:$0x1]
      %v1040 = vld [vmem:[%s907 + $0x10] sm:$0xf]
      %v1041 = vld [vmem:[%s907 + $0x14] sm:$0x1]
      %v1042 = vld [vmem:[%s907 + $0x20] sm:$0xf]
      %v1043 = vld [vmem:[%s907 + $0x24] sm:$0x1]
      %v1044 = vld [vmem:[%s907 + $0x30] sm:$0xf]
      %v1045 = vld [vmem:[%s907 + $0x34] sm:$0x1]
      %v1046 = vld [vmem:[%s907 + $0x40] sm:$0xf]
      %v1047 = vld [vmem:[%s907 + $0x44] sm:$0x1]
      %v1048 = vld [vmem:[%s907 + $0x50] sm:$0xf]
      %v1049 = vld [vmem:[%s907 + $0x54] sm:$0x1]
      %v1050 = vld [vmem:[%s907 + $0x60] sm:$0xf]
      %v1051 = vld [vmem:[%s907 + $0x64] sm:$0x1]
      %v1052 = vld [vmem:[%s907 + $0x70] sm:$0xf]
      %v1053 = vld [vmem:[%s907 + $0x74] sm:$0x1]
      %v1055 = vshrl.u32 %v1038, 16
      %v1057 = vrot.slane %v1055, 4
      %v1058 = vshll.u32 %v1038, 16
      %v1060 = vrot.slane %v1058, 5
      %v1061 = vor.u32 %v1057, %v1060
      %v1062 = vrot.slane %v1061, 4
      %v1064 = vshll.u32 %v1039, 16
      %v1066 = vrot.slane %v1064, 5
      %v1067 = vsel %vm205, %v1062, %v1066
      %v1069 = vshrl.u32 %v1040, 16
      %v1071 = vrot.slane %v1069, 4
      %v1072 = vshll.u32 %v1040, 16
      %v1074 = vrot.slane %v1072, 5
      %v1075 = vor.u32 %v1071, %v1074
      %v1076 = vrot.slane %v1075, 4
      %v1078 = vshll.u32 %v1041, 16
      %v1080 = vrot.slane %v1078, 5
      %v1081 = vsel %vm205, %v1076, %v1080
      %v1083 = vshrl.u32 %v1042, 16
      %v1085 = vrot.slane %v1083, 4
      %v1086 = vshll.u32 %v1042, 16
      %v1088 = vrot.slane %v1086, 5
      %v1089 = vor.u32 %v1085, %v1088
      %v1090 = vrot.slane %v1089, 4
      %v1092 = vshll.u32 %v1043, 16
      %v1094 = vrot.slane %v1092, 5
      %v1095 = vsel %vm205, %v1090, %v1094
      %v1097 = vshrl.u32 %v1044, 16
      %v1099 = vrot.slane %v1097, 4
      %v1100 = vshll.u32 %v1044, 16
      %v1102 = vrot.slane %v1100, 5
      %v1103 = vor.u32 %v1099, %v1102
      %v1104 = vrot.slane %v1103, 4
      %v1106 = vshll.u32 %v1045, 16
      %v1108 = vrot.slane %v1106, 5
      %v1109 = vsel %vm205, %v1104, %v1108
      %v1111 = vshrl.u32 %v1046, 16
      %v1113 = vrot.slane %v1111, 4
      %v1114 = vshll.u32 %v1046, 16
      %v1116 = vrot.slane %v1114, 5
      %v1117 = vor.u32 %v1113, %v1116
      %v1118 = vrot.slane %v1117, 4
      %v1120 = vshll.u32 %v1047, 16
      %v1122 = vrot.slane %v1120, 5
      %v1123 = vsel %vm205, %v1118, %v1122
      %v1125 = vshrl.u32 %v1048, 16
      %v1127 = vrot.slane %v1125, 4
      %v1128 = vshll.u32 %v1048, 16
      %v1130 = vrot.slane %v1128, 5
      %v1131 = vor.u32 %v1127, %v1130
      %v1132 = vrot.slane %v1131, 4
      %v1134 = vshll.u32 %v1049, 16
      %v1136 = vrot.slane %v1134, 5
      %v1137 = vsel %vm205, %v1132, %v1136
      %v1139 = vshrl.u32 %v1050, 16
      %v1141 = vrot.slane %v1139, 4
      %v1142 = vshll.u32 %v1050, 16
      %v1144 = vrot.slane %v1142, 5
      %v1145 = vor.u32 %v1141, %v1144
      %v1146 = vrot.slane %v1145, 4
      %v1148 = vshll.u32 %v1051, 16
      %v1150 = vrot.slane %v1148, 5
      %v1151 = vsel %vm205, %v1146, %v1150
      %v1153 = vshrl.u32 %v1052, 16
      %v1155 = vrot.slane %v1153, 4
      %v1156 = vshll.u32 %v1052, 16
      %v1158 = vrot.slane %v1156, 5
      %v1159 = vor.u32 %v1155, %v1158
      %v1160 = vrot.slane %v1159, 4
      %v1162 = vshll.u32 %v1053, 16
      %v1164 = vrot.slane %v1162, 5
      %v1165 = vsel %vm205, %v1160, %v1164
      %s1166 = scalar_lea.vmem %s1, 80
      %v1167 = vld [vmem:[%s1166] sm:$0xf]
      %v1168 = vld [vmem:[%s1166 + $0x4] sm:$0xf]
      %v1169 = vld [vmem:[%s1166 + $0x8] sm:$0xf]
      %v1170 = vld [vmem:[%s1166 + $0xc] sm:$0xf]
      %v1171 = vunpack.c.l.b16 %v1067
      %v1172 = vunpack.c.l.b16 %v1081
      %v1173 = vunpack.c.l.b16 %v1095
      %v1174 = vunpack.c.l.b16 %v1109
      %v1175 = vunpack.c.l.b16 %v1123
      %v1176 = vunpack.c.l.b16 %v1137
      %v1177 = vunpack.c.l.b16 %v1151
      %v1178 = vunpack.c.l.b16 %v1165
      %v1179 = vpack.c.b16 %v1172, %v1171
      %v1180 = vpack.c.b16 %v1174, %v1173
      %v1181 = vpack.c.b16 %v1176, %v1175
      %v1182 = vpack.c.b16 %v1178, %v1177
      %v1187 = vunpack.c.l.b16 %v1167
      %v1188 = vunpack.c.l.b16 %v1168
      %v1189 = vunpack.c.l.b16 %v1169
      %v1190 = vunpack.c.l.b16 %v1170
      %v1191 = vpack.c.b16 %v1188, %v1187
      %v1192 = vpack.c.b16 %v1190, %v1189
      %v1196 = vsel %vm347, %v1179, 0
      %v1199 = vsel %vm347, %v1180, 0
      %v1202 = vsel %vm347, %v1181, 0
      %v1205 = vsel %vm347, %v1182, 0
      %1207 = vmatprep.subr.bf16.mxu0 0
      %1208 = vmatpush1.bf16.msra.mxu0 %v1191
      %1209 = vmatprep.subr.bf16.mxu0 0
      %1210 = vmatpush1.bf16.msra.mxu0 %v1192
      %1211 = vmatprep.subr.bf16.mxu0 0
      %1212 = vmatpush1.bf16.msra.mxu0 0
      %1213 = vmatprep.subr.bf16.mxu0 0
      %1214 = vmatpush1.bf16.msra.mxu0 0
      %1215 = vmatprep.subr.bf16.mxu0 0
      %1216 = vmatpush1.bf16.msra.mxu0 0
      %1217 = vmatprep.subr.bf16.mxu0 0
      %1218 = vmatpush1.bf16.msra.mxu0 0
      %1219 = vmatprep.subr.bf16.mxu0 0
      %1220 = vmatpush1.bf16.msra.mxu0 0
      %1221 = vmatprep.subr.bf16.mxu0 0
      %1222 = vmatpush1.bf16.msra.mxu0 0
      %1223 = vmatprep.subr.bf16.mxu0 0
      %1224 = vmatpush1.bf16.msra.mxu0 0
      %1225 = vmatprep.subr.bf16.mxu0 0
      %1226 = vmatpush1.bf16.msra.mxu0 0
      %1227 = vmatprep.subr.bf16.mxu0 0
      %1228 = vmatpush1.bf16.msra.mxu0 0
      %1229 = vmatprep.subr.bf16.mxu0 0
      %1230 = vmatpush1.bf16.msra.mxu0 0
      %1231 = vmatprep.subr.bf16.mxu0 0
      %1232 = vmatpush1.bf16.msra.mxu0 0
      %1233 = vmatprep.subr.bf16.mxu0 0
      %1234 = vmatpush1.bf16.msra.mxu0 0
      %1235 = vmatprep.subr.bf16.mxu0 0
      %1236 = vmatpush1.bf16.msra.mxu0 0
      %1237 = vmatprep.subr.bf16.mxu0 0
      %1238 = vmatpush1.bf16.msra.mxu0 0
      %1239 = vmatprep.mubr.bf16.mxu0 0
      %1240 = vmatmul.mubr.bf16.gmra.mrb[0].mxu0 %v1196
      %v1241 = vpop.f32.mrb[0].mxu0
      %v1242 = vadd.f32 0.0, %v1241
      %v1243 = vpop.f32.mrb[0].mxu0
      %v1244 = vpop.f32.mrb[0].mxu0
      %v1245 = vadd.f32 0.0, %v1244
      %v1246 = vpop.f32.mrb[0].mxu0
      %1247 = vmatprep.mubr.bf16.mxu0 0
      %1248 = vmatmul.mubr.bf16.gmra.mrb[0].mxu0 %v1199
      %v1249 = vpop.f32.mrb[0].mxu0
      %v1250 = vadd.f32 0.0, %v1249
      %v1251 = vpop.f32.mrb[0].mxu0
      %v1252 = vpop.f32.mrb[0].mxu0
      %v1253 = vadd.f32 0.0, %v1252
      %v1254 = vpop.f32.mrb[0].mxu0
      %1255 = vmatprep.mubr.bf16.mxu0 0
      %1256 = vmatmul.mubr.bf16.gmra.mrb[0].mxu0 %v1202
      %v1257 = vpop.f32.mrb[0].mxu0
      %v1258 = vadd.f32 0.0, %v1257
      %v1259 = vpop.f32.mrb[0].mxu0
      %v1260 = vpop.f32.mrb[0].mxu0
      %v1261 = vadd.f32 0.0, %v1260
      %v1262 = vpop.f32.mrb[0].mxu0
      %1263 = vmatprep.mubr.bf16.mxu0 0
      %1264 = vmatmul.mubr.bf16.gmra.mrb[0].mxu0 %v1205
      %v1265 = vpop.f32.mrb[0].mxu0
      %v1266 = vadd.f32 0.0, %v1265
      %v1267 = vpop.f32.mrb[0].mxu0
      %v1268 = vpop.f32.mrb[0].mxu0
      %v1269 = vadd.f32 0.0, %v1268
      %v1270 = vpop.f32.mrb[0].mxu0
      %1271 = vdwg.mxu0
      %v1272 = vadd.f32 %v1030, %v1242
      %v1273 = vadd.f32 %v1031, %v1245
      %v1274 = vadd.f32 %v1032, %v1250
      %v1275 = vadd.f32 %v1033, %v1253
      %v1276 = vadd.f32 %v1034, %v1258
      %v1277 = vadd.f32 %v1035, %v1261
      %v1278 = vadd.f32 %v1036, %v1266
      %v1279 = vadd.f32 %v1037, %v1269
      %s1280 = scalar_lea.vmem %s172, 24
      %v1281 = vld [vmem:[%s1280] sm:$0xf]
      %v1282 = vld [vmem:[%s1280 + $0x10] sm:$0xf]
      %v1283 = vld [vmem:[%s1280 + $0x20] sm:$0xf]
      %v1284 = vld [vmem:[%s1280 + $0x30] sm:$0xf]
      %v1285 = vld [vmem:[%s1280 + $0x40] sm:$0xf]
      %v1286 = vld [vmem:[%s1280 + $0x50] sm:$0xf]
      %v1287 = vld [vmem:[%s1280 + $0x60] sm:$0xf]
      %v1288 = vld [vmem:[%s1280 + $0x70] sm:$0xf]
      %s1289 = scalar_lea.vmem %s1, 96
      %v1290 = vld [vmem:[%s1289] sm:$0xf]
      %v1291 = vld [vmem:[%s1289 + $0x4] sm:$0xf]
      %v1292 = vld [vmem:[%s1289 + $0x8] sm:$0xf]
      %v1293 = vld [vmem:[%s1289 + $0xc] sm:$0xf]
      %v1302 = vunpack.c.l.b16 %v1281
      %v1303 = vunpack.c.l.b16 %v1282
      %v1304 = vunpack.c.l.b16 %v1283
      %v1305 = vunpack.c.l.b16 %v1284
      %v1306 = vunpack.c.l.b16 %v1285
      %v1307 = vunpack.c.l.b16 %v1286
      %v1308 = vunpack.c.l.b16 %v1287
      %v1309 = vunpack.c.l.b16 %v1288
      %v1310 = vpack.c.b16 %v1303, %v1302
      %v1311 = vpack.c.b16 %v1305, %v1304
      %v1312 = vpack.c.b16 %v1307, %v1306
      %v1313 = vpack.c.b16 %v1309, %v1308
      %v1318 = vunpack.c.l.b16 %v1290
      %v1319 = vunpack.c.l.b16 %v1291
      %v1320 = vunpack.c.l.b16 %v1292
      %v1321 = vunpack.c.l.b16 %v1293
      %v1322 = vpack.c.b16 %v1319, %v1318
      %v1323 = vpack.c.b16 %v1321, %v1320
      %v1327 = vsel %vm347, %v1310, 0
      %v1330 = vsel %vm347, %v1311, 0
      %v1333 = vsel %vm347, %v1312, 0
      %v1336 = vsel %vm347, %v1313, 0
      %1338 = vmatprep.subr.bf16.mxu0 0
      %1339 = vmatpush1.bf16.msra.mxu0 %v1322
      %1340 = vmatprep.subr.bf16.mxu0 0
      %1341 = vmatpush1.bf16.msra.mxu0 %v1323
      %1342 = vmatprep.subr.bf16.mxu0 0
      %1343 = vmatpush1.bf16.msra.mxu0 0
      %1344 = vmatprep.subr.bf16.mxu0 0
      %1345 = vmatpush1.bf16.msra.mxu0 0
      %1346 = vmatprep.subr.bf16.mxu0 0
      %1347 = vmatpush1.bf16.msra.mxu0 0
      %1348 = vmatprep.subr.bf16.mxu0 0
      %1349 = vmatpush1.bf16.msra.mxu0 0
      %1350 = vmatprep.subr.bf16.mxu0 0
      %1351 = vmatpush1.bf16.msra.mxu0 0
      %1352 = vmatprep.subr.bf16.mxu0 0
      %1353 = vmatpush1.bf16.msra.mxu0 0
      %1354 = vmatprep.subr.bf16.mxu0 0
      %1355 = vmatpush1.bf16.msra.mxu0 0
      %1356 = vmatprep.subr.bf16.mxu0 0
      %1357 = vmatpush1.bf16.msra.mxu0 0
      %1358 = vmatprep.subr.bf16.mxu0 0
      %1359 = vmatpush1.bf16.msra.mxu0 0
      %1360 = vmatprep.subr.bf16.mxu0 0
      %1361 = vmatpush1.bf16.msra.mxu0 0
      %1362 = vmatprep.subr.bf16.mxu0 0
      %1363 = vmatpush1.bf16.msra.mxu0 0
      %1364 = vmatprep.subr.bf16.mxu0 0
      %1365 = vmatpush1.bf16.msra.mxu0 0
      %1366 = vmatprep.subr.bf16.mxu0 0
      %1367 = vmatpush1.bf16.msra.mxu0 0
      %1368 = vmatprep.subr.bf16.mxu0 0
      %1369 = vmatpush1.bf16.msra.mxu0 0
      %1370 = vmatprep.mubr.bf16.mxu0 0
      %1371 = vmatmul.mubr.bf16.gmra.mrb[0].mxu0 %v1327
      %v1372 = vpop.f32.mrb[0].mxu0
      %v1373 = vadd.f32 0.0, %v1372
      %v1374 = vpop.f32.mrb[0].mxu0
      %v1375 = vpop.f32.mrb[0].mxu0
      %v1376 = vadd.f32 0.0, %v1375
      %v1377 = vpop.f32.mrb[0].mxu0
      %1378 = vmatprep.mubr.bf16.mxu0 0
      %1379 = vmatmul.mubr.bf16.gmra.mrb[0].mxu0 %v1330
      %v1380 = vpop.f32.mrb[0].mxu0
      %v1381 = vadd.f32 0.0, %v1380
      %v1382 = vpop.f32.mrb[0].mxu0
      %v1383 = vpop.f32.mrb[0].mxu0
      %v1384 = vadd.f32 0.0, %v1383
      %v1385 = vpop.f32.mrb[0].mxu0
      %1386 = vmatprep.mubr.bf16.mxu0 0
      %1387 = vmatmul.mubr.bf16.gmra.mrb[0].mxu0 %v1333
      %v1388 = vpop.f32.mrb[0].mxu0
      %v1389 = vadd.f32 0.0, %v1388
      %v1390 = vpop.f32.mrb[0].mxu0
      %v1391 = vpop.f32.mrb[0].mxu0
      %v1392 = vadd.f32 0.0, %v1391
      %v1393 = vpop.f32.mrb[0].mxu0
      %1394 = vmatprep.mubr.bf16.mxu0 0
      %1395 = vmatmul.mubr.bf16.gmra.mrb[0].mxu0 %v1336
      %v1396 = vpop.f32.mrb[0].mxu0
      %v1397 = vadd.f32 0.0, %v1396
      %v1398 = vpop.f32.mrb[0].mxu0
      %v1399 = vpop.f32.mrb[0].mxu0
      %v1400 = vadd.f32 0.0, %v1399
      %v1401 = vpop.f32.mrb[0].mxu0
      %1402 = vdwg.mxu0
      %v1403 = vadd.f32 %v1272, %v1373
      %v1404 = vadd.f32 %v1273, %v1376
      %v1405 = vadd.f32 %v1274, %v1381
      %v1406 = vadd.f32 %v1275, %v1384
      %v1407 = vadd.f32 %v1276, %v1389
      %v1408 = vadd.f32 %v1277, %v1392
      %v1409 = vadd.f32 %v1278, %v1397
      %v1410 = vadd.f32 %v1279, %v1400
      %v1411 = vld [vmem:[%s1280] sm:$0xf]
      %v1412 = vld [vmem:[%s1280 + $0x4] sm:$0x1]
      %v1413 = vld [vmem:[%s1280 + $0x10] sm:$0xf]
      %v1414 = vld [vmem:[%s1280 + $0x14] sm:$0x1]
      %v1415 = vld [vmem:[%s1280 + $0x20] sm:$0xf]
      %v1416 = vld [vmem:[%s1280 + $0x24] sm:$0x1]
      %v1417 = vld [vmem:[%s1280 + $0x30] sm:$0xf]
      %v1418 = vld [vmem:[%s1280 + $0x34] sm:$0x1]
      %v1419 = vld [vmem:[%s1280 + $0x40] sm:$0xf]
      %v1420 = vld [vmem:[%s1280 + $0x44] sm:$0x1]
      %v1421 = vld [vmem:[%s1280 + $0x50] sm:$0xf]
      %v1422 = vld [vmem:[%s1280 + $0x54] sm:$0x1]
      %v1423 = vld [vmem:[%s1280 + $0x60] sm:$0xf]
      %v1424 = vld [vmem:[%s1280 + $0x64] sm:$0x1]
      %v1425 = vld [vmem:[%s1280 + $0x70] sm:$0xf]
      %v1426 = vld [vmem:[%s1280 + $0x74] sm:$0x1]
      %v1428 = vshrl.u32 %v1411, 16
      %v1430 = vrot.slane %v1428, 4
      %v1431 = vshll.u32 %v1411, 16
      %v1433 = vrot.slane %v1431, 5
      %v1434 = vor.u32 %v1430, %v1433
      %v1435 = vrot.slane %v1434, 4
      %v1437 = vshll.u32 %v1412, 16
      %v1439 = vrot.slane %v1437, 5
      %v1440 = vsel %vm205, %v1435, %v1439
      %v1442 = vshrl.u32 %v1413, 16
      %v1444 = vrot.slane %v1442, 4
      %v1445 = vshll.u32 %v1413, 16
      %v1447 = vrot.slane %v1445, 5
      %v1448 = vor.u32 %v1444, %v1447
      %v1449 = vrot.slane %v1448, 4
      %v1451 = vshll.u32 %v1414, 16
      %v1453 = vrot.slane %v1451, 5
      %v1454 = vsel %vm205, %v1449, %v1453
      %v1456 = vshrl.u32 %v1415, 16
      %v1458 = vrot.slane %v1456, 4
      %v1459 = vshll.u32 %v1415, 16
      %v1461 = vrot.slane %v1459, 5
      %v1462 = vor.u32 %v1458, %v1461
      %v1463 = vrot.slane %v1462, 4
      %v1465 = vshll.u32 %v1416, 16
      %v1467 = vrot.slane %v1465, 5
      %v1468 = vsel %vm205, %v1463, %v1467
      %v1470 = vshrl.u32 %v1417, 16
      %v1472 = vrot.slane %v1470, 4
      %v1473 = vshll.u32 %v1417, 16
      %v1475 = vrot.slane %v1473, 5
      %v1476 = vor.u32 %v1472, %v1475
      %v1477 = vrot.slane %v1476, 4
      %v1479 = vshll.u32 %v1418, 16
      %v1481 = vrot.slane %v1479, 5
      %v1482 = vsel %vm205, %v1477, %v1481
      %v1484 = vshrl.u32 %v1419, 16
      %v1486 = vrot.slane %v1484, 4
      %v1487 = vshll.u32 %v1419, 16
      %v1489 = vrot.slane %v1487, 5
      %v1490 = vor.u32 %v1486, %v1489
      %v1491 = vrot.slane %v1490, 4
      %v1493 = vshll.u32 %v1420, 16
      %v1495 = vrot.slane %v1493, 5
      %v1496 = vsel %vm205, %v1491, %v1495
      %v1498 = vshrl.u32 %v1421, 16
      %v1500 = vrot.slane %v1498, 4
      %v1501 = vshll.u32 %v1421, 16
      %v1503 = vrot.slane %v1501, 5
      %v1504 = vor.u32 %v1500, %v1503
      %v1505 = vrot.slane %v1504, 4
      %v1507 = vshll.u32 %v1422, 16
      %v1509 = vrot.slane %v1507, 5
      %v1510 = vsel %vm205, %v1505, %v1509
      %v1512 = vshrl.u32 %v1423, 16
      %v1514 = vrot.slane %v1512, 4
      %v1515 = vshll.u32 %v1423, 16
      %v1517 = vrot.slane %v1515, 5
      %v1518 = vor.u32 %v1514, %v1517
      %v1519 = vrot.slane %v1518, 4
      %v1521 = vshll.u32 %v1424, 16
      %v1523 = vrot.slane %v1521, 5
      %v1524 = vsel %vm205, %v1519, %v1523
      %v1526 = vshrl.u32 %v1425, 16
      %v1528 = vrot.slane %v1526, 4
      %v1529 = vshll.u32 %v1425, 16
      %v1531 = vrot.slane %v1529, 5
      %v1532 = vor.u32 %v1528, %v1531
      %v1533 = vrot.slane %v1532, 4
      %v1535 = vshll.u32 %v1426, 16
      %v1537 = vrot.slane %v1535, 5
      %v1538 = vsel %vm205, %v1533, %v1537
      %s1539 = scalar_lea.vmem %s1, 112
      %v1540 = vld [vmem:[%s1539] sm:$0xf]
      %v1541 = vld [vmem:[%s1539 + $0x4] sm:$0xf]
      %v1542 = vld [vmem:[%s1539 + $0x8] sm:$0xf]
      %v1543 = vld [vmem:[%s1539 + $0xc] sm:$0xf]
      %v1544 = vunpack.c.l.b16 %v1440
      %v1545 = vunpack.c.l.b16 %v1454
      %v1546 = vunpack.c.l.b16 %v1468
      %v1547 = vunpack.c.l.b16 %v1482
      %v1548 = vunpack.c.l.b16 %v1496
      %v1549 = vunpack.c.l.b16 %v1510
      %v1550 = vunpack.c.l.b16 %v1524
      %v1551 = vunpack.c.l.b16 %v1538
      %v1552 = vpack.c.b16 %v1545, %v1544
      %v1553 = vpack.c.b16 %v1547, %v1546
      %v1554 = vpack.c.b16 %v1549, %v1548
      %v1555 = vpack.c.b16 %v1551, %v1550
      %v1560 = vunpack.c.l.b16 %v1540
      %v1561 = vunpack.c.l.b16 %v1541
      %v1562 = vunpack.c.l.b16 %v1542
      %v1563 = vunpack.c.l.b16 %v1543
      %v1564 = vpack.c.b16 %v1561, %v1560
      %v1565 = vpack.c.b16 %v1563, %v1562
      %v1569 = vsel %vm347, %v1552, 0
      %v1572 = vsel %vm347, %v1553, 0
      %v1575 = vsel %vm347, %v1554, 0
      %v1578 = vsel %vm347, %v1555, 0
      %1580 = vmatprep.subr.bf16.mxu0 0
      %1581 = vmatpush1.bf16.msra.mxu0 %v1564
      %1582 = vmatprep.subr.bf16.mxu0 0
      %1583 = vmatpush1.bf16.msra.mxu0 %v1565
      %1584 = vmatprep.subr.bf16.mxu0 0
      %1585 = vmatpush1.bf16.msra.mxu0 0
      %1586 = vmatprep.subr.bf16.mxu0 0
      %1587 = vmatpush1.bf16.msra.mxu0 0
      %1588 = vmatprep.subr.bf16.mxu0 0
      %1589 = vmatpush1.bf16.msra.mxu0 0
      %1590 = vmatprep.subr.bf16.mxu0 0
      %1591 = vmatpush1.bf16.msra.mxu0 0
      %1592 = vmatprep.subr.bf16.mxu0 0
      %1593 = vmatpush1.bf16.msra.mxu0 0
      %1594 = vmatprep.subr.bf16.mxu0 0
      %1595 = vmatpush1.bf16.msra.mxu0 0
      %1596 = vmatprep.subr.bf16.mxu0 0
      %1597 = vmatpush1.bf16.msra.mxu0 0
      %1598 = vmatprep.subr.bf16.mxu0 0
      %1599 = vmatpush1.bf16.msra.mxu0 0
      %1600 = vmatprep.subr.bf16.mxu0 0
      %1601 = vmatpush1.bf16.msra.mxu0 0
      %1602 = vmatprep.subr.bf16.mxu0 0
      %1603 = vmatpush1.bf16.msra.mxu0 0
      %1604 = vmatprep.subr.bf16.mxu0 0
      %1605 = vmatpush1.bf16.msra.mxu0 0
      %1606 = vmatprep.subr.bf16.mxu0 0
      %1607 = vmatpush1.bf16.msra.mxu0 0
      %1608 = vmatprep.subr.bf16.mxu0 0
      %1609 = vmatpush1.bf16.msra.mxu0 0
      %1610 = vmatprep.subr.bf16.mxu0 0
      %1611 = vmatpush1.bf16.msra.mxu0 0
      %1612 = vmatprep.mubr.bf16.mxu0 0
      %1613 = vmatmul.mubr.bf16.gmra.mrb[0].mxu0 %v1569
      %v1614 = vpop.f32.mrb[0].mxu0
      %v1615 = vadd.f32 0.0, %v1614
      %v1616 = vpop.f32.mrb[0].mxu0
      %v1617 = vpop.f32.mrb[0].mxu0
      %v1618 = vadd.f32 0.0, %v1617
      %v1619 = vpop.f32.mrb[0].mxu0
      %1620 = vmatprep.mubr.bf16.mxu0 0
      %1621 = vmatmul.mubr.bf16.gmra.mrb[0].mxu0 %v1572
      %v1622 = vpop.f32.mrb[0].mxu0
      %v1623 = vadd.f32 0.0, %v1622
      %v1624 = vpop.f32.mrb[0].mxu0
      %v1625 = vpop.f32.mrb[0].mxu0
      %v1626 = vadd.f32 0.0, %v1625
      %v1627 = vpop.f32.mrb[0].mxu0
      %1628 = vmatprep.mubr.bf16.mxu0 0
      %1629 = vmatmul.mubr.bf16.gmra.mrb[0].mxu0 %v1575
      %v1630 = vpop.f32.mrb[0].mxu0
      %v1631 = vadd.f32 0.0, %v1630
      %v1632 = vpop.f32.mrb[0].mxu0
      %v1633 = vpop.f32.mrb[0].mxu0
      %v1634 = vadd.f32 0.0, %v1633
      %v1635 = vpop.f32.mrb[0].mxu0
      %1636 = vmatprep.mubr.bf16.mxu0 0
      %1637 = vmatmul.mubr.bf16.gmra.mrb[0].mxu0 %v1578
      %v1638 = vpop.f32.mrb[0].mxu0
      %v1639 = vadd.f32 0.0, %v1638
      %v1640 = vpop.f32.mrb[0].mxu0
      %v1641 = vpop.f32.mrb[0].mxu0
      %v1642 = vadd.f32 0.0, %v1641
      %v1643 = vpop.f32.mrb[0].mxu0
      %1644 = vdwg.mxu0
      %v1645 = vadd.f32 %v1403, %v1615
      %v1646 = vadd.f32 %v1404, %v1618
      %v1647 = vadd.f32 %v1405, %v1623
      %v1648 = vadd.f32 %v1406, %v1626
      %v1649 = vadd.f32 %v1407, %v1631
      %v1650 = vadd.f32 %v1408, %v1634
      %v1651 = vadd.f32 %v1409, %v1639
      %v1652 = vadd.f32 %v1410, %v1642
      %1653 = vst.msk [vmem:[%s177] sm:$0xff] %vm347, %v1645
      %1654 = vst.msk [vmem:[%s177 + $0x8] sm:$0xff] %vm347, %v1646
      %1655 = vst.msk [vmem:[%s177 + $0x10] sm:$0xff] %vm347, %v1647
      %1656 = vst.msk [vmem:[%s177 + $0x18] sm:$0xff] %vm347, %v1648
      %1657 = vst.msk [vmem:[%s177 + $0x20] sm:$0xff] %vm347, %v1649
      %1658 = vst.msk [vmem:[%s177 + $0x28] sm:$0xff] %vm347, %v1650
      %1659 = vst.msk [vmem:[%s177 + $0x30] sm:$0xff] %vm347, %v1651
      %1660 = vst.msk [vmem:[%s177 + $0x38] sm:$0xff] %vm347, %v1652
      %v1661 = vsel %vm347, %v1645, 0.0
      %v1662 = vsel %vm347, %v1646, 0.0
      %v1663 = vadd.f32 %v1661, %v1662
      %v1664 = vsel %vm347, %v1647, 0.0
      %v1665 = vadd.f32 %v1663, %v1664
      %v1666 = vsel %vm347, %v1648, 0.0
      %v1667 = vadd.f32 %v1665, %v1666
      %v1668 = vsel %vm347, %v1649, 0.0
      %v1669 = vadd.f32 %v1667, %v1668
      %v1670 = vsel %vm347, %v1650, 0.0
      %v1671 = vadd.f32 %v1669, %v1670
      %v1672 = vsel %vm347, %v1651, 0.0
      %v1673 = vadd.f32 %v1671, %v1672
      %v1674 = vsel %vm347, %v1652, 0.0
      %v1675 = vadd.f32 %v1673, %v1674
      %v1676 = vrot.slane %v1675, 4
      %v1677 = vadd.f32 %v1675, %v1676
      %v1678 = vrot.slane %v1677, 2
      %v1679 = vadd.f32 %v1677, %v1678
      %v1680 = vrot.slane %v1679, 1
      %v1681 = vadd.f32 %v1679, %v1680
      %v1682 = vmul.f32 %v1645, %v1645
      %v1683 = vmul.f32 %v1646, %v1646
      %v1684 = vmul.f32 %v1647, %v1647
      %v1685 = vmul.f32 %v1648, %v1648
      %v1686 = vmul.f32 %v1649, %v1649
      %v1687 = vmul.f32 %v1650, %v1650
      %v1688 = vmul.f32 %v1651, %v1651
      %v1689 = vmul.f32 %v1652, %v1652
      %v1690 = vsel %vm347, %v1682, 0.0
      %v1691 = vsel %vm347, %v1683, 0.0
      %v1692 = vadd.f32 %v1690, %v1691
      %v1693 = vsel %vm347, %v1684, 0.0
      %v1694 = vadd.f32 %v1692, %v1693
      %v1695 = vsel %vm347, %v1685, 0.0
      %v1696 = vadd.f32 %v1694, %v1695
      %v1697 = vsel %vm347, %v1686, 0.0
      %v1698 = vadd.f32 %v1696, %v1697
      %v1699 = vsel %vm347, %v1687, 0.0
      %v1700 = vadd.f32 %v1698, %v1699
      %v1701 = vsel %vm347, %v1688, 0.0
      %v1702 = vadd.f32 %v1700, %v1701
      %v1703 = vsel %vm347, %v1689, 0.0
      %v1704 = vadd.f32 %v1702, %v1703
      %v1705 = vrot.slane %v1704, 4
      %v1706 = vadd.f32 %v1704, %v1705
      %v1707 = vrot.slane %v1706, 2
      %v1708 = vadd.f32 %v1706, %v1707
      %v1709 = vrot.slane %v1708, 1
      %v1710 = vadd.f32 %v1708, %v1709
      %vm1711 = vcmask 1040384
      %v1712 = vsel %vm1711, %v1681, %v1710
      %vm1713 = vcmask 254976
      %1714 = vst.msk [vmem:[%s181] sm:$0x3] %vm1713, %v1712
      %p1715 = scmp.lt.s32.totalorder %s15, 1
      %s1716 = scalar_select %p1715, %s15, 1
      %s1717 = smul.addr %s1716, 8
      %s1718 = smul.addr %s1717, 8
      %s1719 = scalar_lea.vmem %s2, %s1718
      %p1720 = scmp.lt.s32.totalorder %s15, 1
      %s1721 = scalar_select %p1720, %s15, 1
      %s1722 = smul.addr %s1721, 2
      %s1723 = scalar_lea.vmem %s3, %s1722
      // Predicated region
      $region29: #{_lambda_.9} parent=27 // pred_check
        %p1724 = pneg %p80
      $region30: #{_lambda_.9} parent=27 // pred_check_branch
        %1726 = sbr.rel (%p1724) target = $region32
      $region31: #{_lambda_.9} parent=27 // pred_region
        _
      $region32: #{_lambda_.9} parent=27 // pred_fallthru
        _
      // Predicated region
      $region33: #{_lambda_.9} parent=27 // pred_check
        %p1727 = pneg %p106
      $region34: #{_lambda_.9} parent=27 // pred_check_branch
        %1729 = sbr.rel (%p1727) target = $region36
      $region35: #{_lambda_.9} parent=27 // pred_region
        _
      $region36: #{_lambda_.9} parent=27 // pred_fallthru
        _
    $region28: #{_lambda_.9} parent=5 // pred_fallthru
      _
    %p1730 = scmp.le.s32.totalorder 2, %s10
    // Predicated region
    $region37: #{_lambda_.9} parent=5 // pred_check
      %p1731 = pneg %p1730
    $region38: #{_lambda_.9} parent=5 // pred_check_branch
      %1733 = sbr.rel (%p1731) target = $region40
    $region39: #{_lambda_.9} parent=5 // pred_region
      %s1734 = ssub.s32 %s10, 2
      // Predicated region
      $region41: #{_lambda_.9} parent=39 // pred_check
        %p1735 = pneg %p86
      $region42: #{_lambda_.9} parent=39 // pred_check_branch
        %1737 = sbr.rel (%p1735) target = $region44
      $region43: #{_lambda_.9} parent=39 // pred_region
        %p1738 = scmp.lt.s32.totalorder %s16, 1
        %s1739 = scalar_select %p1738, %s16, 1
        %s1740 = smul.addr %s1739, 8
        %s1741 = smul.addr %s1740, 8
        %s1742 = scalar_lea.vmem %s2, %s1741
      $region44: #{_lambda_.9} parent=39 // pred_fallthru
        _
      // Predicated region
      $region45: #{_lambda_.9} parent=39 // pred_check
        %p1743 = pneg %p112
      $region46: #{_lambda_.9} parent=39 // pred_check_branch
        %1745 = sbr.rel (%p1743) target = $region48
      $region47: #{_lambda_.9} parent=39 // pred_region
        %p1746 = scmp.lt.s32.totalorder %s16, 1
        %s1747 = scalar_select %p1746, %s16, 1
        %s1748 = smul.addr %s1747, 2
        %s1749 = scalar_lea.vmem %s3, %s1748
      $region48: #{_lambda_.9} parent=39 // pred_fallthru
        _
    $region40: #{_lambda_.9} parent=5 // pred_fallthru
      _
  $region6: #{_lambda_.9} parent=0 // loop_footer
    %s14 = sadd.s32 1, %s10
  $region7: #{_lambda_.9} parent=0 // loop_footer_branch
    %9 = sbr.rel target = $region3
  $region8: #{_lambda_.9} parent=0 // loop_exit
    _

// kernel: _lambda_.12
$region0: #{_lambda_.12}
  #allocation0 [shape = 'u32[]', space=smem, size = 0x4, offset = 0x4, fixed_abs, tag = 'smem constant byte address 0x4 - core index']
  #allocation1 [shape = 'u32[144,128]{1,0:T(1,128)}', space=vmem, size = 0x12000, scoped, tag = 'internal scratch']
  %s0 = inlined_call_operand.vmem [shape: f32[2,16,64], index: 0, kind: input, shape index: {}]
  %s1 = inlined_call_operand.vmem [shape: f32[1,64], index: 1, kind: input, shape index: {}]
  %s2 = inlined_call_operand.vmem [shape: f32[1,64], index: 2, kind: input, shape index: {}]
  %s3 = inlined_call_operand.vmem [shape: bf16[2,16,64], index: 3, kind: output, shape index: {}]
  %s4 = sld [smem:[#allocation0]]
  $region45: #{_lambda_.12} parent=0
    _
  %s6 = ssub.s32 1, %s4
  %s7 = scalar_select 0, %s6, %s4
  loop: start=0, step=1, limit=4
  $region2: #{_lambda_.12} parent=0 // loop_pre_header
    _
  $region3: #{_lambda_.12} parent=0 // loop_header
    %s9 = sphi 0, %s13
    %p10 = scmp.ge.s32.totalorder %s9, 4
    %s19 = sphi 0, %s21
    %s22 = sphi 0, %s19
    %s23 = sphi 0, %s22
    %s39 = sphi 0, %s23
    %s43 = sphi 0, %s43
    %s45 = sphi 0, %s43
    %s46 = sphi 0, %s45
    %s60 = sphi 0, %s46
    %s64 = sphi 0, %s64
    %s66 = sphi 0, %s64
    %s67 = sphi 0, %s66
    %s81 = sphi 0, %s67
    %s87 = sphi 0, %s89
    %s90 = sphi 0, %s87
    %s91 = sphi 0, %s90
    %s107 = sphi 0, %s91
  $region4: #{_lambda_.12} parent=0 // loop_header_branch
    %12 = sbr.rel (%p10) target = $region8
  $region5: #{_lambda_.12} parent=0 // loop_body
    %s14 = ssub.s32 %s9, 1
    %s15 = ssub.s32 %s9, 2
    %s16 = sadd.s32 %s9, 1
    %s17 = ssub.s32 %s9, %s16
    %p18 = scmp.eq.s32.totalorder %s17, 0
    %s20 = sadd.s32 %s19, 1
    %s21 = scalar_select %p18, %s19, %s20
    %p24 = pneg %p18
    %p25 = scmp.eq.s32.totalorder %s9, 1
    %p26 = por %p24, %p25
    %p27 = scmp.ne.s32.totalorder %s19, %s22
    %p28 = scmp.eq.s32.totalorder %s9, 0
    %p29 = por %p27, %p28
    %p30 = scmp.ne.s32.totalorder %s19, %s22
    %p31 = scmp.eq.s32.totalorder %s14, 1
    %p32 = por %p30, %p31
    %p33 = scmp.ne.s32.totalorder %s22, %s23
    %p34 = scmp.eq.s32.totalorder %s14, 0
    %p35 = por %p33, %p34
    %p36 = scmp.ne.s32.totalorder %s22, %s23
    %p37 = scmp.eq.s32.totalorder %s15, 1
    %p38 = por %p36, %p37
    %p40 = scmp.ne.s32.totalorder %s23, %s39
    %p41 = scmp.eq.s32.totalorder %s15, 0
    %p42 = por %p40, %p41
    %s44 = sadd.s32 %s43, 1
    %p47 = scmp.eq.s32.totalorder %s9, 1
    %p48 = scmp.ne.s32.totalorder %s43, %s45
    %p49 = scmp.eq.s32.totalorder %s9, 0
    %p50 = por %p48, %p49
    %p51 = scmp.ne.s32.totalorder %s43, %s45
    %p52 = scmp.eq.s32.totalorder %s14, 1
    %p53 = por %p51, %p52
    %p54 = scmp.ne.s32.totalorder %s45, %s46
    %p55 = scmp.eq.s32.totalorder %s14, 0
    %p56 = por %p54, %p55
    %p57 = scmp.ne.s32.totalorder %s45, %s46
    %p58 = scmp.eq.s32.totalorder %s15, 1
    %p59 = por %p57, %p58
    %p61 = scmp.ne.s32.totalorder %s46, %s60
    %p62 = scmp.eq.s32.totalorder %s15, 0
    %p63 = por %p61, %p62
    %s65 = sadd.s32 %s64, 1
    %p68 = scmp.eq.s32.totalorder %s9, 1
    %p69 = scmp.ne.s32.totalorder %s64, %s66
    %p70 = scmp.eq.s32.totalorder %s9, 0
    %p71 = por %p69, %p70
    %p72 = scmp.ne.s32.totalorder %s64, %s66
    %p73 = scmp.eq.s32.totalorder %s14, 1
    %p74 = por %p72, %p73
    %p75 = scmp.ne.s32.totalorder %s66, %s67
    %p76 = scmp.eq.s32.totalorder %s14, 0
    %p77 = por %p75, %p76
    %p78 = scmp.ne.s32.totalorder %s66, %s67
    %p79 = scmp.eq.s32.totalorder %s15, 1
    %p80 = por %p78, %p79
    %p82 = scmp.ne.s32.totalorder %s67, %s81
    %p83 = scmp.eq.s32.totalorder %s15, 0
    %p84 = por %p82, %p83
    %s85 = ssub.s32 %s9, %s16
    %p86 = scmp.eq.s32.totalorder %s85, 0
    %s88 = sadd.s32 %s87, 1
    %s89 = scalar_select %p86, %s87, %s88
    %p92 = pneg %p86
    %p93 = scmp.eq.s32.totalorder %s9, 1
    %p94 = por %p92, %p93
    %p95 = scmp.ne.s32.totalorder %s87, %s90
    %p96 = scmp.eq.s32.totalorder %s9, 0
    %p97 = por %p95, %p96
    %p98 = scmp.ne.s32.totalorder %s87, %s90
    %p99 = scmp.eq.s32.totalorder %s14, 1
    %p100 = por %p98, %p99
    %p101 = scmp.ne.s32.totalorder %s90, %s91
    %p102 = scmp.eq.s32.totalorder %s14, 0
    %p103 = por %p101, %p102
    %p104 = scmp.ne.s32.totalorder %s90, %s91
    %p105 = scmp.eq.s32.totalorder %s15, 1
    %p106 = por %p104, %p105
    %p108 = scmp.ne.s32.totalorder %s91, %s107
    %p109 = scmp.eq.s32.totalorder %s15, 0
    %p110 = por %p108, %p109
    %p111 = scmp.le.s32.totalorder 1, %s9
    %p112 = scmp.lt.s32.totalorder %s9, 3
    %p113 = pnand %p111, %p112
    %p114 = pneg %p113
    // Predicated region
    $region9: #{_lambda_.12} parent=5 // pred_check
      _
    $region10: #{_lambda_.12} parent=5 // pred_check_branch
      %116 = sbr.rel (%p113) target = $region12
    $region11: #{_lambda_.12} parent=5 // pred_region
      %s117 = ssub.s32 %s9, 1
      // Predicated region
      $region13: #{_lambda_.12} parent=11 // pred_check
        %p118 = pneg %p56
      $region14: #{_lambda_.12} parent=11 // pred_check_branch
        %120 = sbr.rel (%p118) target = $region16
      $region15: #{_lambda_.12} parent=11 // pred_region
        _
      $region16: #{_lambda_.12} parent=11 // pred_fallthru
        _
      // Predicated region
      $region17: #{_lambda_.12} parent=11 // pred_check
        %p121 = pneg %p77
      $region18: #{_lambda_.12} parent=11 // pred_check_branch
        %123 = sbr.rel (%p121) target = $region20
      $region19: #{_lambda_.12} parent=11 // pred_region
        _
      $region20: #{_lambda_.12} parent=11 // pred_fallthru
        _
    $region12: #{_lambda_.12} parent=5 // pred_fallthru
      _
    %p124 = scmp.lt.s32.totalorder %s9, 2
    // Predicated region
    $region21: #{_lambda_.12} parent=5 // pred_check
      %p125 = pneg %p124
    $region22: #{_lambda_.12} parent=5 // pred_check_branch
      %127 = sbr.rel (%p125) target = $region24
    $region23: #{_lambda_.12} parent=5 // pred_region
      // Predicated region
      $region25: #{_lambda_.12} parent=23 // pred_check
        %p128 = pneg %p29
      $region26: #{_lambda_.12} parent=23 // pred_check_branch
        %130 = sbr.rel (%p128) target = $region28
      $region27: #{_lambda_.12} parent=23 // pred_region
        %p131 = scmp.lt.s32.totalorder %s9, 1
        %s132 = scalar_select %p131, %s9, 1
        %s133 = smul.addr %s132, 2
        %s134 = smul.addr %s133, 8
        %s135 = scalar_lea.vmem %s0, %s134
      $region28: #{_lambda_.12} parent=23 // pred_fallthru
        _
    $region24: #{_lambda_.12} parent=5 // pred_fallthru
      _
    %p136 = scmp.le.s32.totalorder 1, %s9
    %p137 = scmp.lt.s32.totalorder %s9, 3
    %p138 = pnand %p136, %p137
    %p139 = pneg %p138
    // Predicated region
    $region29: #{_lambda_.12} parent=5 // pred_check
      _
    $region30: #{_lambda_.12} parent=5 // pred_check_branch
      %141 = sbr.rel (%p138) target = $region32
    $region31: #{_lambda_.12} parent=5 // pred_region
      %s142 = ssub.s32 %s9, 1
      %p143 = scmp.lt.s32.totalorder %s14, 1
      %s144 = scalar_select %p143, %s14, 1
      %s145 = smul.addr %s144, 2
      %s146 = smul.addr %s145, 8
      %s147 = scalar_lea.vmem %s0, %s146
      %p148 = pneg %p35
      %p149 = pneg %p32
      %p150 = pneg %p56
      %p151 = pneg %p53
      %p152 = pneg %p77
      %p153 = pneg %p74
      %p154 = pneg %p103
      %p155 = pneg %p100
      %p156 = scmp.lt.s32.totalorder %s14, 1
      %s157 = scalar_select %p156, %s14, 1
      %s158 = smul.addr %s157, 2
      %s159 = smul.addr %s158, 4
      %s160 = scalar_lea.vmem %s3, %s159
      %p161 = scmp.lt.s32.totalorder %s14, 1
      %s162 = scalar_select %p161, %s14, 1
      %s163 = smul.addr %s162, 2
      %s164 = smul.addr %s163, 8
      %s165 = scalar_lea.vmem %s0, %s164
      %p166 = scmp.lt.s32.totalorder %s14, 1
      %s167 = scalar_select %p166, %s14, 1
      %s168 = smul.addr %s167, 2
      %s169 = smul.addr %s168, 4
      %s170 = scalar_lea.vmem %s3, %s169
      %v171 = vld [vmem:[%s165] sm:$0xff]
      %v172 = vld [vmem:[%s165 + $0x8] sm:$0xff]
      %v173 = vld [vmem:[%s1] sm:$0x1]
      %v175 = vlaneseq
      %v176 = vshrl.u32 %v175, 7
      %v177 = vsub.s32 0, %v176
      %v178 = vrot.slane %v173, %v177
      %v180 = vmul.f32 %v171, %v178
      %v181 = vmul.f32 %v172, %v178
      %v182 = vld [vmem:[%s2] sm:$0x1]
      %v184 = vlaneseq
      %v185 = vshrl.u32 %v184, 7
      %v186 = vsub.s32 0, %v185
      %v187 = vrot.slane %v182, %v186
      %v189 = vadd.f32 %v180, %v187
      %v190 = vadd.f32 %v181, %v187
      %vm191 = vcmp.ge.f32.partialorder %v189, 0.0
      %vm192 = vcmp.ge.f32.partialorder %v190, 0.0
      %v193 = vmul.f32 %v189, 0.2
      %v194 = vmul.f32 %v190, 0.2
      %v195 = vsel %vm191, %v189, %v193
      %v196 = vsel %vm192, %v190, %v194
      %v197 = vpack.c.bf16 %v196, %v195
      %v199 = vunpack.c.l.b16 %v197
      %v200 = vunpack.c.h.b16 %v197
      %v201 = vpack.c.b16 %v199, %v199
      %v202 = vpack.c.b16 %v200, %v200
      %vm205 = vcmask 519168
      %206 = vst.msk [vmem:[%s170] sm:$0xf] %vm205, %v201
      %207 = vst.msk [vmem:[%s170 + $0x4] sm:$0xf] %vm205, %v202
      %p208 = scmp.lt.s32.totalorder %s14, 1
      %s209 = scalar_select %p208, %s14, 1
      %s210 = smul.addr %s209, 2
      %s211 = smul.addr %s210, 4
      %s212 = scalar_lea.vmem %s3, %s211
      // Predicated region
      $region33: #{_lambda_.12} parent=31 // pred_check
        %p213 = pneg %p100
      $region34: #{_lambda_.12} parent=31 // pred_check_branch
        %215 = sbr.rel (%p213) target = $region36
      $region35: #{_lambda_.12} parent=31 // pred_region
        _
      $region36: #{_lambda_.12} parent=31 // pred_fallthru
        _
    $region32: #{_lambda_.12} parent=5 // pred_fallthru
      _
    %p216 = scmp.le.s32.totalorder 2, %s9
    // Predicated region
    $region37: #{_lambda_.12} parent=5 // pred_check
      %p217 = pneg %p216
    $region38: #{_lambda_.12} parent=5 // pred_check_branch
      %219 = sbr.rel (%p217) target = $region40
    $region39: #{_lambda_.12} parent=5 // pred_region
      %s220 = ssub.s32 %s9, 2
      // Predicated region
      $region41: #{_lambda_.12} parent=39 // pred_check
        %p221 = pneg %p106
      $region42: #{_lambda_.12} parent=39 // pred_check_branch
        %223 = sbr.rel (%p221) target = $region44
      $region43: #{_lambda_.12} parent=39 // pred_region
        %p224 = scmp.lt.s32.totalorder %s15, 1
        %s225 = scalar_select %p224, %s15, 1
        %s226 = smul.addr %s225, 2
        %s227 = smul.addr %s226, 4
        %s228 = scalar_lea.vmem %s3, %s227
      $region44: #{_lambda_.12} parent=39 // pred_fallthru
        _
    $region40: #{_lambda_.12} parent=5 // pred_fallthru
      _
  $region6: #{_lambda_.12} parent=0 // loop_footer
    %s13 = sadd.s32 1, %s9
  $region7: #{_lambda_.12} parent=0 // loop_footer_branch
    %8 = sbr.rel target = $region3
  $region8: #{_lambda_.12} parent=0 // loop_exit
    _

// kernel: _lambda_.11
$region0: #{_lambda_.11}
  #allocation0 [shape = 'u32[]', space=smem, size = 0x4, offset = 0x4, fixed_abs, tag = 'smem constant byte address 0x4 - core index']
  #allocation1 [shape = 'u32[144,128]{1,0:T(1,128)}', space=vmem, size = 0x12000, scoped, tag = 'internal scratch']
  %s0 = inlined_call_operand.vmem [shape: bf16[2,5,2,5,64], index: 0, kind: input, shape index: {}]
  %s1 = inlined_call_operand.vmem [shape: bf16[4,2,64,64], index: 1, kind: input, shape index: {}]
  %s2 = inlined_call_operand.vmem [shape: f32[2,16,64], index: 2, kind: output, shape index: {0}]
  %s3 = inlined_call_operand.vmem [shape: f32[2,2,64], index: 3, kind: output, shape index: {1}]
  %4 = xla_tuple %s2, %s3
  %s5 = sld [smem:[#allocation0]]
  $region49: #{_lambda_.11} parent=0
    _
  %s7 = ssub.s32 1, %s5
  %s8 = scalar_select 0, %s7, %s5
  loop: start=0, step=1, limit=4
  $region2: #{_lambda_.11} parent=0 // loop_pre_header
    _
  $region3: #{_lambda_.11} parent=0 // loop_header
    %s10 = sphi 0, %s14
    %p11 = scmp.ge.s32.totalorder %s10, 4
    %s20 = sphi 0, %s22
    %s23 = sphi 0, %s20
    %s24 = sphi 0, %s23
    %s40 = sphi 0, %s24
    %s44 = sphi 0, %s44
    %s46 = sphi 0, %s44
    %s47 = sphi 0, %s46
    %s61 = sphi 0, %s47
    %s67 = sphi 0, %s69
    %s70 = sphi 0, %s67
    %s71 = sphi 0, %s70
    %s87 = sphi 0, %s71
    %s93 = sphi 0, %s95
    %s96 = sphi 0, %s93
    %s97 = sphi 0, %s96
    %s113 = sphi 0, %s97
  $region4: #{_lambda_.11} parent=0 // loop_header_branch
    %13 = sbr.rel (%p11) target = $region8
  $region5: #{_lambda_.11} parent=0 // loop_body
    %s15 = ssub.s32 %s10, 1
    %s16 = ssub.s32 %s10, 2
    %s17 = sadd.s32 %s10, 1
    %s18 = ssub.s32 %s10, %s17
    %p19 = scmp.eq.s32.totalorder %s18, 0
    %s21 = sadd.s32 %s20, 1
    %s22 = scalar_select %p19, %s20, %s21
    %p25 = pneg %p19
    %p26 = scmp.eq.s32.totalorder %s10, 1
    %p27 = por %p25, %p26
    %p28 = scmp.ne.s32.totalorder %s20, %s23
    %p29 = scmp.eq.s32.totalorder %s10, 0
    %p30 = por %p28, %p29
    %p31 = scmp.ne.s32.totalorder %s20, %s23
    %p32 = scmp.eq.s32.totalorder %s15, 1
    %p33 = por %p31, %p32
    %p34 = scmp.ne.s32.totalorder %s23, %s24
    %p35 = scmp.eq.s32.totalorder %s15, 0
    %p36 = por %p34, %p35
    %p37 = scmp.ne.s32.totalorder %s23, %s24
    %p38 = scmp.eq.s32.totalorder %s16, 1
    %p39 = por %p37, %p38
    %p41 = scmp.ne.s32.totalorder %s24, %s40
    %p42 = scmp.eq.s32.totalorder %s16, 0
    %p43 = por %p41, %p42
    %s45 = sadd.s32 %s44, 1
    %p48 = scmp.eq.s32.totalorder %s10, 1
    %p49 = scmp.ne.s32.totalorder %s44, %s46
    %p50 = scmp.eq.s32.totalorder %s10, 0
    %p51 = por %p49, %p50
    %p52 = scmp.ne.s32.totalorder %s44, %s46
    %p53 = scmp.eq.s32.totalorder %s15, 1
    %p54 = por %p52, %p53
    %p55 = scmp.ne.s32.totalorder %s46, %s47
    %p56 = scmp.eq.s32.totalorder %s15, 0
    %p57 = por %p55, %p56
    %p58 = scmp.ne.s32.totalorder %s46, %s47
    %p59 = scmp.eq.s32.totalorder %s16, 1
    %p60 = por %p58, %p59
    %p62 = scmp.ne.s32.totalorder %s47, %s61
    %p63 = scmp.eq.s32.totalorder %s16, 0
    %p64 = por %p62, %p63
    %s65 = ssub.s32 %s10, %s17
    %p66 = scmp.eq.s32.totalorder %s65, 0
    %s68 = sadd.s32 %s67, 1
    %s69 = scalar_select %p66, %s67, %s68
    %p72 = pneg %p66
    %p73 = scmp.eq.s32.totalorder %s10, 1
    %p74 = por %p72, %p73
    %p75 = scmp.ne.s32.totalorder %s67, %s70
    %p76 = scmp.eq.s32.totalorder %s10, 0
    %p77 = por %p75, %p76
    %p78 = scmp.ne.s32.totalorder %s67, %s70
    %p79 = scmp.eq.s32.totalorder %s15, 1
    %p80 = por %p78, %p79
    %p81 = scmp.ne.s32.totalorder %s70, %s71
    %p82 = scmp.eq.s32.totalorder %s15, 0
    %p83 = por %p81, %p82
    %p84 = scmp.ne.s32.totalorder %s70, %s71
    %p85 = scmp.eq.s32.totalorder %s16, 1
    %p86 = por %p84, %p85
    %p88 = scmp.ne.s32.totalorder %s71, %s87
    %p89 = scmp.eq.s32.totalorder %s16, 0
    %p90 = por %p88, %p89
    %s91 = ssub.s32 %s10, %s17
    %p92 = scmp.eq.s32.totalorder %s91, 0
    %s94 = sadd.s32 %s93, 1
    %s95 = scalar_select %p92, %s93, %s94
    %p98 = pneg %p92
    %p99 = scmp.eq.s32.totalorder %s10, 1
    %p100 = por %p98, %p99
    %p101 = scmp.ne.s32.totalorder %s93, %s96
    %p102 = scmp.eq.s32.totalorder %s10, 0
    %p103 = por %p101, %p102
    %p104 = scmp.ne.s32.totalorder %s93, %s96
    %p105 = scmp.eq.s32.totalorder %s15, 1
    %p106 = por %p104, %p105
    %p107 = scmp.ne.s32.totalorder %s96, %s97
    %p108 = scmp.eq.s32.totalorder %s15, 0
    %p109 = por %p107, %p108
    %p110 = scmp.ne.s32.totalorder %s96, %s97
    %p111 = scmp.eq.s32.totalorder %s16, 1
    %p112 = por %p110, %p111
    %p114 = scmp.ne.s32.totalorder %s97, %s113
    %p115 = scmp.eq.s32.totalorder %s16, 0
    %p116 = por %p114, %p115
    %p117 = scmp.le.s32.totalorder 1, %s10
    %p118 = scmp.lt.s32.totalorder %s10, 3
    %p119 = pnand %p117, %p118
    %p120 = pneg %p119
    // Predicated region
    $region9: #{_lambda_.11} parent=5 // pred_check
      _
    $region10: #{_lambda_.11} parent=5 // pred_check_branch
      %122 = sbr.rel (%p119) target = $region12
    $region11: #{_lambda_.11} parent=5 // pred_region
      %s123 = ssub.s32 %s10, 1
      // Predicated region
      $region13: #{_lambda_.11} parent=11 // pred_check
        %p124 = pneg %p57
      $region14: #{_lambda_.11} parent=11 // pred_check_branch
        %126 = sbr.rel (%p124) target = $region16
      $region15: #{_lambda_.11} parent=11 // pred_region
        _
      $region16: #{_lambda_.11} parent=11 // pred_fallthru
        _
    $region12: #{_lambda_.11} parent=5 // pred_fallthru
      _
    %p127 = scmp.lt.s32.totalorder %s10, 2
    // Predicated region
    $region17: #{_lambda_.11} parent=5 // pred_check
      %p128 = pneg %p127
    $region18: #{_lambda_.11} parent=5 // pred_check_branch
      %130 = sbr.rel (%p128) target = $region20
    $region19: #{_lambda_.11} parent=5 // pred_region
      // Predicated region
      $region21: #{_lambda_.11} parent=19 // pred_check
        %p131 = pneg %p30
      $region22: #{_lambda_.11} parent=19 // pred_check_branch
        %133 = sbr.rel (%p131) target = $region24
      $region23: #{_lambda_.11} parent=19 // pred_region
        %p134 = scmp.lt.s32.totalorder %s10, 1
        %s135 = scalar_select %p134, %s10, 1
        %s136 = smul.addr %s135, 10
        %s137 = smul.addr %s136, 4
        %s138 = scalar_lea.vmem %s0, %s137
      $region24: #{_lambda_.11} parent=19 // pred_fallthru
        _
    $region20: #{_lambda_.11} parent=5 // pred_fallthru
      _
    %p139 = scmp.le.s32.totalorder 1, %s10
    %p140 = scmp.lt.s32.totalorder %s10, 3
    %p141 = pnand %p139, %p140
    %p142 = pneg %p141
    // Predicated region
    $region25: #{_lambda_.11} parent=5 // pred_check
      _
    $region26: #{_lambda_.11} parent=5 // pred_check_branch
      %144 = sbr.rel (%p141) target = $region28
    $region27: #{_lambda_.11} parent=5 // pred_region
      %s145 = ssub.s32 %s10, 1
      %p146 = scmp.lt.s32.totalorder %s15, 1
      %s147 = scalar_select %p146, %s15, 1
      %s148 = smul.addr %s147, 10
      %s149 = smul.addr %s148, 4
      %s150 = scalar_lea.vmem %s0, %s149
      %p151 = pneg %p36
      %p152 = pneg %p33
      %p153 = pneg %p57
      %p154 = pneg %p54
      %p155 = pneg %p83
      %p156 = pneg %p80
      %p157 = scmp.lt.s32.totalorder %s15, 1
      %s158 = scalar_select %p157, %s15, 1
      %s159 = smul.addr %s158, 2
      %s160 = smul.addr %s159, 8
      %s161 = scalar_lea.vmem %s2, %s160
      %p162 = pneg %p109
      %p163 = pneg %p106
      %p164 = scmp.lt.s32.totalorder %s15, 1
      %s165 = scalar_select %p164, %s15, 1
      %s166 = smul.addr %s165, 2
      %s167 = scalar_lea.vmem %s3, %s166
      %p168 = scmp.lt.s32.totalorder %s15, 1
      %s169 = scalar_select %p168, %s15, 1
      %s170 = smul.addr %s169, 10
      %s171 = smul.addr %s170, 4
      %s172 = scalar_lea.vmem %s0, %s171
      %p173 = scmp.lt.s32.totalorder %s15, 1
      %s174 = scalar_select %p173, %s15, 1
      %s175 = smul.addr %s174, 2
      %s176 = smul.addr %s175, 8
      %s177 = scalar_lea.vmem %s2, %s176
      %p178 = scmp.lt.s32.totalorder %s15, 1
      %s179 = scalar_select %p178, %s15, 1
      %s180 = smul.addr %s179, 2
      %s181 = scalar_lea.vmem %s3, %s180
      %v183 = vld [vmem:[%s172] sm:$0x3]
      %v184 = vld [vmem:[%s172 + $0x8] sm:$0x3]
      %v185 = vld [vmem:[%s172 + $0x10] sm:$0x3]
      %v186 = vld [vmem:[%s172 + $0x18] sm:$0x3]
      %v187 = vld [vmem:[%s1] sm:$0xf]
      %v188 = vld [vmem:[%s1 + $0x4] sm:$0xf]
      %v189 = vld [vmem:[%s1 + $0x8] sm:$0xf]
      %v190 = vld [vmem:[%s1 + $0xc] sm:$0xf]
      %v191 = vld [vmem:[%s1 + $0x10] sm:$0xf]
      %v192 = vld [vmem:[%s1 + $0x14] sm:$0xf]
      %v193 = vld [vmem:[%s1 + $0x18] sm:$0xf]
      %v194 = vld [vmem:[%s1 + $0x1c] sm:$0xf]
      %v195 = vld [vmem:[%s172] sm:$0x7]
      %v196 = vld [vmem:[%s172 + $0x8] sm:$0x7]
      %v197 = vld [vmem:[%s172 + $0x10] sm:$0x7]
      %v198 = vld [vmem:[%s172 + $0x18] sm:$0x7]
      %v204 = vunpack.c.l.s4 1983009808
      %v205 = vunpack.c.0.s8 %v204
      %v206 = vlaneseq
      %v207 = vshrl.u32 %v206, 7
      %v208 = vsub.s32 %v205, %v207
      %v209 = vrot.slane %v195, %v208
      %v210 = vcombine.high %v209, %v209
      %v212 = vunpack.c.l.s4 1983009808
      %v213 = vunpack.c.0.s8 %v212
      %v214 = vlaneseq
      %v215 = vshrl.u32 %v214, 7
      %v216 = vsub.s32 %v213, %v215
      %v217 = vrot.slane %v196, %v216
      %v218 = vcombine.high %v217, %v217
      %v220 = vunpack.c.l.s4 1983009808
      %v221 = vunpack.c.0.s8 %v220
      %v222 = vlaneseq
      %v223 = vshrl.u32 %v222, 7
      %v224 = vsub.s32 %v221, %v223
      %v225 = vrot.slane %v197, %v224
      %v226 = vcombine.high %v225, %v225
      %v228 = vunpack.c.l.s4 1983009808
      %v229 = vunpack.c.0.s8 %v228
      %v230 = vlaneseq
      %v231 = vshrl.u32 %v230, 7
      %v232 = vsub.s32 %v229, %v231
      %v233 = vrot.slane %v198, %v232
      %v234 = vcombine.high %v233, %v233
      %vm235 = vsmask.f32 1280
      %vm236 = vsmask.f32 3336
      %vm237 = vmor %vm235, %vm236
      %vm238 = vsmask.f32 5392
      %vm239 = vmor %vm237, %vm238
      %vm240 = vsmask.f32 7448
      %vm241 = vmor %vm239, %vm240
      %v243 = vshrl.u32 %v209, 16
      %v245 = vrot.slane %v243, 6
      %v246 = vshll.u32 %v209, 16
      %v248 = vrot.slane %v246, 7
      %v249 = vor.u32 %v245, %v248
      %v250 = vrot.slane %v249, 2
      %v252 = vshll.u32 %v210, 16
      %v254 = vrot.slane %v252, 7
      %v255 = vsel %vm241, %v250, %v254
      %v257 = vshrl.u32 %v217, 16
      %v259 = vrot.slane %v257, 6
      %v260 = vshll.u32 %v217, 16
      %v262 = vrot.slane %v260, 7
      %v263 = vor.u32 %v259, %v262
      %v264 = vrot.slane %v263, 2
      %v266 = vshll.u32 %v218, 16
      %v268 = vrot.slane %v266, 7
      %v269 = vsel %vm241, %v264, %v268
      %v271 = vshrl.u32 %v225, 16
      %v273 = vrot.slane %v271, 6
      %v274 = vshll.u32 %v225, 16
      %v276 = vrot.slane %v274, 7
      %v277 = vor.u32 %v273, %v276
      %v278 = vrot.slane %v277, 2
      %v280 = vshll.u32 %v226, 16
      %v282 = vrot.slane %v280, 7
      %v283 = vsel %vm241, %v278, %v282
      %v285 = vshrl.u32 %v233, 16
      %v287 = vrot.slane %v285, 6
      %v288 = vshll.u32 %v233, 16
      %v290 = vrot.slane %v288, 7
      %v291 = vor.u32 %v287, %v290
      %v292 = vrot.slane %v291, 2
      %v294 = vshll.u32 %v234, 16
      %v296 = vrot.slane %v294, 7
      %v297 = vsel %vm241, %v292, %v296
      %s298 = scalar_lea.vmem %s1, 32
      %v299 = vld [vmem:[%s298] sm:$0xf]
      %v300 = vld [vmem:[%s298 + $0x4] sm:$0xf]
      %v301 = vld [vmem:[%s298 + $0x8] sm:$0xf]
      %v302 = vld [vmem:[%s298 + $0xc] sm:$0xf]
      %v303 = vld [vmem:[%s298 + $0x10] sm:$0xf]
      %v304 = vld [vmem:[%s298 + $0x14] sm:$0xf]
      %v305 = vld [vmem:[%s298 + $0x18] sm:$0xf]
      %v306 = vld [vmem:[%s298 + $0x1c] sm:$0xf]
      %v307 = vcombine.low %v255, %v269
      %v308 = vcombine.low %v283, %v297
      %v310 = vunpack.c.l.s4 1983009808
      %v311 = vunpack.c.0.s8 %v310
      %v312 = vlaneseq
      %v313 = vshrl.u32 %v312, 7
      %v314 = vsub.s32 %v311, %v313
      %v315 = vrot.slane %v307, %v314
      %v317 = vunpack.c.l.s4 1983009808
      %v318 = vunpack.c.0.s8 %v317
      %v319 = vlaneseq
      %v320 = vshrl.u32 %v319, 7
      %v321 = vsub.s32 %v318, %v320
      %v322 = vrot.slane %v308, %v321
      %v323 = vcombine.low %v315, %v322
      %v332 = vunpack.c.l.b16 %v299
      %v333 = vunpack.c.l.b16 %v300
      %v334 = vunpack.c.l.b16 %v301
      %v335 = vunpack.c.l.b16 %v302
      %v336 = vunpack.c.l.b16 %v303
      %v337 = vunpack.c.l.b16 %v304
      %v338 = vunpack.c.l.b16 %v305
      %v339 = vunpack.c.l.b16 %v306
      %v340 = vpack.c.b16 %v333, %v332
      %v341 = vpack.c.b16 %v335, %v334
      %v342 = vpack.c.b16 %v337, %v336
      %v343 = vpack.c.b16 %v339, %v338
      %vm348 = vcmask 523264
      %v350 = vsel %vm348, %v323, 0
      %352 = vmatprep.subr.bf16.mxu0 0
      %353 = vmatpush1.bf16.msra.mxu0 %v340
      %354 = vmatprep.subr.bf16.mxu0 0
      %355 = vmatpush1.bf16.msra.mxu0 %v341
      %356 = vmatprep.subr.bf16.mxu0 0
      %357 = vmatpush1.bf16.msra.mxu0 %v342
      %358 = vmatprep.subr.bf16.mxu0 0
      %359 = vmatpush1.bf16.msra.mxu0 %v343
      %360 = vmatprep.subr.bf16.mxu0 0
      %361 = vmatpush1.bf16.msra.mxu0 0
      %362 = vmatprep.subr.bf16.mxu0 0
      %363 = vmatpush1.bf16.msra.mxu0 0
      %364 = vmatprep.subr.bf16.mxu0 0
      %365 = vmatpush1.bf16.msra.mxu0 0
      %366 = vmatprep.subr.bf16.mxu0 0
      %367 = vmatpush1.bf16.msra.mxu0 0
      %368 = vmatprep.subr.bf16.mxu0 0
      %369 = vmatpush1.bf16.msra.mxu0 0
      %370 = vmatprep.subr.bf16.mxu0 0
      %371 = vmatpush1.bf16.msra.mxu0 0
      %372 = vmatprep.subr.bf16.mxu0 0
      %373 = vmatpush1.bf16.msra.mxu0 0
      %374 = vmatprep.subr.bf16.mxu0 0
      %375 = vmatpush1.bf16.msra.mxu0 0
      %376 = vmatprep.subr.bf16.mxu0 0
      %377 = vmatpush1.bf16.msra.mxu0 0
      %378 = vmatprep.subr.bf16.mxu0 0
      %379 = vmatpush1.bf16.msra.mxu0 0
      %380 = vmatprep.subr.bf16.mxu0 0
      %381 = vmatpush1.bf16.msra.mxu0 0
      %382 = vmatprep.subr.bf16.mxu0 0
      %383 = vmatpush1.bf16.msra.mxu0 0
      %384 = vmatprep.mubr.bf16.mxu0 0
      %385 = vmatmul.mubr.bf16.gmra.mrb[0].mxu0 %v350
      %v386 = vpop.f32.mrb[0].mxu0
      %v387 = vadd.f32 0.0, %v386
      %v388 = vpop.f32.mrb[0].mxu0
      %v389 = vpop.f32.mrb[0].mxu0
      %v390 = vadd.f32 0.0, %v389
      %v391 = vpop.f32.mrb[0].mxu0
      %392 = vdwg.mxu0
      %v397 = vcombine.low %v183, %v184
      %v398 = vcombine.low %v185, %v186
      %v400 = vunpack.c.l.s4 1983009808
      %v401 = vunpack.c.0.s8 %v400
      %v402 = vlaneseq
      %v403 = vshrl.u32 %v402, 7
      %v404 = vsub.s32 %v401, %v403
      %v405 = vrot.slane %v397, %v404
      %v407 = vunpack.c.l.s4 1983009808
      %v408 = vunpack.c.0.s8 %v407
      %v409 = vlaneseq
      %v410 = vshrl.u32 %v409, 7
      %v411 = vsub.s32 %v408, %v410
      %v412 = vrot.slane %v398, %v411
      %v413 = vcombine.low %v405, %v412
      %v422 = vunpack.c.l.b16 %v187
      %v423 = vunpack.c.l.b16 %v188
      %v424 = vunpack.c.l.b16 %v189
      %v425 = vunpack.c.l.b16 %v190
      %v426 = vunpack.c.l.b16 %v191
      %v427 = vunpack.c.l.b16 %v192
      %v428 = vunpack.c.l.b16 %v193
      %v429 = vunpack.c.l.b16 %v194
      %v430 = vpack.c.b16 %v423, %v422
      %v431 = vpack.c.b16 %v425, %v424
      %v432 = vpack.c.b16 %v427, %v426
      %v433 = vpack.c.b16 %v429, %v428
      %v439 = vsel %vm348, %v413, 0
      %441 = vmatprep.subr.bf16.mxu0 0
      %442 = vmatpush1.bf16.msra.mxu0 %v430
      %443 = vmatprep.subr.bf16.mxu0 0
      %444 = vmatpush1.bf16.msra.mxu0 %v431
      %445 = vmatprep.subr.bf16.mxu0 0
      %446 = vmatpush1.bf16.msra.mxu0 %v432
      %447 = vmatprep.subr.bf16.mxu0 0
      %448 = vmatpush1.bf16.msra.mxu0 %v433
      %449 = vmatprep.subr.bf16.mxu0 0
      %450 = vmatpush1.bf16.msra.mxu0 0
      %451 = vmatprep.subr.bf16.mxu0 0
      %452 = vmatpush1.bf16.msra.mxu0 0
      %453 = vmatprep.subr.bf16.mxu0 0
      %454 = vmatpush1.bf16.msra.mxu0 0
      %455 = vmatprep.subr.bf16.mxu0 0
      %456 = vmatpush1.bf16.msra.mxu0 0
      %457 = vmatprep.subr.bf16.mxu0 0
      %458 = vmatpush1.bf16.msra.mxu0 0
      %459 = vmatprep.subr.bf16.mxu0 0
      %460 = vmatpush1.bf16.msra.mxu0 0
      %461 = vmatprep.subr.bf16.mxu0 0
      %462 = vmatpush1.bf16.msra.mxu0 0
      %463 = vmatprep.subr.bf16.mxu0 0
      %464 = vmatpush1.bf16.msra.mxu0 0
      %465 = vmatprep.subr.bf16.mxu0 0
      %466 = vmatpush1.bf16.msra.mxu0 0
      %467 = vmatprep.subr.bf16.mxu0 0
      %468 = vmatpush1.bf16.msra.mxu0 0
      %469 = vmatprep.subr.bf16.mxu0 0
      %470 = vmatpush1.bf16.msra.mxu0 0
      %471 = vmatprep.subr.bf16.mxu0 0
      %472 = vmatpush1.bf16.msra.mxu0 0
      %473 = vmatprep.mubr.bf16.mxu0 0
      %474 = vmatmul.mubr.bf16.gmra.mrb[0].mxu0 %v439
      %v475 = vpop.f32.mrb[0].mxu0
      %v476 = vadd.f32 %v387, %v475
      %v477 = vpop.f32.mrb[0].mxu0
      %v478 = vpop.f32.mrb[0].mxu0
      %v479 = vadd.f32 %v390, %v478
      %v480 = vpop.f32.mrb[0].mxu0
      %481 = vdwg.mxu0
      %s482 = scalar_lea.vmem %s172, 4
      %v483 = vld [vmem:[%s482] sm:$0x3]
      %v484 = vld [vmem:[%s482 + $0x8] sm:$0x3]
      %v485 = vld [vmem:[%s482 + $0x10] sm:$0x3]
      %v486 = vld [vmem:[%s482 + $0x18] sm:$0x3]
      %s487 = scalar_lea.vmem %s1, 64
      %v488 = vld [vmem:[%s487] sm:$0xf]
      %v489 = vld [vmem:[%s487 + $0x4] sm:$0xf]
      %v490 = vld [vmem:[%s487 + $0x8] sm:$0xf]
      %v491 = vld [vmem:[%s487 + $0xc] sm:$0xf]
      %v492 = vld [vmem:[%s487 + $0x10] sm:$0xf]
      %v493 = vld [vmem:[%s487 + $0x14] sm:$0xf]
      %v494 = vld [vmem:[%s487 + $0x18] sm:$0xf]
      %v495 = vld [vmem:[%s487 + $0x1c] sm:$0xf]
      %v500 = vcombine.low %v483, %v484
      %v501 = vcombine.low %v485, %v486
      %v503 = vunpack.c.l.s4 1983009808
      %v504 = vunpack.c.0.s8 %v503
      %v505 = vlaneseq
      %v506 = vshrl.u32 %v505, 7
      %v507 = vsub.s32 %v504, %v506
      %v508 = vrot.slane %v500, %v507
      %v510 = vunpack.c.l.s4 1983009808
      %v511 = vunpack.c.0.s8 %v510
      %v512 = vlaneseq
      %v513 = vshrl.u32 %v512, 7
      %v514 = vsub.s32 %v511, %v513
      %v515 = vrot.slane %v501, %v514
      %v516 = vcombine.low %v508, %v515
      %v525 = vunpack.c.l.b16 %v488
      %v526 = vunpack.c.l.b16 %v489
      %v527 = vunpack.c.l.b16 %v490
      %v528 = vunpack.c.l.b16 %v491
      %v529 = vunpack.c.l.b16 %v492
      %v530 = vunpack.c.l.b16 %v493
      %v531 = vunpack.c.l.b16 %v494
      %v532 = vunpack.c.l.b16 %v495
      %v533 = vpack.c.b16 %v526, %v525
      %v534 = vpack.c.b16 %v528, %v527
      %v535 = vpack.c.b16 %v530, %v529
      %v536 = vpack.c.b16 %v532, %v531
      %v542 = vsel %vm348, %v516, 0
      %544 = vmatprep.subr.bf16.mxu0 0
      %545 = vmatpush1.bf16.msra.mxu0 %v533
      %546 = vmatprep.subr.bf16.mxu0 0
      %547 = vmatpush1.bf16.msra.mxu0 %v534
      %548 = vmatprep.subr.bf16.mxu0 0
      %549 = vmatpush1.bf16.msra.mxu0 %v535
      %550 = vmatprep.subr.bf16.mxu0 0
      %551 = vmatpush1.bf16.msra.mxu0 %v536
      %552 = vmatprep.subr.bf16.mxu0 0
      %553 = vmatpush1.bf16.msra.mxu0 0
      %554 = vmatprep.subr.bf16.mxu0 0
      %555 = vmatpush1.bf16.msra.mxu0 0
      %556 = vmatprep.subr.bf16.mxu0 0
      %557 = vmatpush1.bf16.msra.mxu0 0
      %558 = vmatprep.subr.bf16.mxu0 0
      %559 = vmatpush1.bf16.msra.mxu0 0
      %560 = vmatprep.subr.bf16.mxu0 0
      %561 = vmatpush1.bf16.msra.mxu0 0
      %562 = vmatprep.subr.bf16.mxu0 0
      %563 = vmatpush1.bf16.msra.mxu0 0
      %564 = vmatprep.subr.bf16.mxu0 0
      %565 = vmatpush1.bf16.msra.mxu0 0
      %566 = vmatprep.subr.bf16.mxu0 0
      %567 = vmatpush1.bf16.msra.mxu0 0
      %568 = vmatprep.subr.bf16.mxu0 0
      %569 = vmatpush1.bf16.msra.mxu0 0
      %570 = vmatprep.subr.bf16.mxu0 0
      %571 = vmatpush1.bf16.msra.mxu0 0
      %572 = vmatprep.subr.bf16.mxu0 0
      %573 = vmatpush1.bf16.msra.mxu0 0
      %574 = vmatprep.subr.bf16.mxu0 0
      %575 = vmatpush1.bf16.msra.mxu0 0
      %576 = vmatprep.mubr.bf16.mxu0 0
      %577 = vmatmul.mubr.bf16.gmra.mrb[0].mxu0 %v542
      %v578 = vpop.f32.mrb[0].mxu0
      %v579 = vadd.f32 0.0, %v578
      %v580 = vpop.f32.mrb[0].mxu0
      %v581 = vpop.f32.mrb[0].mxu0
      %v582 = vadd.f32 0.0, %v581
      %v583 = vpop.f32.mrb[0].mxu0
      %584 = vdwg.mxu0
      %v585 = vadd.f32 %v476, %v579
      %v586 = vadd.f32 %v479, %v582
      %v587 = vld [vmem:[%s482] sm:$0x7]
      %v588 = vld [vmem:[%s482 + $0x8] sm:$0x7]
      %v589 = vld [vmem:[%s482 + $0x10] sm:$0x7]
      %v590 = vld [vmem:[%s482 + $0x18] sm:$0x7]
      %v596 = vunpack.c.l.s4 1983009808
      %v597 = vunpack.c.0.s8 %v596
      %v598 = vlaneseq
      %v599 = vshrl.u32 %v598, 7
      %v600 = vsub.s32 %v597, %v599
      %v601 = vrot.slane %v587, %v600
      %v602 = vcombine.high %v601, %v601
      %v604 = vunpack.c.l.s4 1983009808
      %v605 = vunpack.c.0.s8 %v604
      %v606 = vlaneseq
      %v607 = vshrl.u32 %v606, 7
      %v608 = vsub.s32 %v605, %v607
      %v609 = vrot.slane %v588, %v608
      %v610 = vcombine.high %v609, %v609
      %v612 = vunpack.c.l.s4 1983009808
      %v613 = vunpack.c.0.s8 %v612
      %v614 = vlaneseq
      %v615 = vshrl.u32 %v614, 7
      %v616 = vsub.s32 %v613, %v615
      %v617 = vrot.slane %v589, %v616
      %v618 = vcombine.high %v617, %v617
      %v620 = vunpack.c.l.s4 1983009808
      %v621 = vunpack.c.0.s8 %v620
      %v622 = vlaneseq
      %v623 = vshrl.u32 %v622, 7
      %v624 = vsub.s32 %v621, %v623
      %v625 = vrot.slane %v590, %v624
      %v626 = vcombine.high %v625, %v625
      %v628 = vshrl.u32 %v601, 16
      %v630 = vrot.slane %v628, 6
      %v631 = vshll.u32 %v601, 16
      %v633 = vrot.slane %v631, 7
      %v634 = vor.u32 %v630, %v633
      %v635 = vrot.slane %v634, 2
      %v637 = vshll.u32 %v602, 16
      %v639 = vrot.slane %v637, 7
      %v640 = vsel %vm241, %v635, %v639
      %v642 = vshrl.u32 %v609, 16
      %v644 = vrot.slane %v642, 6
      %v645 = vshll.u32 %v609, 16
      %v647 = vrot.slane %v645, 7
      %v648 = vor.u32 %v644, %v647
      %v649 = vrot.slane %v648, 2
      %v651 = vshll.u32 %v610, 16
      %v653 = vrot.slane %v651, 7
      %v654 = vsel %vm241, %v649, %v653
      %v656 = vshrl.u32 %v617, 16
      %v658 = vrot.slane %v656, 6
      %v659 = vshll.u32 %v617, 16
      %v661 = vrot.slane %v659, 7
      %v662 = vor.u32 %v658, %v661
      %v663 = vrot.slane %v662, 2
      %v665 = vshll.u32 %v618, 16
      %v667 = vrot.slane %v665, 7
      %v668 = vsel %vm241, %v663, %v667
      %v670 = vshrl.u32 %v625, 16
      %v672 = vrot.slane %v670, 6
      %v673 = vshll.u32 %v625, 16
      %v675 = vrot.slane %v673, 7
      %v676 = vor.u32 %v672, %v675
      %v677 = vrot.slane %v676, 2
      %v679 = vshll.u32 %v626, 16
      %v681 = vrot.slane %v679, 7
      %v682 = vsel %vm241, %v677, %v681
      %s683 = scalar_lea.vmem %s1, 96
      %v684 = vld [vmem:[%s683] sm:$0xf]
      %v685 = vld [vmem:[%s683 + $0x4] sm:$0xf]
      %v686 = vld [vmem:[%s683 + $0x8] sm:$0xf]
      %v687 = vld [vmem:[%s683 + $0xc] sm:$0xf]
      %v688 = vld [vmem:[%s683 + $0x10] sm:$0xf]
      %v689 = vld [vmem:[%s683 + $0x14] sm:$0xf]
      %v690 = vld [vmem:[%s683 + $0x18] sm:$0xf]
      %v691 = vld [vmem:[%s683 + $0x1c] sm:$0xf]
      %v692 = vcombine.low %v640, %v654
      %v693 = vcombine.low %v668, %v682
      %v695 = vunpack.c.l.s4 1983009808
      %v696 = vunpack.c.0.s8 %v695
      %v697 = vlaneseq
      %v698 = vshrl.u32 %v697, 7
      %v699 = vsub.s32 %v696, %v698
      %v700 = vrot.slane %v692, %v699
      %v702 = vunpack.c.l.s4 1983009808
      %v703 = vunpack.c.0.s8 %v702
      %v704 = vlaneseq
      %v705 = vshrl.u32 %v704, 7
      %v706 = vsub.s32 %v703, %v705
      %v707 = vrot.slane %v693, %v706
      %v708 = vcombine.low %v700, %v707
      %v717 = vunpack.c.l.b16 %v684
      %v718 = vunpack.c.l.b16 %v685
      %v719 = vunpack.c.l.b16 %v686
      %v720 = vunpack.c.l.b16 %v687
      %v721 = vunpack.c.l.b16 %v688
      %v722 = vunpack.c.l.b16 %v689
      %v723 = vunpack.c.l.b16 %v690
      %v724 = vunpack.c.l.b16 %v691
      %v725 = vpack.c.b16 %v718, %v717
      %v726 = vpack.c.b16 %v720, %v719
      %v727 = vpack.c.b16 %v722, %v721
      %v728 = vpack.c.b16 %v724, %v723
      %v734 = vsel %vm348, %v708, 0
      %736 = vmatprep.subr.bf16.mxu0 0
      %737 = vmatpush1.bf16.msra.mxu0 %v725
      %738 = vmatprep.subr.bf16.mxu0 0
      %739 = vmatpush1.bf16.msra.mxu0 %v726
      %740 = vmatprep.subr.bf16.mxu0 0
      %741 = vmatpush1.bf16.msra.mxu0 %v727
      %742 = vmatprep.subr.bf16.mxu0 0
      %743 = vmatpush1.bf16.msra.mxu0 %v728
      %744 = vmatprep.subr.bf16.mxu0 0
      %745 = vmatpush1.bf16.msra.mxu0 0
      %746 = vmatprep.subr.bf16.mxu0 0
      %747 = vmatpush1.bf16.msra.mxu0 0
      %748 = vmatprep.subr.bf16.mxu0 0
      %749 = vmatpush1.bf16.msra.mxu0 0
      %750 = vmatprep.subr.bf16.mxu0 0
      %751 = vmatpush1.bf16.msra.mxu0 0
      %752 = vmatprep.subr.bf16.mxu0 0
      %753 = vmatpush1.bf16.msra.mxu0 0
      %754 = vmatprep.subr.bf16.mxu0 0
      %755 = vmatpush1.bf16.msra.mxu0 0
      %756 = vmatprep.subr.bf16.mxu0 0
      %757 = vmatpush1.bf16.msra.mxu0 0
      %758 = vmatprep.subr.bf16.mxu0 0
      %759 = vmatpush1.bf16.msra.mxu0 0
      %760 = vmatprep.subr.bf16.mxu0 0
      %761 = vmatpush1.bf16.msra.mxu0 0
      %762 = vmatprep.subr.bf16.mxu0 0
      %763 = vmatpush1.bf16.msra.mxu0 0
      %764 = vmatprep.subr.bf16.mxu0 0
      %765 = vmatpush1.bf16.msra.mxu0 0
      %766 = vmatprep.subr.bf16.mxu0 0
      %767 = vmatpush1.bf16.msra.mxu0 0
      %768 = vmatprep.mubr.bf16.mxu0 0
      %769 = vmatmul.mubr.bf16.gmra.mrb[0].mxu0 %v734
      %v770 = vpop.f32.mrb[0].mxu0
      %v771 = vadd.f32 0.0, %v770
      %v772 = vpop.f32.mrb[0].mxu0
      %v773 = vpop.f32.mrb[0].mxu0
      %v774 = vadd.f32 0.0, %v773
      %v775 = vpop.f32.mrb[0].mxu0
      %776 = vdwg.mxu0
      %v777 = vadd.f32 %v585, %v771
      %v778 = vadd.f32 %v586, %v774
      %s779 = scalar_lea.vmem %s172, 8
      %v780 = vld [vmem:[%s779] sm:$0x3]
      %v781 = vld [vmem:[%s779 + $0x8] sm:$0x3]
      %v782 = vld [vmem:[%s779 + $0x10] sm:$0x3]
      %v783 = vld [vmem:[%s779 + $0x18] sm:$0x3]
      %s784 = scalar_lea.vmem %s1, 128
      %v785 = vld [vmem:[%s784] sm:$0xf]
      %v786 = vld [vmem:[%s784 + $0x4] sm:$0xf]
      %v787 = vld [vmem:[%s784 + $0x8] sm:$0xf]
      %v788 = vld [vmem:[%s784 + $0xc] sm:$0xf]
      %v789 = vld [vmem:[%s784 + $0x10] sm:$0xf]
      %v790 = vld [vmem:[%s784 + $0x14] sm:$0xf]
      %v791 = vld [vmem:[%s784 + $0x18] sm:$0xf]
      %v792 = vld [vmem:[%s784 + $0x1c] sm:$0xf]
      %v797 = vcombine.low %v780, %v781
      %v798 = vcombine.low %v782, %v783
      %v800 = vunpack.c.l.s4 1983009808
      %v801 = vunpack.c.0.s8 %v800
      %v802 = vlaneseq
      %v803 = vshrl.u32 %v802, 7
      %v804 = vsub.s32 %v801, %v803
      %v805 = vrot.slane %v797, %v804
      %v807 = vunpack.c.l.s4 1983009808
      %v808 = vunpack.c.0.s8 %v807
      %v809 = vlaneseq
      %v810 = vshrl.u32 %v809, 7
      %v811 = vsub.s32 %v808, %v810
      %v812 = vrot.slane %v798, %v811
      %v813 = vcombine.low %v805, %v812
      %v822 = vunpack.c.l.b16 %v785
      %v823 = vunpack.c.l.b16 %v786
      %v824 = vunpack.c.l.b16 %v787
      %v825 = vunpack.c.l.b16 %v788
      %v826 = vunpack.c.l.b16 %v789
      %v827 = vunpack.c.l.b16 %v790
      %v828 = vunpack.c.l.b16 %v791
      %v829 = vunpack.c.l.b16 %v792
      %v830 = vpack.c.b16 %v823, %v822
      %v831 = vpack.c.b16 %v825, %v824
      %v832 = vpack.c.b16 %v827, %v826
      %v833 = vpack.c.b16 %v829, %v828
      %v839 = vsel %vm348, %v813, 0
      %841 = vmatprep.subr.bf16.mxu0 0
      %842 = vmatpush1.bf16.msra.mxu0 %v830
      %843 = vmatprep.subr.bf16.mxu0 0
      %844 = vmatpush1.bf16.msra.mxu0 %v831
      %845 = vmatprep.subr.bf16.mxu0 0
      %846 = vmatpush1.bf16.msra.mxu0 %v832
      %847 = vmatprep.subr.bf16.mxu0 0
      %848 = vmatpush1.bf16.msra.mxu0 %v833
      %849 = vmatprep.subr.bf16.mxu0 0
      %850 = vmatpush1.bf16.msra.mxu0 0
      %851 = vmatprep.subr.bf16.mxu0 0
      %852 = vmatpush1.bf16.msra.mxu0 0
      %853 = vmatprep.subr.bf16.mxu0 0
      %854 = vmatpush1.bf16.msra.mxu0 0
      %855 = vmatprep.subr.bf16.mxu0 0
      %856 = vmatpush1.bf16.msra.mxu0 0
      %857 = vmatprep.subr.bf16.mxu0 0
      %858 = vmatpush1.bf16.msra.mxu0 0
      %859 = vmatprep.subr.bf16.mxu0 0
      %860 = vmatpush1.bf16.msra.mxu0 0
      %861 = vmatprep.subr.bf16.mxu0 0
      %862 = vmatpush1.bf16.msra.mxu0 0
      %863 = vmatprep.subr.bf16.mxu0 0
      %864 = vmatpush1.bf16.msra.mxu0 0
      %865 = vmatprep.subr.bf16.mxu0 0
      %866 = vmatpush1.bf16.msra.mxu0 0
      %867 = vmatprep.subr.bf16.mxu0 0
      %868 = vmatpush1.bf16.msra.mxu0 0
      %869 = vmatprep.subr.bf16.mxu0 0
      %870 = vmatpush1.bf16.msra.mxu0 0
      %871 = vmatprep.subr.bf16.mxu0 0
      %872 = vmatpush1.bf16.msra.mxu0 0
      %873 = vmatprep.mubr.bf16.mxu0 0
      %874 = vmatmul.mubr.bf16.gmra.mrb[0].mxu0 %v839
      %v875 = vpop.f32.mrb[0].mxu0
      %v876 = vadd.f32 0.0, %v875
      %v877 = vpop.f32.mrb[0].mxu0
      %v878 = vpop.f32.mrb[0].mxu0
      %v879 = vadd.f32 0.0, %v878
      %v880 = vpop.f32.mrb[0].mxu0
      %881 = vdwg.mxu0
      %v882 = vadd.f32 %v777, %v876
      %v883 = vadd.f32 %v778, %v879
      %v884 = vld [vmem:[%s779] sm:$0x7]
      %v885 = vld [vmem:[%s779 + $0x8] sm:$0x7]
      %v886 = vld [vmem:[%s779 + $0x10] sm:$0x7]
      %v887 = vld [vmem:[%s779 + $0x18] sm:$0x7]
      %v893 = vunpack.c.l.s4 1983009808
      %v894 = vunpack.c.0.s8 %v893
      %v895 = vlaneseq
      %v896 = vshrl.u32 %v895, 7
      %v897 = vsub.s32 %v894, %v896
      %v898 = vrot.slane %v884, %v897
      %v899 = vcombine.high %v898, %v898
      %v901 = vunpack.c.l.s4 1983009808
      %v902 = vunpack.c.0.s8 %v901
      %v903 = vlaneseq
      %v904 = vshrl.u32 %v903, 7
      %v905 = vsub.s32 %v902, %v904
      %v906 = vrot.slane %v885, %v905
      %v907 = vcombine.high %v906, %v906
      %v909 = vunpack.c.l.s4 1983009808
      %v910 = vunpack.c.0.s8 %v909
      %v911 = vlaneseq
      %v912 = vshrl.u32 %v911, 7
      %v913 = vsub.s32 %v910, %v912
      %v914 = vrot.slane %v886, %v913
      %v915 = vcombine.high %v914, %v914
      %v917 = vunpack.c.l.s4 1983009808
      %v918 = vunpack.c.0.s8 %v917
      %v919 = vlaneseq
      %v920 = vshrl.u32 %v919, 7
      %v921 = vsub.s32 %v918, %v920
      %v922 = vrot.slane %v887, %v921
      %v923 = vcombine.high %v922, %v922
      %v925 = vshrl.u32 %v898, 16
      %v927 = vrot.slane %v925, 6
      %v928 = vshll.u32 %v898, 16
      %v930 = vrot.slane %v928, 7
      %v931 = vor.u32 %v927, %v930
      %v932 = vrot.slane %v931, 2
      %v934 = vshll.u32 %v899, 16
      %v936 = vrot.slane %v934, 7
      %v937 = vsel %vm241, %v932, %v936
      %v939 = vshrl.u32 %v906, 16
      %v941 = vrot.slane %v939, 6
      %v942 = vshll.u32 %v906, 16
      %v944 = vrot.slane %v942, 7
      %v945 = vor.u32 %v941, %v944
      %v946 = vrot.slane %v945, 2
      %v948 = vshll.u32 %v907, 16
      %v950 = vrot.slane %v948, 7
      %v951 = vsel %vm241, %v946, %v950
      %v953 = vshrl.u32 %v914, 16
      %v955 = vrot.slane %v953, 6
      %v956 = vshll.u32 %v914, 16
      %v958 = vrot.slane %v956, 7
      %v959 = vor.u32 %v955, %v958
      %v960 = vrot.slane %v959, 2
      %v962 = vshll.u32 %v915, 16
      %v964 = vrot.slane %v962, 7
      %v965 = vsel %vm241, %v960, %v964
      %v967 = vshrl.u32 %v922, 16
      %v969 = vrot.slane %v967, 6
      %v970 = vshll.u32 %v922, 16
      %v972 = vrot.slane %v970, 7
      %v973 = vor.u32 %v969, %v972
      %v974 = vrot.slane %v973, 2
      %v976 = vshll.u32 %v923, 16
      %v978 = vrot.slane %v976, 7
      %v979 = vsel %vm241, %v974, %v978
      %s980 = scalar_lea.vmem %s1, 160
      %v981 = vld [vmem:[%s980] sm:$0xf]
      %v982 = vld [vmem:[%s980 + $0x4] sm:$0xf]
      %v983 = vld [vmem:[%s980 + $0x8] sm:$0xf]
      %v984 = vld [vmem:[%s980 + $0xc] sm:$0xf]
      %v985 = vld [vmem:[%s980 + $0x10] sm:$0xf]
      %v986 = vld [vmem:[%s980 + $0x14] sm:$0xf]
      %v987 = vld [vmem:[%s980 + $0x18] sm:$0xf]
      %v988 = vld [vmem:[%s980 + $0x1c] sm:$0xf]
      %v989 = vcombine.low %v937, %v951
      %v990 = vcombine.low %v965, %v979
      %v992 = vunpack.c.l.s4 1983009808
      %v993 = vunpack.c.0.s8 %v992
      %v994 = vlaneseq
      %v995 = vshrl.u32 %v994, 7
      %v996 = vsub.s32 %v993, %v995
      %v997 = vrot.slane %v989, %v996
      %v999 = vunpack.c.l.s4 1983009808
      %v1000 = vunpack.c.0.s8 %v999
      %v1001 = vlaneseq
      %v1002 = vshrl.u32 %v1001, 7
      %v1003 = vsub.s32 %v1000, %v1002
      %v1004 = vrot.slane %v990, %v1003
      %v1005 = vcombine.low %v997, %v1004
      %v1014 = vunpack.c.l.b16 %v981
      %v1015 = vunpack.c.l.b16 %v982
      %v1016 = vunpack.c.l.b16 %v983
      %v1017 = vunpack.c.l.b16 %v984
      %v1018 = vunpack.c.l.b16 %v985
      %v1019 = vunpack.c.l.b16 %v986
      %v1020 = vunpack.c.l.b16 %v987
      %v1021 = vunpack.c.l.b16 %v988
      %v1022 = vpack.c.b16 %v1015, %v1014
      %v1023 = vpack.c.b16 %v1017, %v1016
      %v1024 = vpack.c.b16 %v1019, %v1018
      %v1025 = vpack.c.b16 %v1021, %v1020
      %v1031 = vsel %vm348, %v1005, 0
      %1033 = vmatprep.subr.bf16.mxu0 0
      %1034 = vmatpush1.bf16.msra.mxu0 %v1022
      %1035 = vmatprep.subr.bf16.mxu0 0
      %1036 = vmatpush1.bf16.msra.mxu0 %v1023
      %1037 = vmatprep.subr.bf16.mxu0 0
      %1038 = vmatpush1.bf16.msra.mxu0 %v1024
      %1039 = vmatprep.subr.bf16.mxu0 0
      %1040 = vmatpush1.bf16.msra.mxu0 %v1025
      %1041 = vmatprep.subr.bf16.mxu0 0
      %1042 = vmatpush1.bf16.msra.mxu0 0
      %1043 = vmatprep.subr.bf16.mxu0 0
      %1044 = vmatpush1.bf16.msra.mxu0 0
      %1045 = vmatprep.subr.bf16.mxu0 0
      %1046 = vmatpush1.bf16.msra.mxu0 0
      %1047 = vmatprep.subr.bf16.mxu0 0
      %1048 = vmatpush1.bf16.msra.mxu0 0
      %1049 = vmatprep.subr.bf16.mxu0 0
      %1050 = vmatpush1.bf16.msra.mxu0 0
      %1051 = vmatprep.subr.bf16.mxu0 0
      %1052 = vmatpush1.bf16.msra.mxu0 0
      %1053 = vmatprep.subr.bf16.mxu0 0
      %1054 = vmatpush1.bf16.msra.mxu0 0
      %1055 = vmatprep.subr.bf16.mxu0 0
      %1056 = vmatpush1.bf16.msra.mxu0 0
      %1057 = vmatprep.subr.bf16.mxu0 0
      %1058 = vmatpush1.bf16.msra.mxu0 0
      %1059 = vmatprep.subr.bf16.mxu0 0
      %1060 = vmatpush1.bf16.msra.mxu0 0
      %1061 = vmatprep.subr.bf16.mxu0 0
      %1062 = vmatpush1.bf16.msra.mxu0 0
      %1063 = vmatprep.subr.bf16.mxu0 0
      %1064 = vmatpush1.bf16.msra.mxu0 0
      %1065 = vmatprep.mubr.bf16.mxu0 0
      %1066 = vmatmul.mubr.bf16.gmra.mrb[0].mxu0 %v1031
      %v1067 = vpop.f32.mrb[0].mxu0
      %v1068 = vadd.f32 0.0, %v1067
      %v1069 = vpop.f32.mrb[0].mxu0
      %v1070 = vpop.f32.mrb[0].mxu0
      %v1071 = vadd.f32 0.0, %v1070
      %v1072 = vpop.f32.mrb[0].mxu0
      %1073 = vdwg.mxu0
      %v1074 = vadd.f32 %v882, %v1068
      %v1075 = vadd.f32 %v883, %v1071
      %s1076 = scalar_lea.vmem %s172, 12
      %v1077 = vld [vmem:[%s1076] sm:$0x3]
      %v1078 = vld [vmem:[%s1076 + $0x8] sm:$0x3]
      %v1079 = vld [vmem:[%s1076 + $0x10] sm:$0x3]
      %v1080 = vld [vmem:[%s1076 + $0x18] sm:$0x3]
      %s1081 = scalar_lea.vmem %s1, 192
      %v1082 = vld [vmem:[%s1081] sm:$0xf]
      %v1083 = vld [vmem:[%s1081 + $0x4] sm:$0xf]
      %v1084 = vld [vmem:[%s1081 + $0x8] sm:$0xf]
      %v1085 = vld [vmem:[%s1081 + $0xc] sm:$0xf]
      %v1086 = vld [vmem:[%s1081 + $0x10] sm:$0xf]
      %v1087 = vld [vmem:[%s1081 + $0x14] sm:$0xf]
      %v1088 = vld [vmem:[%s1081 + $0x18] sm:$0xf]
      %v1089 = vld [vmem:[%s1081 + $0x1c] sm:$0xf]
      %v1094 = vcombine.low %v1077, %v1078
      %v1095 = vcombine.low %v1079, %v1080
      %v1097 = vunpack.c.l.s4 1983009808
      %v1098 = vunpack.c.0.s8 %v1097
      %v1099 = vlaneseq
      %v1100 = vshrl.u32 %v1099, 7
      %v1101 = vsub.s32 %v1098, %v1100
      %v1102 = vrot.slane %v1094, %v1101
      %v1104 = vunpack.c.l.s4 1983009808
      %v1105 = vunpack.c.0.s8 %v1104
      %v1106 = vlaneseq
      %v1107 = vshrl.u32 %v1106, 7
      %v1108 = vsub.s32 %v1105, %v1107
      %v1109 = vrot.slane %v1095, %v1108
      %v1110 = vcombine.low %v1102, %v1109
      %v1119 = vunpack.c.l.b16 %v1082
      %v1120 = vunpack.c.l.b16 %v1083
      %v1121 = vunpack.c.l.b16 %v1084
      %v1122 = vunpack.c.l.b16 %v1085
      %v1123 = vunpack.c.l.b16 %v1086
      %v1124 = vunpack.c.l.b16 %v1087
      %v1125 = vunpack.c.l.b16 %v1088
      %v1126 = vunpack.c.l.b16 %v1089
      %v1127 = vpack.c.b16 %v1120, %v1119
      %v1128 = vpack.c.b16 %v1122, %v1121
      %v1129 = vpack.c.b16 %v1124, %v1123
      %v1130 = vpack.c.b16 %v1126, %v1125
      %v1136 = vsel %vm348, %v1110, 0
      %1138 = vmatprep.subr.bf16.mxu0 0
      %1139 = vmatpush1.bf16.msra.mxu0 %v1127
      %1140 = vmatprep.subr.bf16.mxu0 0
      %1141 = vmatpush1.bf16.msra.mxu0 %v1128
      %1142 = vmatprep.subr.bf16.mxu0 0
      %1143 = vmatpush1.bf16.msra.mxu0 %v1129
      %1144 = vmatprep.subr.bf16.mxu0 0
      %1145 = vmatpush1.bf16.msra.mxu0 %v1130
      %1146 = vmatprep.subr.bf16.mxu0 0
      %1147 = vmatpush1.bf16.msra.mxu0 0
      %1148 = vmatprep.subr.bf16.mxu0 0
      %1149 = vmatpush1.bf16.msra.mxu0 0
      %1150 = vmatprep.subr.bf16.mxu0 0
      %1151 = vmatpush1.bf16.msra.mxu0 0
      %1152 = vmatprep.subr.bf16.mxu0 0
      %1153 = vmatpush1.bf16.msra.mxu0 0
      %1154 = vmatprep.subr.bf16.mxu0 0
      %1155 = vmatpush1.bf16.msra.mxu0 0
      %1156 = vmatprep.subr.bf16.mxu0 0
      %1157 = vmatpush1.bf16.msra.mxu0 0
      %1158 = vmatprep.subr.bf16.mxu0 0
      %1159 = vmatpush1.bf16.msra.mxu0 0
      %1160 = vmatprep.subr.bf16.mxu0 0
      %1161 = vmatpush1.bf16.msra.mxu0 0
      %1162 = vmatprep.subr.bf16.mxu0 0
      %1163 = vmatpush1.bf16.msra.mxu0 0
      %1164 = vmatprep.subr.bf16.mxu0 0
      %1165 = vmatpush1.bf16.msra.mxu0 0
      %1166 = vmatprep.subr.bf16.mxu0 0
      %1167 = vmatpush1.bf16.msra.mxu0 0
      %1168 = vmatprep.subr.bf16.mxu0 0
      %1169 = vmatpush1.bf16.msra.mxu0 0
      %1170 = vmatprep.mubr.bf16.mxu0 0
      %1171 = vmatmul.mubr.bf16.gmra.mrb[0].mxu0 %v1136
      %v1172 = vpop.f32.mrb[0].mxu0
      %v1173 = vadd.f32 0.0, %v1172
      %v1174 = vpop.f32.mrb[0].mxu0
      %v1175 = vpop.f32.mrb[0].mxu0
      %v1176 = vadd.f32 0.0, %v1175
      %v1177 = vpop.f32.mrb[0].mxu0
      %1178 = vdwg.mxu0
      %v1179 = vadd.f32 %v1074, %v1173
      %v1180 = vadd.f32 %v1075, %v1176
      %v1181 = vld [vmem:[%s1076] sm:$0x7]
      %v1182 = vld [vmem:[%s1076 + $0x8] sm:$0x7]
      %v1183 = vld [vmem:[%s1076 + $0x10] sm:$0x7]
      %v1184 = vld [vmem:[%s1076 + $0x18] sm:$0x7]
      %v1190 = vunpack.c.l.s4 1983009808
      %v1191 = vunpack.c.0.s8 %v1190
      %v1192 = vlaneseq
      %v1193 = vshrl.u32 %v1192, 7
      %v1194 = vsub.s32 %v1191, %v1193
      %v1195 = vrot.slane %v1181, %v1194
      %v1196 = vcombine.high %v1195, %v1195
      %v1198 = vunpack.c.l.s4 1983009808
      %v1199 = vunpack.c.0.s8 %v1198
      %v1200 = vlaneseq
      %v1201 = vshrl.u32 %v1200, 7
      %v1202 = vsub.s32 %v1199, %v1201
      %v1203 = vrot.slane %v1182, %v1202
      %v1204 = vcombine.high %v1203, %v1203
      %v1206 = vunpack.c.l.s4 1983009808
      %v1207 = vunpack.c.0.s8 %v1206
      %v1208 = vlaneseq
      %v1209 = vshrl.u32 %v1208, 7
      %v1210 = vsub.s32 %v1207, %v1209
      %v1211 = vrot.slane %v1183, %v1210
      %v1212 = vcombine.high %v1211, %v1211
      %v1214 = vunpack.c.l.s4 1983009808
      %v1215 = vunpack.c.0.s8 %v1214
      %v1216 = vlaneseq
      %v1217 = vshrl.u32 %v1216, 7
      %v1218 = vsub.s32 %v1215, %v1217
      %v1219 = vrot.slane %v1184, %v1218
      %v1220 = vcombine.high %v1219, %v1219
      %v1222 = vshrl.u32 %v1195, 16
      %v1224 = vrot.slane %v1222, 6
      %v1225 = vshll.u32 %v1195, 16
      %v1227 = vrot.slane %v1225, 7
      %v1228 = vor.u32 %v1224, %v1227
      %v1229 = vrot.slane %v1228, 2
      %v1231 = vshll.u32 %v1196, 16
      %v1233 = vrot.slane %v1231, 7
      %v1234 = vsel %vm241, %v1229, %v1233
      %v1236 = vshrl.u32 %v1203, 16
      %v1238 = vrot.slane %v1236, 6
      %v1239 = vshll.u32 %v1203, 16
      %v1241 = vrot.slane %v1239, 7
      %v1242 = vor.u32 %v1238, %v1241
      %v1243 = vrot.slane %v1242, 2
      %v1245 = vshll.u32 %v1204, 16
      %v1247 = vrot.slane %v1245, 7
      %v1248 = vsel %vm241, %v1243, %v1247
      %v1250 = vshrl.u32 %v1211, 16
      %v1252 = vrot.slane %v1250, 6
      %v1253 = vshll.u32 %v1211, 16
      %v1255 = vrot.slane %v1253, 7
      %v1256 = vor.u32 %v1252, %v1255
      %v1257 = vrot.slane %v1256, 2
      %v1259 = vshll.u32 %v1212, 16
      %v1261 = vrot.slane %v1259, 7
      %v1262 = vsel %vm241, %v1257, %v1261
      %v1264 = vshrl.u32 %v1219, 16
      %v1266 = vrot.slane %v1264, 6
      %v1267 = vshll.u32 %v1219, 16
      %v1269 = vrot.slane %v1267, 7
      %v1270 = vor.u32 %v1266, %v1269
      %v1271 = vrot.slane %v1270, 2
      %v1273 = vshll.u32 %v1220, 16
      %v1275 = vrot.slane %v1273, 7
      %v1276 = vsel %vm241, %v1271, %v1275
      %s1277 = scalar_lea.vmem %s1, 224
      %v1278 = vld [vmem:[%s1277] sm:$0xf]
      %v1279 = vld [vmem:[%s1277 + $0x4] sm:$0xf]
      %v1280 = vld [vmem:[%s1277 + $0x8] sm:$0xf]
      %v1281 = vld [vmem:[%s1277 + $0xc] sm:$0xf]
      %v1282 = vld [vmem:[%s1277 + $0x10] sm:$0xf]
      %v1283 = vld [vmem:[%s1277 + $0x14] sm:$0xf]
      %v1284 = vld [vmem:[%s1277 + $0x18] sm:$0xf]
      %v1285 = vld [vmem:[%s1277 + $0x1c] sm:$0xf]
      %v1286 = vcombine.low %v1234, %v1248
      %v1287 = vcombine.low %v1262, %v1276
      %v1289 = vunpack.c.l.s4 1983009808
      %v1290 = vunpack.c.0.s8 %v1289
      %v1291 = vlaneseq
      %v1292 = vshrl.u32 %v1291, 7
      %v1293 = vsub.s32 %v1290, %v1292
      %v1294 = vrot.slane %v1286, %v1293
      %v1296 = vunpack.c.l.s4 1983009808
      %v1297 = vunpack.c.0.s8 %v1296
      %v1298 = vlaneseq
      %v1299 = vshrl.u32 %v1298, 7
      %v1300 = vsub.s32 %v1297, %v1299
      %v1301 = vrot.slane %v1287, %v1300
      %v1302 = vcombine.low %v1294, %v1301
      %v1311 = vunpack.c.l.b16 %v1278
      %v1312 = vunpack.c.l.b16 %v1279
      %v1313 = vunpack.c.l.b16 %v1280
      %v1314 = vunpack.c.l.b16 %v1281
      %v1315 = vunpack.c.l.b16 %v1282
      %v1316 = vunpack.c.l.b16 %v1283
      %v1317 = vunpack.c.l.b16 %v1284
      %v1318 = vunpack.c.l.b16 %v1285
      %v1319 = vpack.c.b16 %v1312, %v1311
      %v1320 = vpack.c.b16 %v1314, %v1313
      %v1321 = vpack.c.b16 %v1316, %v1315
      %v1322 = vpack.c.b16 %v1318, %v1317
      %v1328 = vsel %vm348, %v1302, 0
      %1330 = vmatprep.subr.bf16.mxu0 0
      %1331 = vmatpush1.bf16.msra.mxu0 %v1319
      %1332 = vmatprep.subr.bf16.mxu0 0
      %1333 = vmatpush1.bf16.msra.mxu0 %v1320
      %1334 = vmatprep.subr.bf16.mxu0 0
      %1335 = vmatpush1.bf16.msra.mxu0 %v1321
      %1336 = vmatprep.subr.bf16.mxu0 0
      %1337 = vmatpush1.bf16.msra.mxu0 %v1322
      %1338 = vmatprep.subr.bf16.mxu0 0
      %1339 = vmatpush1.bf16.msra.mxu0 0
      %1340 = vmatprep.subr.bf16.mxu0 0
      %1341 = vmatpush1.bf16.msra.mxu0 0
      %1342 = vmatprep.subr.bf16.mxu0 0
      %1343 = vmatpush1.bf16.msra.mxu0 0
      %1344 = vmatprep.subr.bf16.mxu0 0
      %1345 = vmatpush1.bf16.msra.mxu0 0
      %1346 = vmatprep.subr.bf16.mxu0 0
      %1347 = vmatpush1.bf16.msra.mxu0 0
      %1348 = vmatprep.subr.bf16.mxu0 0
      %1349 = vmatpush1.bf16.msra.mxu0 0
      %1350 = vmatprep.subr.bf16.mxu0 0
      %1351 = vmatpush1.bf16.msra.mxu0 0
      %1352 = vmatprep.subr.bf16.mxu0 0
      %1353 = vmatpush1.bf16.msra.mxu0 0
      %1354 = vmatprep.subr.bf16.mxu0 0
      %1355 = vmatpush1.bf16.msra.mxu0 0
      %1356 = vmatprep.subr.bf16.mxu0 0
      %1357 = vmatpush1.bf16.msra.mxu0 0
      %1358 = vmatprep.subr.bf16.mxu0 0
      %1359 = vmatpush1.bf16.msra.mxu0 0
      %1360 = vmatprep.subr.bf16.mxu0 0
      %1361 = vmatpush1.bf16.msra.mxu0 0
      %1362 = vmatprep.mubr.bf16.mxu0 0
      %1363 = vmatmul.mubr.bf16.gmra.mrb[0].mxu0 %v1328
      %v1364 = vpop.f32.mrb[0].mxu0
      %v1365 = vadd.f32 0.0, %v1364
      %v1366 = vpop.f32.mrb[0].mxu0
      %v1367 = vpop.f32.mrb[0].mxu0
      %v1368 = vadd.f32 0.0, %v1367
      %v1369 = vpop.f32.mrb[0].mxu0
      %1370 = vdwg.mxu0
      %v1371 = vadd.f32 %v1179, %v1365
      %v1372 = vadd.f32 %v1180, %v1368
      %1373 = vst.msk [vmem:[%s177] sm:$0xff] %vm348, %v1371
      %1374 = vst.msk [vmem:[%s177 + $0x8] sm:$0xff] %vm348, %v1372
      %v1375 = vsel %vm348, %v1371, 0.0
      %v1376 = vsel %vm348, %v1372, 0.0
      %v1377 = vadd.f32 %v1375, %v1376
      %v1378 = vrot.slane %v1377, 4
      %v1379 = vadd.f32 %v1377, %v1378
      %v1380 = vrot.slane %v1379, 2
      %v1381 = vadd.f32 %v1379, %v1380
      %v1382 = vrot.slane %v1381, 1
      %v1383 = vadd.f32 %v1381, %v1382
      %v1384 = vmul.f32 %v1371, %v1371
      %v1385 = vmul.f32 %v1372, %v1372
      %v1386 = vsel %vm348, %v1384, 0.0
      %v1387 = vsel %vm348, %v1385, 0.0
      %v1388 = vadd.f32 %v1386, %v1387
      %v1389 = vrot.slane %v1388, 4
      %v1390 = vadd.f32 %v1388, %v1389
      %v1391 = vrot.slane %v1390, 2
      %v1392 = vadd.f32 %v1390, %v1391
      %v1393 = vrot.slane %v1392, 1
      %v1394 = vadd.f32 %v1392, %v1393
      %vm1395 = vcmask 1040384
      %v1396 = vsel %vm1395, %v1383, %v1394
      %vm1397 = vcmask 517120
      %1398 = vst.msk [vmem:[%s181] sm:$0x3] %vm1397, %v1396
      %p1399 = scmp.lt.s32.totalorder %s15, 1
      %s1400 = scalar_select %p1399, %s15, 1
      %s1401 = smul.addr %s1400, 2
      %s1402 = smul.addr %s1401, 8
      %s1403 = scalar_lea.vmem %s2, %s1402
      %p1404 = scmp.lt.s32.totalorder %s15, 1
      %s1405 = scalar_select %p1404, %s15, 1
      %s1406 = smul.addr %s1405, 2
      %s1407 = scalar_lea.vmem %s3, %s1406
      // Predicated region
      $region29: #{_lambda_.11} parent=27 // pred_check
        %p1408 = pneg %p80
      $region30: #{_lambda_.11} parent=27 // pred_check_branch
        %1410 = sbr.rel (%p1408) target = $region32
      $region31: #{_lambda_.11} parent=27 // pred_region
        _
      $region32: #{_lambda_.11} parent=27 // pred_fallthru
        _
      // Predicated region
      $region33: #{_lambda_.11} parent=27 // pred_check
        %p1411 = pneg %p106
      $region34: #{_lambda_.11} parent=27 // pred_check_branch
        %1413 = sbr.rel (%p1411) target = $region36
      $region35: #{_lambda_.11} parent=27 // pred_region
        _
      $region36: #{_lambda_.11} parent=27 // pred_fallthru
        _
    $region28: #{_lambda_.11} parent=5 // pred_fallthru
      _
    %p1414 = scmp.le.s32.totalorder 2, %s10
    // Predicated region
    $region37: #{_lambda_.11} parent=5 // pred_check
      %p1415 = pneg %p1414
    $region38: #{_lambda_.11} parent=5 // pred_check_branch
      %1417 = sbr.rel (%p1415) target = $region40
    $region39: #{_lambda_.11} parent=5 // pred_region
      %s1418 = ssub.s32 %s10, 2
      // Predicated region
      $region41: #{_lambda_.11} parent=39 // pred_check
        %p1419 = pneg %p86
      $region42: #{_lambda_.11} parent=39 // pred_check_branch
        %1421 = sbr.rel (%p1419) target = $region44
      $region43: #{_lambda_.11} parent=39 // pred_region
        %p1422 = scmp.lt.s32.totalorder %s16, 1
        %s1423 = scalar_select %p1422, %s16, 1
        %s1424 = smul.addr %s1423, 2
        %s1425 = smul.addr %s1424, 8
        %s1426 = scalar_lea.vmem %s2, %s1425
      $region44: #{_lambda_.11} parent=39 // pred_fallthru
        _
      // Predicated region
      $region45: #{_lambda_.11} parent=39 // pred_check
        %p1427 = pneg %p112
      $region46: #{_lambda_.11} parent=39 // pred_check_branch
        %1429 = sbr.rel (%p1427) target = $region48
      $region47: #{_lambda_.11} parent=39 // pred_region
        %p1430 = scmp.lt.s32.totalorder %s16, 1
        %s1431 = scalar_select %p1430, %s16, 1
        %s1432 = smul.addr %s1431, 2
        %s1433 = scalar_lea.vmem %s3, %s1432
      $region48: #{_lambda_.11} parent=39 // pred_fallthru
        _
    $region40: #{_lambda_.11} parent=5 // pred_fallthru
      _
  $region6: #{_lambda_.11} parent=0 // loop_footer
    %s14 = sadd.s32 1, %s10
  $region7: #{_lambda_.11} parent=0 // loop_footer_branch
    %9 = sbr.rel target = $region3
  $region8: #{_lambda_.11} parent=0 // loop_exit
    _

// kernel: _lambda_.14
$region0: #{_lambda_.14}
  #allocation0 [shape = 'u32[]', space=smem, size = 0x4, offset = 0x4, fixed_abs, tag = 'smem constant byte address 0x4 - core index']
  #allocation1 [shape = 'u32[144,128]{1,0:T(1,128)}', space=vmem, size = 0x12000, scoped, tag = 'internal scratch']
  %s0 = inlined_call_operand.vmem [shape: f32[2,9,128], index: 0, kind: input, shape index: {}]
  %s1 = inlined_call_operand.vmem [shape: f32[1,128], index: 1, kind: input, shape index: {}]
  %s2 = inlined_call_operand.vmem [shape: f32[1,128], index: 2, kind: input, shape index: {}]
  %s3 = inlined_call_operand.vmem [shape: bf16[2,9,128], index: 3, kind: output, shape index: {}]
  %s4 = sld [smem:[#allocation0]]
  $region45: #{_lambda_.14} parent=0
    _
  %s6 = ssub.s32 1, %s4
  %s7 = scalar_select 0, %s6, %s4
  loop: start=0, step=1, limit=4
  $region2: #{_lambda_.14} parent=0 // loop_pre_header
    _
  $region3: #{_lambda_.14} parent=0 // loop_header
    %s9 = sphi 0, %s13
    %p10 = scmp.ge.s32.totalorder %s9, 4
    %s19 = sphi 0, %s21
    %s22 = sphi 0, %s19
    %s23 = sphi 0, %s22
    %s39 = sphi 0, %s23
    %s43 = sphi 0, %s43
    %s45 = sphi 0, %s43
    %s46 = sphi 0, %s45
    %s60 = sphi 0, %s46
    %s64 = sphi 0, %s64
    %s66 = sphi 0, %s64
    %s67 = sphi 0, %s66
    %s81 = sphi 0, %s67
    %s87 = sphi 0, %s89
    %s90 = sphi 0, %s87
    %s91 = sphi 0, %s90
    %s107 = sphi 0, %s91
  $region4: #{_lambda_.14} parent=0 // loop_header_branch
    %12 = sbr.rel (%p10) target = $region8
  $region5: #{_lambda_.14} parent=0 // loop_body
    %s14 = ssub.s32 %s9, 1
    %s15 = ssub.s32 %s9, 2
    %s16 = sadd.s32 %s9, 1
    %s17 = ssub.s32 %s9, %s16
    %p18 = scmp.eq.s32.totalorder %s17, 0
    %s20 = sadd.s32 %s19, 1
    %s21 = scalar_select %p18, %s19, %s20
    %p24 = pneg %p18
    %p25 = scmp.eq.s32.totalorder %s9, 1
    %p26 = por %p24, %p25
    %p27 = scmp.ne.s32.totalorder %s19, %s22
    %p28 = scmp.eq.s32.totalorder %s9, 0
    %p29 = por %p27, %p28
    %p30 = scmp.ne.s32.totalorder %s19, %s22
    %p31 = scmp.eq.s32.totalorder %s14, 1
    %p32 = por %p30, %p31
    %p33 = scmp.ne.s32.totalorder %s22, %s23
    %p34 = scmp.eq.s32.totalorder %s14, 0
    %p35 = por %p33, %p34
    %p36 = scmp.ne.s32.totalorder %s22, %s23
    %p37 = scmp.eq.s32.totalorder %s15, 1
    %p38 = por %p36, %p37
    %p40 = scmp.ne.s32.totalorder %s23, %s39
    %p41 = scmp.eq.s32.totalorder %s15, 0
    %p42 = por %p40, %p41
    %s44 = sadd.s32 %s43, 1
    %p47 = scmp.eq.s32.totalorder %s9, 1
    %p48 = scmp.ne.s32.totalorder %s43, %s45
    %p49 = scmp.eq.s32.totalorder %s9, 0
    %p50 = por %p48, %p49
    %p51 = scmp.ne.s32.totalorder %s43, %s45
    %p52 = scmp.eq.s32.totalorder %s14, 1
    %p53 = por %p51, %p52
    %p54 = scmp.ne.s32.totalorder %s45, %s46
    %p55 = scmp.eq.s32.totalorder %s14, 0
    %p56 = por %p54, %p55
    %p57 = scmp.ne.s32.totalorder %s45, %s46
    %p58 = scmp.eq.s32.totalorder %s15, 1
    %p59 = por %p57, %p58
    %p61 = scmp.ne.s32.totalorder %s46, %s60
    %p62 = scmp.eq.s32.totalorder %s15, 0
    %p63 = por %p61, %p62
    %s65 = sadd.s32 %s64, 1
    %p68 = scmp.eq.s32.totalorder %s9, 1
    %p69 = scmp.ne.s32.totalorder %s64, %s66
    %p70 = scmp.eq.s32.totalorder %s9, 0
    %p71 = por %p69, %p70
    %p72 = scmp.ne.s32.totalorder %s64, %s66
    %p73 = scmp.eq.s32.totalorder %s14, 1
    %p74 = por %p72, %p73
    %p75 = scmp.ne.s32.totalorder %s66, %s67
    %p76 = scmp.eq.s32.totalorder %s14, 0
    %p77 = por %p75, %p76
    %p78 = scmp.ne.s32.totalorder %s66, %s67
    %p79 = scmp.eq.s32.totalorder %s15, 1
    %p80 = por %p78, %p79
    %p82 = scmp.ne.s32.totalorder %s67, %s81
    %p83 = scmp.eq.s32.totalorder %s15, 0
    %p84 = por %p82, %p83
    %s85 = ssub.s32 %s9, %s16
    %p86 = scmp.eq.s32.totalorder %s85, 0
    %s88 = sadd.s32 %s87, 1
    %s89 = scalar_select %p86, %s87, %s88
    %p92 = pneg %p86
    %p93 = scmp.eq.s32.totalorder %s9, 1
    %p94 = por %p92, %p93
    %p95 = scmp.ne.s32.totalorder %s87, %s90
    %p96 = scmp.eq.s32.totalorder %s9, 0
    %p97 = por %p95, %p96
    %p98 = scmp.ne.s32.totalorder %s87, %s90
    %p99 = scmp.eq.s32.totalorder %s14, 1
    %p100 = por %p98, %p99
    %p101 = scmp.ne.s32.totalorder %s90, %s91
    %p102 = scmp.eq.s32.totalorder %s14, 0
    %p103 = por %p101, %p102
    %p104 = scmp.ne.s32.totalorder %s90, %s91
    %p105 = scmp.eq.s32.totalorder %s15, 1
    %p106 = por %p104, %p105
    %p108 = scmp.ne.s32.totalorder %s91, %s107
    %p109 = scmp.eq.s32.totalorder %s15, 0
    %p110 = por %p108, %p109
    %p111 = scmp.le.s32.totalorder 1, %s9
    %p112 = scmp.lt.s32.totalorder %s9, 3
    %p113 = pnand %p111, %p112
    %p114 = pneg %p113
    // Predicated region
    $region9: #{_lambda_.14} parent=5 // pred_check
      _
    $region10: #{_lambda_.14} parent=5 // pred_check_branch
      %116 = sbr.rel (%p113) target = $region12
    $region11: #{_lambda_.14} parent=5 // pred_region
      %s117 = ssub.s32 %s9, 1
      // Predicated region
      $region13: #{_lambda_.14} parent=11 // pred_check
        %p118 = pneg %p56
      $region14: #{_lambda_.14} parent=11 // pred_check_branch
        %120 = sbr.rel (%p118) target = $region16
      $region15: #{_lambda_.14} parent=11 // pred_region
        _
      $region16: #{_lambda_.14} parent=11 // pred_fallthru
        _
      // Predicated region
      $region17: #{_lambda_.14} parent=11 // pred_check
        %p121 = pneg %p77
      $region18: #{_lambda_.14} parent=11 // pred_check_branch
        %123 = sbr.rel (%p121) target = $region20
      $region19: #{_lambda_.14} parent=11 // pred_region
        _
      $region20: #{_lambda_.14} parent=11 // pred_fallthru
        _
    $region12: #{_lambda_.14} parent=5 // pred_fallthru
      _
    %p124 = scmp.lt.s32.totalorder %s9, 2
    // Predicated region
    $region21: #{_lambda_.14} parent=5 // pred_check
      %p125 = pneg %p124
    $region22: #{_lambda_.14} parent=5 // pred_check_branch
      %127 = sbr.rel (%p125) target = $region24
    $region23: #{_lambda_.14} parent=5 // pred_region
      // Predicated region
      $region25: #{_lambda_.14} parent=23 // pred_check
        %p128 = pneg %p29
      $region26: #{_lambda_.14} parent=23 // pred_check_branch
        %130 = sbr.rel (%p128) target = $region28
      $region27: #{_lambda_.14} parent=23 // pred_region
        %p131 = scmp.lt.s32.totalorder %s9, 1
        %s132 = scalar_select %p131, %s9, 1
        %s133 = smul.addr %s132, 2
        %s134 = smul.addr %s133, 8
        %s135 = scalar_lea.vmem %s0, %s134
      $region28: #{_lambda_.14} parent=23 // pred_fallthru
        _
    $region24: #{_lambda_.14} parent=5 // pred_fallthru
      _
    %p136 = scmp.le.s32.totalorder 1, %s9
    %p137 = scmp.lt.s32.totalorder %s9, 3
    %p138 = pnand %p136, %p137
    %p139 = pneg %p138
    // Predicated region
    $region29: #{_lambda_.14} parent=5 // pred_check
      _
    $region30: #{_lambda_.14} parent=5 // pred_check_branch
      %141 = sbr.rel (%p138) target = $region32
    $region31: #{_lambda_.14} parent=5 // pred_region
      %s142 = ssub.s32 %s9, 1
      %p143 = scmp.lt.s32.totalorder %s14, 1
      %s144 = scalar_select %p143, %s14, 1
      %s145 = smul.addr %s144, 2
      %s146 = smul.addr %s145, 8
      %s147 = scalar_lea.vmem %s0, %s146
      %p148 = pneg %p35
      %p149 = pneg %p32
      %p150 = pneg %p56
      %p151 = pneg %p53
      %p152 = pneg %p77
      %p153 = pneg %p74
      %p154 = pneg %p103
      %p155 = pneg %p100
      %p156 = scmp.lt.s32.totalorder %s14, 1
      %s157 = scalar_select %p156, %s14, 1
      %s158 = smul.addr %s157, 2
      %s159 = smul.addr %s158, 4
      %s160 = scalar_lea.vmem %s3, %s159
      %p161 = scmp.lt.s32.totalorder %s14, 1
      %s162 = scalar_select %p161, %s14, 1
      %s163 = smul.addr %s162, 2
      %s164 = smul.addr %s163, 8
      %s165 = scalar_lea.vmem %s0, %s164
      %p166 = scmp.lt.s32.totalorder %s14, 1
      %s167 = scalar_select %p166, %s14, 1
      %s168 = smul.addr %s167, 2
      %s169 = smul.addr %s168, 4
      %s170 = scalar_lea.vmem %s3, %s169
      %v171 = vld [vmem:[%s165] sm:$0xff]
      %v172 = vld [vmem:[%s165 + $0x8] sm:$0x1]
      %v173 = vld [vmem:[%s1] sm:$0x1]
      %v175 = vlaneseq
      %v176 = vshrl.u32 %v175, 7
      %v177 = vsub.s32 0, %v176
      %v178 = vrot.slane %v173, %v177
      %v180 = vmul.f32 %v171, %v178
      %v181 = vmul.f32 %v172, %v178
      %v182 = vld [vmem:[%s2] sm:$0x1]
      %v184 = vlaneseq
      %v185 = vshrl.u32 %v184, 7
      %v186 = vsub.s32 0, %v185
      %v187 = vrot.slane %v182, %v186
      %v189 = vadd.f32 %v180, %v187
      %v190 = vadd.f32 %v181, %v187
      %vm191 = vcmp.ge.f32.partialorder %v189, 0.0
      %vm192 = vcmp.ge.f32.partialorder %v190, 0.0
      %v193 = vmul.f32 %v189, 0.2
      %v194 = vmul.f32 %v190, 0.2
      %v195 = vsel %vm191, %v189, %v193
      %v196 = vsel %vm192, %v190, %v194
      %v197 = vpack.c.bf16 %v196, %v195
      %v199 = vunpack.c.l.b16 %v197
      %v200 = vunpack.c.h.b16 %v197
      %v201 = vpack.c.b16 %v199, %v199
      %v202 = vpack.c.b16 %v200, %v200
      %205 = vst [vmem:[%s170] sm:$0xf] %v201
      %vm206 = vcmask 1040384
      %vm207 = vsmask.f32 256
      %vm208 = vmand %vm206, %vm207
      %v209 = vld [vmem:[%s170 + $0x4] sm:$0x1]
      %v210 = vsel %vm208, %v202, %v209
      %211 = vst [vmem:[%s170 + $0x4] sm:$0x1] %v210
      %p212 = scmp.lt.s32.totalorder %s14, 1
      %s213 = scalar_select %p212, %s14, 1
      %s214 = smul.addr %s213, 2
      %s215 = smul.addr %s214, 4
      %s216 = scalar_lea.vmem %s3, %s215
      // Predicated region
      $region33: #{_lambda_.14} parent=31 // pred_check
        %p217 = pneg %p100
      $region34: #{_lambda_.14} parent=31 // pred_check_branch
        %219 = sbr.rel (%p217) target = $region36
      $region35: #{_lambda_.14} parent=31 // pred_region
        _
      $region36: #{_lambda_.14} parent=31 // pred_fallthru
        _
    $region32: #{_lambda_.14} parent=5 // pred_fallthru
      _
    %p220 = scmp.le.s32.totalorder 2, %s9
    // Predicated region
    $region37: #{_lambda_.14} parent=5 // pred_check
      %p221 = pneg %p220
    $region38: #{_lambda_.14} parent=5 // pred_check_branch
      %223 = sbr.rel (%p221) target = $region40
    $region39: #{_lambda_.14} parent=5 // pred_region
      %s224 = ssub.s32 %s9, 2
      // Predicated region
      $region41: #{_lambda_.14} parent=39 // pred_check
        %p225 = pneg %p106
      $region42: #{_lambda_.14} parent=39 // pred_check_branch
        %227 = sbr.rel (%p225) target = $region44
      $region43: #{_lambda_.14} parent=39 // pred_region
        %p228 = scmp.lt.s32.totalorder %s15, 1
        %s229 = scalar_select %p228, %s15, 1
        %s230 = smul.addr %s229, 2
        %s231 = smul.addr %s230, 4
        %s232 = scalar_lea.vmem %s3, %s231
      $region44: #{_lambda_.14} parent=39 // pred_fallthru
        _
    $region40: #{_lambda_.14} parent=5 // pred_fallthru
      _
  $region6: #{_lambda_.14} parent=0 // loop_footer
    %s13 = sadd.s32 1, %s9
  $region7: #{_lambda_.14} parent=0 // loop_footer_branch
    %8 = sbr.rel target = $region3
  $region8: #{_lambda_.14} parent=0 // loop_exit
    _

// kernel: _lambda_.13
$region0: #{_lambda_.13}
  #allocation0 [shape = 'u32[]', space=smem, size = 0x4, offset = 0x4, fixed_abs, tag = 'smem constant byte address 0x4 - core index']
  #allocation1 [shape = 'u32[144,128]{1,0:T(1,128)}', space=vmem, size = 0x12000, scoped, tag = 'internal scratch']
  %s0 = inlined_call_operand.vmem [shape: bf16[2,6,1,6,64], index: 0, kind: input, shape index: {}]
  %s1 = inlined_call_operand.vmem [shape: bf16[4,4,64,128], index: 1, kind: input, shape index: {}]
  %s2 = inlined_call_operand.vmem [shape: f32[2,9,128], index: 2, kind: output, shape index: {0}]
  %s3 = inlined_call_operand.vmem [shape: f32[2,2,128], index: 3, kind: output, shape index: {1}]
  %4 = xla_tuple %s2, %s3
  %s5 = sld [smem:[#allocation0]]
  $region49: #{_lambda_.13} parent=0
    _
  %s7 = ssub.s32 1, %s5
  %s8 = scalar_select 0, %s7, %s5
  loop: start=0, step=1, limit=4
  $region2: #{_lambda_.13} parent=0 // loop_pre_header
    _
  $region3: #{_lambda_.13} parent=0 // loop_header
    %s10 = sphi 0, %s14
    %p11 = scmp.ge.s32.totalorder %s10, 4
    %s20 = sphi 0, %s22
    %s23 = sphi 0, %s20
    %s24 = sphi 0, %s23
    %s40 = sphi 0, %s24
    %s44 = sphi 0, %s44
    %s46 = sphi 0, %s44
    %s47 = sphi 0, %s46
    %s61 = sphi 0, %s47
    %s67 = sphi 0, %s69
    %s70 = sphi 0, %s67
    %s71 = sphi 0, %s70
    %s87 = sphi 0, %s71
    %s93 = sphi 0, %s95
    %s96 = sphi 0, %s93
    %s97 = sphi 0, %s96
    %s113 = sphi 0, %s97
  $region4: #{_lambda_.13} parent=0 // loop_header_branch
    %13 = sbr.rel (%p11) target = $region8
  $region5: #{_lambda_.13} parent=0 // loop_body
    %s15 = ssub.s32 %s10, 1
    %s16 = ssub.s32 %s10, 2
    %s17 = sadd.s32 %s10, 1
    %s18 = ssub.s32 %s10, %s17
    %p19 = scmp.eq.s32.totalorder %s18, 0
    %s21 = sadd.s32 %s20, 1
    %s22 = scalar_select %p19, %s20, %s21
    %p25 = pneg %p19
    %p26 = scmp.eq.s32.totalorder %s10, 1
    %p27 = por %p25, %p26
    %p28 = scmp.ne.s32.totalorder %s20, %s23
    %p29 = scmp.eq.s32.totalorder %s10, 0
    %p30 = por %p28, %p29
    %p31 = scmp.ne.s32.totalorder %s20, %s23
    %p32 = scmp.eq.s32.totalorder %s15, 1
    %p33 = por %p31, %p32
    %p34 = scmp.ne.s32.totalorder %s23, %s24
    %p35 = scmp.eq.s32.totalorder %s15, 0
    %p36 = por %p34, %p35
    %p37 = scmp.ne.s32.totalorder %s23, %s24
    %p38 = scmp.eq.s32.totalorder %s16, 1
    %p39 = por %p37, %p38
    %p41 = scmp.ne.s32.totalorder %s24, %s40
    %p42 = scmp.eq.s32.totalorder %s16, 0
    %p43 = por %p41, %p42
    %s45 = sadd.s32 %s44, 1
    %p48 = scmp.eq.s32.totalorder %s10, 1
    %p49 = scmp.ne.s32.totalorder %s44, %s46
    %p50 = scmp.eq.s32.totalorder %s10, 0
    %p51 = por %p49, %p50
    %p52 = scmp.ne.s32.totalorder %s44, %s46
    %p53 = scmp.eq.s32.totalorder %s15, 1
    %p54 = por %p52, %p53
    %p55 = scmp.ne.s32.totalorder %s46, %s47
    %p56 = scmp.eq.s32.totalorder %s15, 0
    %p57 = por %p55, %p56
    %p58 = scmp.ne.s32.totalorder %s46, %s47
    %p59 = scmp.eq.s32.totalorder %s16, 1
    %p60 = por %p58, %p59
    %p62 = scmp.ne.s32.totalorder %s47, %s61
    %p63 = scmp.eq.s32.totalorder %s16, 0
    %p64 = por %p62, %p63
    %s65 = ssub.s32 %s10, %s17
    %p66 = scmp.eq.s32.totalorder %s65, 0
    %s68 = sadd.s32 %s67, 1
    %s69 = scalar_select %p66, %s67, %s68
    %p72 = pneg %p66
    %p73 = scmp.eq.s32.totalorder %s10, 1
    %p74 = por %p72, %p73
    %p75 = scmp.ne.s32.totalorder %s67, %s70
    %p76 = scmp.eq.s32.totalorder %s10, 0
    %p77 = por %p75, %p76
    %p78 = scmp.ne.s32.totalorder %s67, %s70
    %p79 = scmp.eq.s32.totalorder %s15, 1
    %p80 = por %p78, %p79
    %p81 = scmp.ne.s32.totalorder %s70, %s71
    %p82 = scmp.eq.s32.totalorder %s15, 0
    %p83 = por %p81, %p82
    %p84 = scmp.ne.s32.totalorder %s70, %s71
    %p85 = scmp.eq.s32.totalorder %s16, 1
    %p86 = por %p84, %p85
    %p88 = scmp.ne.s32.totalorder %s71, %s87
    %p89 = scmp.eq.s32.totalorder %s16, 0
    %p90 = por %p88, %p89
    %s91 = ssub.s32 %s10, %s17
    %p92 = scmp.eq.s32.totalorder %s91, 0
    %s94 = sadd.s32 %s93, 1
    %s95 = scalar_select %p92, %s93, %s94
    %p98 = pneg %p92
    %p99 = scmp.eq.s32.totalorder %s10, 1
    %p100 = por %p98, %p99
    %p101 = scmp.ne.s32.totalorder %s93, %s96
    %p102 = scmp.eq.s32.totalorder %s10, 0
    %p103 = por %p101, %p102
    %p104 = scmp.ne.s32.totalorder %s93, %s96
    %p105 = scmp.eq.s32.totalorder %s15, 1
    %p106 = por %p104, %p105
    %p107 = scmp.ne.s32.totalorder %s96, %s97
    %p108 = scmp.eq.s32.totalorder %s15, 0
    %p109 = por %p107, %p108
    %p110 = scmp.ne.s32.totalorder %s96, %s97
    %p111 = scmp.eq.s32.totalorder %s16, 1
    %p112 = por %p110, %p111
    %p114 = scmp.ne.s32.totalorder %s97, %s113
    %p115 = scmp.eq.s32.totalorder %s16, 0
    %p116 = por %p114, %p115
    %p117 = scmp.le.s32.totalorder 1, %s10
    %p118 = scmp.lt.s32.totalorder %s10, 3
    %p119 = pnand %p117, %p118
    %p120 = pneg %p119
    // Predicated region
    $region9: #{_lambda_.13} parent=5 // pred_check
      _
    $region10: #{_lambda_.13} parent=5 // pred_check_branch
      %122 = sbr.rel (%p119) target = $region12
    $region11: #{_lambda_.13} parent=5 // pred_region
      %s123 = ssub.s32 %s10, 1
      // Predicated region
      $region13: #{_lambda_.13} parent=11 // pred_check
        %p124 = pneg %p57
      $region14: #{_lambda_.13} parent=11 // pred_check_branch
        %126 = sbr.rel (%p124) target = $region16
      $region15: #{_lambda_.13} parent=11 // pred_region
        _
      $region16: #{_lambda_.13} parent=11 // pred_fallthru
        _
    $region12: #{_lambda_.13} parent=5 // pred_fallthru
      _
    %p127 = scmp.lt.s32.totalorder %s10, 2
    // Predicated region
    $region17: #{_lambda_.13} parent=5 // pred_check
      %p128 = pneg %p127
    $region18: #{_lambda_.13} parent=5 // pred_check_branch
      %130 = sbr.rel (%p128) target = $region20
    $region19: #{_lambda_.13} parent=5 // pred_region
      // Predicated region
      $region21: #{_lambda_.13} parent=19 // pred_check
        %p131 = pneg %p30
      $region22: #{_lambda_.13} parent=19 // pred_check_branch
        %133 = sbr.rel (%p131) target = $region24
      $region23: #{_lambda_.13} parent=19 // pred_region
        %p134 = scmp.lt.s32.totalorder %s10, 1
        %s135 = scalar_select %p134, %s10, 1
        %s136 = smul.addr %s135, 6
        %s137 = smul.addr %s136, 4
        %s138 = scalar_lea.vmem %s0, %s137
      $region24: #{_lambda_.13} parent=19 // pred_fallthru
        _
    $region20: #{_lambda_.13} parent=5 // pred_fallthru
      _
    %p139 = scmp.le.s32.totalorder 1, %s10
    %p140 = scmp.lt.s32.totalorder %s10, 3
    %p141 = pnand %p139, %p140
    %p142 = pneg %p141
    // Predicated region
    $region25: #{_lambda_.13} parent=5 // pred_check
      _
    $region26: #{_lambda_.13} parent=5 // pred_check_branch
      %144 = sbr.rel (%p141) target = $region28
    $region27: #{_lambda_.13} parent=5 // pred_region
      %s145 = ssub.s32 %s10, 1
      %p146 = scmp.lt.s32.totalorder %s15, 1
      %s147 = scalar_select %p146, %s15, 1
      %s148 = smul.addr %s147, 6
      %s149 = smul.addr %s148, 4
      %s150 = scalar_lea.vmem %s0, %s149
      %p151 = pneg %p36
      %p152 = pneg %p33
      %p153 = pneg %p57
      %p154 = pneg %p54
      %p155 = pneg %p83
      %p156 = pneg %p80
      %p157 = scmp.lt.s32.totalorder %s15, 1
      %s158 = scalar_select %p157, %s15, 1
      %s159 = smul.addr %s158, 2
      %s160 = smul.addr %s159, 8
      %s161 = scalar_lea.vmem %s2, %s160
      %p162 = pneg %p109
      %p163 = pneg %p106
      %p164 = scmp.lt.s32.totalorder %s15, 1
      %s165 = scalar_select %p164, %s15, 1
      %s166 = smul.addr %s165, 2
      %s167 = scalar_lea.vmem %s3, %s166
      %p168 = scmp.lt.s32.totalorder %s15, 1
      %s169 = scalar_select %p168, %s15, 1
      %s170 = smul.addr %s169, 6
      %s171 = smul.addr %s170, 4
      %s172 = scalar_lea.vmem %s0, %s171
      %p173 = scmp.lt.s32.totalorder %s15, 1
      %s174 = scalar_select %p173, %s15, 1
      %s175 = smul.addr %s174, 2
      %s176 = smul.addr %s175, 8
      %s177 = scalar_lea.vmem %s2, %s176
      %p178 = scmp.lt.s32.totalorder %s15, 1
      %s179 = scalar_select %p178, %s15, 1
      %s180 = smul.addr %s179, 2
      %s181 = scalar_lea.vmem %s3, %s180
      %v183 = vld [vmem:[%s172] sm:$0x3]
      %v184 = vld [vmem:[%s172 + $0x4] sm:$0x3]
      %v185 = vld [vmem:[%s172 + $0x8] sm:$0x3]
      %v190 = vunpack.c.l.s4 1966171168
      %v191 = vunpack.c.0.s8 %v190
      %v192 = vlaneseq
      %v193 = vshrl.u32 %v192, 7
      %v194 = vsub.s32 %v191, %v193
      %v195 = vrot.slane %v183, %v194
      %v196 = vcombine.high %v195, %v195
      %v198 = vunpack.c.l.s4 1966171168
      %v199 = vunpack.c.0.s8 %v198
      %v200 = vlaneseq
      %v201 = vshrl.u32 %v200, 7
      %v202 = vsub.s32 %v199, %v201
      %v203 = vrot.slane %v195, %v202
      %v205 = vunpack.c.l.s4 1966171168
      %v206 = vunpack.c.0.s8 %v205
      %v207 = vlaneseq
      %v208 = vshrl.u32 %v207, 7
      %v209 = vsub.s32 %v206, %v208
      %v210 = vrot.slane %v196, %v209
      %v212 = vunpack.c.l.s4 1966171168
      %v213 = vunpack.c.0.s8 %v212
      %v214 = vlaneseq
      %v215 = vshrl.u32 %v214, 7
      %v216 = vsub.s32 %v213, %v215
      %v217 = vrot.slane %v184, %v216
      %v218 = vcombine.high %v217, %v217
      %v220 = vunpack.c.l.s4 1966171168
      %v221 = vunpack.c.0.s8 %v220
      %v222 = vlaneseq
      %v223 = vshrl.u32 %v222, 7
      %v224 = vsub.s32 %v221, %v223
      %v225 = vrot.slane %v217, %v224
      %v227 = vunpack.c.l.s4 1966171168
      %v228 = vunpack.c.0.s8 %v227
      %v229 = vlaneseq
      %v230 = vshrl.u32 %v229, 7
      %v231 = vsub.s32 %v228, %v230
      %v232 = vrot.slane %v218, %v231
      %v234 = vunpack.c.l.s4 1966171168
      %v235 = vunpack.c.0.s8 %v234
      %v236 = vlaneseq
      %v237 = vshrl.u32 %v236, 7
      %v238 = vsub.s32 %v235, %v237
      %v239 = vrot.slane %v185, %v238
      %v240 = vcombine.high %v239, %v239
      %v242 = vunpack.c.l.s4 1966171168
      %v243 = vunpack.c.0.s8 %v242
      %v244 = vlaneseq
      %v245 = vshrl.u32 %v244, 7
      %v246 = vsub.s32 %v243, %v245
      %v247 = vrot.slane %v239, %v246
      %v249 = vunpack.c.l.s4 1966171168
      %v250 = vunpack.c.0.s8 %v249
      %v251 = vlaneseq
      %v252 = vshrl.u32 %v251, 7
      %v253 = vsub.s32 %v250, %v252
      %v254 = vrot.slane %v240, %v253
      %v255 = vunpack.i.l.s16 %v203
      %v256 = vunpack.i.h.s16 %v203
      %v257 = vunpack.i.l.s16 %v210
      %v258 = vunpack.i.l.s16 %v225
      %v259 = vunpack.i.h.s16 %v225
      %v260 = vunpack.i.l.s16 %v232
      %v261 = vunpack.i.l.s16 %v247
      %v262 = vunpack.i.h.s16 %v247
      %v263 = vunpack.i.l.s16 %v254
      %v264 = vld [vmem:[%s1] sm:$0xf]
      %v265 = vld [vmem:[%s1 + $0x4] sm:$0xf]
      %v266 = vld [vmem:[%s1 + $0x8] sm:$0xf]
      %v267 = vld [vmem:[%s1 + $0xc] sm:$0xf]
      %v268 = vld [vmem:[%s1 + $0x10] sm:$0xf]
      %v269 = vld [vmem:[%s1 + $0x14] sm:$0xf]
      %v270 = vld [vmem:[%s1 + $0x18] sm:$0xf]
      %v271 = vld [vmem:[%s1 + $0x1c] sm:$0xf]
      %v272 = vunpack.i.h.s16 %v210
      %v273 = vunpack.i.h.s16 %v232
      %v274 = vunpack.i.h.s16 %v254
      %s275 = scalar_lea.vmem %s1, 32
      %v276 = vld [vmem:[%s275] sm:$0xf]
      %v277 = vld [vmem:[%s275 + $0x4] sm:$0xf]
      %v278 = vld [vmem:[%s275 + $0x8] sm:$0xf]
      %v279 = vld [vmem:[%s275 + $0xc] sm:$0xf]
      %v280 = vld [vmem:[%s275 + $0x10] sm:$0xf]
      %v281 = vld [vmem:[%s275 + $0x14] sm:$0xf]
      %v282 = vld [vmem:[%s275 + $0x18] sm:$0xf]
      %v283 = vld [vmem:[%s275 + $0x1c] sm:$0xf]
      %v284 = vpack.i.b16 %v257, %v256
      %v285 = vpack.i.b16 %v259, %v272
      %v286 = vpack.i.b16 %v273, %v260
      %v287 = vpack.i.b16 %v263, %v262
      %v289 = vcombine.low %v284, %v285
      %v290 = vcombine.low %v286, %v287
      %v292 = vunpack.c.l.s4 1966171168
      %v293 = vunpack.c.0.s8 %v292
      %v294 = vlaneseq
      %v295 = vshrl.u32 %v294, 7
      %v296 = vsub.s32 %v293, %v295
      %v297 = vrot.slane %v289, %v296
      %v299 = vunpack.c.l.s4 1966171168
      %v300 = vunpack.c.0.s8 %v299
      %v301 = vlaneseq
      %v302 = vshrl.u32 %v301, 7
      %v303 = vsub.s32 %v300, %v302
      %v304 = vrot.slane %v290, %v303
      %v306 = vunpack.c.l.s4 1966171168
      %v307 = vunpack.c.0.s8 %v306
      %v308 = vlaneseq
      %v309 = vshrl.u32 %v308, 7
      %v310 = vsub.s32 %v307, %v309
      %v311 = vrot.slane %v274, %v310
      %v312 = vcombine.low %v297, %v304
      %v314 = vunpack.c.l.s4 1966171168
      %v315 = vunpack.c.0.s8 %v314
      %v316 = vlaneseq
      %v317 = vshrl.u32 %v316, 7
      %v318 = vsub.s32 %v315, %v317
      %v319 = vrot.slane %v312, %v318
      %v321 = vunpack.c.l.s4 1966171168
      %v322 = vunpack.c.0.s8 %v321
      %v323 = vlaneseq
      %v324 = vshrl.u32 %v323, 7
      %v325 = vsub.s32 %v322, %v324
      %v326 = vrot.slane %v311, %v325
      %v327 = vcombine.low %v319, %v326
      %v336 = vunpack.c.l.b16 %v276
      %v337 = vunpack.c.l.b16 %v277
      %v338 = vunpack.c.l.b16 %v278
      %v339 = vunpack.c.l.b16 %v279
      %v340 = vunpack.c.l.b16 %v280
      %v341 = vunpack.c.l.b16 %v281
      %v342 = vunpack.c.l.b16 %v282
      %v343 = vunpack.c.l.b16 %v283
      %v344 = vpack.c.b16 %v337, %v336
      %v345 = vpack.c.b16 %v339, %v338
      %v346 = vpack.c.b16 %v341, %v340
      %v347 = vpack.c.b16 %v343, %v342
      %vm352 = vcmask 523264
      %v354 = vsel %vm352, %v327, 0
      %356 = vmatprep.subr.bf16.mxu0 0
      %357 = vmatpush1.bf16.msra.mxu0 %v344
      %358 = vmatprep.subr.bf16.mxu0 0
      %359 = vmatpush1.bf16.msra.mxu0 %v345
      %360 = vmatprep.subr.bf16.mxu0 0
      %361 = vmatpush1.bf16.msra.mxu0 %v346
      %362 = vmatprep.subr.bf16.mxu0 0
      %363 = vmatpush1.bf16.msra.mxu0 %v347
      %364 = vmatprep.subr.bf16.mxu0 0
      %365 = vmatpush1.bf16.msra.mxu0 0
      %366 = vmatprep.subr.bf16.mxu0 0
      %367 = vmatpush1.bf16.msra.mxu0 0
      %368 = vmatprep.subr.bf16.mxu0 0
      %369 = vmatpush1.bf16.msra.mxu0 0
      %370 = vmatprep.subr.bf16.mxu0 0
      %371 = vmatpush1.bf16.msra.mxu0 0
      %372 = vmatprep.subr.bf16.mxu0 0
      %373 = vmatpush1.bf16.msra.mxu0 0
      %374 = vmatprep.subr.bf16.mxu0 0
      %375 = vmatpush1.bf16.msra.mxu0 0
      %376 = vmatprep.subr.bf16.mxu0 0
      %377 = vmatpush1.bf16.msra.mxu0 0
      %378 = vmatprep.subr.bf16.mxu0 0
      %379 = vmatpush1.bf16.msra.mxu0 0
      %380 = vmatprep.subr.bf16.mxu0 0
      %381 = vmatpush1.bf16.msra.mxu0 0
      %382 = vmatprep.subr.bf16.mxu0 0
      %383 = vmatpush1.bf16.msra.mxu0 0
      %384 = vmatprep.subr.bf16.mxu0 0
      %385 = vmatpush1.bf16.msra.mxu0 0
      %386 = vmatprep.subr.bf16.mxu0 0
      %387 = vmatpush1.bf16.msra.mxu0 0
      %388 = vmatprep.mubr.bf16.mxu0 0
      %389 = vmatmul.mubr.bf16.gmra.mrb[0].mxu0 %v354
      %v390 = vpop.f32.mrb[0].mxu0
      %v391 = vadd.f32 0.0, %v390
      %v392 = vpop.f32.mrb[0].mxu0
      %v393 = vpop.f32.mrb[0].mxu0
      %v394 = vadd.f32 0.0, %v393
      %v395 = vpop.f32.mrb[0].mxu0
      %396 = vdwg.mxu0
      %v397 = vpack.i.b16 %v256, %v255
      %v398 = vpack.i.b16 %v258, %v257
      %v399 = vpack.i.b16 %v260, %v259
      %v400 = vpack.i.b16 %v262, %v261
      %v402 = vcombine.low %v397, %v398
      %v403 = vcombine.low %v399, %v400
      %v405 = vunpack.c.l.s4 1966171168
      %v406 = vunpack.c.0.s8 %v405
      %v407 = vlaneseq
      %v408 = vshrl.u32 %v407, 7
      %v409 = vsub.s32 %v406, %v408
      %v410 = vrot.slane %v402, %v409
      %v412 = vunpack.c.l.s4 1966171168
      %v413 = vunpack.c.0.s8 %v412
      %v414 = vlaneseq
      %v415 = vshrl.u32 %v414, 7
      %v416 = vsub.s32 %v413, %v415
      %v417 = vrot.slane %v403, %v416
      %v419 = vunpack.c.l.s4 1966171168
      %v420 = vunpack.c.0.s8 %v419
      %v421 = vlaneseq
      %v422 = vshrl.u32 %v421, 7
      %v423 = vsub.s32 %v420, %v422
      %v424 = vrot.slane %v263, %v423
      %v425 = vcombine.low %v410, %v417
      %v427 = vunpack.c.l.s4 1966171168
      %v428 = vunpack.c.0.s8 %v427
      %v429 = vlaneseq
      %v430 = vshrl.u32 %v429, 7
      %v431 = vsub.s32 %v428, %v430
      %v432 = vrot.slane %v425, %v431
      %v434 = vunpack.c.l.s4 1966171168
      %v435 = vunpack.c.0.s8 %v434
      %v436 = vlaneseq
      %v437 = vshrl.u32 %v436, 7
      %v438 = vsub.s32 %v435, %v437
      %v439 = vrot.slane %v424, %v438
      %v440 = vcombine.low %v432, %v439
      %v449 = vunpack.c.l.b16 %v264
      %v450 = vunpack.c.l.b16 %v265
      %v451 = vunpack.c.l.b16 %v266
      %v452 = vunpack.c.l.b16 %v267
      %v453 = vunpack.c.l.b16 %v268
      %v454 = vunpack.c.l.b16 %v269
      %v455 = vunpack.c.l.b16 %v270
      %v456 = vunpack.c.l.b16 %v271
      %v457 = vpack.c.b16 %v450, %v449
      %v458 = vpack.c.b16 %v452, %v451
      %v459 = vpack.c.b16 %v454, %v453
      %v460 = vpack.c.b16 %v456, %v455
      %v466 = vsel %vm352, %v440, 0
      %468 = vmatprep.subr.bf16.mxu0 0
      %469 = vmatpush1.bf16.msra.mxu0 %v457
      %470 = vmatprep.subr.bf16.mxu0 0
      %471 = vmatpush1.bf16.msra.mxu0 %v458
      %472 = vmatprep.subr.bf16.mxu0 0
      %473 = vmatpush1.bf16.msra.mxu0 %v459
      %474 = vmatprep.subr.bf16.mxu0 0
      %475 = vmatpush1.bf16.msra.mxu0 %v460
      %476 = vmatprep.subr.bf16.mxu0 0
      %477 = vmatpush1.bf16.msra.mxu0 0
      %478 = vmatprep.subr.bf16.mxu0 0
      %479 = vmatpush1.bf16.msra.mxu0 0
      %480 = vmatprep.subr.bf16.mxu0 0
      %481 = vmatpush1.bf16.msra.mxu0 0
      %482 = vmatprep.subr.bf16.mxu0 0
      %483 = vmatpush1.bf16.msra.mxu0 0
      %484 = vmatprep.subr.bf16.mxu0 0
      %485 = vmatpush1.bf16.msra.mxu0 0
      %486 = vmatprep.subr.bf16.mxu0 0
      %487 = vmatpush1.bf16.msra.mxu0 0
      %488 = vmatprep.subr.bf16.mxu0 0
      %489 = vmatpush1.bf16.msra.mxu0 0
      %490 = vmatprep.subr.bf16.mxu0 0
      %491 = vmatpush1.bf16.msra.mxu0 0
      %492 = vmatprep.subr.bf16.mxu0 0
      %493 = vmatpush1.bf16.msra.mxu0 0
      %494 = vmatprep.subr.bf16.mxu0 0
      %495 = vmatpush1.bf16.msra.mxu0 0
      %496 = vmatprep.subr.bf16.mxu0 0
      %497 = vmatpush1.bf16.msra.mxu0 0
      %498 = vmatprep.subr.bf16.mxu0 0
      %499 = vmatpush1.bf16.msra.mxu0 0
      %500 = vmatprep.mubr.bf16.mxu0 0
      %501 = vmatmul.mubr.bf16.gmra.mrb[0].mxu0 %v466
      %v502 = vpop.f32.mrb[0].mxu0
      %v503 = vadd.f32 %v391, %v502
      %v504 = vpop.f32.mrb[0].mxu0
      %v505 = vpop.f32.mrb[0].mxu0
      %v506 = vadd.f32 %v394, %v505
      %v507 = vpop.f32.mrb[0].mxu0
      %508 = vdwg.mxu0
      %v509 = vld [vmem:[%s172] sm:$0x6]
      %v510 = vld [vmem:[%s172 + $0x4] sm:$0x6]
      %v511 = vld [vmem:[%s172 + $0x8] sm:$0x6]
      %v516 = vunpack.c.l.s4 1966171168
      %v517 = vunpack.c.0.s8 %v516
      %v518 = vlaneseq
      %v519 = vshrl.u32 %v518, 7
      %v520 = vsub.s32 %v517, %v519
      %v521 = vrot.slane %v509, %v520
      %v522 = vcombine.high %v521, %v521
      %v524 = vunpack.c.l.s4 1966171168
      %v525 = vunpack.c.0.s8 %v524
      %v526 = vlaneseq
      %v527 = vshrl.u32 %v526, 7
      %v528 = vsub.s32 %v525, %v527
      %v529 = vrot.slane %v521, %v528
      %v531 = vunpack.c.l.s4 1966171168
      %v532 = vunpack.c.0.s8 %v531
      %v533 = vlaneseq
      %v534 = vshrl.u32 %v533, 7
      %v535 = vsub.s32 %v532, %v534
      %v536 = vrot.slane %v522, %v535
      %v537 = vcombine.high %v529, %v529
      %v539 = vunpack.c.l.s4 1966171168
      %v540 = vunpack.c.0.s8 %v539
      %v541 = vlaneseq
      %v542 = vshrl.u32 %v541, 7
      %v543 = vsub.s32 %v540, %v542
      %v544 = vrot.slane %v510, %v543
      %v545 = vcombine.high %v544, %v544
      %v547 = vunpack.c.l.s4 1966171168
      %v548 = vunpack.c.0.s8 %v547
      %v549 = vlaneseq
      %v550 = vshrl.u32 %v549, 7
      %v551 = vsub.s32 %v548, %v550
      %v552 = vrot.slane %v544, %v551
      %v554 = vunpack.c.l.s4 1966171168
      %v555 = vunpack.c.0.s8 %v554
      %v556 = vlaneseq
      %v557 = vshrl.u32 %v556, 7
      %v558 = vsub.s32 %v555, %v557
      %v559 = vrot.slane %v545, %v558
      %v560 = vcombine.high %v552, %v552
      %v562 = vunpack.c.l.s4 1966171168
      %v563 = vunpack.c.0.s8 %v562
      %v564 = vlaneseq
      %v565 = vshrl.u32 %v564, 7
      %v566 = vsub.s32 %v563, %v565
      %v567 = vrot.slane %v511, %v566
      %v568 = vcombine.high %v567, %v567
      %v570 = vunpack.c.l.s4 1966171168
      %v571 = vunpack.c.0.s8 %v570
      %v572 = vlaneseq
      %v573 = vshrl.u32 %v572, 7
      %v574 = vsub.s32 %v571, %v573
      %v575 = vrot.slane %v567, %v574
      %v577 = vunpack.c.l.s4 1966171168
      %v578 = vunpack.c.0.s8 %v577
      %v579 = vlaneseq
      %v580 = vshrl.u32 %v579, 7
      %v581 = vsub.s32 %v578, %v580
      %v582 = vrot.slane %v568, %v581
      %v583 = vcombine.high %v575, %v575
      %v584 = vunpack.i.l.s16 %v536
      %v585 = vunpack.i.h.s16 %v536
      %v586 = vunpack.i.l.s16 %v537
      %v587 = vunpack.i.l.s16 %v559
      %v588 = vunpack.i.h.s16 %v559
      %v589 = vunpack.i.l.s16 %v560
      %v590 = vunpack.i.l.s16 %v582
      %v591 = vunpack.i.h.s16 %v582
      %v592 = vunpack.i.l.s16 %v583
      %s593 = scalar_lea.vmem %s1, 64
      %v594 = vld [vmem:[%s593] sm:$0xf]
      %v595 = vld [vmem:[%s593 + $0x4] sm:$0xf]
      %v596 = vld [vmem:[%s593 + $0x8] sm:$0xf]
      %v597 = vld [vmem:[%s593 + $0xc] sm:$0xf]
      %v598 = vld [vmem:[%s593 + $0x10] sm:$0xf]
      %v599 = vld [vmem:[%s593 + $0x14] sm:$0xf]
      %v600 = vld [vmem:[%s593 + $0x18] sm:$0xf]
      %v601 = vld [vmem:[%s593 + $0x1c] sm:$0xf]
      %v602 = vpack.i.b16 %v585, %v584
      %v603 = vpack.i.b16 %v587, %v586
      %v604 = vpack.i.b16 %v589, %v588
      %v605 = vpack.i.b16 %v591, %v590
      %v607 = vcombine.low %v602, %v603
      %v608 = vcombine.low %v604, %v605
      %v610 = vunpack.c.l.s4 1966171168
      %v611 = vunpack.c.0.s8 %v610
      %v612 = vlaneseq
      %v613 = vshrl.u32 %v612, 7
      %v614 = vsub.s32 %v611, %v613
      %v615 = vrot.slane %v607, %v614
      %v617 = vunpack.c.l.s4 1966171168
      %v618 = vunpack.c.0.s8 %v617
      %v619 = vlaneseq
      %v620 = vshrl.u32 %v619, 7
      %v621 = vsub.s32 %v618, %v620
      %v622 = vrot.slane %v608, %v621
      %v624 = vunpack.c.l.s4 1966171168
      %v625 = vunpack.c.0.s8 %v624
      %v626 = vlaneseq
      %v627 = vshrl.u32 %v626, 7
      %v628 = vsub.s32 %v625, %v627
      %v629 = vrot.slane %v592, %v628
      %v630 = vcombine.low %v615, %v622
      %v632 = vunpack.c.l.s4 1966171168
      %v633 = vunpack.c.0.s8 %v632
      %v634 = vlaneseq
      %v635 = vshrl.u32 %v634, 7
      %v636 = vsub.s32 %v633, %v635
      %v637 = vrot.slane %v630, %v636
      %v639 = vunpack.c.l.s4 1966171168
      %v640 = vunpack.c.0.s8 %v639
      %v641 = vlaneseq
      %v642 = vshrl.u32 %v641, 7
      %v643 = vsub.s32 %v640, %v642
      %v644 = vrot.slane %v629, %v643
      %v645 = vcombine.low %v637, %v644
      %v654 = vunpack.c.l.b16 %v594
      %v655 = vunpack.c.l.b16 %v595
      %v656 = vunpack.c.l.b16 %v596
      %v657 = vunpack.c.l.b16 %v597
      %v658 = vunpack.c.l.b16 %v598
      %v659 = vunpack.c.l.b16 %v599
      %v660 = vunpack.c.l.b16 %v600
      %v661 = vunpack.c.l.b16 %v601
      %v662 = vpack.c.b16 %v655, %v654
      %v663 = vpack.c.b16 %v657, %v656
      %v664 = vpack.c.b16 %v659, %v658
      %v665 = vpack.c.b16 %v661, %v660
      %v671 = vsel %vm352, %v645, 0
      %673 = vmatprep.subr.bf16.mxu0 0
      %674 = vmatpush1.bf16.msra.mxu0 %v662
      %675 = vmatprep.subr.bf16.mxu0 0
      %676 = vmatpush1.bf16.msra.mxu0 %v663
      %677 = vmatprep.subr.bf16.mxu0 0
      %678 = vmatpush1.bf16.msra.mxu0 %v664
      %679 = vmatprep.subr.bf16.mxu0 0
      %680 = vmatpush1.bf16.msra.mxu0 %v665
      %681 = vmatprep.subr.bf16.mxu0 0
      %682 = vmatpush1.bf16.msra.mxu0 0
      %683 = vmatprep.subr.bf16.mxu0 0
      %684 = vmatpush1.bf16.msra.mxu0 0
      %685 = vmatprep.subr.bf16.mxu0 0
      %686 = vmatpush1.bf16.msra.mxu0 0
      %687 = vmatprep.subr.bf16.mxu0 0
      %688 = vmatpush1.bf16.msra.mxu0 0
      %689 = vmatprep.subr.bf16.mxu0 0
      %690 = vmatpush1.bf16.msra.mxu0 0
      %691 = vmatprep.subr.bf16.mxu0 0
      %692 = vmatpush1.bf16.msra.mxu0 0
      %693 = vmatprep.subr.bf16.mxu0 0
      %694 = vmatpush1.bf16.msra.mxu0 0
      %695 = vmatprep.subr.bf16.mxu0 0
      %696 = vmatpush1.bf16.msra.mxu0 0
      %697 = vmatprep.subr.bf16.mxu0 0
      %698 = vmatpush1.bf16.msra.mxu0 0
      %699 = vmatprep.subr.bf16.mxu0 0
      %700 = vmatpush1.bf16.msra.mxu0 0
      %701 = vmatprep.subr.bf16.mxu0 0
      %702 = vmatpush1.bf16.msra.mxu0 0
      %703 = vmatprep.subr.bf16.mxu0 0
      %704 = vmatpush1.bf16.msra.mxu0 0
      %705 = vmatprep.mubr.bf16.mxu0 0
      %706 = vmatmul.mubr.bf16.gmra.mrb[0].mxu0 %v671
      %v707 = vpop.f32.mrb[0].mxu0
      %v708 = vadd.f32 0.0, %v707
      %v709 = vpop.f32.mrb[0].mxu0
      %v710 = vpop.f32.mrb[0].mxu0
      %v711 = vadd.f32 0.0, %v710
      %v712 = vpop.f32.mrb[0].mxu0
      %713 = vdwg.mxu0
      %v714 = vadd.f32 %v503, %v708
      %v715 = vadd.f32 %v506, %v711
      %v716 = vld [vmem:[%s172] sm:$0x6]
      %v717 = vld [vmem:[%s172 + $0x4] sm:$0x6]
      %v718 = vld [vmem:[%s172 + $0x8] sm:$0x6]
      %v723 = vunpack.c.l.s4 1966171168
      %v724 = vunpack.c.0.s8 %v723
      %v725 = vlaneseq
      %v726 = vshrl.u32 %v725, 7
      %v727 = vsub.s32 %v724, %v726
      %v728 = vrot.slane %v716, %v727
      %v729 = vcombine.high %v728, %v728
      %v731 = vunpack.c.l.s4 1966171168
      %v732 = vunpack.c.0.s8 %v731
      %v733 = vlaneseq
      %v734 = vshrl.u32 %v733, 7
      %v735 = vsub.s32 %v732, %v734
      %v736 = vrot.slane %v728, %v735
      %v738 = vunpack.c.l.s4 1966171168
      %v739 = vunpack.c.0.s8 %v738
      %v740 = vlaneseq
      %v741 = vshrl.u32 %v740, 7
      %v742 = vsub.s32 %v739, %v741
      %v743 = vrot.slane %v729, %v742
      %v744 = vcombine.high %v736, %v736
      %v746 = vunpack.c.l.s4 1966171168
      %v747 = vunpack.c.0.s8 %v746
      %v748 = vlaneseq
      %v749 = vshrl.u32 %v748, 7
      %v750 = vsub.s32 %v747, %v749
      %v751 = vrot.slane %v717, %v750
      %v752 = vcombine.high %v751, %v751
      %v754 = vunpack.c.l.s4 1966171168
      %v755 = vunpack.c.0.s8 %v754
      %v756 = vlaneseq
      %v757 = vshrl.u32 %v756, 7
      %v758 = vsub.s32 %v755, %v757
      %v759 = vrot.slane %v751, %v758
      %v761 = vunpack.c.l.s4 1966171168
      %v762 = vunpack.c.0.s8 %v761
      %v763 = vlaneseq
      %v764 = vshrl.u32 %v763, 7
      %v765 = vsub.s32 %v762, %v764
      %v766 = vrot.slane %v752, %v765
      %v767 = vcombine.high %v759, %v759
      %v769 = vunpack.c.l.s4 1966171168
      %v770 = vunpack.c.0.s8 %v769
      %v771 = vlaneseq
      %v772 = vshrl.u32 %v771, 7
      %v773 = vsub.s32 %v770, %v772
      %v774 = vrot.slane %v718, %v773
      %v775 = vcombine.high %v774, %v774
      %v777 = vunpack.c.l.s4 1966171168
      %v778 = vunpack.c.0.s8 %v777
      %v779 = vlaneseq
      %v780 = vshrl.u32 %v779, 7
      %v781 = vsub.s32 %v778, %v780
      %v782 = vrot.slane %v774, %v781
      %v784 = vunpack.c.l.s4 1966171168
      %v785 = vunpack.c.0.s8 %v784
      %v786 = vlaneseq
      %v787 = vshrl.u32 %v786, 7
      %v788 = vsub.s32 %v785, %v787
      %v789 = vrot.slane %v775, %v788
      %v790 = vcombine.high %v782, %v782
      %v791 = vunpack.i.h.s16 %v743
      %v792 = vunpack.i.l.s16 %v744
      %v793 = vunpack.i.h.s16 %v744
      %v794 = vunpack.i.h.s16 %v766
      %v795 = vunpack.i.l.s16 %v767
      %v796 = vunpack.i.h.s16 %v767
      %v797 = vunpack.i.h.s16 %v789
      %v798 = vunpack.i.l.s16 %v790
      %v799 = vunpack.i.h.s16 %v790
      %s800 = scalar_lea.vmem %s1, 96
      %v801 = vld [vmem:[%s800] sm:$0xf]
      %v802 = vld [vmem:[%s800 + $0x4] sm:$0xf]
      %v803 = vld [vmem:[%s800 + $0x8] sm:$0xf]
      %v804 = vld [vmem:[%s800 + $0xc] sm:$0xf]
      %v805 = vld [vmem:[%s800 + $0x10] sm:$0xf]
      %v806 = vld [vmem:[%s800 + $0x14] sm:$0xf]
      %v807 = vld [vmem:[%s800 + $0x18] sm:$0xf]
      %v808 = vld [vmem:[%s800 + $0x1c] sm:$0xf]
      %v809 = vpack.i.b16 %v792, %v791
      %v810 = vpack.i.b16 %v794, %v793
      %v811 = vpack.i.b16 %v796, %v795
      %v812 = vpack.i.b16 %v798, %v797
      %v814 = vcombine.low %v809, %v810
      %v815 = vcombine.low %v811, %v812
      %v817 = vunpack.c.l.s4 1966171168
      %v818 = vunpack.c.0.s8 %v817
      %v819 = vlaneseq
      %v820 = vshrl.u32 %v819, 7
      %v821 = vsub.s32 %v818, %v820
      %v822 = vrot.slane %v814, %v821
      %v824 = vunpack.c.l.s4 1966171168
      %v825 = vunpack.c.0.s8 %v824
      %v826 = vlaneseq
      %v827 = vshrl.u32 %v826, 7
      %v828 = vsub.s32 %v825, %v827
      %v829 = vrot.slane %v815, %v828
      %v831 = vunpack.c.l.s4 1966171168
      %v832 = vunpack.c.0.s8 %v831
      %v833 = vlaneseq
      %v834 = vshrl.u32 %v833, 7
      %v835 = vsub.s32 %v832, %v834
      %v836 = vrot.slane %v799, %v835
      %v837 = vcombine.low %v822, %v829
      %v839 = vunpack.c.l.s4 1966171168
      %v840 = vunpack.c.0.s8 %v839
      %v841 = vlaneseq
      %v842 = vshrl.u32 %v841, 7
      %v843 = vsub.s32 %v840, %v842
      %v844 = vrot.slane %v837, %v843
      %v846 = vunpack.c.l.s4 1966171168
      %v847 = vunpack.c.0.s8 %v846
      %v848 = vlaneseq
      %v849 = vshrl.u32 %v848, 7
      %v850 = vsub.s32 %v847, %v849
      %v851 = vrot.slane %v836, %v850
      %v852 = vcombine.low %v844, %v851
      %v861 = vunpack.c.l.b16 %v801
      %v862 = vunpack.c.l.b16 %v802
      %v863 = vunpack.c.l.b16 %v803
      %v864 = vunpack.c.l.b16 %v804
      %v865 = vunpack.c.l.b16 %v805
      %v866 = vunpack.c.l.b16 %v806
      %v867 = vunpack.c.l.b16 %v807
      %v868 = vunpack.c.l.b16 %v808
      %v869 = vpack.c.b16 %v862, %v861
      %v870 = vpack.c.b16 %v864, %v863
      %v871 = vpack.c.b16 %v866, %v865
      %v872 = vpack.c.b16 %v868, %v867
      %v878 = vsel %vm352, %v852, 0
      %880 = vmatprep.subr.bf16.mxu0 0
      %881 = vmatpush1.bf16.msra.mxu0 %v869
      %882 = vmatprep.subr.bf16.mxu0 0
      %883 = vmatpush1.bf16.msra.mxu0 %v870
      %884 = vmatprep.subr.bf16.mxu0 0
      %885 = vmatpush1.bf16.msra.mxu0 %v871
      %886 = vmatprep.subr.bf16.mxu0 0
      %887 = vmatpush1.bf16.msra.mxu0 %v872
      %888 = vmatprep.subr.bf16.mxu0 0
      %889 = vmatpush1.bf16.msra.mxu0 0
      %890 = vmatprep.subr.bf16.mxu0 0
      %891 = vmatpush1.bf16.msra.mxu0 0
      %892 = vmatprep.subr.bf16.mxu0 0
      %893 = vmatpush1.bf16.msra.mxu0 0
      %894 = vmatprep.subr.bf16.mxu0 0
      %895 = vmatpush1.bf16.msra.mxu0 0
      %896 = vmatprep.subr.bf16.mxu0 0
      %897 = vmatpush1.bf16.msra.mxu0 0
      %898 = vmatprep.subr.bf16.mxu0 0
      %899 = vmatpush1.bf16.msra.mxu0 0
      %900 = vmatprep.subr.bf16.mxu0 0
      %901 = vmatpush1.bf16.msra.mxu0 0
      %902 = vmatprep.subr.bf16.mxu0 0
      %903 = vmatpush1.bf16.msra.mxu0 0
      %904 = vmatprep.subr.bf16.mxu0 0
      %905 = vmatpush1.bf16.msra.mxu0 0
      %906 = vmatprep.subr.bf16.mxu0 0
      %907 = vmatpush1.bf16.msra.mxu0 0
      %908 = vmatprep.subr.bf16.mxu0 0
      %909 = vmatpush1.bf16.msra.mxu0 0
      %910 = vmatprep.subr.bf16.mxu0 0
      %911 = vmatpush1.bf16.msra.mxu0 0
      %912 = vmatprep.mubr.bf16.mxu0 0
      %913 = vmatmul.mubr.bf16.gmra.mrb[0].mxu0 %v878
      %v914 = vpop.f32.mrb[0].mxu0
      %v915 = vadd.f32 0.0, %v914
      %v916 = vpop.f32.mrb[0].mxu0
      %v917 = vpop.f32.mrb[0].mxu0
      %v918 = vadd.f32 0.0, %v917
      %v919 = vpop.f32.mrb[0].mxu0
      %920 = vdwg.mxu0
      %v921 = vadd.f32 %v714, %v915
      %v922 = vadd.f32 %v715, %v918
      %s923 = scalar_lea.vmem %s172, 4
      %v924 = vld [vmem:[%s923] sm:$0x3]
      %v925 = vld [vmem:[%s923 + $0x4] sm:$0x3]
      %v926 = vld [vmem:[%s923 + $0x8] sm:$0x3]
      %v931 = vunpack.c.l.s4 1966171168
      %v932 = vunpack.c.0.s8 %v931
      %v933 = vlaneseq
      %v934 = vshrl.u32 %v933, 7
      %v935 = vsub.s32 %v932, %v934
      %v936 = vrot.slane %v924, %v935
      %v937 = vcombine.high %v936, %v936
      %v939 = vunpack.c.l.s4 1966171168
      %v940 = vunpack.c.0.s8 %v939
      %v941 = vlaneseq
      %v942 = vshrl.u32 %v941, 7
      %v943 = vsub.s32 %v940, %v942
      %v944 = vrot.slane %v936, %v943
      %v946 = vunpack.c.l.s4 1966171168
      %v947 = vunpack.c.0.s8 %v946
      %v948 = vlaneseq
      %v949 = vshrl.u32 %v948, 7
      %v950 = vsub.s32 %v947, %v949
      %v951 = vrot.slane %v937, %v950
      %v953 = vunpack.c.l.s4 1966171168
      %v954 = vunpack.c.0.s8 %v953
      %v955 = vlaneseq
      %v956 = vshrl.u32 %v955, 7
      %v957 = vsub.s32 %v954, %v956
      %v958 = vrot.slane %v925, %v957
      %v959 = vcombine.high %v958, %v958
      %v961 = vunpack.c.l.s4 1966171168
      %v962 = vunpack.c.0.s8 %v961
      %v963 = vlaneseq
      %v964 = vshrl.u32 %v963, 7
      %v965 = vsub.s32 %v962, %v964
      %v966 = vrot.slane %v958, %v965
      %v968 = vunpack.c.l.s4 1966171168
      %v969 = vunpack.c.0.s8 %v968
      %v970 = vlaneseq
      %v971 = vshrl.u32 %v970, 7
      %v972 = vsub.s32 %v969, %v971
      %v973 = vrot.slane %v959, %v972
      %v975 = vunpack.c.l.s4 1966171168
      %v976 = vunpack.c.0.s8 %v975
      %v977 = vlaneseq
      %v978 = vshrl.u32 %v977, 7
      %v979 = vsub.s32 %v976, %v978
      %v980 = vrot.slane %v926, %v979
      %v981 = vcombine.high %v980, %v980
      %v983 = vunpack.c.l.s4 1966171168
      %v984 = vunpack.c.0.s8 %v983
      %v985 = vlaneseq
      %v986 = vshrl.u32 %v985, 7
      %v987 = vsub.s32 %v984, %v986
      %v988 = vrot.slane %v980, %v987
      %v990 = vunpack.c.l.s4 1966171168
      %v991 = vunpack.c.0.s8 %v990
      %v992 = vlaneseq
      %v993 = vshrl.u32 %v992, 7
      %v994 = vsub.s32 %v991, %v993
      %v995 = vrot.slane %v981, %v994
      %v996 = vunpack.i.l.s16 %v944
      %v997 = vunpack.i.h.s16 %v944
      %v998 = vunpack.i.l.s16 %v951
      %v999 = vunpack.i.l.s16 %v966
      %v1000 = vunpack.i.h.s16 %v966
      %v1001 = vunpack.i.l.s16 %v973
      %v1002 = vunpack.i.l.s16 %v988
      %v1003 = vunpack.i.h.s16 %v988
      %v1004 = vunpack.i.l.s16 %v995
      %s1005 = scalar_lea.vmem %s1, 128
      %v1006 = vld [vmem:[%s1005] sm:$0xf]
      %v1007 = vld [vmem:[%s1005 + $0x4] sm:$0xf]
      %v1008 = vld [vmem:[%s1005 + $0x8] sm:$0xf]
      %v1009 = vld [vmem:[%s1005 + $0xc] sm:$0xf]
      %v1010 = vld [vmem:[%s1005 + $0x10] sm:$0xf]
      %v1011 = vld [vmem:[%s1005 + $0x14] sm:$0xf]
      %v1012 = vld [vmem:[%s1005 + $0x18] sm:$0xf]
      %v1013 = vld [vmem:[%s1005 + $0x1c] sm:$0xf]
      %v1014 = vpack.i.b16 %v997, %v996
      %v1015 = vpack.i.b16 %v999, %v998
      %v1016 = vpack.i.b16 %v1001, %v1000
      %v1017 = vpack.i.b16 %v1003, %v1002
      %v1019 = vcombine.low %v1014, %v1015
      %v1020 = vcombine.low %v1016, %v1017
      %v1022 = vunpack.c.l.s4 1966171168
      %v1023 = vunpack.c.0.s8 %v1022
      %v1024 = vlaneseq
      %v1025 = vshrl.u32 %v1024, 7
      %v1026 = vsub.s32 %v1023, %v1025
      %v1027 = vrot.slane %v1019, %v1026
      %v1029 = vunpack.c.l.s4 1966171168
      %v1030 = vunpack.c.0.s8 %v1029
      %v1031 = vlaneseq
      %v1032 = vshrl.u32 %v1031, 7
      %v1033 = vsub.s32 %v1030, %v1032
      %v1034 = vrot.slane %v1020, %v1033
      %v1036 = vunpack.c.l.s4 1966171168
      %v1037 = vunpack.c.0.s8 %v1036
      %v1038 = vlaneseq
      %v1039 = vshrl.u32 %v1038, 7
      %v1040 = vsub.s32 %v1037, %v1039
      %v1041 = vrot.slane %v1004, %v1040
      %v1042 = vcombine.low %v1027, %v1034
      %v1044 = vunpack.c.l.s4 1966171168
      %v1045 = vunpack.c.0.s8 %v1044
      %v1046 = vlaneseq
      %v1047 = vshrl.u32 %v1046, 7
      %v1048 = vsub.s32 %v1045, %v1047
      %v1049 = vrot.slane %v1042, %v1048
      %v1051 = vunpack.c.l.s4 1966171168
      %v1052 = vunpack.c.0.s8 %v1051
      %v1053 = vlaneseq
      %v1054 = vshrl.u32 %v1053, 7
      %v1055 = vsub.s32 %v1052, %v1054
      %v1056 = vrot.slane %v1041, %v1055
      %v1057 = vcombine.low %v1049, %v1056
      %v1066 = vunpack.c.l.b16 %v1006
      %v1067 = vunpack.c.l.b16 %v1007
      %v1068 = vunpack.c.l.b16 %v1008
      %v1069 = vunpack.c.l.b16 %v1009
      %v1070 = vunpack.c.l.b16 %v1010
      %v1071 = vunpack.c.l.b16 %v1011
      %v1072 = vunpack.c.l.b16 %v1012
      %v1073 = vunpack.c.l.b16 %v1013
      %v1074 = vpack.c.b16 %v1067, %v1066
      %v1075 = vpack.c.b16 %v1069, %v1068
      %v1076 = vpack.c.b16 %v1071, %v1070
      %v1077 = vpack.c.b16 %v1073, %v1072
      %v1083 = vsel %vm352, %v1057, 0
      %1085 = vmatprep.subr.bf16.mxu0 0
      %1086 = vmatpush1.bf16.msra.mxu0 %v1074
      %1087 = vmatprep.subr.bf16.mxu0 0
      %1088 = vmatpush1.bf16.msra.mxu0 %v1075
      %1089 = vmatprep.subr.bf16.mxu0 0
      %1090 = vmatpush1.bf16.msra.mxu0 %v1076
      %1091 = vmatprep.subr.bf16.mxu0 0
      %1092 = vmatpush1.bf16.msra.mxu0 %v1077
      %1093 = vmatprep.subr.bf16.mxu0 0
      %1094 = vmatpush1.bf16.msra.mxu0 0
      %1095 = vmatprep.subr.bf16.mxu0 0
      %1096 = vmatpush1.bf16.msra.mxu0 0
      %1097 = vmatprep.subr.bf16.mxu0 0
      %1098 = vmatpush1.bf16.msra.mxu0 0
      %1099 = vmatprep.subr.bf16.mxu0 0
      %1100 = vmatpush1.bf16.msra.mxu0 0
      %1101 = vmatprep.subr.bf16.mxu0 0
      %1102 = vmatpush1.bf16.msra.mxu0 0
      %1103 = vmatprep.subr.bf16.mxu0 0
      %1104 = vmatpush1.bf16.msra.mxu0 0
      %1105 = vmatprep.subr.bf16.mxu0 0
      %1106 = vmatpush1.bf16.msra.mxu0 0
      %1107 = vmatprep.subr.bf16.mxu0 0
      %1108 = vmatpush1.bf16.msra.mxu0 0
      %1109 = vmatprep.subr.bf16.mxu0 0
      %1110 = vmatpush1.bf16.msra.mxu0 0
      %1111 = vmatprep.subr.bf16.mxu0 0
      %1112 = vmatpush1.bf16.msra.mxu0 0
      %1113 = vmatprep.subr.bf16.mxu0 0
      %1114 = vmatpush1.bf16.msra.mxu0 0
      %1115 = vmatprep.subr.bf16.mxu0 0
      %1116 = vmatpush1.bf16.msra.mxu0 0
      %1117 = vmatprep.mubr.bf16.mxu0 0
      %1118 = vmatmul.mubr.bf16.gmra.mrb[0].mxu0 %v1083
      %v1119 = vpop.f32.mrb[0].mxu0
      %v1120 = vadd.f32 0.0, %v1119
      %v1121 = vpop.f32.mrb[0].mxu0
      %v1122 = vpop.f32.mrb[0].mxu0
      %v1123 = vadd.f32 0.0, %v1122
      %v1124 = vpop.f32.mrb[0].mxu0
      %1125 = vdwg.mxu0
      %v1126 = vadd.f32 %v921, %v1120
      %v1127 = vadd.f32 %v922, %v1123
      %v1128 = vld [vmem:[%s923] sm:$0x3]
      %v1129 = vld [vmem:[%s923 + $0x4] sm:$0x3]
      %v1130 = vld [vmem:[%s923 + $0x8] sm:$0x3]
      %v1135 = vunpack.c.l.s4 1966171168
      %v1136 = vunpack.c.0.s8 %v1135
      %v1137 = vlaneseq
      %v1138 = vshrl.u32 %v1137, 7
      %v1139 = vsub.s32 %v1136, %v1138
      %v1140 = vrot.slane %v1128, %v1139
      %v1141 = vcombine.high %v1140, %v1140
      %v1143 = vunpack.c.l.s4 1966171168
      %v1144 = vunpack.c.0.s8 %v1143
      %v1145 = vlaneseq
      %v1146 = vshrl.u32 %v1145, 7
      %v1147 = vsub.s32 %v1144, %v1146
      %v1148 = vrot.slane %v1140, %v1147
      %v1150 = vunpack.c.l.s4 1966171168
      %v1151 = vunpack.c.0.s8 %v1150
      %v1152 = vlaneseq
      %v1153 = vshrl.u32 %v1152, 7
      %v1154 = vsub.s32 %v1151, %v1153
      %v1155 = vrot.slane %v1141, %v1154
      %v1157 = vunpack.c.l.s4 1966171168
      %v1158 = vunpack.c.0.s8 %v1157
      %v1159 = vlaneseq
      %v1160 = vshrl.u32 %v1159, 7
      %v1161 = vsub.s32 %v1158, %v1160
      %v1162 = vrot.slane %v1129, %v1161
      %v1163 = vcombine.high %v1162, %v1162
      %v1165 = vunpack.c.l.s4 1966171168
      %v1166 = vunpack.c.0.s8 %v1165
      %v1167 = vlaneseq
      %v1168 = vshrl.u32 %v1167, 7
      %v1169 = vsub.s32 %v1166, %v1168
      %v1170 = vrot.slane %v1162, %v1169
      %v1172 = vunpack.c.l.s4 1966171168
      %v1173 = vunpack.c.0.s8 %v1172
      %v1174 = vlaneseq
      %v1175 = vshrl.u32 %v1174, 7
      %v1176 = vsub.s32 %v1173, %v1175
      %v1177 = vrot.slane %v1163, %v1176
      %v1179 = vunpack.c.l.s4 1966171168
      %v1180 = vunpack.c.0.s8 %v1179
      %v1181 = vlaneseq
      %v1182 = vshrl.u32 %v1181, 7
      %v1183 = vsub.s32 %v1180, %v1182
      %v1184 = vrot.slane %v1130, %v1183
      %v1185 = vcombine.high %v1184, %v1184
      %v1187 = vunpack.c.l.s4 1966171168
      %v1188 = vunpack.c.0.s8 %v1187
      %v1189 = vlaneseq
      %v1190 = vshrl.u32 %v1189, 7
      %v1191 = vsub.s32 %v1188, %v1190
      %v1192 = vrot.slane %v1184, %v1191
      %v1194 = vunpack.c.l.s4 1966171168
      %v1195 = vunpack.c.0.s8 %v1194
      %v1196 = vlaneseq
      %v1197 = vshrl.u32 %v1196, 7
      %v1198 = vsub.s32 %v1195, %v1197
      %v1199 = vrot.slane %v1185, %v1198
      %v1200 = vunpack.i.h.s16 %v1148
      %v1201 = vunpack.i.l.s16 %v1155
      %v1202 = vunpack.i.h.s16 %v1155
      %v1203 = vunpack.i.h.s16 %v1170
      %v1204 = vunpack.i.l.s16 %v1177
      %v1205 = vunpack.i.h.s16 %v1177
      %v1206 = vunpack.i.h.s16 %v1192
      %v1207 = vunpack.i.l.s16 %v1199
      %v1208 = vunpack.i.h.s16 %v1199
      %s1209 = scalar_lea.vmem %s1, 160
      %v1210 = vld [vmem:[%s1209] sm:$0xf]
      %v1211 = vld [vmem:[%s1209 + $0x4] sm:$0xf]
      %v1212 = vld [vmem:[%s1209 + $0x8] sm:$0xf]
      %v1213 = vld [vmem:[%s1209 + $0xc] sm:$0xf]
      %v1214 = vld [vmem:[%s1209 + $0x10] sm:$0xf]
      %v1215 = vld [vmem:[%s1209 + $0x14] sm:$0xf]
      %v1216 = vld [vmem:[%s1209 + $0x18] sm:$0xf]
      %v1217 = vld [vmem:[%s1209 + $0x1c] sm:$0xf]
      %v1218 = vpack.i.b16 %v1201, %v1200
      %v1219 = vpack.i.b16 %v1203, %v1202
      %v1220 = vpack.i.b16 %v1205, %v1204
      %v1221 = vpack.i.b16 %v1207, %v1206
      %v1223 = vcombine.low %v1218, %v1219
      %v1224 = vcombine.low %v1220, %v1221
      %v1226 = vunpack.c.l.s4 1966171168
      %v1227 = vunpack.c.0.s8 %v1226
      %v1228 = vlaneseq
      %v1229 = vshrl.u32 %v1228, 7
      %v1230 = vsub.s32 %v1227, %v1229
      %v1231 = vrot.slane %v1223, %v1230
      %v1233 = vunpack.c.l.s4 1966171168
      %v1234 = vunpack.c.0.s8 %v1233
      %v1235 = vlaneseq
      %v1236 = vshrl.u32 %v1235, 7
      %v1237 = vsub.s32 %v1234, %v1236
      %v1238 = vrot.slane %v1224, %v1237
      %v1240 = vunpack.c.l.s4 1966171168
      %v1241 = vunpack.c.0.s8 %v1240
      %v1242 = vlaneseq
      %v1243 = vshrl.u32 %v1242, 7
      %v1244 = vsub.s32 %v1241, %v1243
      %v1245 = vrot.slane %v1208, %v1244
      %v1246 = vcombine.low %v1231, %v1238
      %v1248 = vunpack.c.l.s4 1966171168
      %v1249 = vunpack.c.0.s8 %v1248
      %v1250 = vlaneseq
      %v1251 = vshrl.u32 %v1250, 7
      %v1252 = vsub.s32 %v1249, %v1251
      %v1253 = vrot.slane %v1246, %v1252
      %v1255 = vunpack.c.l.s4 1966171168
      %v1256 = vunpack.c.0.s8 %v1255
      %v1257 = vlaneseq
      %v1258 = vshrl.u32 %v1257, 7
      %v1259 = vsub.s32 %v1256, %v1258
      %v1260 = vrot.slane %v1245, %v1259
      %v1261 = vcombine.low %v1253, %v1260
      %v1270 = vunpack.c.l.b16 %v1210
      %v1271 = vunpack.c.l.b16 %v1211
      %v1272 = vunpack.c.l.b16 %v1212
      %v1273 = vunpack.c.l.b16 %v1213
      %v1274 = vunpack.c.l.b16 %v1214
      %v1275 = vunpack.c.l.b16 %v1215
      %v1276 = vunpack.c.l.b16 %v1216
      %v1277 = vunpack.c.l.b16 %v1217
      %v1278 = vpack.c.b16 %v1271, %v1270
      %v1279 = vpack.c.b16 %v1273, %v1272
      %v1280 = vpack.c.b16 %v1275, %v1274
      %v1281 = vpack.c.b16 %v1277, %v1276
      %v1287 = vsel %vm352, %v1261, 0
      %1289 = vmatprep.subr.bf16.mxu0 0
      %1290 = vmatpush1.bf16.msra.mxu0 %v1278
      %1291 = vmatprep.subr.bf16.mxu0 0
      %1292 = vmatpush1.bf16.msra.mxu0 %v1279
      %1293 = vmatprep.subr.bf16.mxu0 0
      %1294 = vmatpush1.bf16.msra.mxu0 %v1280
      %1295 = vmatprep.subr.bf16.mxu0 0
      %1296 = vmatpush1.bf16.msra.mxu0 %v1281
      %1297 = vmatprep.subr.bf16.mxu0 0
      %1298 = vmatpush1.bf16.msra.mxu0 0
      %1299 = vmatprep.subr.bf16.mxu0 0
      %1300 = vmatpush1.bf16.msra.mxu0 0
      %1301 = vmatprep.subr.bf16.mxu0 0
      %1302 = vmatpush1.bf16.msra.mxu0 0
      %1303 = vmatprep.subr.bf16.mxu0 0
      %1304 = vmatpush1.bf16.msra.mxu0 0
      %1305 = vmatprep.subr.bf16.mxu0 0
      %1306 = vmatpush1.bf16.msra.mxu0 0
      %1307 = vmatprep.subr.bf16.mxu0 0
      %1308 = vmatpush1.bf16.msra.mxu0 0
      %1309 = vmatprep.subr.bf16.mxu0 0
      %1310 = vmatpush1.bf16.msra.mxu0 0
      %1311 = vmatprep.subr.bf16.mxu0 0
      %1312 = vmatpush1.bf16.msra.mxu0 0
      %1313 = vmatprep.subr.bf16.mxu0 0
      %1314 = vmatpush1.bf16.msra.mxu0 0
      %1315 = vmatprep.subr.bf16.mxu0 0
      %1316 = vmatpush1.bf16.msra.mxu0 0
      %1317 = vmatprep.subr.bf16.mxu0 0
      %1318 = vmatpush1.bf16.msra.mxu0 0
      %1319 = vmatprep.subr.bf16.mxu0 0
      %1320 = vmatpush1.bf16.msra.mxu0 0
      %1321 = vmatprep.mubr.bf16.mxu0 0
      %1322 = vmatmul.mubr.bf16.gmra.mrb[0].mxu0 %v1287
      %v1323 = vpop.f32.mrb[0].mxu0
      %v1324 = vadd.f32 0.0, %v1323
      %v1325 = vpop.f32.mrb[0].mxu0
      %v1326 = vpop.f32.mrb[0].mxu0
      %v1327 = vadd.f32 0.0, %v1326
      %v1328 = vpop.f32.mrb[0].mxu0
      %1329 = vdwg.mxu0
      %v1330 = vadd.f32 %v1126, %v1324
      %v1331 = vadd.f32 %v1127, %v1327
      %v1332 = vld [vmem:[%s923] sm:$0x6]
      %v1333 = vld [vmem:[%s923 + $0x4] sm:$0x6]
      %v1334 = vld [vmem:[%s923 + $0x8] sm:$0x6]
      %v1339 = vunpack.c.l.s4 1966171168
      %v1340 = vunpack.c.0.s8 %v1339
      %v1341 = vlaneseq
      %v1342 = vshrl.u32 %v1341, 7
      %v1343 = vsub.s32 %v1340, %v1342
      %v1344 = vrot.slane %v1332, %v1343
      %v1345 = vcombine.high %v1344, %v1344
      %v1347 = vunpack.c.l.s4 1966171168
      %v1348 = vunpack.c.0.s8 %v1347
      %v1349 = vlaneseq
      %v1350 = vshrl.u32 %v1349, 7
      %v1351 = vsub.s32 %v1348, %v1350
      %v1352 = vrot.slane %v1344, %v1351
      %v1354 = vunpack.c.l.s4 1966171168
      %v1355 = vunpack.c.0.s8 %v1354
      %v1356 = vlaneseq
      %v1357 = vshrl.u32 %v1356, 7
      %v1358 = vsub.s32 %v1355, %v1357
      %v1359 = vrot.slane %v1345, %v1358
      %v1360 = vcombine.high %v1352, %v1352
      %v1362 = vunpack.c.l.s4 1966171168
      %v1363 = vunpack.c.0.s8 %v1362
      %v1364 = vlaneseq
      %v1365 = vshrl.u32 %v1364, 7
      %v1366 = vsub.s32 %v1363, %v1365
      %v1367 = vrot.slane %v1333, %v1366
      %v1368 = vcombine.high %v1367, %v1367
      %v1370 = vunpack.c.l.s4 1966171168
      %v1371 = vunpack.c.0.s8 %v1370
      %v1372 = vlaneseq
      %v1373 = vshrl.u32 %v1372, 7
      %v1374 = vsub.s32 %v1371, %v1373
      %v1375 = vrot.slane %v1367, %v1374
      %v1377 = vunpack.c.l.s4 1966171168
      %v1378 = vunpack.c.0.s8 %v1377
      %v1379 = vlaneseq
      %v1380 = vshrl.u32 %v1379, 7
      %v1381 = vsub.s32 %v1378, %v1380
      %v1382 = vrot.slane %v1368, %v1381
      %v1383 = vcombine.high %v1375, %v1375
      %v1385 = vunpack.c.l.s4 1966171168
      %v1386 = vunpack.c.0.s8 %v1385
      %v1387 = vlaneseq
      %v1388 = vshrl.u32 %v1387, 7
      %v1389 = vsub.s32 %v1386, %v1388
      %v1390 = vrot.slane %v1334, %v1389
      %v1391 = vcombine.high %v1390, %v1390
      %v1393 = vunpack.c.l.s4 1966171168
      %v1394 = vunpack.c.0.s8 %v1393
      %v1395 = vlaneseq
      %v1396 = vshrl.u32 %v1395, 7
      %v1397 = vsub.s32 %v1394, %v1396
      %v1398 = vrot.slane %v1390, %v1397
      %v1400 = vunpack.c.l.s4 1966171168
      %v1401 = vunpack.c.0.s8 %v1400
      %v1402 = vlaneseq
      %v1403 = vshrl.u32 %v1402, 7
      %v1404 = vsub.s32 %v1401, %v1403
      %v1405 = vrot.slane %v1391, %v1404
      %v1406 = vcombine.high %v1398, %v1398
      %v1407 = vunpack.i.l.s16 %v1359
      %v1408 = vunpack.i.h.s16 %v1359
      %v1409 = vunpack.i.l.s16 %v1360
      %v1410 = vunpack.i.l.s16 %v1382
      %v1411 = vunpack.i.h.s16 %v1382
      %v1412 = vunpack.i.l.s16 %v1383
      %v1413 = vunpack.i.l.s16 %v1405
      %v1414 = vunpack.i.h.s16 %v1405
      %v1415 = vunpack.i.l.s16 %v1406
      %s1416 = scalar_lea.vmem %s1, 192
      %v1417 = vld [vmem:[%s1416] sm:$0xf]
      %v1418 = vld [vmem:[%s1416 + $0x4] sm:$0xf]
      %v1419 = vld [vmem:[%s1416 + $0x8] sm:$0xf]
      %v1420 = vld [vmem:[%s1416 + $0xc] sm:$0xf]
      %v1421 = vld [vmem:[%s1416 + $0x10] sm:$0xf]
      %v1422 = vld [vmem:[%s1416 + $0x14] sm:$0xf]
      %v1423 = vld [vmem:[%s1416 + $0x18] sm:$0xf]
      %v1424 = vld [vmem:[%s1416 + $0x1c] sm:$0xf]
      %v1425 = vpack.i.b16 %v1408, %v1407
      %v1426 = vpack.i.b16 %v1410, %v1409
      %v1427 = vpack.i.b16 %v1412, %v1411
      %v1428 = vpack.i.b16 %v1414, %v1413
      %v1430 = vcombine.low %v1425, %v1426
      %v1431 = vcombine.low %v1427, %v1428
      %v1433 = vunpack.c.l.s4 1966171168
      %v1434 = vunpack.c.0.s8 %v1433
      %v1435 = vlaneseq
      %v1436 = vshrl.u32 %v1435, 7
      %v1437 = vsub.s32 %v1434, %v1436
      %v1438 = vrot.slane %v1430, %v1437
      %v1440 = vunpack.c.l.s4 1966171168
      %v1441 = vunpack.c.0.s8 %v1440
      %v1442 = vlaneseq
      %v1443 = vshrl.u32 %v1442, 7
      %v1444 = vsub.s32 %v1441, %v1443
      %v1445 = vrot.slane %v1431, %v1444
      %v1447 = vunpack.c.l.s4 1966171168
      %v1448 = vunpack.c.0.s8 %v1447
      %v1449 = vlaneseq
      %v1450 = vshrl.u32 %v1449, 7
      %v1451 = vsub.s32 %v1448, %v1450
      %v1452 = vrot.slane %v1415, %v1451
      %v1453 = vcombine.low %v1438, %v1445
      %v1455 = vunpack.c.l.s4 1966171168
      %v1456 = vunpack.c.0.s8 %v1455
      %v1457 = vlaneseq
      %v1458 = vshrl.u32 %v1457, 7
      %v1459 = vsub.s32 %v1456, %v1458
      %v1460 = vrot.slane %v1453, %v1459
      %v1462 = vunpack.c.l.s4 1966171168
      %v1463 = vunpack.c.0.s8 %v1462
      %v1464 = vlaneseq
      %v1465 = vshrl.u32 %v1464, 7
      %v1466 = vsub.s32 %v1463, %v1465
      %v1467 = vrot.slane %v1452, %v1466
      %v1468 = vcombine.low %v1460, %v1467
      %v1477 = vunpack.c.l.b16 %v1417
      %v1478 = vunpack.c.l.b16 %v1418
      %v1479 = vunpack.c.l.b16 %v1419
      %v1480 = vunpack.c.l.b16 %v1420
      %v1481 = vunpack.c.l.b16 %v1421
      %v1482 = vunpack.c.l.b16 %v1422
      %v1483 = vunpack.c.l.b16 %v1423
      %v1484 = vunpack.c.l.b16 %v1424
      %v1485 = vpack.c.b16 %v1478, %v1477
      %v1486 = vpack.c.b16 %v1480, %v1479
      %v1487 = vpack.c.b16 %v1482, %v1481
      %v1488 = vpack.c.b16 %v1484, %v1483
      %v1494 = vsel %vm352, %v1468, 0
      %1496 = vmatprep.subr.bf16.mxu0 0
      %1497 = vmatpush1.bf16.msra.mxu0 %v1485
      %1498 = vmatprep.subr.bf16.mxu0 0
      %1499 = vmatpush1.bf16.msra.mxu0 %v1486
      %1500 = vmatprep.subr.bf16.mxu0 0
      %1501 = vmatpush1.bf16.msra.mxu0 %v1487
      %1502 = vmatprep.subr.bf16.mxu0 0
      %1503 = vmatpush1.bf16.msra.mxu0 %v1488
      %1504 = vmatprep.subr.bf16.mxu0 0
      %1505 = vmatpush1.bf16.msra.mxu0 0
      %1506 = vmatprep.subr.bf16.mxu0 0
      %1507 = vmatpush1.bf16.msra.mxu0 0
      %1508 = vmatprep.subr.bf16.mxu0 0
      %1509 = vmatpush1.bf16.msra.mxu0 0
      %1510 = vmatprep.subr.bf16.mxu0 0
      %1511 = vmatpush1.bf16.msra.mxu0 0
      %1512 = vmatprep.subr.bf16.mxu0 0
      %1513 = vmatpush1.bf16.msra.mxu0 0
      %1514 = vmatprep.subr.bf16.mxu0 0
      %1515 = vmatpush1.bf16.msra.mxu0 0
      %1516 = vmatprep.subr.bf16.mxu0 0
      %1517 = vmatpush1.bf16.msra.mxu0 0
      %1518 = vmatprep.subr.bf16.mxu0 0
      %1519 = vmatpush1.bf16.msra.mxu0 0
      %1520 = vmatprep.subr.bf16.mxu0 0
      %1521 = vmatpush1.bf16.msra.mxu0 0
      %1522 = vmatprep.subr.bf16.mxu0 0
      %1523 = vmatpush1.bf16.msra.mxu0 0
      %1524 = vmatprep.subr.bf16.mxu0 0
      %1525 = vmatpush1.bf16.msra.mxu0 0
      %1526 = vmatprep.subr.bf16.mxu0 0
      %1527 = vmatpush1.bf16.msra.mxu0 0
      %1528 = vmatprep.mubr.bf16.mxu0 0
      %1529 = vmatmul.mubr.bf16.gmra.mrb[0].mxu0 %v1494
      %v1530 = vpop.f32.mrb[0].mxu0
      %v1531 = vadd.f32 0.0, %v1530
      %v1532 = vpop.f32.mrb[0].mxu0
      %v1533 = vpop.f32.mrb[0].mxu0
      %v1534 = vadd.f32 0.0, %v1533
      %v1535 = vpop.f32.mrb[0].mxu0
      %1536 = vdwg.mxu0
      %v1537 = vadd.f32 %v1330, %v1531
      %v1538 = vadd.f32 %v1331, %v1534
      %v1539 = vld [vmem:[%s923] sm:$0x6]
      %v1540 = vld [vmem:[%s923 + $0x4] sm:$0x6]
      %v1541 = vld [vmem:[%s923 + $0x8] sm:$0x6]
      %v1546 = vunpack.c.l.s4 1966171168
      %v1547 = vunpack.c.0.s8 %v1546
      %v1548 = vlaneseq
      %v1549 = vshrl.u32 %v1548, 7
      %v1550 = vsub.s32 %v1547, %v1549
      %v1551 = vrot.slane %v1539, %v1550
      %v1552 = vcombine.high %v1551, %v1551
      %v1554 = vunpack.c.l.s4 1966171168
      %v1555 = vunpack.c.0.s8 %v1554
      %v1556 = vlaneseq
      %v1557 = vshrl.u32 %v1556, 7
      %v1558 = vsub.s32 %v1555, %v1557
      %v1559 = vrot.slane %v1551, %v1558
      %v1561 = vunpack.c.l.s4 1966171168
      %v1562 = vunpack.c.0.s8 %v1561
      %v1563 = vlaneseq
      %v1564 = vshrl.u32 %v1563, 7
      %v1565 = vsub.s32 %v1562, %v1564
      %v1566 = vrot.slane %v1552, %v1565
      %v1567 = vcombine.high %v1559, %v1559
      %v1569 = vunpack.c.l.s4 1966171168
      %v1570 = vunpack.c.0.s8 %v1569
      %v1571 = vlaneseq
      %v1572 = vshrl.u32 %v1571, 7
      %v1573 = vsub.s32 %v1570, %v1572
      %v1574 = vrot.slane %v1540, %v1573
      %v1575 = vcombine.high %v1574, %v1574
      %v1577 = vunpack.c.l.s4 1966171168
      %v1578 = vunpack.c.0.s8 %v1577
      %v1579 = vlaneseq
      %v1580 = vshrl.u32 %v1579, 7
      %v1581 = vsub.s32 %v1578, %v1580
      %v1582 = vrot.slane %v1574, %v1581
      %v1584 = vunpack.c.l.s4 1966171168
      %v1585 = vunpack.c.0.s8 %v1584
      %v1586 = vlaneseq
      %v1587 = vshrl.u32 %v1586, 7
      %v1588 = vsub.s32 %v1585, %v1587
      %v1589 = vrot.slane %v1575, %v1588
      %v1590 = vcombine.high %v1582, %v1582
      %v1592 = vunpack.c.l.s4 1966171168
      %v1593 = vunpack.c.0.s8 %v1592
      %v1594 = vlaneseq
      %v1595 = vshrl.u32 %v1594, 7
      %v1596 = vsub.s32 %v1593, %v1595
      %v1597 = vrot.slane %v1541, %v1596
      %v1598 = vcombine.high %v1597, %v1597
      %v1600 = vunpack.c.l.s4 1966171168
      %v1601 = vunpack.c.0.s8 %v1600
      %v1602 = vlaneseq
      %v1603 = vshrl.u32 %v1602, 7
      %v1604 = vsub.s32 %v1601, %v1603
      %v1605 = vrot.slane %v1597, %v1604
      %v1607 = vunpack.c.l.s4 1966171168
      %v1608 = vunpack.c.0.s8 %v1607
      %v1609 = vlaneseq
      %v1610 = vshrl.u32 %v1609, 7
      %v1611 = vsub.s32 %v1608, %v1610
      %v1612 = vrot.slane %v1598, %v1611
      %v1613 = vcombine.high %v1605, %v1605
      %v1614 = vunpack.i.h.s16 %v1566
      %v1615 = vunpack.i.l.s16 %v1567
      %v1616 = vunpack.i.h.s16 %v1567
      %v1617 = vunpack.i.h.s16 %v1589
      %v1618 = vunpack.i.l.s16 %v1590
      %v1619 = vunpack.i.h.s16 %v1590
      %v1620 = vunpack.i.h.s16 %v1612
      %v1621 = vunpack.i.l.s16 %v1613
      %v1622 = vunpack.i.h.s16 %v1613
      %s1623 = scalar_lea.vmem %s1, 224
      %v1624 = vld [vmem:[%s1623] sm:$0xf]
      %v1625 = vld [vmem:[%s1623 + $0x4] sm:$0xf]
      %v1626 = vld [vmem:[%s1623 + $0x8] sm:$0xf]
      %v1627 = vld [vmem:[%s1623 + $0xc] sm:$0xf]
      %v1628 = vld [vmem:[%s1623 + $0x10] sm:$0xf]
      %v1629 = vld [vmem:[%s1623 + $0x14] sm:$0xf]
      %v1630 = vld [vmem:[%s1623 + $0x18] sm:$0xf]
      %v1631 = vld [vmem:[%s1623 + $0x1c] sm:$0xf]
      %v1632 = vpack.i.b16 %v1615, %v1614
      %v1633 = vpack.i.b16 %v1617, %v1616
      %v1634 = vpack.i.b16 %v1619, %v1618
      %v1635 = vpack.i.b16 %v1621, %v1620
      %v1637 = vcombine.low %v1632, %v1633
      %v1638 = vcombine.low %v1634, %v1635
      %v1640 = vunpack.c.l.s4 1966171168
      %v1641 = vunpack.c.0.s8 %v1640
      %v1642 = vlaneseq
      %v1643 = vshrl.u32 %v1642, 7
      %v1644 = vsub.s32 %v1641, %v1643
      %v1645 = vrot.slane %v1637, %v1644
      %v1647 = vunpack.c.l.s4 1966171168
      %v1648 = vunpack.c.0.s8 %v1647
      %v1649 = vlaneseq
      %v1650 = vshrl.u32 %v1649, 7
      %v1651 = vsub.s32 %v1648, %v1650
      %v1652 = vrot.slane %v1638, %v1651
      %v1654 = vunpack.c.l.s4 1966171168
      %v1655 = vunpack.c.0.s8 %v1654
      %v1656 = vlaneseq
      %v1657 = vshrl.u32 %v1656, 7
      %v1658 = vsub.s32 %v1655, %v1657
      %v1659 = vrot.slane %v1622, %v1658
      %v1660 = vcombine.low %v1645, %v1652
      %v1662 = vunpack.c.l.s4 1966171168
      %v1663 = vunpack.c.0.s8 %v1662
      %v1664 = vlaneseq
      %v1665 = vshrl.u32 %v1664, 7
      %v1666 = vsub.s32 %v1663, %v1665
      %v1667 = vrot.slane %v1660, %v1666
      %v1669 = vunpack.c.l.s4 1966171168
      %v1670 = vunpack.c.0.s8 %v1669
      %v1671 = vlaneseq
      %v1672 = vshrl.u32 %v1671, 7
      %v1673 = vsub.s32 %v1670, %v1672
      %v1674 = vrot.slane %v1659, %v1673
      %v1675 = vcombine.low %v1667, %v1674
      %v1684 = vunpack.c.l.b16 %v1624
      %v1685 = vunpack.c.l.b16 %v1625
      %v1686 = vunpack.c.l.b16 %v1626
      %v1687 = vunpack.c.l.b16 %v1627
      %v1688 = vunpack.c.l.b16 %v1628
      %v1689 = vunpack.c.l.b16 %v1629
      %v1690 = vunpack.c.l.b16 %v1630
      %v1691 = vunpack.c.l.b16 %v1631
      %v1692 = vpack.c.b16 %v1685, %v1684
      %v1693 = vpack.c.b16 %v1687, %v1686
      %v1694 = vpack.c.b16 %v1689, %v1688
      %v1695 = vpack.c.b16 %v1691, %v1690
      %v1701 = vsel %vm352, %v1675, 0
      %1703 = vmatprep.subr.bf16.mxu0 0
      %1704 = vmatpush1.bf16.msra.mxu0 %v1692
      %1705 = vmatprep.subr.bf16.mxu0 0
      %1706 = vmatpush1.bf16.msra.mxu0 %v1693
      %1707 = vmatprep.subr.bf16.mxu0 0
      %1708 = vmatpush1.bf16.msra.mxu0 %v1694
      %1709 = vmatprep.subr.bf16.mxu0 0
      %1710 = vmatpush1.bf16.msra.mxu0 %v1695
      %1711 = vmatprep.subr.bf16.mxu0 0
      %1712 = vmatpush1.bf16.msra.mxu0 0
      %1713 = vmatprep.subr.bf16.mxu0 0
      %1714 = vmatpush1.bf16.msra.mxu0 0
      %1715 = vmatprep.subr.bf16.mxu0 0
      %1716 = vmatpush1.bf16.msra.mxu0 0
      %1717 = vmatprep.subr.bf16.mxu0 0
      %1718 = vmatpush1.bf16.msra.mxu0 0
      %1719 = vmatprep.subr.bf16.mxu0 0
      %1720 = vmatpush1.bf16.msra.mxu0 0
      %1721 = vmatprep.subr.bf16.mxu0 0
      %1722 = vmatpush1.bf16.msra.mxu0 0
      %1723 = vmatprep.subr.bf16.mxu0 0
      %1724 = vmatpush1.bf16.msra.mxu0 0
      %1725 = vmatprep.subr.bf16.mxu0 0
      %1726 = vmatpush1.bf16.msra.mxu0 0
      %1727 = vmatprep.subr.bf16.mxu0 0
      %1728 = vmatpush1.bf16.msra.mxu0 0
      %1729 = vmatprep.subr.bf16.mxu0 0
      %1730 = vmatpush1.bf16.msra.mxu0 0
      %1731 = vmatprep.subr.bf16.mxu0 0
      %1732 = vmatpush1.bf16.msra.mxu0 0
      %1733 = vmatprep.subr.bf16.mxu0 0
      %1734 = vmatpush1.bf16.msra.mxu0 0
      %1735 = vmatprep.mubr.bf16.mxu0 0
      %1736 = vmatmul.mubr.bf16.gmra.mrb[0].mxu0 %v1701
      %v1737 = vpop.f32.mrb[0].mxu0
      %v1738 = vadd.f32 0.0, %v1737
      %v1739 = vpop.f32.mrb[0].mxu0
      %v1740 = vpop.f32.mrb[0].mxu0
      %v1741 = vadd.f32 0.0, %v1740
      %v1742 = vpop.f32.mrb[0].mxu0
      %1743 = vdwg.mxu0
      %v1744 = vadd.f32 %v1537, %v1738
      %v1745 = vadd.f32 %v1538, %v1741
      %s1746 = scalar_lea.vmem %s172, 8
      %v1747 = vld [vmem:[%s1746] sm:$0x3]
      %v1748 = vld [vmem:[%s1746 + $0x4] sm:$0x3]
      %v1749 = vld [vmem:[%s1746 + $0x8] sm:$0x3]
      %v1754 = vunpack.c.l.s4 1966171168
      %v1755 = vunpack.c.0.s8 %v1754
      %v1756 = vlaneseq
      %v1757 = vshrl.u32 %v1756, 7
      %v1758 = vsub.s32 %v1755, %v1757
      %v1759 = vrot.slane %v1747, %v1758
      %v1760 = vcombine.high %v1759, %v1759
      %v1762 = vunpack.c.l.s4 1966171168
      %v1763 = vunpack.c.0.s8 %v1762
      %v1764 = vlaneseq
      %v1765 = vshrl.u32 %v1764, 7
      %v1766 = vsub.s32 %v1763, %v1765
      %v1767 = vrot.slane %v1759, %v1766
      %v1769 = vunpack.c.l.s4 1966171168
      %v1770 = vunpack.c.0.s8 %v1769
      %v1771 = vlaneseq
      %v1772 = vshrl.u32 %v1771, 7
      %v1773 = vsub.s32 %v1770, %v1772
      %v1774 = vrot.slane %v1760, %v1773
      %v1776 = vunpack.c.l.s4 1966171168
      %v1777 = vunpack.c.0.s8 %v1776
      %v1778 = vlaneseq
      %v1779 = vshrl.u32 %v1778, 7
      %v1780 = vsub.s32 %v1777, %v1779
      %v1781 = vrot.slane %v1748, %v1780
      %v1782 = vcombine.high %v1781, %v1781
      %v1784 = vunpack.c.l.s4 1966171168
      %v1785 = vunpack.c.0.s8 %v1784
      %v1786 = vlaneseq
      %v1787 = vshrl.u32 %v1786, 7
      %v1788 = vsub.s32 %v1785, %v1787
      %v1789 = vrot.slane %v1781, %v1788
      %v1791 = vunpack.c.l.s4 1966171168
      %v1792 = vunpack.c.0.s8 %v1791
      %v1793 = vlaneseq
      %v1794 = vshrl.u32 %v1793, 7
      %v1795 = vsub.s32 %v1792, %v1794
      %v1796 = vrot.slane %v1782, %v1795
      %v1798 = vunpack.c.l.s4 1966171168
      %v1799 = vunpack.c.0.s8 %v1798
      %v1800 = vlaneseq
      %v1801 = vshrl.u32 %v1800, 7
      %v1802 = vsub.s32 %v1799, %v1801
      %v1803 = vrot.slane %v1749, %v1802
      %v1804 = vcombine.high %v1803, %v1803
      %v1806 = vunpack.c.l.s4 1966171168
      %v1807 = vunpack.c.0.s8 %v1806
      %v1808 = vlaneseq
      %v1809 = vshrl.u32 %v1808, 7
      %v1810 = vsub.s32 %v1807, %v1809
      %v1811 = vrot.slane %v1803, %v1810
      %v1813 = vunpack.c.l.s4 1966171168
      %v1814 = vunpack.c.0.s8 %v1813
      %v1815 = vlaneseq
      %v1816 = vshrl.u32 %v1815, 7
      %v1817 = vsub.s32 %v1814, %v1816
      %v1818 = vrot.slane %v1804, %v1817
      %v1819 = vunpack.i.l.s16 %v1767
      %v1820 = vunpack.i.h.s16 %v1767
      %v1821 = vunpack.i.l.s16 %v1774
      %v1822 = vunpack.i.l.s16 %v1789
      %v1823 = vunpack.i.h.s16 %v1789
      %v1824 = vunpack.i.l.s16 %v1796
      %v1825 = vunpack.i.l.s16 %v1811
      %v1826 = vunpack.i.h.s16 %v1811
      %v1827 = vunpack.i.l.s16 %v1818
      %s1828 = scalar_lea.vmem %s1, 256
      %v1829 = vld [vmem:[%s1828] sm:$0xf]
      %v1830 = vld [vmem:[%s1828 + $0x4] sm:$0xf]
      %v1831 = vld [vmem:[%s1828 + $0x8] sm:$0xf]
      %v1832 = vld [vmem:[%s1828 + $0xc] sm:$0xf]
      %v1833 = vld [vmem:[%s1828 + $0x10] sm:$0xf]
      %v1834 = vld [vmem:[%s1828 + $0x14] sm:$0xf]
      %v1835 = vld [vmem:[%s1828 + $0x18] sm:$0xf]
      %v1836 = vld [vmem:[%s1828 + $0x1c] sm:$0xf]
      %v1837 = vpack.i.b16 %v1820, %v1819
      %v1838 = vpack.i.b16 %v1822, %v1821
      %v1839 = vpack.i.b16 %v1824, %v1823
      %v1840 = vpack.i.b16 %v1826, %v1825
      %v1842 = vcombine.low %v1837, %v1838
      %v1843 = vcombine.low %v1839, %v1840
      %v1845 = vunpack.c.l.s4 1966171168
      %v1846 = vunpack.c.0.s8 %v1845
      %v1847 = vlaneseq
      %v1848 = vshrl.u32 %v1847, 7
      %v1849 = vsub.s32 %v1846, %v1848
      %v1850 = vrot.slane %v1842, %v1849
      %v1852 = vunpack.c.l.s4 1966171168
      %v1853 = vunpack.c.0.s8 %v1852
      %v1854 = vlaneseq
      %v1855 = vshrl.u32 %v1854, 7
      %v1856 = vsub.s32 %v1853, %v1855
      %v1857 = vrot.slane %v1843, %v1856
      %v1859 = vunpack.c.l.s4 1966171168
      %v1860 = vunpack.c.0.s8 %v1859
      %v1861 = vlaneseq
      %v1862 = vshrl.u32 %v1861, 7
      %v1863 = vsub.s32 %v1860, %v1862
      %v1864 = vrot.slane %v1827, %v1863
      %v1865 = vcombine.low %v1850, %v1857
      %v1867 = vunpack.c.l.s4 1966171168
      %v1868 = vunpack.c.0.s8 %v1867
      %v1869 = vlaneseq
      %v1870 = vshrl.u32 %v1869, 7
      %v1871 = vsub.s32 %v1868, %v1870
      %v1872 = vrot.slane %v1865, %v1871
      %v1874 = vunpack.c.l.s4 1966171168
      %v1875 = vunpack.c.0.s8 %v1874
      %v1876 = vlaneseq
      %v1877 = vshrl.u32 %v1876, 7
      %v1878 = vsub.s32 %v1875, %v1877
      %v1879 = vrot.slane %v1864, %v1878
      %v1880 = vcombine.low %v1872, %v1879
      %v1889 = vunpack.c.l.b16 %v1829
      %v1890 = vunpack.c.l.b16 %v1830
      %v1891 = vunpack.c.l.b16 %v1831
      %v1892 = vunpack.c.l.b16 %v1832
      %v1893 = vunpack.c.l.b16 %v1833
      %v1894 = vunpack.c.l.b16 %v1834
      %v1895 = vunpack.c.l.b16 %v1835
      %v1896 = vunpack.c.l.b16 %v1836
      %v1897 = vpack.c.b16 %v1890, %v1889
      %v1898 = vpack.c.b16 %v1892, %v1891
      %v1899 = vpack.c.b16 %v1894, %v1893
      %v1900 = vpack.c.b16 %v1896, %v1895
      %v1906 = vsel %vm352, %v1880, 0
      %1908 = vmatprep.subr.bf16.mxu0 0
      %1909 = vmatpush1.bf16.msra.mxu0 %v1897
      %1910 = vmatprep.subr.bf16.mxu0 0
      %1911 = vmatpush1.bf16.msra.mxu0 %v1898
      %1912 = vmatprep.subr.bf16.mxu0 0
      %1913 = vmatpush1.bf16.msra.mxu0 %v1899
      %1914 = vmatprep.subr.bf16.mxu0 0
      %1915 = vmatpush1.bf16.msra.mxu0 %v1900
      %1916 = vmatprep.subr.bf16.mxu0 0
      %1917 = vmatpush1.bf16.msra.mxu0 0
      %1918 = vmatprep.subr.bf16.mxu0 0
      %1919 = vmatpush1.bf16.msra.mxu0 0
      %1920 = vmatprep.subr.bf16.mxu0 0
      %1921 = vmatpush1.bf16.msra.mxu0 0
      %1922 = vmatprep.subr.bf16.mxu0 0
      %1923 = vmatpush1.bf16.msra.mxu0 0
      %1924 = vmatprep.subr.bf16.mxu0 0
      %1925 = vmatpush1.bf16.msra.mxu0 0
      %1926 = vmatprep.subr.bf16.mxu0 0
      %1927 = vmatpush1.bf16.msra.mxu0 0
      %1928 = vmatprep.subr.bf16.mxu0 0
      %1929 = vmatpush1.bf16.msra.mxu0 0
      %1930 = vmatprep.subr.bf16.mxu0 0
      %1931 = vmatpush1.bf16.msra.mxu0 0
      %1932 = vmatprep.subr.bf16.mxu0 0
      %1933 = vmatpush1.bf16.msra.mxu0 0
      %1934 = vmatprep.subr.bf16.mxu0 0
      %1935 = vmatpush1.bf16.msra.mxu0 0
      %1936 = vmatprep.subr.bf16.mxu0 0
      %1937 = vmatpush1.bf16.msra.mxu0 0
      %1938 = vmatprep.subr.bf16.mxu0 0
      %1939 = vmatpush1.bf16.msra.mxu0 0
      %1940 = vmatprep.mubr.bf16.mxu0 0
      %1941 = vmatmul.mubr.bf16.gmra.mrb[0].mxu0 %v1906
      %v1942 = vpop.f32.mrb[0].mxu0
      %v1943 = vadd.f32 0.0, %v1942
      %v1944 = vpop.f32.mrb[0].mxu0
      %v1945 = vpop.f32.mrb[0].mxu0
      %v1946 = vadd.f32 0.0, %v1945
      %v1947 = vpop.f32.mrb[0].mxu0
      %1948 = vdwg.mxu0
      %v1949 = vadd.f32 %v1744, %v1943
      %v1950 = vadd.f32 %v1745, %v1946
      %v1951 = vld [vmem:[%s1746] sm:$0x3]
      %v1952 = vld [vmem:[%s1746 + $0x4] sm:$0x3]
      %v1953 = vld [vmem:[%s1746 + $0x8] sm:$0x3]
      %v1958 = vunpack.c.l.s4 1966171168
      %v1959 = vunpack.c.0.s8 %v1958
      %v1960 = vlaneseq
      %v1961 = vshrl.u32 %v1960, 7
      %v1962 = vsub.s32 %v1959, %v1961
      %v1963 = vrot.slane %v1951, %v1962
      %v1964 = vcombine.high %v1963, %v1963
      %v1966 = vunpack.c.l.s4 1966171168
      %v1967 = vunpack.c.0.s8 %v1966
      %v1968 = vlaneseq
      %v1969 = vshrl.u32 %v1968, 7
      %v1970 = vsub.s32 %v1967, %v1969
      %v1971 = vrot.slane %v1963, %v1970
      %v1973 = vunpack.c.l.s4 1966171168
      %v1974 = vunpack.c.0.s8 %v1973
      %v1975 = vlaneseq
      %v1976 = vshrl.u32 %v1975, 7
      %v1977 = vsub.s32 %v1974, %v1976
      %v1978 = vrot.slane %v1964, %v1977
      %v1980 = vunpack.c.l.s4 1966171168
      %v1981 = vunpack.c.0.s8 %v1980
      %v1982 = vlaneseq
      %v1983 = vshrl.u32 %v1982, 7
      %v1984 = vsub.s32 %v1981, %v1983
      %v1985 = vrot.slane %v1952, %v1984
      %v1986 = vcombine.high %v1985, %v1985
      %v1988 = vunpack.c.l.s4 1966171168
      %v1989 = vunpack.c.0.s8 %v1988
      %v1990 = vlaneseq
      %v1991 = vshrl.u32 %v1990, 7
      %v1992 = vsub.s32 %v1989, %v1991
      %v1993 = vrot.slane %v1985, %v1992
      %v1995 = vunpack.c.l.s4 1966171168
      %v1996 = vunpack.c.0.s8 %v1995
      %v1997 = vlaneseq
      %v1998 = vshrl.u32 %v1997, 7
      %v1999 = vsub.s32 %v1996, %v1998
      %v2000 = vrot.slane %v1986, %v1999
      %v2002 = vunpack.c.l.s4 1966171168
      %v2003 = vunpack.c.0.s8 %v2002
      %v2004 = vlaneseq
      %v2005 = vshrl.u32 %v2004, 7
      %v2006 = vsub.s32 %v2003, %v2005
      %v2007 = vrot.slane %v1953, %v2006
      %v2008 = vcombine.high %v2007, %v2007
      %v2010 = vunpack.c.l.s4 1966171168
      %v2011 = vunpack.c.0.s8 %v2010
      %v2012 = vlaneseq
      %v2013 = vshrl.u32 %v2012, 7
      %v2014 = vsub.s32 %v2011, %v2013
      %v2015 = vrot.slane %v2007, %v2014
      %v2017 = vunpack.c.l.s4 1966171168
      %v2018 = vunpack.c.0.s8 %v2017
      %v2019 = vlaneseq
      %v2020 = vshrl.u32 %v2019, 7
      %v2021 = vsub.s32 %v2018, %v2020
      %v2022 = vrot.slane %v2008, %v2021
      %v2023 = vunpack.i.h.s16 %v1971
      %v2024 = vunpack.i.l.s16 %v1978
      %v2025 = vunpack.i.h.s16 %v1978
      %v2026 = vunpack.i.h.s16 %v1993
      %v2027 = vunpack.i.l.s16 %v2000
      %v2028 = vunpack.i.h.s16 %v2000
      %v2029 = vunpack.i.h.s16 %v2015
      %v2030 = vunpack.i.l.s16 %v2022
      %v2031 = vunpack.i.h.s16 %v2022
      %s2032 = scalar_lea.vmem %s1, 288
      %v2033 = vld [vmem:[%s2032] sm:$0xf]
      %v2034 = vld [vmem:[%s2032 + $0x4] sm:$0xf]
      %v2035 = vld [vmem:[%s2032 + $0x8] sm:$0xf]
      %v2036 = vld [vmem:[%s2032 + $0xc] sm:$0xf]
      %v2037 = vld [vmem:[%s2032 + $0x10] sm:$0xf]
      %v2038 = vld [vmem:[%s2032 + $0x14] sm:$0xf]
      %v2039 = vld [vmem:[%s2032 + $0x18] sm:$0xf]
      %v2040 = vld [vmem:[%s2032 + $0x1c] sm:$0xf]
      %v2041 = vpack.i.b16 %v2024, %v2023
      %v2042 = vpack.i.b16 %v2026, %v2025
      %v2043 = vpack.i.b16 %v2028, %v2027
      %v2044 = vpack.i.b16 %v2030, %v2029
      %v2046 = vcombine.low %v2041, %v2042
      %v2047 = vcombine.low %v2043, %v2044
      %v2049 = vunpack.c.l.s4 1966171168
      %v2050 = vunpack.c.0.s8 %v2049
      %v2051 = vlaneseq
      %v2052 = vshrl.u32 %v2051, 7
      %v2053 = vsub.s32 %v2050, %v2052
      %v2054 = vrot.slane %v2046, %v2053
      %v2056 = vunpack.c.l.s4 1966171168
      %v2057 = vunpack.c.0.s8 %v2056
      %v2058 = vlaneseq
      %v2059 = vshrl.u32 %v2058, 7
      %v2060 = vsub.s32 %v2057, %v2059
      %v2061 = vrot.slane %v2047, %v2060
      %v2063 = vunpack.c.l.s4 1966171168
      %v2064 = vunpack.c.0.s8 %v2063
      %v2065 = vlaneseq
      %v2066 = vshrl.u32 %v2065, 7
      %v2067 = vsub.s32 %v2064, %v2066
      %v2068 = vrot.slane %v2031, %v2067
      %v2069 = vcombine.low %v2054, %v2061
      %v2071 = vunpack.c.l.s4 1966171168
      %v2072 = vunpack.c.0.s8 %v2071
      %v2073 = vlaneseq
      %v2074 = vshrl.u32 %v2073, 7
      %v2075 = vsub.s32 %v2072, %v2074
      %v2076 = vrot.slane %v2069, %v2075
      %v2078 = vunpack.c.l.s4 1966171168
      %v2079 = vunpack.c.0.s8 %v2078
      %v2080 = vlaneseq
      %v2081 = vshrl.u32 %v2080, 7
      %v2082 = vsub.s32 %v2079, %v2081
      %v2083 = vrot.slane %v2068, %v2082
      %v2084 = vcombine.low %v2076, %v2083
      %v2093 = vunpack.c.l.b16 %v2033
      %v2094 = vunpack.c.l.b16 %v2034
      %v2095 = vunpack.c.l.b16 %v2035
      %v2096 = vunpack.c.l.b16 %v2036
      %v2097 = vunpack.c.l.b16 %v2037
      %v2098 = vunpack.c.l.b16 %v2038
      %v2099 = vunpack.c.l.b16 %v2039
      %v2100 = vunpack.c.l.b16 %v2040
      %v2101 = vpack.c.b16 %v2094, %v2093
      %v2102 = vpack.c.b16 %v2096, %v2095
      %v2103 = vpack.c.b16 %v2098, %v2097
      %v2104 = vpack.c.b16 %v2100, %v2099
      %v2110 = vsel %vm352, %v2084, 0
      %2112 = vmatprep.subr.bf16.mxu0 0
      %2113 = vmatpush1.bf16.msra.mxu0 %v2101
      %2114 = vmatprep.subr.bf16.mxu0 0
      %2115 = vmatpush1.bf16.msra.mxu0 %v2102
      %2116 = vmatprep.subr.bf16.mxu0 0
      %2117 = vmatpush1.bf16.msra.mxu0 %v2103
      %2118 = vmatprep.subr.bf16.mxu0 0
      %2119 = vmatpush1.bf16.msra.mxu0 %v2104
      %2120 = vmatprep.subr.bf16.mxu0 0
      %2121 = vmatpush1.bf16.msra.mxu0 0
      %2122 = vmatprep.subr.bf16.mxu0 0
      %2123 = vmatpush1.bf16.msra.mxu0 0
      %2124 = vmatprep.subr.bf16.mxu0 0
      %2125 = vmatpush1.bf16.msra.mxu0 0
      %2126 = vmatprep.subr.bf16.mxu0 0
      %2127 = vmatpush1.bf16.msra.mxu0 0
      %2128 = vmatprep.subr.bf16.mxu0 0
      %2129 = vmatpush1.bf16.msra.mxu0 0
      %2130 = vmatprep.subr.bf16.mxu0 0
      %2131 = vmatpush1.bf16.msra.mxu0 0
      %2132 = vmatprep.subr.bf16.mxu0 0
      %2133 = vmatpush1.bf16.msra.mxu0 0
      %2134 = vmatprep.subr.bf16.mxu0 0
      %2135 = vmatpush1.bf16.msra.mxu0 0
      %2136 = vmatprep.subr.bf16.mxu0 0
      %2137 = vmatpush1.bf16.msra.mxu0 0
      %2138 = vmatprep.subr.bf16.mxu0 0
      %2139 = vmatpush1.bf16.msra.mxu0 0
      %2140 = vmatprep.subr.bf16.mxu0 0
      %2141 = vmatpush1.bf16.msra.mxu0 0
      %2142 = vmatprep.subr.bf16.mxu0 0
      %2143 = vmatpush1.bf16.msra.mxu0 0
      %2144 = vmatprep.mubr.bf16.mxu0 0
      %2145 = vmatmul.mubr.bf16.gmra.mrb[0].mxu0 %v2110
      %v2146 = vpop.f32.mrb[0].mxu0
      %v2147 = vadd.f32 0.0, %v2146
      %v2148 = vpop.f32.mrb[0].mxu0
      %v2149 = vpop.f32.mrb[0].mxu0
      %v2150 = vadd.f32 0.0, %v2149
      %v2151 = vpop.f32.mrb[0].mxu0
      %2152 = vdwg.mxu0
      %v2153 = vadd.f32 %v1949, %v2147
      %v2154 = vadd.f32 %v1950, %v2150
      %v2155 = vld [vmem:[%s1746] sm:$0x6]
      %v2156 = vld [vmem:[%s1746 + $0x4] sm:$0x6]
      %v2157 = vld [vmem:[%s1746 + $0x8] sm:$0x6]
      %v2162 = vunpack.c.l.s4 1966171168
      %v2163 = vunpack.c.0.s8 %v2162
      %v2164 = vlaneseq
      %v2165 = vshrl.u32 %v2164, 7
      %v2166 = vsub.s32 %v2163, %v2165
      %v2167 = vrot.slane %v2155, %v2166
      %v2168 = vcombine.high %v2167, %v2167
      %v2170 = vunpack.c.l.s4 1966171168
      %v2171 = vunpack.c.0.s8 %v2170
      %v2172 = vlaneseq
      %v2173 = vshrl.u32 %v2172, 7
      %v2174 = vsub.s32 %v2171, %v2173
      %v2175 = vrot.slane %v2167, %v2174
      %v2177 = vunpack.c.l.s4 1966171168
      %v2178 = vunpack.c.0.s8 %v2177
      %v2179 = vlaneseq
      %v2180 = vshrl.u32 %v2179, 7
      %v2181 = vsub.s32 %v2178, %v2180
      %v2182 = vrot.slane %v2168, %v2181
      %v2183 = vcombine.high %v2175, %v2175
      %v2185 = vunpack.c.l.s4 1966171168
      %v2186 = vunpack.c.0.s8 %v2185
      %v2187 = vlaneseq
      %v2188 = vshrl.u32 %v2187, 7
      %v2189 = vsub.s32 %v2186, %v2188
      %v2190 = vrot.slane %v2156, %v2189
      %v2191 = vcombine.high %v2190, %v2190
      %v2193 = vunpack.c.l.s4 1966171168
      %v2194 = vunpack.c.0.s8 %v2193
      %v2195 = vlaneseq
      %v2196 = vshrl.u32 %v2195, 7
      %v2197 = vsub.s32 %v2194, %v2196
      %v2198 = vrot.slane %v2190, %v2197
      %v2200 = vunpack.c.l.s4 1966171168
      %v2201 = vunpack.c.0.s8 %v2200
      %v2202 = vlaneseq
      %v2203 = vshrl.u32 %v2202, 7
      %v2204 = vsub.s32 %v2201, %v2203
      %v2205 = vrot.slane %v2191, %v2204
      %v2206 = vcombine.high %v2198, %v2198
      %v2208 = vunpack.c.l.s4 1966171168
      %v2209 = vunpack.c.0.s8 %v2208
      %v2210 = vlaneseq
      %v2211 = vshrl.u32 %v2210, 7
      %v2212 = vsub.s32 %v2209, %v2211
      %v2213 = vrot.slane %v2157, %v2212
      %v2214 = vcombine.high %v2213, %v2213
      %v2216 = vunpack.c.l.s4 1966171168
      %v2217 = vunpack.c.0.s8 %v2216
      %v2218 = vlaneseq
      %v2219 = vshrl.u32 %v2218, 7
      %v2220 = vsub.s32 %v2217, %v2219
      %v2221 = vrot.slane %v2213, %v2220
      %v2223 = vunpack.c.l.s4 1966171168
      %v2224 = vunpack.c.0.s8 %v2223
      %v2225 = vlaneseq
      %v2226 = vshrl.u32 %v2225, 7
      %v2227 = vsub.s32 %v2224, %v2226
      %v2228 = vrot.slane %v2214, %v2227
      %v2229 = vcombine.high %v2221, %v2221
      %v2230 = vunpack.i.l.s16 %v2182
      %v2231 = vunpack.i.h.s16 %v2182
      %v2232 = vunpack.i.l.s16 %v2183
      %v2233 = vunpack.i.l.s16 %v2205
      %v2234 = vunpack.i.h.s16 %v2205
      %v2235 = vunpack.i.l.s16 %v2206
      %v2236 = vunpack.i.l.s16 %v2228
      %v2237 = vunpack.i.h.s16 %v2228
      %v2238 = vunpack.i.l.s16 %v2229
      %s2239 = scalar_lea.vmem %s1, 320
      %v2240 = vld [vmem:[%s2239] sm:$0xf]
      %v2241 = vld [vmem:[%s2239 + $0x4] sm:$0xf]
      %v2242 = vld [vmem:[%s2239 + $0x8] sm:$0xf]
      %v2243 = vld [vmem:[%s2239 + $0xc] sm:$0xf]
      %v2244 = vld [vmem:[%s2239 + $0x10] sm:$0xf]
      %v2245 = vld [vmem:[%s2239 + $0x14] sm:$0xf]
      %v2246 = vld [vmem:[%s2239 + $0x18] sm:$0xf]
      %v2247 = vld [vmem:[%s2239 + $0x1c] sm:$0xf]
      %v2248 = vpack.i.b16 %v2231, %v2230
      %v2249 = vpack.i.b16 %v2233, %v2232
      %v2250 = vpack.i.b16 %v2235, %v2234
      %v2251 = vpack.i.b16 %v2237, %v2236
      %v2253 = vcombine.low %v2248, %v2249
      %v2254 = vcombine.low %v2250, %v2251
      %v2256 = vunpack.c.l.s4 1966171168
      %v2257 = vunpack.c.0.s8 %v2256
      %v2258 = vlaneseq
      %v2259 = vshrl.u32 %v2258, 7
      %v2260 = vsub.s32 %v2257, %v2259
      %v2261 = vrot.slane %v2253, %v2260
      %v2263 = vunpack.c.l.s4 1966171168
      %v2264 = vunpack.c.0.s8 %v2263
      %v2265 = vlaneseq
      %v2266 = vshrl.u32 %v2265, 7
      %v2267 = vsub.s32 %v2264, %v2266
      %v2268 = vrot.slane %v2254, %v2267
      %v2270 = vunpack.c.l.s4 1966171168
      %v2271 = vunpack.c.0.s8 %v2270
      %v2272 = vlaneseq
      %v2273 = vshrl.u32 %v2272, 7
      %v2274 = vsub.s32 %v2271, %v2273
      %v2275 = vrot.slane %v2238, %v2274
      %v2276 = vcombine.low %v2261, %v2268
      %v2278 = vunpack.c.l.s4 1966171168
      %v2279 = vunpack.c.0.s8 %v2278
      %v2280 = vlaneseq
      %v2281 = vshrl.u32 %v2280, 7
      %v2282 = vsub.s32 %v2279, %v2281
      %v2283 = vrot.slane %v2276, %v2282
      %v2285 = vunpack.c.l.s4 1966171168
      %v2286 = vunpack.c.0.s8 %v2285
      %v2287 = vlaneseq
      %v2288 = vshrl.u32 %v2287, 7
      %v2289 = vsub.s32 %v2286, %v2288
      %v2290 = vrot.slane %v2275, %v2289
      %v2291 = vcombine.low %v2283, %v2290
      %v2300 = vunpack.c.l.b16 %v2240
      %v2301 = vunpack.c.l.b16 %v2241
      %v2302 = vunpack.c.l.b16 %v2242
      %v2303 = vunpack.c.l.b16 %v2243
      %v2304 = vunpack.c.l.b16 %v2244
      %v2305 = vunpack.c.l.b16 %v2245
      %v2306 = vunpack.c.l.b16 %v2246
      %v2307 = vunpack.c.l.b16 %v2247
      %v2308 = vpack.c.b16 %v2301, %v2300
      %v2309 = vpack.c.b16 %v2303, %v2302
      %v2310 = vpack.c.b16 %v2305, %v2304
      %v2311 = vpack.c.b16 %v2307, %v2306
      %v2317 = vsel %vm352, %v2291, 0
      %2319 = vmatprep.subr.bf16.mxu0 0
      %2320 = vmatpush1.bf16.msra.mxu0 %v2308
      %2321 = vmatprep.subr.bf16.mxu0 0
      %2322 = vmatpush1.bf16.msra.mxu0 %v2309
      %2323 = vmatprep.subr.bf16.mxu0 0
      %2324 = vmatpush1.bf16.msra.mxu0 %v2310
      %2325 = vmatprep.subr.bf16.mxu0 0
      %2326 = vmatpush1.bf16.msra.mxu0 %v2311
      %2327 = vmatprep.subr.bf16.mxu0 0
      %2328 = vmatpush1.bf16.msra.mxu0 0
      %2329 = vmatprep.subr.bf16.mxu0 0
      %2330 = vmatpush1.bf16.msra.mxu0 0
      %2331 = vmatprep.subr.bf16.mxu0 0
      %2332 = vmatpush1.bf16.msra.mxu0 0
      %2333 = vmatprep.subr.bf16.mxu0 0
      %2334 = vmatpush1.bf16.msra.mxu0 0
      %2335 = vmatprep.subr.bf16.mxu0 0
      %2336 = vmatpush1.bf16.msra.mxu0 0
      %2337 = vmatprep.subr.bf16.mxu0 0
      %2338 = vmatpush1.bf16.msra.mxu0 0
      %2339 = vmatprep.subr.bf16.mxu0 0
      %2340 = vmatpush1.bf16.msra.mxu0 0
      %2341 = vmatprep.subr.bf16.mxu0 0
      %2342 = vmatpush1.bf16.msra.mxu0 0
      %2343 = vmatprep.subr.bf16.mxu0 0
      %2344 = vmatpush1.bf16.msra.mxu0 0
      %2345 = vmatprep.subr.bf16.mxu0 0
      %2346 = vmatpush1.bf16.msra.mxu0 0
      %2347 = vmatprep.subr.bf16.mxu0 0
      %2348 = vmatpush1.bf16.msra.mxu0 0
      %2349 = vmatprep.subr.bf16.mxu0 0
      %2350 = vmatpush1.bf16.msra.mxu0 0
      %2351 = vmatprep.mubr.bf16.mxu0 0
      %2352 = vmatmul.mubr.bf16.gmra.mrb[0].mxu0 %v2317
      %v2353 = vpop.f32.mrb[0].mxu0
      %v2354 = vadd.f32 0.0, %v2353
      %v2355 = vpop.f32.mrb[0].mxu0
      %v2356 = vpop.f32.mrb[0].mxu0
      %v2357 = vadd.f32 0.0, %v2356
      %v2358 = vpop.f32.mrb[0].mxu0
      %2359 = vdwg.mxu0
      %v2360 = vadd.f32 %v2153, %v2354
      %v2361 = vadd.f32 %v2154, %v2357
      %v2362 = vld [vmem:[%s1746] sm:$0x6]
      %v2363 = vld [vmem:[%s1746 + $0x4] sm:$0x6]
      %v2364 = vld [vmem:[%s1746 + $0x8] sm:$0x6]
      %v2369 = vunpack.c.l.s4 1966171168
      %v2370 = vunpack.c.0.s8 %v2369
      %v2371 = vlaneseq
      %v2372 = vshrl.u32 %v2371, 7
      %v2373 = vsub.s32 %v2370, %v2372
      %v2374 = vrot.slane %v2362, %v2373
      %v2375 = vcombine.high %v2374, %v2374
      %v2377 = vunpack.c.l.s4 1966171168
      %v2378 = vunpack.c.0.s8 %v2377
      %v2379 = vlaneseq
      %v2380 = vshrl.u32 %v2379, 7
      %v2381 = vsub.s32 %v2378, %v2380
      %v2382 = vrot.slane %v2374, %v2381
      %v2384 = vunpack.c.l.s4 1966171168
      %v2385 = vunpack.c.0.s8 %v2384
      %v2386 = vlaneseq
      %v2387 = vshrl.u32 %v2386, 7
      %v2388 = vsub.s32 %v2385, %v2387
      %v2389 = vrot.slane %v2375, %v2388
      %v2390 = vcombine.high %v2382, %v2382
      %v2392 = vunpack.c.l.s4 1966171168
      %v2393 = vunpack.c.0.s8 %v2392
      %v2394 = vlaneseq
      %v2395 = vshrl.u32 %v2394, 7
      %v2396 = vsub.s32 %v2393, %v2395
      %v2397 = vrot.slane %v2363, %v2396
      %v2398 = vcombine.high %v2397, %v2397
      %v2400 = vunpack.c.l.s4 1966171168
      %v2401 = vunpack.c.0.s8 %v2400
      %v2402 = vlaneseq
      %v2403 = vshrl.u32 %v2402, 7
      %v2404 = vsub.s32 %v2401, %v2403
      %v2405 = vrot.slane %v2397, %v2404
      %v2407 = vunpack.c.l.s4 1966171168
      %v2408 = vunpack.c.0.s8 %v2407
      %v2409 = vlaneseq
      %v2410 = vshrl.u32 %v2409, 7
      %v2411 = vsub.s32 %v2408, %v2410
      %v2412 = vrot.slane %v2398, %v2411
      %v2413 = vcombine.high %v2405, %v2405
      %v2415 = vunpack.c.l.s4 1966171168
      %v2416 = vunpack.c.0.s8 %v2415
      %v2417 = vlaneseq
      %v2418 = vshrl.u32 %v2417, 7
      %v2419 = vsub.s32 %v2416, %v2418
      %v2420 = vrot.slane %v2364, %v2419
      %v2421 = vcombine.high %v2420, %v2420
      %v2423 = vunpack.c.l.s4 1966171168
      %v2424 = vunpack.c.0.s8 %v2423
      %v2425 = vlaneseq
      %v2426 = vshrl.u32 %v2425, 7
      %v2427 = vsub.s32 %v2424, %v2426
      %v2428 = vrot.slane %v2420, %v2427
      %v2430 = vunpack.c.l.s4 1966171168
      %v2431 = vunpack.c.0.s8 %v2430
      %v2432 = vlaneseq
      %v2433 = vshrl.u32 %v2432, 7
      %v2434 = vsub.s32 %v2431, %v2433
      %v2435 = vrot.slane %v2421, %v2434
      %v2436 = vcombine.high %v2428, %v2428
      %v2437 = vunpack.i.h.s16 %v2389
      %v2438 = vunpack.i.l.s16 %v2390
      %v2439 = vunpack.i.h.s16 %v2390
      %v2440 = vunpack.i.h.s16 %v2412
      %v2441 = vunpack.i.l.s16 %v2413
      %v2442 = vunpack.i.h.s16 %v2413
      %v2443 = vunpack.i.h.s16 %v2435
      %v2444 = vunpack.i.l.s16 %v2436
      %v2445 = vunpack.i.h.s16 %v2436
      %s2446 = scalar_lea.vmem %s1, 352
      %v2447 = vld [vmem:[%s2446] sm:$0xf]
      %v2448 = vld [vmem:[%s2446 + $0x4] sm:$0xf]
      %v2449 = vld [vmem:[%s2446 + $0x8] sm:$0xf]
      %v2450 = vld [vmem:[%s2446 + $0xc] sm:$0xf]
      %v2451 = vld [vmem:[%s2446 + $0x10] sm:$0xf]
      %v2452 = vld [vmem:[%s2446 + $0x14] sm:$0xf]
      %v2453 = vld [vmem:[%s2446 + $0x18] sm:$0xf]
      %v2454 = vld [vmem:[%s2446 + $0x1c] sm:$0xf]
      %v2455 = vpack.i.b16 %v2438, %v2437
      %v2456 = vpack.i.b16 %v2440, %v2439
      %v2457 = vpack.i.b16 %v2442, %v2441
      %v2458 = vpack.i.b16 %v2444, %v2443
      %v2460 = vcombine.low %v2455, %v2456
      %v2461 = vcombine.low %v2457, %v2458
      %v2463 = vunpack.c.l.s4 1966171168
      %v2464 = vunpack.c.0.s8 %v2463
      %v2465 = vlaneseq
      %v2466 = vshrl.u32 %v2465, 7
      %v2467 = vsub.s32 %v2464, %v2466
      %v2468 = vrot.slane %v2460, %v2467
      %v2470 = vunpack.c.l.s4 1966171168
      %v2471 = vunpack.c.0.s8 %v2470
      %v2472 = vlaneseq
      %v2473 = vshrl.u32 %v2472, 7
      %v2474 = vsub.s32 %v2471, %v2473
      %v2475 = vrot.slane %v2461, %v2474
      %v2477 = vunpack.c.l.s4 1966171168
      %v2478 = vunpack.c.0.s8 %v2477
      %v2479 = vlaneseq
      %v2480 = vshrl.u32 %v2479, 7
      %v2481 = vsub.s32 %v2478, %v2480
      %v2482 = vrot.slane %v2445, %v2481
      %v2483 = vcombine.low %v2468, %v2475
      %v2485 = vunpack.c.l.s4 1966171168
      %v2486 = vunpack.c.0.s8 %v2485
      %v2487 = vlaneseq
      %v2488 = vshrl.u32 %v2487, 7
      %v2489 = vsub.s32 %v2486, %v2488
      %v2490 = vrot.slane %v2483, %v2489
      %v2492 = vunpack.c.l.s4 1966171168
      %v2493 = vunpack.c.0.s8 %v2492
      %v2494 = vlaneseq
      %v2495 = vshrl.u32 %v2494, 7
      %v2496 = vsub.s32 %v2493, %v2495
      %v2497 = vrot.slane %v2482, %v2496
      %v2498 = vcombine.low %v2490, %v2497
      %v2507 = vunpack.c.l.b16 %v2447
      %v2508 = vunpack.c.l.b16 %v2448
      %v2509 = vunpack.c.l.b16 %v2449
      %v2510 = vunpack.c.l.b16 %v2450
      %v2511 = vunpack.c.l.b16 %v2451
      %v2512 = vunpack.c.l.b16 %v2452
      %v2513 = vunpack.c.l.b16 %v2453
      %v2514 = vunpack.c.l.b16 %v2454
      %v2515 = vpack.c.b16 %v2508, %v2507
      %v2516 = vpack.c.b16 %v2510, %v2509
      %v2517 = vpack.c.b16 %v2512, %v2511
      %v2518 = vpack.c.b16 %v2514, %v2513
      %v2524 = vsel %vm352, %v2498, 0
      %2526 = vmatprep.subr.bf16.mxu0 0
      %2527 = vmatpush1.bf16.msra.mxu0 %v2515
      %2528 = vmatprep.subr.bf16.mxu0 0
      %2529 = vmatpush1.bf16.msra.mxu0 %v2516
      %2530 = vmatprep.subr.bf16.mxu0 0
      %2531 = vmatpush1.bf16.msra.mxu0 %v2517
      %2532 = vmatprep.subr.bf16.mxu0 0
      %2533 = vmatpush1.bf16.msra.mxu0 %v2518
      %2534 = vmatprep.subr.bf16.mxu0 0
      %2535 = vmatpush1.bf16.msra.mxu0 0
      %2536 = vmatprep.subr.bf16.mxu0 0
      %2537 = vmatpush1.bf16.msra.mxu0 0
      %2538 = vmatprep.subr.bf16.mxu0 0
      %2539 = vmatpush1.bf16.msra.mxu0 0
      %2540 = vmatprep.subr.bf16.mxu0 0
      %2541 = vmatpush1.bf16.msra.mxu0 0
      %2542 = vmatprep.subr.bf16.mxu0 0
      %2543 = vmatpush1.bf16.msra.mxu0 0
      %2544 = vmatprep.subr.bf16.mxu0 0
      %2545 = vmatpush1.bf16.msra.mxu0 0
      %2546 = vmatprep.subr.bf16.mxu0 0
      %2547 = vmatpush1.bf16.msra.mxu0 0
      %2548 = vmatprep.subr.bf16.mxu0 0
      %2549 = vmatpush1.bf16.msra.mxu0 0
      %2550 = vmatprep.subr.bf16.mxu0 0
      %2551 = vmatpush1.bf16.msra.mxu0 0
      %2552 = vmatprep.subr.bf16.mxu0 0
      %2553 = vmatpush1.bf16.msra.mxu0 0
      %2554 = vmatprep.subr.bf16.mxu0 0
      %2555 = vmatpush1.bf16.msra.mxu0 0
      %2556 = vmatprep.subr.bf16.mxu0 0
      %2557 = vmatpush1.bf16.msra.mxu0 0
      %2558 = vmatprep.mubr.bf16.mxu0 0
      %2559 = vmatmul.mubr.bf16.gmra.mrb[0].mxu0 %v2524
      %v2560 = vpop.f32.mrb[0].mxu0
      %v2561 = vadd.f32 0.0, %v2560
      %v2562 = vpop.f32.mrb[0].mxu0
      %v2563 = vpop.f32.mrb[0].mxu0
      %v2564 = vadd.f32 0.0, %v2563
      %v2565 = vpop.f32.mrb[0].mxu0
      %2566 = vdwg.mxu0
      %v2567 = vadd.f32 %v2360, %v2561
      %v2568 = vadd.f32 %v2361, %v2564
      %s2569 = scalar_lea.vmem %s172, 12
      %v2570 = vld [vmem:[%s2569] sm:$0x3]
      %v2571 = vld [vmem:[%s2569 + $0x4] sm:$0x3]
      %v2572 = vld [vmem:[%s2569 + $0x8] sm:$0x3]
      %v2577 = vunpack.c.l.s4 1966171168
      %v2578 = vunpack.c.0.s8 %v2577
      %v2579 = vlaneseq
      %v2580 = vshrl.u32 %v2579, 7
      %v2581 = vsub.s32 %v2578, %v2580
      %v2582 = vrot.slane %v2570, %v2581
      %v2583 = vcombine.high %v2582, %v2582
      %v2585 = vunpack.c.l.s4 1966171168
      %v2586 = vunpack.c.0.s8 %v2585
      %v2587 = vlaneseq
      %v2588 = vshrl.u32 %v2587, 7
      %v2589 = vsub.s32 %v2586, %v2588
      %v2590 = vrot.slane %v2582, %v2589
      %v2592 = vunpack.c.l.s4 1966171168
      %v2593 = vunpack.c.0.s8 %v2592
      %v2594 = vlaneseq
      %v2595 = vshrl.u32 %v2594, 7
      %v2596 = vsub.s32 %v2593, %v2595
      %v2597 = vrot.slane %v2583, %v2596
      %v2599 = vunpack.c.l.s4 1966171168
      %v2600 = vunpack.c.0.s8 %v2599
      %v2601 = vlaneseq
      %v2602 = vshrl.u32 %v2601, 7
      %v2603 = vsub.s32 %v2600, %v2602
      %v2604 = vrot.slane %v2571, %v2603
      %v2605 = vcombine.high %v2604, %v2604
      %v2607 = vunpack.c.l.s4 1966171168
      %v2608 = vunpack.c.0.s8 %v2607
      %v2609 = vlaneseq
      %v2610 = vshrl.u32 %v2609, 7
      %v2611 = vsub.s32 %v2608, %v2610
      %v2612 = vrot.slane %v2604, %v2611
      %v2614 = vunpack.c.l.s4 1966171168
      %v2615 = vunpack.c.0.s8 %v2614
      %v2616 = vlaneseq
      %v2617 = vshrl.u32 %v2616, 7
      %v2618 = vsub.s32 %v2615, %v2617
      %v2619 = vrot.slane %v2605, %v2618
      %v2621 = vunpack.c.l.s4 1966171168
      %v2622 = vunpack.c.0.s8 %v2621
      %v2623 = vlaneseq
      %v2624 = vshrl.u32 %v2623, 7
      %v2625 = vsub.s32 %v2622, %v2624
      %v2626 = vrot.slane %v2572, %v2625
      %v2627 = vcombine.high %v2626, %v2626
      %v2629 = vunpack.c.l.s4 1966171168
      %v2630 = vunpack.c.0.s8 %v2629
      %v2631 = vlaneseq
      %v2632 = vshrl.u32 %v2631, 7
      %v2633 = vsub.s32 %v2630, %v2632
      %v2634 = vrot.slane %v2626, %v2633
      %v2636 = vunpack.c.l.s4 1966171168
      %v2637 = vunpack.c.0.s8 %v2636
      %v2638 = vlaneseq
      %v2639 = vshrl.u32 %v2638, 7
      %v2640 = vsub.s32 %v2637, %v2639
      %v2641 = vrot.slane %v2627, %v2640
      %v2642 = vunpack.i.l.s16 %v2590
      %v2643 = vunpack.i.h.s16 %v2590
      %v2644 = vunpack.i.l.s16 %v2597
      %v2645 = vunpack.i.l.s16 %v2612
      %v2646 = vunpack.i.h.s16 %v2612
      %v2647 = vunpack.i.l.s16 %v2619
      %v2648 = vunpack.i.l.s16 %v2634
      %v2649 = vunpack.i.h.s16 %v2634
      %v2650 = vunpack.i.l.s16 %v2641
      %s2651 = scalar_lea.vmem %s1, 384
      %v2652 = vld [vmem:[%s2651] sm:$0xf]
      %v2653 = vld [vmem:[%s2651 + $0x4] sm:$0xf]
      %v2654 = vld [vmem:[%s2651 + $0x8] sm:$0xf]
      %v2655 = vld [vmem:[%s2651 + $0xc] sm:$0xf]
      %v2656 = vld [vmem:[%s2651 + $0x10] sm:$0xf]
      %v2657 = vld [vmem:[%s2651 + $0x14] sm:$0xf]
      %v2658 = vld [vmem:[%s2651 + $0x18] sm:$0xf]
      %v2659 = vld [vmem:[%s2651 + $0x1c] sm:$0xf]
      %v2660 = vpack.i.b16 %v2643, %v2642
      %v2661 = vpack.i.b16 %v2645, %v2644
      %v2662 = vpack.i.b16 %v2647, %v2646
      %v2663 = vpack.i.b16 %v2649, %v2648
      %v2665 = vcombine.low %v2660, %v2661
      %v2666 = vcombine.low %v2662, %v2663
      %v2668 = vunpack.c.l.s4 1966171168
      %v2669 = vunpack.c.0.s8 %v2668
      %v2670 = vlaneseq
      %v2671 = vshrl.u32 %v2670, 7
      %v2672 = vsub.s32 %v2669, %v2671
      %v2673 = vrot.slane %v2665, %v2672
      %v2675 = vunpack.c.l.s4 1966171168
      %v2676 = vunpack.c.0.s8 %v2675
      %v2677 = vlaneseq
      %v2678 = vshrl.u32 %v2677, 7
      %v2679 = vsub.s32 %v2676, %v2678
      %v2680 = vrot.slane %v2666, %v2679
      %v2682 = vunpack.c.l.s4 1966171168
      %v2683 = vunpack.c.0.s8 %v2682
      %v2684 = vlaneseq
      %v2685 = vshrl.u32 %v2684, 7
      %v2686 = vsub.s32 %v2683, %v2685
      %v2687 = vrot.slane %v2650, %v2686
      %v2688 = vcombine.low %v2673, %v2680
      %v2690 = vunpack.c.l.s4 1966171168
      %v2691 = vunpack.c.0.s8 %v2690
      %v2692 = vlaneseq
      %v2693 = vshrl.u32 %v2692, 7
      %v2694 = vsub.s32 %v2691, %v2693
      %v2695 = vrot.slane %v2688, %v2694
      %v2697 = vunpack.c.l.s4 1966171168
      %v2698 = vunpack.c.0.s8 %v2697
      %v2699 = vlaneseq
      %v2700 = vshrl.u32 %v2699, 7
      %v2701 = vsub.s32 %v2698, %v2700
      %v2702 = vrot.slane %v2687, %v2701
      %v2703 = vcombine.low %v2695, %v2702
      %v2712 = vunpack.c.l.b16 %v2652
      %v2713 = vunpack.c.l.b16 %v2653
      %v2714 = vunpack.c.l.b16 %v2654
      %v2715 = vunpack.c.l.b16 %v2655
      %v2716 = vunpack.c.l.b16 %v2656
      %v2717 = vunpack.c.l.b16 %v2657
      %v2718 = vunpack.c.l.b16 %v2658
      %v2719 = vunpack.c.l.b16 %v2659
      %v2720 = vpack.c.b16 %v2713, %v2712
      %v2721 = vpack.c.b16 %v2715, %v2714
      %v2722 = vpack.c.b16 %v2717, %v2716
      %v2723 = vpack.c.b16 %v2719, %v2718
      %v2729 = vsel %vm352, %v2703, 0
      %2731 = vmatprep.subr.bf16.mxu0 0
      %2732 = vmatpush1.bf16.msra.mxu0 %v2720
      %2733 = vmatprep.subr.bf16.mxu0 0
      %2734 = vmatpush1.bf16.msra.mxu0 %v2721
      %2735 = vmatprep.subr.bf16.mxu0 0
      %2736 = vmatpush1.bf16.msra.mxu0 %v2722
      %2737 = vmatprep.subr.bf16.mxu0 0
      %2738 = vmatpush1.bf16.msra.mxu0 %v2723
      %2739 = vmatprep.subr.bf16.mxu0 0
      %2740 = vmatpush1.bf16.msra.mxu0 0
      %2741 = vmatprep.subr.bf16.mxu0 0
      %2742 = vmatpush1.bf16.msra.mxu0 0
      %2743 = vmatprep.subr.bf16.mxu0 0
      %2744 = vmatpush1.bf16.msra.mxu0 0
      %2745 = vmatprep.subr.bf16.mxu0 0
      %2746 = vmatpush1.bf16.msra.mxu0 0
      %2747 = vmatprep.subr.bf16.mxu0 0
      %2748 = vmatpush1.bf16.msra.mxu0 0
      %2749 = vmatprep.subr.bf16.mxu0 0
      %2750 = vmatpush1.bf16.msra.mxu0 0
      %2751 = vmatprep.subr.bf16.mxu0 0
      %2752 = vmatpush1.bf16.msra.mxu0 0
      %2753 = vmatprep.subr.bf16.mxu0 0
      %2754 = vmatpush1.bf16.msra.mxu0 0
      %2755 = vmatprep.subr.bf16.mxu0 0
      %2756 = vmatpush1.bf16.msra.mxu0 0
      %2757 = vmatprep.subr.bf16.mxu0 0
      %2758 = vmatpush1.bf16.msra.mxu0 0
      %2759 = vmatprep.subr.bf16.mxu0 0
      %2760 = vmatpush1.bf16.msra.mxu0 0
      %2761 = vmatprep.subr.bf16.mxu0 0
      %2762 = vmatpush1.bf16.msra.mxu0 0
      %2763 = vmatprep.mubr.bf16.mxu0 0
      %2764 = vmatmul.mubr.bf16.gmra.mrb[0].mxu0 %v2729
      %v2765 = vpop.f32.mrb[0].mxu0
      %v2766 = vadd.f32 0.0, %v2765
      %v2767 = vpop.f32.mrb[0].mxu0
      %v2768 = vpop.f32.mrb[0].mxu0
      %v2769 = vadd.f32 0.0, %v2768
      %v2770 = vpop.f32.mrb[0].mxu0
      %2771 = vdwg.mxu0
      %v2772 = vadd.f32 %v2567, %v2766
      %v2773 = vadd.f32 %v2568, %v2769
      %v2774 = vld [vmem:[%s2569] sm:$0x3]
      %v2775 = vld [vmem:[%s2569 + $0x4] sm:$0x3]
      %v2776 = vld [vmem:[%s2569 + $0x8] sm:$0x3]
      %v2781 = vunpack.c.l.s4 1966171168
      %v2782 = vunpack.c.0.s8 %v2781
      %v2783 = vlaneseq
      %v2784 = vshrl.u32 %v2783, 7
      %v2785 = vsub.s32 %v2782, %v2784
      %v2786 = vrot.slane %v2774, %v2785
      %v2787 = vcombine.high %v2786, %v2786
      %v2789 = vunpack.c.l.s4 1966171168
      %v2790 = vunpack.c.0.s8 %v2789
      %v2791 = vlaneseq
      %v2792 = vshrl.u32 %v2791, 7
      %v2793 = vsub.s32 %v2790, %v2792
      %v2794 = vrot.slane %v2786, %v2793
      %v2796 = vunpack.c.l.s4 1966171168
      %v2797 = vunpack.c.0.s8 %v2796
      %v2798 = vlaneseq
      %v2799 = vshrl.u32 %v2798, 7
      %v2800 = vsub.s32 %v2797, %v2799
      %v2801 = vrot.slane %v2787, %v2800
      %v2803 = vunpack.c.l.s4 1966171168
      %v2804 = vunpack.c.0.s8 %v2803
      %v2805 = vlaneseq
      %v2806 = vshrl.u32 %v2805, 7
      %v2807 = vsub.s32 %v2804, %v2806
      %v2808 = vrot.slane %v2775, %v2807
      %v2809 = vcombine.high %v2808, %v2808
      %v2811 = vunpack.c.l.s4 1966171168
      %v2812 = vunpack.c.0.s8 %v2811
      %v2813 = vlaneseq
      %v2814 = vshrl.u32 %v2813, 7
      %v2815 = vsub.s32 %v2812, %v2814
      %v2816 = vrot.slane %v2808, %v2815
      %v2818 = vunpack.c.l.s4 1966171168
      %v2819 = vunpack.c.0.s8 %v2818
      %v2820 = vlaneseq
      %v2821 = vshrl.u32 %v2820, 7
      %v2822 = vsub.s32 %v2819, %v2821
      %v2823 = vrot.slane %v2809, %v2822
      %v2825 = vunpack.c.l.s4 1966171168
      %v2826 = vunpack.c.0.s8 %v2825
      %v2827 = vlaneseq
      %v2828 = vshrl.u32 %v2827, 7
      %v2829 = vsub.s32 %v2826, %v2828
      %v2830 = vrot.slane %v2776, %v2829
      %v2831 = vcombine.high %v2830, %v2830
      %v2833 = vunpack.c.l.s4 1966171168
      %v2834 = vunpack.c.0.s8 %v2833
      %v2835 = vlaneseq
      %v2836 = vshrl.u32 %v2835, 7
      %v2837 = vsub.s32 %v2834, %v2836
      %v2838 = vrot.slane %v2830, %v2837
      %v2840 = vunpack.c.l.s4 1966171168
      %v2841 = vunpack.c.0.s8 %v2840
      %v2842 = vlaneseq
      %v2843 = vshrl.u32 %v2842, 7
      %v2844 = vsub.s32 %v2841, %v2843
      %v2845 = vrot.slane %v2831, %v2844
      %v2846 = vunpack.i.h.s16 %v2794
      %v2847 = vunpack.i.l.s16 %v2801
      %v2848 = vunpack.i.h.s16 %v2801
      %v2849 = vunpack.i.h.s16 %v2816
      %v2850 = vunpack.i.l.s16 %v2823
      %v2851 = vunpack.i.h.s16 %v2823
      %v2852 = vunpack.i.h.s16 %v2838
      %v2853 = vunpack.i.l.s16 %v2845
      %v2854 = vunpack.i.h.s16 %v2845
      %s2855 = scalar_lea.vmem %s1, 416
      %v2856 = vld [vmem:[%s2855] sm:$0xf]
      %v2857 = vld [vmem:[%s2855 + $0x4] sm:$0xf]
      %v2858 = vld [vmem:[%s2855 + $0x8] sm:$0xf]
      %v2859 = vld [vmem:[%s2855 + $0xc] sm:$0xf]
      %v2860 = vld [vmem:[%s2855 + $0x10] sm:$0xf]
      %v2861 = vld [vmem:[%s2855 + $0x14] sm:$0xf]
      %v2862 = vld [vmem:[%s2855 + $0x18] sm:$0xf]
      %v2863 = vld [vmem:[%s2855 + $0x1c] sm:$0xf]
      %v2864 = vpack.i.b16 %v2847, %v2846
      %v2865 = vpack.i.b16 %v2849, %v2848
      %v2866 = vpack.i.b16 %v2851, %v2850
      %v2867 = vpack.i.b16 %v2853, %v2852
      %v2869 = vcombine.low %v2864, %v2865
      %v2870 = vcombine.low %v2866, %v2867
      %v2872 = vunpack.c.l.s4 1966171168
      %v2873 = vunpack.c.0.s8 %v2872
      %v2874 = vlaneseq
      %v2875 = vshrl.u32 %v2874, 7
      %v2876 = vsub.s32 %v2873, %v2875
      %v2877 = vrot.slane %v2869, %v2876
      %v2879 = vunpack.c.l.s4 1966171168
      %v2880 = vunpack.c.0.s8 %v2879
      %v2881 = vlaneseq
      %v2882 = vshrl.u32 %v2881, 7
      %v2883 = vsub.s32 %v2880, %v2882
      %v2884 = vrot.slane %v2870, %v2883
      %v2886 = vunpack.c.l.s4 1966171168
      %v2887 = vunpack.c.0.s8 %v2886
      %v2888 = vlaneseq
      %v2889 = vshrl.u32 %v2888, 7
      %v2890 = vsub.s32 %v2887, %v2889
      %v2891 = vrot.slane %v2854, %v2890
      %v2892 = vcombine.low %v2877, %v2884
      %v2894 = vunpack.c.l.s4 1966171168
      %v2895 = vunpack.c.0.s8 %v2894
      %v2896 = vlaneseq
      %v2897 = vshrl.u32 %v2896, 7
      %v2898 = vsub.s32 %v2895, %v2897
      %v2899 = vrot.slane %v2892, %v2898
      %v2901 = vunpack.c.l.s4 1966171168
      %v2902 = vunpack.c.0.s8 %v2901
      %v2903 = vlaneseq
      %v2904 = vshrl.u32 %v2903, 7
      %v2905 = vsub.s32 %v2902, %v2904
      %v2906 = vrot.slane %v2891, %v2905
      %v2907 = vcombine.low %v2899, %v2906
      %v2916 = vunpack.c.l.b16 %v2856
      %v2917 = vunpack.c.l.b16 %v2857
      %v2918 = vunpack.c.l.b16 %v2858
      %v2919 = vunpack.c.l.b16 %v2859
      %v2920 = vunpack.c.l.b16 %v2860
      %v2921 = vunpack.c.l.b16 %v2861
      %v2922 = vunpack.c.l.b16 %v2862
      %v2923 = vunpack.c.l.b16 %v2863
      %v2924 = vpack.c.b16 %v2917, %v2916
      %v2925 = vpack.c.b16 %v2919, %v2918
      %v2926 = vpack.c.b16 %v2921, %v2920
      %v2927 = vpack.c.b16 %v2923, %v2922
      %v2933 = vsel %vm352, %v2907, 0
      %2935 = vmatprep.subr.bf16.mxu0 0
      %2936 = vmatpush1.bf16.msra.mxu0 %v2924
      %2937 = vmatprep.subr.bf16.mxu0 0
      %2938 = vmatpush1.bf16.msra.mxu0 %v2925
      %2939 = vmatprep.subr.bf16.mxu0 0
      %2940 = vmatpush1.bf16.msra.mxu0 %v2926
      %2941 = vmatprep.subr.bf16.mxu0 0
      %2942 = vmatpush1.bf16.msra.mxu0 %v2927
      %2943 = vmatprep.subr.bf16.mxu0 0
      %2944 = vmatpush1.bf16.msra.mxu0 0
      %2945 = vmatprep.subr.bf16.mxu0 0
      %2946 = vmatpush1.bf16.msra.mxu0 0
      %2947 = vmatprep.subr.bf16.mxu0 0
      %2948 = vmatpush1.bf16.msra.mxu0 0
      %2949 = vmatprep.subr.bf16.mxu0 0
      %2950 = vmatpush1.bf16.msra.mxu0 0
      %2951 = vmatprep.subr.bf16.mxu0 0
      %2952 = vmatpush1.bf16.msra.mxu0 0
      %2953 = vmatprep.subr.bf16.mxu0 0
      %2954 = vmatpush1.bf16.msra.mxu0 0
      %2955 = vmatprep.subr.bf16.mxu0 0
      %2956 = vmatpush1.bf16.msra.mxu0 0
      %2957 = vmatprep.subr.bf16.mxu0 0
      %2958 = vmatpush1.bf16.msra.mxu0 0
      %2959 = vmatprep.subr.bf16.mxu0 0
      %2960 = vmatpush1.bf16.msra.mxu0 0
      %2961 = vmatprep.subr.bf16.mxu0 0
      %2962 = vmatpush1.bf16.msra.mxu0 0
      %2963 = vmatprep.subr.bf16.mxu0 0
      %2964 = vmatpush1.bf16.msra.mxu0 0
      %2965 = vmatprep.subr.bf16.mxu0 0
      %2966 = vmatpush1.bf16.msra.mxu0 0
      %2967 = vmatprep.mubr.bf16.mxu0 0
      %2968 = vmatmul.mubr.bf16.gmra.mrb[0].mxu0 %v2933
      %v2969 = vpop.f32.mrb[0].mxu0
      %v2970 = vadd.f32 0.0, %v2969
      %v2971 = vpop.f32.mrb[0].mxu0
      %v2972 = vpop.f32.mrb[0].mxu0
      %v2973 = vadd.f32 0.0, %v2972
      %v2974 = vpop.f32.mrb[0].mxu0
      %2975 = vdwg.mxu0
      %v2976 = vadd.f32 %v2772, %v2970
      %v2977 = vadd.f32 %v2773, %v2973
      %v2978 = vld [vmem:[%s2569] sm:$0x6]
      %v2979 = vld [vmem:[%s2569 + $0x4] sm:$0x6]
      %v2980 = vld [vmem:[%s2569 + $0x8] sm:$0x6]
      %v2985 = vunpack.c.l.s4 1966171168
      %v2986 = vunpack.c.0.s8 %v2985
      %v2987 = vlaneseq
      %v2988 = vshrl.u32 %v2987, 7
      %v2989 = vsub.s32 %v2986, %v2988
      %v2990 = vrot.slane %v2978, %v2989
      %v2991 = vcombine.high %v2990, %v2990
      %v2993 = vunpack.c.l.s4 1966171168
      %v2994 = vunpack.c.0.s8 %v2993
      %v2995 = vlaneseq
      %v2996 = vshrl.u32 %v2995, 7
      %v2997 = vsub.s32 %v2994, %v2996
      %v2998 = vrot.slane %v2990, %v2997
      %v3000 = vunpack.c.l.s4 1966171168
      %v3001 = vunpack.c.0.s8 %v3000
      %v3002 = vlaneseq
      %v3003 = vshrl.u32 %v3002, 7
      %v3004 = vsub.s32 %v3001, %v3003
      %v3005 = vrot.slane %v2991, %v3004
      %v3006 = vcombine.high %v2998, %v2998
      %v3008 = vunpack.c.l.s4 1966171168
      %v3009 = vunpack.c.0.s8 %v3008
      %v3010 = vlaneseq
      %v3011 = vshrl.u32 %v3010, 7
      %v3012 = vsub.s32 %v3009, %v3011
      %v3013 = vrot.slane %v2979, %v3012
      %v3014 = vcombine.high %v3013, %v3013
      %v3016 = vunpack.c.l.s4 1966171168
      %v3017 = vunpack.c.0.s8 %v3016
      %v3018 = vlaneseq
      %v3019 = vshrl.u32 %v3018, 7
      %v3020 = vsub.s32 %v3017, %v3019
      %v3021 = vrot.slane %v3013, %v3020
      %v3023 = vunpack.c.l.s4 1966171168
      %v3024 = vunpack.c.0.s8 %v3023
      %v3025 = vlaneseq
      %v3026 = vshrl.u32 %v3025, 7
      %v3027 = vsub.s32 %v3024, %v3026
      %v3028 = vrot.slane %v3014, %v3027
      %v3029 = vcombine.high %v3021, %v3021
      %v3031 = vunpack.c.l.s4 1966171168
      %v3032 = vunpack.c.0.s8 %v3031
      %v3033 = vlaneseq
      %v3034 = vshrl.u32 %v3033, 7
      %v3035 = vsub.s32 %v3032, %v3034
      %v3036 = vrot.slane %v2980, %v3035
      %v3037 = vcombine.high %v3036, %v3036
      %v3039 = vunpack.c.l.s4 1966171168
      %v3040 = vunpack.c.0.s8 %v3039
      %v3041 = vlaneseq
      %v3042 = vshrl.u32 %v3041, 7
      %v3043 = vsub.s32 %v3040, %v3042
      %v3044 = vrot.slane %v3036, %v3043
      %v3046 = vunpack.c.l.s4 1966171168
      %v3047 = vunpack.c.0.s8 %v3046
      %v3048 = vlaneseq
      %v3049 = vshrl.u32 %v3048, 7
      %v3050 = vsub.s32 %v3047, %v3049
      %v3051 = vrot.slane %v3037, %v3050
      %v3052 = vcombine.high %v3044, %v3044
      %v3053 = vunpack.i.l.s16 %v3005
      %v3054 = vunpack.i.h.s16 %v3005
      %v3055 = vunpack.i.l.s16 %v3006
      %v3056 = vunpack.i.l.s16 %v3028
      %v3057 = vunpack.i.h.s16 %v3028
      %v3058 = vunpack.i.l.s16 %v3029
      %v3059 = vunpack.i.l.s16 %v3051
      %v3060 = vunpack.i.h.s16 %v3051
      %v3061 = vunpack.i.l.s16 %v3052
      %s3062 = scalar_lea.vmem %s1, 448
      %v3063 = vld [vmem:[%s3062] sm:$0xf]
      %v3064 = vld [vmem:[%s3062 + $0x4] sm:$0xf]
      %v3065 = vld [vmem:[%s3062 + $0x8] sm:$0xf]
      %v3066 = vld [vmem:[%s3062 + $0xc] sm:$0xf]
      %v3067 = vld [vmem:[%s3062 + $0x10] sm:$0xf]
      %v3068 = vld [vmem:[%s3062 + $0x14] sm:$0xf]
      %v3069 = vld [vmem:[%s3062 + $0x18] sm:$0xf]
      %v3070 = vld [vmem:[%s3062 + $0x1c] sm:$0xf]
      %v3071 = vpack.i.b16 %v3054, %v3053
      %v3072 = vpack.i.b16 %v3056, %v3055
      %v3073 = vpack.i.b16 %v3058, %v3057
      %v3074 = vpack.i.b16 %v3060, %v3059
      %v3076 = vcombine.low %v3071, %v3072
      %v3077 = vcombine.low %v3073, %v3074
      %v3079 = vunpack.c.l.s4 1966171168
      %v3080 = vunpack.c.0.s8 %v3079
      %v3081 = vlaneseq
      %v3082 = vshrl.u32 %v3081, 7
      %v3083 = vsub.s32 %v3080, %v3082
      %v3084 = vrot.slane %v3076, %v3083
      %v3086 = vunpack.c.l.s4 1966171168
      %v3087 = vunpack.c.0.s8 %v3086
      %v3088 = vlaneseq
      %v3089 = vshrl.u32 %v3088, 7
      %v3090 = vsub.s32 %v3087, %v3089
      %v3091 = vrot.slane %v3077, %v3090
      %v3093 = vunpack.c.l.s4 1966171168
      %v3094 = vunpack.c.0.s8 %v3093
      %v3095 = vlaneseq
      %v3096 = vshrl.u32 %v3095, 7
      %v3097 = vsub.s32 %v3094, %v3096
      %v3098 = vrot.slane %v3061, %v3097
      %v3099 = vcombine.low %v3084, %v3091
      %v3101 = vunpack.c.l.s4 1966171168
      %v3102 = vunpack.c.0.s8 %v3101
      %v3103 = vlaneseq
      %v3104 = vshrl.u32 %v3103, 7
      %v3105 = vsub.s32 %v3102, %v3104
      %v3106 = vrot.slane %v3099, %v3105
      %v3108 = vunpack.c.l.s4 1966171168
      %v3109 = vunpack.c.0.s8 %v3108
      %v3110 = vlaneseq
      %v3111 = vshrl.u32 %v3110, 7
      %v3112 = vsub.s32 %v3109, %v3111
      %v3113 = vrot.slane %v3098, %v3112
      %v3114 = vcombine.low %v3106, %v3113
      %v3123 = vunpack.c.l.b16 %v3063
      %v3124 = vunpack.c.l.b16 %v3064
      %v3125 = vunpack.c.l.b16 %v3065
      %v3126 = vunpack.c.l.b16 %v3066
      %v3127 = vunpack.c.l.b16 %v3067
      %v3128 = vunpack.c.l.b16 %v3068
      %v3129 = vunpack.c.l.b16 %v3069
      %v3130 = vunpack.c.l.b16 %v3070
      %v3131 = vpack.c.b16 %v3124, %v3123
      %v3132 = vpack.c.b16 %v3126, %v3125
      %v3133 = vpack.c.b16 %v3128, %v3127
      %v3134 = vpack.c.b16 %v3130, %v3129
      %v3140 = vsel %vm352, %v3114, 0
      %3142 = vmatprep.subr.bf16.mxu0 0
      %3143 = vmatpush1.bf16.msra.mxu0 %v3131
      %3144 = vmatprep.subr.bf16.mxu0 0
      %3145 = vmatpush1.bf16.msra.mxu0 %v3132
      %3146 = vmatprep.subr.bf16.mxu0 0
      %3147 = vmatpush1.bf16.msra.mxu0 %v3133
      %3148 = vmatprep.subr.bf16.mxu0 0
      %3149 = vmatpush1.bf16.msra.mxu0 %v3134
      %3150 = vmatprep.subr.bf16.mxu0 0
      %3151 = vmatpush1.bf16.msra.mxu0 0
      %3152 = vmatprep.subr.bf16.mxu0 0
      %3153 = vmatpush1.bf16.msra.mxu0 0
      %3154 = vmatprep.subr.bf16.mxu0 0
      %3155 = vmatpush1.bf16.msra.mxu0 0
      %3156 = vmatprep.subr.bf16.mxu0 0
      %3157 = vmatpush1.bf16.msra.mxu0 0
      %3158 = vmatprep.subr.bf16.mxu0 0
      %3159 = vmatpush1.bf16.msra.mxu0 0
      %3160 = vmatprep.subr.bf16.mxu0 0
      %3161 = vmatpush1.bf16.msra.mxu0 0
      %3162 = vmatprep.subr.bf16.mxu0 0
      %3163 = vmatpush1.bf16.msra.mxu0 0
      %3164 = vmatprep.subr.bf16.mxu0 0
      %3165 = vmatpush1.bf16.msra.mxu0 0
      %3166 = vmatprep.subr.bf16.mxu0 0
      %3167 = vmatpush1.bf16.msra.mxu0 0
      %3168 = vmatprep.subr.bf16.mxu0 0
      %3169 = vmatpush1.bf16.msra.mxu0 0
      %3170 = vmatprep.subr.bf16.mxu0 0
      %3171 = vmatpush1.bf16.msra.mxu0 0
      %3172 = vmatprep.subr.bf16.mxu0 0
      %3173 = vmatpush1.bf16.msra.mxu0 0
      %3174 = vmatprep.mubr.bf16.mxu0 0
      %3175 = vmatmul.mubr.bf16.gmra.mrb[0].mxu0 %v3140
      %v3176 = vpop.f32.mrb[0].mxu0
      %v3177 = vadd.f32 0.0, %v3176
      %v3178 = vpop.f32.mrb[0].mxu0
      %v3179 = vpop.f32.mrb[0].mxu0
      %v3180 = vadd.f32 0.0, %v3179
      %v3181 = vpop.f32.mrb[0].mxu0
      %3182 = vdwg.mxu0
      %v3183 = vadd.f32 %v2976, %v3177
      %v3184 = vadd.f32 %v2977, %v3180
      %v3185 = vld [vmem:[%s2569] sm:$0x6]
      %v3186 = vld [vmem:[%s2569 + $0x4] sm:$0x6]
      %v3187 = vld [vmem:[%s2569 + $0x8] sm:$0x6]
      %v3192 = vunpack.c.l.s4 1966171168
      %v3193 = vunpack.c.0.s8 %v3192
      %v3194 = vlaneseq
      %v3195 = vshrl.u32 %v3194, 7
      %v3196 = vsub.s32 %v3193, %v3195
      %v3197 = vrot.slane %v3185, %v3196
      %v3198 = vcombine.high %v3197, %v3197
      %v3200 = vunpack.c.l.s4 1966171168
      %v3201 = vunpack.c.0.s8 %v3200
      %v3202 = vlaneseq
      %v3203 = vshrl.u32 %v3202, 7
      %v3204 = vsub.s32 %v3201, %v3203
      %v3205 = vrot.slane %v3197, %v3204
      %v3207 = vunpack.c.l.s4 1966171168
      %v3208 = vunpack.c.0.s8 %v3207
      %v3209 = vlaneseq
      %v3210 = vshrl.u32 %v3209, 7
      %v3211 = vsub.s32 %v3208, %v3210
      %v3212 = vrot.slane %v3198, %v3211
      %v3213 = vcombine.high %v3205, %v3205
      %v3215 = vunpack.c.l.s4 1966171168
      %v3216 = vunpack.c.0.s8 %v3215
      %v3217 = vlaneseq
      %v3218 = vshrl.u32 %v3217, 7
      %v3219 = vsub.s32 %v3216, %v3218
      %v3220 = vrot.slane %v3186, %v3219
      %v3221 = vcombine.high %v3220, %v3220
      %v3223 = vunpack.c.l.s4 1966171168
      %v3224 = vunpack.c.0.s8 %v3223
      %v3225 = vlaneseq
      %v3226 = vshrl.u32 %v3225, 7
      %v3227 = vsub.s32 %v3224, %v3226
      %v3228 = vrot.slane %v3220, %v3227
      %v3230 = vunpack.c.l.s4 1966171168
      %v3231 = vunpack.c.0.s8 %v3230
      %v3232 = vlaneseq
      %v3233 = vshrl.u32 %v3232, 7
      %v3234 = vsub.s32 %v3231, %v3233
      %v3235 = vrot.slane %v3221, %v3234
      %v3236 = vcombine.high %v3228, %v3228
      %v3238 = vunpack.c.l.s4 1966171168
      %v3239 = vunpack.c.0.s8 %v3238
      %v3240 = vlaneseq
      %v3241 = vshrl.u32 %v3240, 7
      %v3242 = vsub.s32 %v3239, %v3241
      %v3243 = vrot.slane %v3187, %v3242
      %v3244 = vcombine.high %v3243, %v3243
      %v3246 = vunpack.c.l.s4 1966171168
      %v3247 = vunpack.c.0.s8 %v3246
      %v3248 = vlaneseq
      %v3249 = vshrl.u32 %v3248, 7
      %v3250 = vsub.s32 %v3247, %v3249
      %v3251 = vrot.slane %v3243, %v3250
      %v3253 = vunpack.c.l.s4 1966171168
      %v3254 = vunpack.c.0.s8 %v3253
      %v3255 = vlaneseq
      %v3256 = vshrl.u32 %v3255, 7
      %v3257 = vsub.s32 %v3254, %v3256
      %v3258 = vrot.slane %v3244, %v3257
      %v3259 = vcombine.high %v3251, %v3251
      %v3260 = vunpack.i.h.s16 %v3212
      %v3261 = vunpack.i.l.s16 %v3213
      %v3262 = vunpack.i.h.s16 %v3213
      %v3263 = vunpack.i.h.s16 %v3235
      %v3264 = vunpack.i.l.s16 %v3236
      %v3265 = vunpack.i.h.s16 %v3236
      %v3266 = vunpack.i.h.s16 %v3258
      %v3267 = vunpack.i.l.s16 %v3259
      %v3268 = vunpack.i.h.s16 %v3259
      %s3269 = scalar_lea.vmem %s1, 480
      %v3270 = vld [vmem:[%s3269] sm:$0xf]
      %v3271 = vld [vmem:[%s3269 + $0x4] sm:$0xf]
      %v3272 = vld [vmem:[%s3269 + $0x8] sm:$0xf]
      %v3273 = vld [vmem:[%s3269 + $0xc] sm:$0xf]
      %v3274 = vld [vmem:[%s3269 + $0x10] sm:$0xf]
      %v3275 = vld [vmem:[%s3269 + $0x14] sm:$0xf]
      %v3276 = vld [vmem:[%s3269 + $0x18] sm:$0xf]
      %v3277 = vld [vmem:[%s3269 + $0x1c] sm:$0xf]
      %v3278 = vpack.i.b16 %v3261, %v3260
      %v3279 = vpack.i.b16 %v3263, %v3262
      %v3280 = vpack.i.b16 %v3265, %v3264
      %v3281 = vpack.i.b16 %v3267, %v3266
      %v3283 = vcombine.low %v3278, %v3279
      %v3284 = vcombine.low %v3280, %v3281
      %v3286 = vunpack.c.l.s4 1966171168
      %v3287 = vunpack.c.0.s8 %v3286
      %v3288 = vlaneseq
      %v3289 = vshrl.u32 %v3288, 7
      %v3290 = vsub.s32 %v3287, %v3289
      %v3291 = vrot.slane %v3283, %v3290
      %v3293 = vunpack.c.l.s4 1966171168
      %v3294 = vunpack.c.0.s8 %v3293
      %v3295 = vlaneseq
      %v3296 = vshrl.u32 %v3295, 7
      %v3297 = vsub.s32 %v3294, %v3296
      %v3298 = vrot.slane %v3284, %v3297
      %v3300 = vunpack.c.l.s4 1966171168
      %v3301 = vunpack.c.0.s8 %v3300
      %v3302 = vlaneseq
      %v3303 = vshrl.u32 %v3302, 7
      %v3304 = vsub.s32 %v3301, %v3303
      %v3305 = vrot.slane %v3268, %v3304
      %v3306 = vcombine.low %v3291, %v3298
      %v3308 = vunpack.c.l.s4 1966171168
      %v3309 = vunpack.c.0.s8 %v3308
      %v3310 = vlaneseq
      %v3311 = vshrl.u32 %v3310, 7
      %v3312 = vsub.s32 %v3309, %v3311
      %v3313 = vrot.slane %v3306, %v3312
      %v3315 = vunpack.c.l.s4 1966171168
      %v3316 = vunpack.c.0.s8 %v3315
      %v3317 = vlaneseq
      %v3318 = vshrl.u32 %v3317, 7
      %v3319 = vsub.s32 %v3316, %v3318
      %v3320 = vrot.slane %v3305, %v3319
      %v3321 = vcombine.low %v3313, %v3320
      %v3330 = vunpack.c.l.b16 %v3270
      %v3331 = vunpack.c.l.b16 %v3271
      %v3332 = vunpack.c.l.b16 %v3272
      %v3333 = vunpack.c.l.b16 %v3273
      %v3334 = vunpack.c.l.b16 %v3274
      %v3335 = vunpack.c.l.b16 %v3275
      %v3336 = vunpack.c.l.b16 %v3276
      %v3337 = vunpack.c.l.b16 %v3277
      %v3338 = vpack.c.b16 %v3331, %v3330
      %v3339 = vpack.c.b16 %v3333, %v3332
      %v3340 = vpack.c.b16 %v3335, %v3334
      %v3341 = vpack.c.b16 %v3337, %v3336
      %v3347 = vsel %vm352, %v3321, 0
      %3349 = vmatprep.subr.bf16.mxu0 0
      %3350 = vmatpush1.bf16.msra.mxu0 %v3338
      %3351 = vmatprep.subr.bf16.mxu0 0
      %3352 = vmatpush1.bf16.msra.mxu0 %v3339
      %3353 = vmatprep.subr.bf16.mxu0 0
      %3354 = vmatpush1.bf16.msra.mxu0 %v3340
      %3355 = vmatprep.subr.bf16.mxu0 0
      %3356 = vmatpush1.bf16.msra.mxu0 %v3341
      %3357 = vmatprep.subr.bf16.mxu0 0
      %3358 = vmatpush1.bf16.msra.mxu0 0
      %3359 = vmatprep.subr.bf16.mxu0 0
      %3360 = vmatpush1.bf16.msra.mxu0 0
      %3361 = vmatprep.subr.bf16.mxu0 0
      %3362 = vmatpush1.bf16.msra.mxu0 0
      %3363 = vmatprep.subr.bf16.mxu0 0
      %3364 = vmatpush1.bf16.msra.mxu0 0
      %3365 = vmatprep.subr.bf16.mxu0 0
      %3366 = vmatpush1.bf16.msra.mxu0 0
      %3367 = vmatprep.subr.bf16.mxu0 0
      %3368 = vmatpush1.bf16.msra.mxu0 0
      %3369 = vmatprep.subr.bf16.mxu0 0
      %3370 = vmatpush1.bf16.msra.mxu0 0
      %3371 = vmatprep.subr.bf16.mxu0 0
      %3372 = vmatpush1.bf16.msra.mxu0 0
      %3373 = vmatprep.subr.bf16.mxu0 0
      %3374 = vmatpush1.bf16.msra.mxu0 0
      %3375 = vmatprep.subr.bf16.mxu0 0
      %3376 = vmatpush1.bf16.msra.mxu0 0
      %3377 = vmatprep.subr.bf16.mxu0 0
      %3378 = vmatpush1.bf16.msra.mxu0 0
      %3379 = vmatprep.subr.bf16.mxu0 0
      %3380 = vmatpush1.bf16.msra.mxu0 0
      %3381 = vmatprep.mubr.bf16.mxu0 0
      %3382 = vmatmul.mubr.bf16.gmra.mrb[0].mxu0 %v3347
      %v3383 = vpop.f32.mrb[0].mxu0
      %v3384 = vadd.f32 0.0, %v3383
      %v3385 = vpop.f32.mrb[0].mxu0
      %v3386 = vpop.f32.mrb[0].mxu0
      %v3387 = vadd.f32 0.0, %v3386
      %v3388 = vpop.f32.mrb[0].mxu0
      %3389 = vdwg.mxu0
      %v3390 = vadd.f32 %v3183, %v3384
      %v3391 = vadd.f32 %v3184, %v3387
      %3392 = vst [vmem:[%s177] sm:$0xff] %v3390
      %3393 = vst [vmem:[%s177 + $0x8] sm:$0x1] %v3391
      %vm3394 = vcmask 1040384
      %v3395 = vsel %vm3394, %v3391, 0.0
      %v3396 = vadd.f32 %v3390, %v3395
      %v3397 = vrot.slane %v3396, 4
      %v3398 = vadd.f32 %v3396, %v3397
      %v3399 = vrot.slane %v3398, 2
      %v3400 = vadd.f32 %v3398, %v3399
      %v3401 = vrot.slane %v3400, 1
      %v3402 = vadd.f32 %v3400, %v3401
      %v3403 = vmul.f32 %v3390, %v3390
      %v3404 = vmul.f32 %v3391, %v3391
      %v3405 = vsel %vm3394, %v3404, 0.0
      %v3406 = vadd.f32 %v3403, %v3405
      %v3407 = vrot.slane %v3406, 4
      %v3408 = vadd.f32 %v3406, %v3407
      %v3409 = vrot.slane %v3408, 2
      %v3410 = vadd.f32 %v3408, %v3409
      %v3411 = vrot.slane %v3410, 1
      %v3412 = vadd.f32 %v3410, %v3411
      %v3413 = vsel %vm3394, %v3402, %v3412
      %3414 = vst [vmem:[%s181] sm:$0x3] %v3413
      %p3415 = scmp.lt.s32.totalorder %s15, 1
      %s3416 = scalar_select %p3415, %s15, 1
      %s3417 = smul.addr %s3416, 2
      %s3418 = smul.addr %s3417, 8
      %s3419 = scalar_lea.vmem %s2, %s3418
      %p3420 = scmp.lt.s32.totalorder %s15, 1
      %s3421 = scalar_select %p3420, %s15, 1
      %s3422 = smul.addr %s3421, 2
      %s3423 = scalar_lea.vmem %s3, %s3422
      // Predicated region
      $region29: #{_lambda_.13} parent=27 // pred_check
        %p3424 = pneg %p80
      $region30: #{_lambda_.13} parent=27 // pred_check_branch
        %3426 = sbr.rel (%p3424) target = $region32
      $region31: #{_lambda_.13} parent=27 // pred_region
        _
      $region32: #{_lambda_.13} parent=27 // pred_fallthru
        _
      // Predicated region
      $region33: #{_lambda_.13} parent=27 // pred_check
        %p3427 = pneg %p106
      $region34: #{_lambda_.13} parent=27 // pred_check_branch
        %3429 = sbr.rel (%p3427) target = $region36
      $region35: #{_lambda_.13} parent=27 // pred_region
        _
      $region36: #{_lambda_.13} parent=27 // pred_fallthru
        _
    $region28: #{_lambda_.13} parent=5 // pred_fallthru
      _
    %p3430 = scmp.le.s32.totalorder 2, %s10
    // Predicated region
    $region37: #{_lambda_.13} parent=5 // pred_check
      %p3431 = pneg %p3430
    $region38: #{_lambda_.13} parent=5 // pred_check_branch
      %3433 = sbr.rel (%p3431) target = $region40
    $region39: #{_lambda_.13} parent=5 // pred_region
      %s3434 = ssub.s32 %s10, 2
      // Predicated region
      $region41: #{_lambda_.13} parent=39 // pred_check
        %p3435 = pneg %p86
      $region42: #{_lambda_.13} parent=39 // pred_check_branch
        %3437 = sbr.rel (%p3435) target = $region44
      $region43: #{_lambda_.13} parent=39 // pred_region
        %p3438 = scmp.lt.s32.totalorder %s16, 1
        %s3439 = scalar_select %p3438, %s16, 1
        %s3440 = smul.addr %s3439, 2
        %s3441 = smul.addr %s3440, 8
        %s3442 = scalar_lea.vmem %s2, %s3441
      $region44: #{_lambda_.13} parent=39 // pred_fallthru
        _
      // Predicated region
      $region45: #{_lambda_.13} parent=39 // pred_check
        %p3443 = pneg %p112
      $region46: #{_lambda_.13} parent=39 // pred_check_branch
        %3445 = sbr.rel (%p3443) target = $region48
      $region47: #{_lambda_.13} parent=39 // pred_region
        %p3446 = scmp.lt.s32.totalorder %s16, 1
        %s3447 = scalar_select %p3446, %s16, 1
        %s3448 = smul.addr %s3447, 2
        %s3449 = scalar_lea.vmem %s3, %s3448
      $region48: #{_lambda_.13} parent=39 // pred_fallthru
        _
    $region40: #{_lambda_.13} parent=5 // pred_fallthru
      _
  $region6: #{_lambda_.13} parent=0 // loop_footer
    %s14 = sadd.s32 1, %s10
  $region7: #{_lambda_.13} parent=0 // loop_footer_branch
    %9 = sbr.rel target = $region3
  $region8: #{_lambda_.13} parent=0 // loop_exit
    _

// kernel: _lambda_.15
$region0: #{_lambda_.15}
  #allocation0 [shape = 'u32[]', space=smem, size = 0x4, offset = 0x4, fixed_abs, tag = 'smem constant byte address 0x4 - core index']
  #allocation1 [shape = 'u32[144,128]{1,0:T(1,128)}', space=vmem, size = 0x12000, scoped, tag = 'internal scratch']
  %s0 = inlined_call_operand.vmem [shape: bf16[2,5,1,5,128], index: 0, kind: input, shape index: {}]
  %s1 = inlined_call_operand.vmem [shape: bf16[4,4,128,128], index: 1, kind: input, shape index: {}]
  %s2 = inlined_call_operand.vmem [shape: f32[1,128], index: 2, kind: input, shape index: {}]
  %s3 = inlined_call_operand.vmem [shape: f32[2,4,128], index: 3, kind: output, shape index: {}]
  %s4 = sld [smem:[#allocation0]]
  $region45: #{_lambda_.15} parent=0
    _
  %s6 = ssub.s32 1, %s4
  %s7 = scalar_select 0, %s6, %s4
  loop: start=0, step=1, limit=4
  $region2: #{_lambda_.15} parent=0 // loop_pre_header
    _
  $region3: #{_lambda_.15} parent=0 // loop_header
    %s9 = sphi 0, %s13
    %p10 = scmp.ge.s32.totalorder %s9, 4
    %s19 = sphi 0, %s21
    %s22 = sphi 0, %s19
    %s23 = sphi 0, %s22
    %s39 = sphi 0, %s23
    %s43 = sphi 0, %s43
    %s45 = sphi 0, %s43
    %s46 = sphi 0, %s45
    %s60 = sphi 0, %s46
    %s64 = sphi 0, %s64
    %s66 = sphi 0, %s64
    %s67 = sphi 0, %s66
    %s81 = sphi 0, %s67
    %s87 = sphi 0, %s89
    %s90 = sphi 0, %s87
    %s91 = sphi 0, %s90
    %s107 = sphi 0, %s91
  $region4: #{_lambda_.15} parent=0 // loop_header_branch
    %12 = sbr.rel (%p10) target = $region8
  $region5: #{_lambda_.15} parent=0 // loop_body
    %s14 = ssub.s32 %s9, 1
    %s15 = ssub.s32 %s9, 2
    %s16 = sadd.s32 %s9, 1
    %s17 = ssub.s32 %s9, %s16
    %p18 = scmp.eq.s32.totalorder %s17, 0
    %s20 = sadd.s32 %s19, 1
    %s21 = scalar_select %p18, %s19, %s20
    %p24 = pneg %p18
    %p25 = scmp.eq.s32.totalorder %s9, 1
    %p26 = por %p24, %p25
    %p27 = scmp.ne.s32.totalorder %s19, %s22
    %p28 = scmp.eq.s32.totalorder %s9, 0
    %p29 = por %p27, %p28
    %p30 = scmp.ne.s32.totalorder %s19, %s22
    %p31 = scmp.eq.s32.totalorder %s14, 1
    %p32 = por %p30, %p31
    %p33 = scmp.ne.s32.totalorder %s22, %s23
    %p34 = scmp.eq.s32.totalorder %s14, 0
    %p35 = por %p33, %p34
    %p36 = scmp.ne.s32.totalorder %s22, %s23
    %p37 = scmp.eq.s32.totalorder %s15, 1
    %p38 = por %p36, %p37
    %p40 = scmp.ne.s32.totalorder %s23, %s39
    %p41 = scmp.eq.s32.totalorder %s15, 0
    %p42 = por %p40, %p41
    %s44 = sadd.s32 %s43, 1
    %p47 = scmp.eq.s32.totalorder %s9, 1
    %p48 = scmp.ne.s32.totalorder %s43, %s45
    %p49 = scmp.eq.s32.totalorder %s9, 0
    %p50 = por %p48, %p49
    %p51 = scmp.ne.s32.totalorder %s43, %s45
    %p52 = scmp.eq.s32.totalorder %s14, 1
    %p53 = por %p51, %p52
    %p54 = scmp.ne.s32.totalorder %s45, %s46
    %p55 = scmp.eq.s32.totalorder %s14, 0
    %p56 = por %p54, %p55
    %p57 = scmp.ne.s32.totalorder %s45, %s46
    %p58 = scmp.eq.s32.totalorder %s15, 1
    %p59 = por %p57, %p58
    %p61 = scmp.ne.s32.totalorder %s46, %s60
    %p62 = scmp.eq.s32.totalorder %s15, 0
    %p63 = por %p61, %p62
    %s65 = sadd.s32 %s64, 1
    %p68 = scmp.eq.s32.totalorder %s9, 1
    %p69 = scmp.ne.s32.totalorder %s64, %s66
    %p70 = scmp.eq.s32.totalorder %s9, 0
    %p71 = por %p69, %p70
    %p72 = scmp.ne.s32.totalorder %s64, %s66
    %p73 = scmp.eq.s32.totalorder %s14, 1
    %p74 = por %p72, %p73
    %p75 = scmp.ne.s32.totalorder %s66, %s67
    %p76 = scmp.eq.s32.totalorder %s14, 0
    %p77 = por %p75, %p76
    %p78 = scmp.ne.s32.totalorder %s66, %s67
    %p79 = scmp.eq.s32.totalorder %s15, 1
    %p80 = por %p78, %p79
    %p82 = scmp.ne.s32.totalorder %s67, %s81
    %p83 = scmp.eq.s32.totalorder %s15, 0
    %p84 = por %p82, %p83
    %s85 = ssub.s32 %s9, %s16
    %p86 = scmp.eq.s32.totalorder %s85, 0
    %s88 = sadd.s32 %s87, 1
    %s89 = scalar_select %p86, %s87, %s88
    %p92 = pneg %p86
    %p93 = scmp.eq.s32.totalorder %s9, 1
    %p94 = por %p92, %p93
    %p95 = scmp.ne.s32.totalorder %s87, %s90
    %p96 = scmp.eq.s32.totalorder %s9, 0
    %p97 = por %p95, %p96
    %p98 = scmp.ne.s32.totalorder %s87, %s90
    %p99 = scmp.eq.s32.totalorder %s14, 1
    %p100 = por %p98, %p99
    %p101 = scmp.ne.s32.totalorder %s90, %s91
    %p102 = scmp.eq.s32.totalorder %s14, 0
    %p103 = por %p101, %p102
    %p104 = scmp.ne.s32.totalorder %s90, %s91
    %p105 = scmp.eq.s32.totalorder %s15, 1
    %p106 = por %p104, %p105
    %p108 = scmp.ne.s32.totalorder %s91, %s107
    %p109 = scmp.eq.s32.totalorder %s15, 0
    %p110 = por %p108, %p109
    %p111 = scmp.le.s32.totalorder 1, %s9
    %p112 = scmp.lt.s32.totalorder %s9, 3
    %p113 = pnand %p111, %p112
    %p114 = pneg %p113
    // Predicated region
    $region9: #{_lambda_.15} parent=5 // pred_check
      _
    $region10: #{_lambda_.15} parent=5 // pred_check_branch
      %116 = sbr.rel (%p113) target = $region12
    $region11: #{_lambda_.15} parent=5 // pred_region
      %s117 = ssub.s32 %s9, 1
      // Predicated region
      $region13: #{_lambda_.15} parent=11 // pred_check
        %p118 = pneg %p56
      $region14: #{_lambda_.15} parent=11 // pred_check_branch
        %120 = sbr.rel (%p118) target = $region16
      $region15: #{_lambda_.15} parent=11 // pred_region
        _
      $region16: #{_lambda_.15} parent=11 // pred_fallthru
        _
      // Predicated region
      $region17: #{_lambda_.15} parent=11 // pred_check
        %p121 = pneg %p77
      $region18: #{_lambda_.15} parent=11 // pred_check_branch
        %123 = sbr.rel (%p121) target = $region20
      $region19: #{_lambda_.15} parent=11 // pred_region
        _
      $region20: #{_lambda_.15} parent=11 // pred_fallthru
        _
    $region12: #{_lambda_.15} parent=5 // pred_fallthru
      _
    %p124 = scmp.lt.s32.totalorder %s9, 2
    // Predicated region
    $region21: #{_lambda_.15} parent=5 // pred_check
      %p125 = pneg %p124
    $region22: #{_lambda_.15} parent=5 // pred_check_branch
      %127 = sbr.rel (%p125) target = $region24
    $region23: #{_lambda_.15} parent=5 // pred_region
      // Predicated region
      $region25: #{_lambda_.15} parent=23 // pred_check
        %p128 = pneg %p29
      $region26: #{_lambda_.15} parent=23 // pred_check_branch
        %130 = sbr.rel (%p128) target = $region28
      $region27: #{_lambda_.15} parent=23 // pred_region
        %p131 = scmp.lt.s32.totalorder %s9, 1
        %s132 = scalar_select %p131, %s9, 1
        %s133 = smul.addr %s132, 5
        %s134 = smul.addr %s133, 4
        %s135 = scalar_lea.vmem %s0, %s134
      $region28: #{_lambda_.15} parent=23 // pred_fallthru
        _
    $region24: #{_lambda_.15} parent=5 // pred_fallthru
      _
    %p136 = scmp.le.s32.totalorder 1, %s9
    %p137 = scmp.lt.s32.totalorder %s9, 3
    %p138 = pnand %p136, %p137
    %p139 = pneg %p138
    // Predicated region
    $region29: #{_lambda_.15} parent=5 // pred_check
      _
    $region30: #{_lambda_.15} parent=5 // pred_check_branch
      %141 = sbr.rel (%p138) target = $region32
    $region31: #{_lambda_.15} parent=5 // pred_region
      %s142 = ssub.s32 %s9, 1
      %p143 = scmp.lt.s32.totalorder %s14, 1
      %s144 = scalar_select %p143, %s14, 1
      %s145 = smul.addr %s144, 5
      %s146 = smul.addr %s145, 4
      %s147 = scalar_lea.vmem %s0, %s146
      %p148 = pneg %p35
      %p149 = pneg %p32
      %p150 = pneg %p56
      %p151 = pneg %p53
      %p152 = pneg %p77
      %p153 = pneg %p74
      %p154 = pneg %p103
      %p155 = pneg %p100
      %p156 = scmp.lt.s32.totalorder %s14, 1
      %s157 = scalar_select %p156, %s14, 1
      %s158 = smul.addr %s157, 4
      %s159 = scalar_lea.vmem %s3, %s158
      %p160 = scmp.lt.s32.totalorder %s14, 1
      %s161 = scalar_select %p160, %s14, 1
      %s162 = smul.addr %s161, 5
      %s163 = smul.addr %s162, 4
      %s164 = scalar_lea.vmem %s0, %s163
      %p165 = scmp.lt.s32.totalorder %s14, 1
      %s166 = scalar_select %p165, %s14, 1
      %s167 = smul.addr %s166, 4
      %s168 = scalar_lea.vmem %s3, %s167
      %v170 = vld [vmem:[%s164] sm:$0x1]
      %v171 = vld [vmem:[%s164 + $0x4] sm:$0x1]
      %v172 = vld [vmem:[%s1] sm:$0xf]
      %v173 = vld [vmem:[%s1 + $0x4] sm:$0xf]
      %v174 = vld [vmem:[%s1 + $0x8] sm:$0xf]
      %v175 = vld [vmem:[%s1 + $0xc] sm:$0xf]
      %v176 = vld [vmem:[%s1 + $0x10] sm:$0xf]
      %v177 = vld [vmem:[%s1 + $0x14] sm:$0xf]
      %v178 = vld [vmem:[%s1 + $0x18] sm:$0xf]
      %v179 = vld [vmem:[%s1 + $0x1c] sm:$0xf]
      %v180 = vld [vmem:[%s1 + $0x20] sm:$0xf]
      %v181 = vld [vmem:[%s1 + $0x24] sm:$0xf]
      %v182 = vld [vmem:[%s1 + $0x28] sm:$0xf]
      %v183 = vld [vmem:[%s1 + $0x2c] sm:$0xf]
      %v184 = vld [vmem:[%s1 + $0x30] sm:$0xf]
      %v185 = vld [vmem:[%s1 + $0x34] sm:$0xf]
      %v186 = vld [vmem:[%s1 + $0x38] sm:$0xf]
      %v187 = vld [vmem:[%s1 + $0x3c] sm:$0xf]
      %v188 = vld [vmem:[%s164] sm:$0x3]
      %v189 = vld [vmem:[%s164 + $0x4] sm:$0x3]
      %v193 = vunpack.c.l.s4 1966171168
      %v194 = vunpack.c.0.s8 %v193
      %v195 = vlaneseq
      %v196 = vshrl.u32 %v195, 7
      %v197 = vsub.s32 %v194, %v196
      %v198 = vrot.slane %v188, %v197
      %v199 = vcombine.high %v198, %v198
      %v201 = vunpack.c.l.s4 1966171168
      %v202 = vunpack.c.0.s8 %v201
      %v203 = vlaneseq
      %v204 = vshrl.u32 %v203, 7
      %v205 = vsub.s32 %v202, %v204
      %v206 = vrot.slane %v198, %v205
      %v208 = vunpack.c.l.s4 1966171168
      %v209 = vunpack.c.0.s8 %v208
      %v210 = vlaneseq
      %v211 = vshrl.u32 %v210, 7
      %v212 = vsub.s32 %v209, %v211
      %v213 = vrot.slane %v199, %v212
      %v215 = vunpack.c.l.s4 1966171168
      %v216 = vunpack.c.0.s8 %v215
      %v217 = vlaneseq
      %v218 = vshrl.u32 %v217, 7
      %v219 = vsub.s32 %v216, %v218
      %v220 = vrot.slane %v189, %v219
      %v221 = vcombine.high %v220, %v220
      %v223 = vunpack.c.l.s4 1966171168
      %v224 = vunpack.c.0.s8 %v223
      %v225 = vlaneseq
      %v226 = vshrl.u32 %v225, 7
      %v227 = vsub.s32 %v224, %v226
      %v228 = vrot.slane %v220, %v227
      %v230 = vunpack.c.l.s4 1966171168
      %v231 = vunpack.c.0.s8 %v230
      %v232 = vlaneseq
      %v233 = vshrl.u32 %v232, 7
      %v234 = vsub.s32 %v231, %v233
      %v235 = vrot.slane %v221, %v234
      %vm236 = vsmask.f32 256
      %vm237 = vsmask.f32 1284
      %vm238 = vmor %vm236, %vm237
      %vm239 = vsmask.f32 2312
      %vm240 = vmor %vm238, %vm239
      %vm241 = vsmask.f32 3340
      %vm242 = vmor %vm240, %vm241
      %vm243 = vsmask.f32 4368
      %vm244 = vmor %vm242, %vm243
      %vm245 = vsmask.f32 5396
      %vm246 = vmor %vm244, %vm245
      %vm247 = vsmask.f32 6424
      %vm248 = vmor %vm246, %vm247
      %vm249 = vsmask.f32 7452
      %vm250 = vmor %vm248, %vm249
      %v252 = vshrl.u32 %v206, 16
      %v254 = vrot.slane %v252, 7
      %v255 = vrot.slane %v254, 1
      %v257 = vshll.u32 %v213, 16
      %v259 = vsel %vm250, %v255, %v257
      %v261 = vshrl.u32 %v228, 16
      %v263 = vrot.slane %v261, 7
      %v264 = vrot.slane %v263, 1
      %v266 = vshll.u32 %v235, 16
      %v268 = vsel %vm250, %v264, %v266
      %s269 = scalar_lea.vmem %s1, 64
      %v270 = vld [vmem:[%s269] sm:$0xf]
      %v271 = vld [vmem:[%s269 + $0x4] sm:$0xf]
      %v272 = vld [vmem:[%s269 + $0x8] sm:$0xf]
      %v273 = vld [vmem:[%s269 + $0xc] sm:$0xf]
      %v274 = vld [vmem:[%s269 + $0x10] sm:$0xf]
      %v275 = vld [vmem:[%s269 + $0x14] sm:$0xf]
      %v276 = vld [vmem:[%s269 + $0x18] sm:$0xf]
      %v277 = vld [vmem:[%s269 + $0x1c] sm:$0xf]
      %v278 = vld [vmem:[%s269 + $0x20] sm:$0xf]
      %v279 = vld [vmem:[%s269 + $0x24] sm:$0xf]
      %v280 = vld [vmem:[%s269 + $0x28] sm:$0xf]
      %v281 = vld [vmem:[%s269 + $0x2c] sm:$0xf]
      %v282 = vld [vmem:[%s269 + $0x30] sm:$0xf]
      %v283 = vld [vmem:[%s269 + $0x34] sm:$0xf]
      %v284 = vld [vmem:[%s269 + $0x38] sm:$0xf]
      %v285 = vld [vmem:[%s269 + $0x3c] sm:$0xf]
      %v286 = vcombine.low %v259, %v268
      %v288 = vunpack.c.l.s4 1966171168
      %v289 = vunpack.c.0.s8 %v288
      %v290 = vlaneseq
      %v291 = vshrl.u32 %v290, 7
      %v292 = vsub.s32 %v289, %v291
      %v293 = vrot.slane %v286, %v292
      %v295 = vunpack.c.l.s4 1966171168
      %v296 = vunpack.c.0.s8 %v295
      %v297 = vlaneseq
      %v298 = vshrl.u32 %v297, 7
      %v299 = vsub.s32 %v296, %v298
      %v300 = vrot.slane %v293, %v299
      %v318 = vunpack.c.l.b16 %v270
      %v319 = vunpack.c.l.b16 %v271
      %v320 = vunpack.c.l.b16 %v272
      %v321 = vunpack.c.l.b16 %v273
      %v322 = vunpack.c.l.b16 %v274
      %v323 = vunpack.c.l.b16 %v275
      %v324 = vunpack.c.l.b16 %v276
      %v325 = vunpack.c.l.b16 %v277
      %v326 = vunpack.c.l.b16 %v278
      %v327 = vunpack.c.l.b16 %v279
      %v328 = vunpack.c.l.b16 %v280
      %v329 = vunpack.c.l.b16 %v281
      %v330 = vunpack.c.l.b16 %v282
      %v331 = vunpack.c.l.b16 %v283
      %v332 = vunpack.c.l.b16 %v284
      %v333 = vunpack.c.l.b16 %v285
      %v334 = vpack.c.b16 %v319, %v318
      %v335 = vpack.c.b16 %v321, %v320
      %v336 = vpack.c.b16 %v323, %v322
      %v337 = vpack.c.b16 %v325, %v324
      %v338 = vpack.c.b16 %v327, %v326
      %v339 = vpack.c.b16 %v329, %v328
      %v340 = vpack.c.b16 %v331, %v330
      %v341 = vpack.c.b16 %v333, %v332
      %350 = vmatprep.subr.bf16.mxu0 0
      %351 = vmatpush1.bf16.msra.mxu0 %v334
      %352 = vmatprep.subr.bf16.mxu0 0
      %353 = vmatpush1.bf16.msra.mxu0 %v335
      %354 = vmatprep.subr.bf16.mxu0 0
      %355 = vmatpush1.bf16.msra.mxu0 %v336
      %356 = vmatprep.subr.bf16.mxu0 0
      %357 = vmatpush1.bf16.msra.mxu0 %v337
      %358 = vmatprep.subr.bf16.mxu0 0
      %359 = vmatpush1.bf16.msra.mxu0 %v338
      %360 = vmatprep.subr.bf16.mxu0 0
      %361 = vmatpush1.bf16.msra.mxu0 %v339
      %362 = vmatprep.subr.bf16.mxu0 0
      %363 = vmatpush1.bf16.msra.mxu0 %v340
      %364 = vmatprep.subr.bf16.mxu0 0
      %365 = vmatpush1.bf16.msra.mxu0 %v341
      %366 = vmatprep.subr.bf16.mxu0 0
      %367 = vmatpush1.bf16.msra.mxu0 0
      %368 = vmatprep.subr.bf16.mxu0 0
      %369 = vmatpush1.bf16.msra.mxu0 0
      %370 = vmatprep.subr.bf16.mxu0 0
      %371 = vmatpush1.bf16.msra.mxu0 0
      %372 = vmatprep.subr.bf16.mxu0 0
      %373 = vmatpush1.bf16.msra.mxu0 0
      %374 = vmatprep.subr.bf16.mxu0 0
      %375 = vmatpush1.bf16.msra.mxu0 0
      %376 = vmatprep.subr.bf16.mxu0 0
      %377 = vmatpush1.bf16.msra.mxu0 0
      %378 = vmatprep.subr.bf16.mxu0 0
      %379 = vmatpush1.bf16.msra.mxu0 0
      %380 = vmatprep.subr.bf16.mxu0 0
      %381 = vmatpush1.bf16.msra.mxu0 0
      %382 = vmatprep.mubr.bf16.mxu0 0
      %383 = vmatmul.mubr.bf16.gmra.mrb[0].mxu0 %v300
      %v384 = vpop.f32.mrb[0].mxu0
      %v385 = vadd.f32 0.0, %v384
      %v386 = vpop.f32.mrb[0].mxu0
      %v387 = vpop.f32.mrb[0].mxu0
      %v388 = vpop.f32.mrb[0].mxu0
      %389 = vdwg.mxu0
      %v392 = vcombine.low %v170, %v171
      %v394 = vunpack.c.l.s4 1966171168
      %v395 = vunpack.c.0.s8 %v394
      %v396 = vlaneseq
      %v397 = vshrl.u32 %v396, 7
      %v398 = vsub.s32 %v395, %v397
      %v399 = vrot.slane %v392, %v398
      %v401 = vunpack.c.l.s4 1966171168
      %v402 = vunpack.c.0.s8 %v401
      %v403 = vlaneseq
      %v404 = vshrl.u32 %v403, 7
      %v405 = vsub.s32 %v402, %v404
      %v406 = vrot.slane %v399, %v405
      %v424 = vunpack.c.l.b16 %v172
      %v425 = vunpack.c.l.b16 %v173
      %v426 = vunpack.c.l.b16 %v174
      %v427 = vunpack.c.l.b16 %v175
      %v428 = vunpack.c.l.b16 %v176
      %v429 = vunpack.c.l.b16 %v177
      %v430 = vunpack.c.l.b16 %v178
      %v431 = vunpack.c.l.b16 %v179
      %v432 = vunpack.c.l.b16 %v180
      %v433 = vunpack.c.l.b16 %v181
      %v434 = vunpack.c.l.b16 %v182
      %v435 = vunpack.c.l.b16 %v183
      %v436 = vunpack.c.l.b16 %v184
      %v437 = vunpack.c.l.b16 %v185
      %v438 = vunpack.c.l.b16 %v186
      %v439 = vunpack.c.l.b16 %v187
      %v440 = vpack.c.b16 %v425, %v424
      %v441 = vpack.c.b16 %v427, %v426
      %v442 = vpack.c.b16 %v429, %v428
      %v443 = vpack.c.b16 %v431, %v430
      %v444 = vpack.c.b16 %v433, %v432
      %v445 = vpack.c.b16 %v435, %v434
      %v446 = vpack.c.b16 %v437, %v436
      %v447 = vpack.c.b16 %v439, %v438
      %456 = vmatprep.subr.bf16.mxu0 0
      %457 = vmatpush1.bf16.msra.mxu0 %v440
      %458 = vmatprep.subr.bf16.mxu0 0
      %459 = vmatpush1.bf16.msra.mxu0 %v441
      %460 = vmatprep.subr.bf16.mxu0 0
      %461 = vmatpush1.bf16.msra.mxu0 %v442
      %462 = vmatprep.subr.bf16.mxu0 0
      %463 = vmatpush1.bf16.msra.mxu0 %v443
      %464 = vmatprep.subr.bf16.mxu0 0
      %465 = vmatpush1.bf16.msra.mxu0 %v444
      %466 = vmatprep.subr.bf16.mxu0 0
      %467 = vmatpush1.bf16.msra.mxu0 %v445
      %468 = vmatprep.subr.bf16.mxu0 0
      %469 = vmatpush1.bf16.msra.mxu0 %v446
      %470 = vmatprep.subr.bf16.mxu0 0
      %471 = vmatpush1.bf16.msra.mxu0 %v447
      %472 = vmatprep.subr.bf16.mxu0 0
      %473 = vmatpush1.bf16.msra.mxu0 0
      %474 = vmatprep.subr.bf16.mxu0 0
      %475 = vmatpush1.bf16.msra.mxu0 0
      %476 = vmatprep.subr.bf16.mxu0 0
      %477 = vmatpush1.bf16.msra.mxu0 0
      %478 = vmatprep.subr.bf16.mxu0 0
      %479 = vmatpush1.bf16.msra.mxu0 0
      %480 = vmatprep.subr.bf16.mxu0 0
      %481 = vmatpush1.bf16.msra.mxu0 0
      %482 = vmatprep.subr.bf16.mxu0 0
      %483 = vmatpush1.bf16.msra.mxu0 0
      %484 = vmatprep.subr.bf16.mxu0 0
      %485 = vmatpush1.bf16.msra.mxu0 0
      %486 = vmatprep.subr.bf16.mxu0 0
      %487 = vmatpush1.bf16.msra.mxu0 0
      %488 = vmatprep.mubr.bf16.mxu0 0
      %489 = vmatmul.mubr.bf16.gmra.mrb[0].mxu0 %v406
      %v490 = vpop.f32.mrb[0].mxu0
      %v491 = vadd.f32 %v385, %v490
      %v492 = vpop.f32.mrb[0].mxu0
      %v493 = vpop.f32.mrb[0].mxu0
      %v494 = vpop.f32.mrb[0].mxu0
      %495 = vdwg.mxu0
      %v496 = vld [vmem:[%s164] sm:$0x2]
      %v497 = vld [vmem:[%s164 + $0x4] sm:$0x2]
      %v501 = vunpack.c.l.s4 1966171168
      %v502 = vunpack.c.0.s8 %v501
      %v503 = vlaneseq
      %v504 = vshrl.u32 %v503, 7
      %v505 = vsub.s32 %v502, %v504
      %v506 = vrot.slane %v496, %v505
      %v507 = vcombine.high %v506, %v506
      %v509 = vunpack.c.l.s4 1966171168
      %v510 = vunpack.c.0.s8 %v509
      %v511 = vlaneseq
      %v512 = vshrl.u32 %v511, 7
      %v513 = vsub.s32 %v510, %v512
      %v514 = vrot.slane %v507, %v513
      %v516 = vunpack.c.l.s4 1966171168
      %v517 = vunpack.c.0.s8 %v516
      %v518 = vlaneseq
      %v519 = vshrl.u32 %v518, 7
      %v520 = vsub.s32 %v517, %v519
      %v521 = vrot.slane %v497, %v520
      %v522 = vcombine.high %v521, %v521
      %v524 = vunpack.c.l.s4 1966171168
      %v525 = vunpack.c.0.s8 %v524
      %v526 = vlaneseq
      %v527 = vshrl.u32 %v526, 7
      %v528 = vsub.s32 %v525, %v527
      %v529 = vrot.slane %v522, %v528
      %s530 = scalar_lea.vmem %s1, 128
      %v531 = vld [vmem:[%s530] sm:$0xf]
      %v532 = vld [vmem:[%s530 + $0x4] sm:$0xf]
      %v533 = vld [vmem:[%s530 + $0x8] sm:$0xf]
      %v534 = vld [vmem:[%s530 + $0xc] sm:$0xf]
      %v535 = vld [vmem:[%s530 + $0x10] sm:$0xf]
      %v536 = vld [vmem:[%s530 + $0x14] sm:$0xf]
      %v537 = vld [vmem:[%s530 + $0x18] sm:$0xf]
      %v538 = vld [vmem:[%s530 + $0x1c] sm:$0xf]
      %v539 = vld [vmem:[%s530 + $0x20] sm:$0xf]
      %v540 = vld [vmem:[%s530 + $0x24] sm:$0xf]
      %v541 = vld [vmem:[%s530 + $0x28] sm:$0xf]
      %v542 = vld [vmem:[%s530 + $0x2c] sm:$0xf]
      %v543 = vld [vmem:[%s530 + $0x30] sm:$0xf]
      %v544 = vld [vmem:[%s530 + $0x34] sm:$0xf]
      %v545 = vld [vmem:[%s530 + $0x38] sm:$0xf]
      %v546 = vld [vmem:[%s530 + $0x3c] sm:$0xf]
      %v547 = vcombine.low %v514, %v529
      %v549 = vunpack.c.l.s4 1966171168
      %v550 = vunpack.c.0.s8 %v549
      %v551 = vlaneseq
      %v552 = vshrl.u32 %v551, 7
      %v553 = vsub.s32 %v550, %v552
      %v554 = vrot.slane %v547, %v553
      %v556 = vunpack.c.l.s4 1966171168
      %v557 = vunpack.c.0.s8 %v556
      %v558 = vlaneseq
      %v559 = vshrl.u32 %v558, 7
      %v560 = vsub.s32 %v557, %v559
      %v561 = vrot.slane %v554, %v560
      %v579 = vunpack.c.l.b16 %v531
      %v580 = vunpack.c.l.b16 %v532
      %v581 = vunpack.c.l.b16 %v533
      %v582 = vunpack.c.l.b16 %v534
      %v583 = vunpack.c.l.b16 %v535
      %v584 = vunpack.c.l.b16 %v536
      %v585 = vunpack.c.l.b16 %v537
      %v586 = vunpack.c.l.b16 %v538
      %v587 = vunpack.c.l.b16 %v539
      %v588 = vunpack.c.l.b16 %v540
      %v589 = vunpack.c.l.b16 %v541
      %v590 = vunpack.c.l.b16 %v542
      %v591 = vunpack.c.l.b16 %v543
      %v592 = vunpack.c.l.b16 %v544
      %v593 = vunpack.c.l.b16 %v545
      %v594 = vunpack.c.l.b16 %v546
      %v595 = vpack.c.b16 %v580, %v579
      %v596 = vpack.c.b16 %v582, %v581
      %v597 = vpack.c.b16 %v584, %v583
      %v598 = vpack.c.b16 %v586, %v585
      %v599 = vpack.c.b16 %v588, %v587
      %v600 = vpack.c.b16 %v590, %v589
      %v601 = vpack.c.b16 %v592, %v591
      %v602 = vpack.c.b16 %v594, %v593
      %611 = vmatprep.subr.bf16.mxu0 0
      %612 = vmatpush1.bf16.msra.mxu0 %v595
      %613 = vmatprep.subr.bf16.mxu0 0
      %614 = vmatpush1.bf16.msra.mxu0 %v596
      %615 = vmatprep.subr.bf16.mxu0 0
      %616 = vmatpush1.bf16.msra.mxu0 %v597
      %617 = vmatprep.subr.bf16.mxu0 0
      %618 = vmatpush1.bf16.msra.mxu0 %v598
      %619 = vmatprep.subr.bf16.mxu0 0
      %620 = vmatpush1.bf16.msra.mxu0 %v599
      %621 = vmatprep.subr.bf16.mxu0 0
      %622 = vmatpush1.bf16.msra.mxu0 %v600
      %623 = vmatprep.subr.bf16.mxu0 0
      %624 = vmatpush1.bf16.msra.mxu0 %v601
      %625 = vmatprep.subr.bf16.mxu0 0
      %626 = vmatpush1.bf16.msra.mxu0 %v602
      %627 = vmatprep.subr.bf16.mxu0 0
      %628 = vmatpush1.bf16.msra.mxu0 0
      %629 = vmatprep.subr.bf16.mxu0 0
      %630 = vmatpush1.bf16.msra.mxu0 0
      %631 = vmatprep.subr.bf16.mxu0 0
      %632 = vmatpush1.bf16.msra.mxu0 0
      %633 = vmatprep.subr.bf16.mxu0 0
      %634 = vmatpush1.bf16.msra.mxu0 0
      %635 = vmatprep.subr.bf16.mxu0 0
      %636 = vmatpush1.bf16.msra.mxu0 0
      %637 = vmatprep.subr.bf16.mxu0 0
      %638 = vmatpush1.bf16.msra.mxu0 0
      %639 = vmatprep.subr.bf16.mxu0 0
      %640 = vmatpush1.bf16.msra.mxu0 0
      %641 = vmatprep.subr.bf16.mxu0 0
      %642 = vmatpush1.bf16.msra.mxu0 0
      %643 = vmatprep.mubr.bf16.mxu0 0
      %644 = vmatmul.mubr.bf16.gmra.mrb[0].mxu0 %v561
      %v645 = vpop.f32.mrb[0].mxu0
      %v646 = vadd.f32 0.0, %v645
      %v647 = vpop.f32.mrb[0].mxu0
      %v648 = vpop.f32.mrb[0].mxu0
      %v649 = vpop.f32.mrb[0].mxu0
      %650 = vdwg.mxu0
      %v651 = vadd.f32 %v491, %v646
      %v652 = vld [vmem:[%s164] sm:$0x6]
      %v653 = vld [vmem:[%s164 + $0x4] sm:$0x6]
      %v657 = vunpack.c.l.s4 1966171168
      %v658 = vunpack.c.0.s8 %v657
      %v659 = vlaneseq
      %v660 = vshrl.u32 %v659, 7
      %v661 = vsub.s32 %v658, %v660
      %v662 = vrot.slane %v652, %v661
      %v663 = vcombine.high %v662, %v662
      %v665 = vunpack.c.l.s4 1966171168
      %v666 = vunpack.c.0.s8 %v665
      %v667 = vlaneseq
      %v668 = vshrl.u32 %v667, 7
      %v669 = vsub.s32 %v666, %v668
      %v670 = vrot.slane %v662, %v669
      %v672 = vunpack.c.l.s4 1966171168
      %v673 = vunpack.c.0.s8 %v672
      %v674 = vlaneseq
      %v675 = vshrl.u32 %v674, 7
      %v676 = vsub.s32 %v673, %v675
      %v677 = vrot.slane %v663, %v676
      %v678 = vcombine.high %v670, %v670
      %v680 = vunpack.c.l.s4 1966171168
      %v681 = vunpack.c.0.s8 %v680
      %v682 = vlaneseq
      %v683 = vshrl.u32 %v682, 7
      %v684 = vsub.s32 %v681, %v683
      %v685 = vrot.slane %v653, %v684
      %v686 = vcombine.high %v685, %v685
      %v688 = vunpack.c.l.s4 1966171168
      %v689 = vunpack.c.0.s8 %v688
      %v690 = vlaneseq
      %v691 = vshrl.u32 %v690, 7
      %v692 = vsub.s32 %v689, %v691
      %v693 = vrot.slane %v685, %v692
      %v695 = vunpack.c.l.s4 1966171168
      %v696 = vunpack.c.0.s8 %v695
      %v697 = vlaneseq
      %v698 = vshrl.u32 %v697, 7
      %v699 = vsub.s32 %v696, %v698
      %v700 = vrot.slane %v686, %v699
      %v701 = vcombine.high %v693, %v693
      %v703 = vshrl.u32 %v677, 16
      %v705 = vrot.slane %v703, 7
      %v706 = vrot.slane %v705, 1
      %v708 = vshll.u32 %v678, 16
      %v710 = vsel %vm250, %v706, %v708
      %v712 = vshrl.u32 %v700, 16
      %v714 = vrot.slane %v712, 7
      %v715 = vrot.slane %v714, 1
      %v717 = vshll.u32 %v701, 16
      %v719 = vsel %vm250, %v715, %v717
      %s720 = scalar_lea.vmem %s1, 192
      %v721 = vld [vmem:[%s720] sm:$0xf]
      %v722 = vld [vmem:[%s720 + $0x4] sm:$0xf]
      %v723 = vld [vmem:[%s720 + $0x8] sm:$0xf]
      %v724 = vld [vmem:[%s720 + $0xc] sm:$0xf]
      %v725 = vld [vmem:[%s720 + $0x10] sm:$0xf]
      %v726 = vld [vmem:[%s720 + $0x14] sm:$0xf]
      %v727 = vld [vmem:[%s720 + $0x18] sm:$0xf]
      %v728 = vld [vmem:[%s720 + $0x1c] sm:$0xf]
      %v729 = vld [vmem:[%s720 + $0x20] sm:$0xf]
      %v730 = vld [vmem:[%s720 + $0x24] sm:$0xf]
      %v731 = vld [vmem:[%s720 + $0x28] sm:$0xf]
      %v732 = vld [vmem:[%s720 + $0x2c] sm:$0xf]
      %v733 = vld [vmem:[%s720 + $0x30] sm:$0xf]
      %v734 = vld [vmem:[%s720 + $0x34] sm:$0xf]
      %v735 = vld [vmem:[%s720 + $0x38] sm:$0xf]
      %v736 = vld [vmem:[%s720 + $0x3c] sm:$0xf]
      %v737 = vcombine.low %v710, %v719
      %v739 = vunpack.c.l.s4 1966171168
      %v740 = vunpack.c.0.s8 %v739
      %v741 = vlaneseq
      %v742 = vshrl.u32 %v741, 7
      %v743 = vsub.s32 %v740, %v742
      %v744 = vrot.slane %v737, %v743
      %v746 = vunpack.c.l.s4 1966171168
      %v747 = vunpack.c.0.s8 %v746
      %v748 = vlaneseq
      %v749 = vshrl.u32 %v748, 7
      %v750 = vsub.s32 %v747, %v749
      %v751 = vrot.slane %v744, %v750
      %v769 = vunpack.c.l.b16 %v721
      %v770 = vunpack.c.l.b16 %v722
      %v771 = vunpack.c.l.b16 %v723
      %v772 = vunpack.c.l.b16 %v724
      %v773 = vunpack.c.l.b16 %v725
      %v774 = vunpack.c.l.b16 %v726
      %v775 = vunpack.c.l.b16 %v727
      %v776 = vunpack.c.l.b16 %v728
      %v777 = vunpack.c.l.b16 %v729
      %v778 = vunpack.c.l.b16 %v730
      %v779 = vunpack.c.l.b16 %v731
      %v780 = vunpack.c.l.b16 %v732
      %v781 = vunpack.c.l.b16 %v733
      %v782 = vunpack.c.l.b16 %v734
      %v783 = vunpack.c.l.b16 %v735
      %v784 = vunpack.c.l.b16 %v736
      %v785 = vpack.c.b16 %v770, %v769
      %v786 = vpack.c.b16 %v772, %v771
      %v787 = vpack.c.b16 %v774, %v773
      %v788 = vpack.c.b16 %v776, %v775
      %v789 = vpack.c.b16 %v778, %v777
      %v790 = vpack.c.b16 %v780, %v779
      %v791 = vpack.c.b16 %v782, %v781
      %v792 = vpack.c.b16 %v784, %v783
      %801 = vmatprep.subr.bf16.mxu0 0
      %802 = vmatpush1.bf16.msra.mxu0 %v785
      %803 = vmatprep.subr.bf16.mxu0 0
      %804 = vmatpush1.bf16.msra.mxu0 %v786
      %805 = vmatprep.subr.bf16.mxu0 0
      %806 = vmatpush1.bf16.msra.mxu0 %v787
      %807 = vmatprep.subr.bf16.mxu0 0
      %808 = vmatpush1.bf16.msra.mxu0 %v788
      %809 = vmatprep.subr.bf16.mxu0 0
      %810 = vmatpush1.bf16.msra.mxu0 %v789
      %811 = vmatprep.subr.bf16.mxu0 0
      %812 = vmatpush1.bf16.msra.mxu0 %v790
      %813 = vmatprep.subr.bf16.mxu0 0
      %814 = vmatpush1.bf16.msra.mxu0 %v791
      %815 = vmatprep.subr.bf16.mxu0 0
      %816 = vmatpush1.bf16.msra.mxu0 %v792
      %817 = vmatprep.subr.bf16.mxu0 0
      %818 = vmatpush1.bf16.msra.mxu0 0
      %819 = vmatprep.subr.bf16.mxu0 0
      %820 = vmatpush1.bf16.msra.mxu0 0
      %821 = vmatprep.subr.bf16.mxu0 0
      %822 = vmatpush1.bf16.msra.mxu0 0
      %823 = vmatprep.subr.bf16.mxu0 0
      %824 = vmatpush1.bf16.msra.mxu0 0
      %825 = vmatprep.subr.bf16.mxu0 0
      %826 = vmatpush1.bf16.msra.mxu0 0
      %827 = vmatprep.subr.bf16.mxu0 0
      %828 = vmatpush1.bf16.msra.mxu0 0
      %829 = vmatprep.subr.bf16.mxu0 0
      %830 = vmatpush1.bf16.msra.mxu0 0
      %831 = vmatprep.subr.bf16.mxu0 0
      %832 = vmatpush1.bf16.msra.mxu0 0
      %833 = vmatprep.mubr.bf16.mxu0 0
      %834 = vmatmul.mubr.bf16.gmra.mrb[0].mxu0 %v751
      %v835 = vpop.f32.mrb[0].mxu0
      %v836 = vadd.f32 0.0, %v835
      %v837 = vpop.f32.mrb[0].mxu0
      %v838 = vpop.f32.mrb[0].mxu0
      %v839 = vpop.f32.mrb[0].mxu0
      %840 = vdwg.mxu0
      %v841 = vadd.f32 %v651, %v836
      %s842 = scalar_lea.vmem %s164, 4
      %v843 = vld [vmem:[%s842] sm:$0x1]
      %v844 = vld [vmem:[%s842 + $0x4] sm:$0x1]
      %s845 = scalar_lea.vmem %s1, 256
      %v846 = vld [vmem:[%s845] sm:$0xf]
      %v847 = vld [vmem:[%s845 + $0x4] sm:$0xf]
      %v848 = vld [vmem:[%s845 + $0x8] sm:$0xf]
      %v849 = vld [vmem:[%s845 + $0xc] sm:$0xf]
      %v850 = vld [vmem:[%s845 + $0x10] sm:$0xf]
      %v851 = vld [vmem:[%s845 + $0x14] sm:$0xf]
      %v852 = vld [vmem:[%s845 + $0x18] sm:$0xf]
      %v853 = vld [vmem:[%s845 + $0x1c] sm:$0xf]
      %v854 = vld [vmem:[%s845 + $0x20] sm:$0xf]
      %v855 = vld [vmem:[%s845 + $0x24] sm:$0xf]
      %v856 = vld [vmem:[%s845 + $0x28] sm:$0xf]
      %v857 = vld [vmem:[%s845 + $0x2c] sm:$0xf]
      %v858 = vld [vmem:[%s845 + $0x30] sm:$0xf]
      %v859 = vld [vmem:[%s845 + $0x34] sm:$0xf]
      %v860 = vld [vmem:[%s845 + $0x38] sm:$0xf]
      %v861 = vld [vmem:[%s845 + $0x3c] sm:$0xf]
      %v864 = vcombine.low %v843, %v844
      %v866 = vunpack.c.l.s4 1966171168
      %v867 = vunpack.c.0.s8 %v866
      %v868 = vlaneseq
      %v869 = vshrl.u32 %v868, 7
      %v870 = vsub.s32 %v867, %v869
      %v871 = vrot.slane %v864, %v870
      %v873 = vunpack.c.l.s4 1966171168
      %v874 = vunpack.c.0.s8 %v873
      %v875 = vlaneseq
      %v876 = vshrl.u32 %v875, 7
      %v877 = vsub.s32 %v874, %v876
      %v878 = vrot.slane %v871, %v877
      %v896 = vunpack.c.l.b16 %v846
      %v897 = vunpack.c.l.b16 %v847
      %v898 = vunpack.c.l.b16 %v848
      %v899 = vunpack.c.l.b16 %v849
      %v900 = vunpack.c.l.b16 %v850
      %v901 = vunpack.c.l.b16 %v851
      %v902 = vunpack.c.l.b16 %v852
      %v903 = vunpack.c.l.b16 %v853
      %v904 = vunpack.c.l.b16 %v854
      %v905 = vunpack.c.l.b16 %v855
      %v906 = vunpack.c.l.b16 %v856
      %v907 = vunpack.c.l.b16 %v857
      %v908 = vunpack.c.l.b16 %v858
      %v909 = vunpack.c.l.b16 %v859
      %v910 = vunpack.c.l.b16 %v860
      %v911 = vunpack.c.l.b16 %v861
      %v912 = vpack.c.b16 %v897, %v896
      %v913 = vpack.c.b16 %v899, %v898
      %v914 = vpack.c.b16 %v901, %v900
      %v915 = vpack.c.b16 %v903, %v902
      %v916 = vpack.c.b16 %v905, %v904
      %v917 = vpack.c.b16 %v907, %v906
      %v918 = vpack.c.b16 %v909, %v908
      %v919 = vpack.c.b16 %v911, %v910
      %928 = vmatprep.subr.bf16.mxu0 0
      %929 = vmatpush1.bf16.msra.mxu0 %v912
      %930 = vmatprep.subr.bf16.mxu0 0
      %931 = vmatpush1.bf16.msra.mxu0 %v913
      %932 = vmatprep.subr.bf16.mxu0 0
      %933 = vmatpush1.bf16.msra.mxu0 %v914
      %934 = vmatprep.subr.bf16.mxu0 0
      %935 = vmatpush1.bf16.msra.mxu0 %v915
      %936 = vmatprep.subr.bf16.mxu0 0
      %937 = vmatpush1.bf16.msra.mxu0 %v916
      %938 = vmatprep.subr.bf16.mxu0 0
      %939 = vmatpush1.bf16.msra.mxu0 %v917
      %940 = vmatprep.subr.bf16.mxu0 0
      %941 = vmatpush1.bf16.msra.mxu0 %v918
      %942 = vmatprep.subr.bf16.mxu0 0
      %943 = vmatpush1.bf16.msra.mxu0 %v919
      %944 = vmatprep.subr.bf16.mxu0 0
      %945 = vmatpush1.bf16.msra.mxu0 0
      %946 = vmatprep.subr.bf16.mxu0 0
      %947 = vmatpush1.bf16.msra.mxu0 0
      %948 = vmatprep.subr.bf16.mxu0 0
      %949 = vmatpush1.bf16.msra.mxu0 0
      %950 = vmatprep.subr.bf16.mxu0 0
      %951 = vmatpush1.bf16.msra.mxu0 0
      %952 = vmatprep.subr.bf16.mxu0 0
      %953 = vmatpush1.bf16.msra.mxu0 0
      %954 = vmatprep.subr.bf16.mxu0 0
      %955 = vmatpush1.bf16.msra.mxu0 0
      %956 = vmatprep.subr.bf16.mxu0 0
      %957 = vmatpush1.bf16.msra.mxu0 0
      %958 = vmatprep.subr.bf16.mxu0 0
      %959 = vmatpush1.bf16.msra.mxu0 0
      %960 = vmatprep.mubr.bf16.mxu0 0
      %961 = vmatmul.mubr.bf16.gmra.mrb[0].mxu0 %v878
      %v962 = vpop.f32.mrb[0].mxu0
      %v963 = vadd.f32 0.0, %v962
      %v964 = vpop.f32.mrb[0].mxu0
      %v965 = vpop.f32.mrb[0].mxu0
      %v966 = vpop.f32.mrb[0].mxu0
      %967 = vdwg.mxu0
      %v968 = vadd.f32 %v841, %v963
      %v969 = vld [vmem:[%s842] sm:$0x3]
      %v970 = vld [vmem:[%s842 + $0x4] sm:$0x3]
      %v974 = vunpack.c.l.s4 1966171168
      %v975 = vunpack.c.0.s8 %v974
      %v976 = vlaneseq
      %v977 = vshrl.u32 %v976, 7
      %v978 = vsub.s32 %v975, %v977
      %v979 = vrot.slane %v969, %v978
      %v980 = vcombine.high %v979, %v979
      %v982 = vunpack.c.l.s4 1966171168
      %v983 = vunpack.c.0.s8 %v982
      %v984 = vlaneseq
      %v985 = vshrl.u32 %v984, 7
      %v986 = vsub.s32 %v983, %v985
      %v987 = vrot.slane %v979, %v986
      %v989 = vunpack.c.l.s4 1966171168
      %v990 = vunpack.c.0.s8 %v989
      %v991 = vlaneseq
      %v992 = vshrl.u32 %v991, 7
      %v993 = vsub.s32 %v990, %v992
      %v994 = vrot.slane %v980, %v993
      %v996 = vunpack.c.l.s4 1966171168
      %v997 = vunpack.c.0.s8 %v996
      %v998 = vlaneseq
      %v999 = vshrl.u32 %v998, 7
      %v1000 = vsub.s32 %v997, %v999
      %v1001 = vrot.slane %v970, %v1000
      %v1002 = vcombine.high %v1001, %v1001
      %v1004 = vunpack.c.l.s4 1966171168
      %v1005 = vunpack.c.0.s8 %v1004
      %v1006 = vlaneseq
      %v1007 = vshrl.u32 %v1006, 7
      %v1008 = vsub.s32 %v1005, %v1007
      %v1009 = vrot.slane %v1001, %v1008
      %v1011 = vunpack.c.l.s4 1966171168
      %v1012 = vunpack.c.0.s8 %v1011
      %v1013 = vlaneseq
      %v1014 = vshrl.u32 %v1013, 7
      %v1015 = vsub.s32 %v1012, %v1014
      %v1016 = vrot.slane %v1002, %v1015
      %v1018 = vshrl.u32 %v987, 16
      %v1020 = vrot.slane %v1018, 7
      %v1021 = vrot.slane %v1020, 1
      %v1023 = vshll.u32 %v994, 16
      %v1025 = vsel %vm250, %v1021, %v1023
      %v1027 = vshrl.u32 %v1009, 16
      %v1029 = vrot.slane %v1027, 7
      %v1030 = vrot.slane %v1029, 1
      %v1032 = vshll.u32 %v1016, 16
      %v1034 = vsel %vm250, %v1030, %v1032
      %s1035 = scalar_lea.vmem %s1, 320
      %v1036 = vld [vmem:[%s1035] sm:$0xf]
      %v1037 = vld [vmem:[%s1035 + $0x4] sm:$0xf]
      %v1038 = vld [vmem:[%s1035 + $0x8] sm:$0xf]
      %v1039 = vld [vmem:[%s1035 + $0xc] sm:$0xf]
      %v1040 = vld [vmem:[%s1035 + $0x10] sm:$0xf]
      %v1041 = vld [vmem:[%s1035 + $0x14] sm:$0xf]
      %v1042 = vld [vmem:[%s1035 + $0x18] sm:$0xf]
      %v1043 = vld [vmem:[%s1035 + $0x1c] sm:$0xf]
      %v1044 = vld [vmem:[%s1035 + $0x20] sm:$0xf]
      %v1045 = vld [vmem:[%s1035 + $0x24] sm:$0xf]
      %v1046 = vld [vmem:[%s1035 + $0x28] sm:$0xf]
      %v1047 = vld [vmem:[%s1035 + $0x2c] sm:$0xf]
      %v1048 = vld [vmem:[%s1035 + $0x30] sm:$0xf]
      %v1049 = vld [vmem:[%s1035 + $0x34] sm:$0xf]
      %v1050 = vld [vmem:[%s1035 + $0x38] sm:$0xf]
      %v1051 = vld [vmem:[%s1035 + $0x3c] sm:$0xf]
      %v1052 = vcombine.low %v1025, %v1034
      %v1054 = vunpack.c.l.s4 1966171168
      %v1055 = vunpack.c.0.s8 %v1054
      %v1056 = vlaneseq
      %v1057 = vshrl.u32 %v1056, 7
      %v1058 = vsub.s32 %v1055, %v1057
      %v1059 = vrot.slane %v1052, %v1058
      %v1061 = vunpack.c.l.s4 1966171168
      %v1062 = vunpack.c.0.s8 %v1061
      %v1063 = vlaneseq
      %v1064 = vshrl.u32 %v1063, 7
      %v1065 = vsub.s32 %v1062, %v1064
      %v1066 = vrot.slane %v1059, %v1065
      %v1084 = vunpack.c.l.b16 %v1036
      %v1085 = vunpack.c.l.b16 %v1037
      %v1086 = vunpack.c.l.b16 %v1038
      %v1087 = vunpack.c.l.b16 %v1039
      %v1088 = vunpack.c.l.b16 %v1040
      %v1089 = vunpack.c.l.b16 %v1041
      %v1090 = vunpack.c.l.b16 %v1042
      %v1091 = vunpack.c.l.b16 %v1043
      %v1092 = vunpack.c.l.b16 %v1044
      %v1093 = vunpack.c.l.b16 %v1045
      %v1094 = vunpack.c.l.b16 %v1046
      %v1095 = vunpack.c.l.b16 %v1047
      %v1096 = vunpack.c.l.b16 %v1048
      %v1097 = vunpack.c.l.b16 %v1049
      %v1098 = vunpack.c.l.b16 %v1050
      %v1099 = vunpack.c.l.b16 %v1051
      %v1100 = vpack.c.b16 %v1085, %v1084
      %v1101 = vpack.c.b16 %v1087, %v1086
      %v1102 = vpack.c.b16 %v1089, %v1088
      %v1103 = vpack.c.b16 %v1091, %v1090
      %v1104 = vpack.c.b16 %v1093, %v1092
      %v1105 = vpack.c.b16 %v1095, %v1094
      %v1106 = vpack.c.b16 %v1097, %v1096
      %v1107 = vpack.c.b16 %v1099, %v1098
      %1116 = vmatprep.subr.bf16.mxu0 0
      %1117 = vmatpush1.bf16.msra.mxu0 %v1100
      %1118 = vmatprep.subr.bf16.mxu0 0
      %1119 = vmatpush1.bf16.msra.mxu0 %v1101
      %1120 = vmatprep.subr.bf16.mxu0 0
      %1121 = vmatpush1.bf16.msra.mxu0 %v1102
      %1122 = vmatprep.subr.bf16.mxu0 0
      %1123 = vmatpush1.bf16.msra.mxu0 %v1103
      %1124 = vmatprep.subr.bf16.mxu0 0
      %1125 = vmatpush1.bf16.msra.mxu0 %v1104
      %1126 = vmatprep.subr.bf16.mxu0 0
      %1127 = vmatpush1.bf16.msra.mxu0 %v1105
      %1128 = vmatprep.subr.bf16.mxu0 0
      %1129 = vmatpush1.bf16.msra.mxu0 %v1106
      %1130 = vmatprep.subr.bf16.mxu0 0
      %1131 = vmatpush1.bf16.msra.mxu0 %v1107
      %1132 = vmatprep.subr.bf16.mxu0 0
      %1133 = vmatpush1.bf16.msra.mxu0 0
      %1134 = vmatprep.subr.bf16.mxu0 0
      %1135 = vmatpush1.bf16.msra.mxu0 0
      %1136 = vmatprep.subr.bf16.mxu0 0
      %1137 = vmatpush1.bf16.msra.mxu0 0
      %1138 = vmatprep.subr.bf16.mxu0 0
      %1139 = vmatpush1.bf16.msra.mxu0 0
      %1140 = vmatprep.subr.bf16.mxu0 0
      %1141 = vmatpush1.bf16.msra.mxu0 0
      %1142 = vmatprep.subr.bf16.mxu0 0
      %1143 = vmatpush1.bf16.msra.mxu0 0
      %1144 = vmatprep.subr.bf16.mxu0 0
      %1145 = vmatpush1.bf16.msra.mxu0 0
      %1146 = vmatprep.subr.bf16.mxu0 0
      %1147 = vmatpush1.bf16.msra.mxu0 0
      %1148 = vmatprep.mubr.bf16.mxu0 0
      %1149 = vmatmul.mubr.bf16.gmra.mrb[0].mxu0 %v1066
      %v1150 = vpop.f32.mrb[0].mxu0
      %v1151 = vadd.f32 0.0, %v1150
      %v1152 = vpop.f32.mrb[0].mxu0
      %v1153 = vpop.f32.mrb[0].mxu0
      %v1154 = vpop.f32.mrb[0].mxu0
      %1155 = vdwg.mxu0
      %v1156 = vadd.f32 %v968, %v1151
      %v1157 = vld [vmem:[%s842] sm:$0x2]
      %v1158 = vld [vmem:[%s842 + $0x4] sm:$0x2]
      %v1162 = vunpack.c.l.s4 1966171168
      %v1163 = vunpack.c.0.s8 %v1162
      %v1164 = vlaneseq
      %v1165 = vshrl.u32 %v1164, 7
      %v1166 = vsub.s32 %v1163, %v1165
      %v1167 = vrot.slane %v1157, %v1166
      %v1168 = vcombine.high %v1167, %v1167
      %v1170 = vunpack.c.l.s4 1966171168
      %v1171 = vunpack.c.0.s8 %v1170
      %v1172 = vlaneseq
      %v1173 = vshrl.u32 %v1172, 7
      %v1174 = vsub.s32 %v1171, %v1173
      %v1175 = vrot.slane %v1168, %v1174
      %v1177 = vunpack.c.l.s4 1966171168
      %v1178 = vunpack.c.0.s8 %v1177
      %v1179 = vlaneseq
      %v1180 = vshrl.u32 %v1179, 7
      %v1181 = vsub.s32 %v1178, %v1180
      %v1182 = vrot.slane %v1158, %v1181
      %v1183 = vcombine.high %v1182, %v1182
      %v1185 = vunpack.c.l.s4 1966171168
      %v1186 = vunpack.c.0.s8 %v1185
      %v1187 = vlaneseq
      %v1188 = vshrl.u32 %v1187, 7
      %v1189 = vsub.s32 %v1186, %v1188
      %v1190 = vrot.slane %v1183, %v1189
      %s1191 = scalar_lea.vmem %s1, 384
      %v1192 = vld [vmem:[%s1191] sm:$0xf]
      %v1193 = vld [vmem:[%s1191 + $0x4] sm:$0xf]
      %v1194 = vld [vmem:[%s1191 + $0x8] sm:$0xf]
      %v1195 = vld [vmem:[%s1191 + $0xc] sm:$0xf]
      %v1196 = vld [vmem:[%s1191 + $0x10] sm:$0xf]
      %v1197 = vld [vmem:[%s1191 + $0x14] sm:$0xf]
      %v1198 = vld [vmem:[%s1191 + $0x18] sm:$0xf]
      %v1199 = vld [vmem:[%s1191 + $0x1c] sm:$0xf]
      %v1200 = vld [vmem:[%s1191 + $0x20] sm:$0xf]
      %v1201 = vld [vmem:[%s1191 + $0x24] sm:$0xf]
      %v1202 = vld [vmem:[%s1191 + $0x28] sm:$0xf]
      %v1203 = vld [vmem:[%s1191 + $0x2c] sm:$0xf]
      %v1204 = vld [vmem:[%s1191 + $0x30] sm:$0xf]
      %v1205 = vld [vmem:[%s1191 + $0x34] sm:$0xf]
      %v1206 = vld [vmem:[%s1191 + $0x38] sm:$0xf]
      %v1207 = vld [vmem:[%s1191 + $0x3c] sm:$0xf]
      %v1208 = vcombine.low %v1175, %v1190
      %v1210 = vunpack.c.l.s4 1966171168
      %v1211 = vunpack.c.0.s8 %v1210
      %v1212 = vlaneseq
      %v1213 = vshrl.u32 %v1212, 7
      %v1214 = vsub.s32 %v1211, %v1213
      %v1215 = vrot.slane %v1208, %v1214
      %v1217 = vunpack.c.l.s4 1966171168
      %v1218 = vunpack.c.0.s8 %v1217
      %v1219 = vlaneseq
      %v1220 = vshrl.u32 %v1219, 7
      %v1221 = vsub.s32 %v1218, %v1220
      %v1222 = vrot.slane %v1215, %v1221
      %v1240 = vunpack.c.l.b16 %v1192
      %v1241 = vunpack.c.l.b16 %v1193
      %v1242 = vunpack.c.l.b16 %v1194
      %v1243 = vunpack.c.l.b16 %v1195
      %v1244 = vunpack.c.l.b16 %v1196
      %v1245 = vunpack.c.l.b16 %v1197
      %v1246 = vunpack.c.l.b16 %v1198
      %v1247 = vunpack.c.l.b16 %v1199
      %v1248 = vunpack.c.l.b16 %v1200
      %v1249 = vunpack.c.l.b16 %v1201
      %v1250 = vunpack.c.l.b16 %v1202
      %v1251 = vunpack.c.l.b16 %v1203
      %v1252 = vunpack.c.l.b16 %v1204
      %v1253 = vunpack.c.l.b16 %v1205
      %v1254 = vunpack.c.l.b16 %v1206
      %v1255 = vunpack.c.l.b16 %v1207
      %v1256 = vpack.c.b16 %v1241, %v1240
      %v1257 = vpack.c.b16 %v1243, %v1242
      %v1258 = vpack.c.b16 %v1245, %v1244
      %v1259 = vpack.c.b16 %v1247, %v1246
      %v1260 = vpack.c.b16 %v1249, %v1248
      %v1261 = vpack.c.b16 %v1251, %v1250
      %v1262 = vpack.c.b16 %v1253, %v1252
      %v1263 = vpack.c.b16 %v1255, %v1254
      %1272 = vmatprep.subr.bf16.mxu0 0
      %1273 = vmatpush1.bf16.msra.mxu0 %v1256
      %1274 = vmatprep.subr.bf16.mxu0 0
      %1275 = vmatpush1.bf16.msra.mxu0 %v1257
      %1276 = vmatprep.subr.bf16.mxu0 0
      %1277 = vmatpush1.bf16.msra.mxu0 %v1258
      %1278 = vmatprep.subr.bf16.mxu0 0
      %1279 = vmatpush1.bf16.msra.mxu0 %v1259
      %1280 = vmatprep.subr.bf16.mxu0 0
      %1281 = vmatpush1.bf16.msra.mxu0 %v1260
      %1282 = vmatprep.subr.bf16.mxu0 0
      %1283 = vmatpush1.bf16.msra.mxu0 %v1261
      %1284 = vmatprep.subr.bf16.mxu0 0
      %1285 = vmatpush1.bf16.msra.mxu0 %v1262
      %1286 = vmatprep.subr.bf16.mxu0 0
      %1287 = vmatpush1.bf16.msra.mxu0 %v1263
      %1288 = vmatprep.subr.bf16.mxu0 0
      %1289 = vmatpush1.bf16.msra.mxu0 0
      %1290 = vmatprep.subr.bf16.mxu0 0
      %1291 = vmatpush1.bf16.msra.mxu0 0
      %1292 = vmatprep.subr.bf16.mxu0 0
      %1293 = vmatpush1.bf16.msra.mxu0 0
      %1294 = vmatprep.subr.bf16.mxu0 0
      %1295 = vmatpush1.bf16.msra.mxu0 0
      %1296 = vmatprep.subr.bf16.mxu0 0
      %1297 = vmatpush1.bf16.msra.mxu0 0
      %1298 = vmatprep.subr.bf16.mxu0 0
      %1299 = vmatpush1.bf16.msra.mxu0 0
      %1300 = vmatprep.subr.bf16.mxu0 0
      %1301 = vmatpush1.bf16.msra.mxu0 0
      %1302 = vmatprep.subr.bf16.mxu0 0
      %1303 = vmatpush1.bf16.msra.mxu0 0
      %1304 = vmatprep.mubr.bf16.mxu0 0
      %1305 = vmatmul.mubr.bf16.gmra.mrb[0].mxu0 %v1222
      %v1306 = vpop.f32.mrb[0].mxu0
      %v1307 = vadd.f32 0.0, %v1306
      %v1308 = vpop.f32.mrb[0].mxu0
      %v1309 = vpop.f32.mrb[0].mxu0
      %v1310 = vpop.f32.mrb[0].mxu0
      %1311 = vdwg.mxu0
      %v1312 = vadd.f32 %v1156, %v1307
      %v1313 = vld [vmem:[%s842] sm:$0x6]
      %v1314 = vld [vmem:[%s842 + $0x4] sm:$0x6]
      %v1318 = vunpack.c.l.s4 1966171168
      %v1319 = vunpack.c.0.s8 %v1318
      %v1320 = vlaneseq
      %v1321 = vshrl.u32 %v1320, 7
      %v1322 = vsub.s32 %v1319, %v1321
      %v1323 = vrot.slane %v1313, %v1322
      %v1324 = vcombine.high %v1323, %v1323
      %v1326 = vunpack.c.l.s4 1966171168
      %v1327 = vunpack.c.0.s8 %v1326
      %v1328 = vlaneseq
      %v1329 = vshrl.u32 %v1328, 7
      %v1330 = vsub.s32 %v1327, %v1329
      %v1331 = vrot.slane %v1323, %v1330
      %v1333 = vunpack.c.l.s4 1966171168
      %v1334 = vunpack.c.0.s8 %v1333
      %v1335 = vlaneseq
      %v1336 = vshrl.u32 %v1335, 7
      %v1337 = vsub.s32 %v1334, %v1336
      %v1338 = vrot.slane %v1324, %v1337
      %v1339 = vcombine.high %v1331, %v1331
      %v1341 = vunpack.c.l.s4 1966171168
      %v1342 = vunpack.c.0.s8 %v1341
      %v1343 = vlaneseq
      %v1344 = vshrl.u32 %v1343, 7
      %v1345 = vsub.s32 %v1342, %v1344
      %v1346 = vrot.slane %v1314, %v1345
      %v1347 = vcombine.high %v1346, %v1346
      %v1349 = vunpack.c.l.s4 1966171168
      %v1350 = vunpack.c.0.s8 %v1349
      %v1351 = vlaneseq
      %v1352 = vshrl.u32 %v1351, 7
      %v1353 = vsub.s32 %v1350, %v1352
      %v1354 = vrot.slane %v1346, %v1353
      %v1356 = vunpack.c.l.s4 1966171168
      %v1357 = vunpack.c.0.s8 %v1356
      %v1358 = vlaneseq
      %v1359 = vshrl.u32 %v1358, 7
      %v1360 = vsub.s32 %v1357, %v1359
      %v1361 = vrot.slane %v1347, %v1360
      %v1362 = vcombine.high %v1354, %v1354
      %v1364 = vshrl.u32 %v1338, 16
      %v1366 = vrot.slane %v1364, 7
      %v1367 = vrot.slane %v1366, 1
      %v1369 = vshll.u32 %v1339, 16
      %v1371 = vsel %vm250, %v1367, %v1369
      %v1373 = vshrl.u32 %v1361, 16
      %v1375 = vrot.slane %v1373, 7
      %v1376 = vrot.slane %v1375, 1
      %v1378 = vshll.u32 %v1362, 16
      %v1380 = vsel %vm250, %v1376, %v1378
      %s1381 = scalar_lea.vmem %s1, 448
      %v1382 = vld [vmem:[%s1381] sm:$0xf]
      %v1383 = vld [vmem:[%s1381 + $0x4] sm:$0xf]
      %v1384 = vld [vmem:[%s1381 + $0x8] sm:$0xf]
      %v1385 = vld [vmem:[%s1381 + $0xc] sm:$0xf]
      %v1386 = vld [vmem:[%s1381 + $0x10] sm:$0xf]
      %v1387 = vld [vmem:[%s1381 + $0x14] sm:$0xf]
      %v1388 = vld [vmem:[%s1381 + $0x18] sm:$0xf]
      %v1389 = vld [vmem:[%s1381 + $0x1c] sm:$0xf]
      %v1390 = vld [vmem:[%s1381 + $0x20] sm:$0xf]
      %v1391 = vld [vmem:[%s1381 + $0x24] sm:$0xf]
      %v1392 = vld [vmem:[%s1381 + $0x28] sm:$0xf]
      %v1393 = vld [vmem:[%s1381 + $0x2c] sm:$0xf]
      %v1394 = vld [vmem:[%s1381 + $0x30] sm:$0xf]
      %v1395 = vld [vmem:[%s1381 + $0x34] sm:$0xf]
      %v1396 = vld [vmem:[%s1381 + $0x38] sm:$0xf]
      %v1397 = vld [vmem:[%s1381 + $0x3c] sm:$0xf]
      %v1398 = vcombine.low %v1371, %v1380
      %v1400 = vunpack.c.l.s4 1966171168
      %v1401 = vunpack.c.0.s8 %v1400
      %v1402 = vlaneseq
      %v1403 = vshrl.u32 %v1402, 7
      %v1404 = vsub.s32 %v1401, %v1403
      %v1405 = vrot.slane %v1398, %v1404
      %v1407 = vunpack.c.l.s4 1966171168
      %v1408 = vunpack.c.0.s8 %v1407
      %v1409 = vlaneseq
      %v1410 = vshrl.u32 %v1409, 7
      %v1411 = vsub.s32 %v1408, %v1410
      %v1412 = vrot.slane %v1405, %v1411
      %v1430 = vunpack.c.l.b16 %v1382
      %v1431 = vunpack.c.l.b16 %v1383
      %v1432 = vunpack.c.l.b16 %v1384
      %v1433 = vunpack.c.l.b16 %v1385
      %v1434 = vunpack.c.l.b16 %v1386
      %v1435 = vunpack.c.l.b16 %v1387
      %v1436 = vunpack.c.l.b16 %v1388
      %v1437 = vunpack.c.l.b16 %v1389
      %v1438 = vunpack.c.l.b16 %v1390
      %v1439 = vunpack.c.l.b16 %v1391
      %v1440 = vunpack.c.l.b16 %v1392
      %v1441 = vunpack.c.l.b16 %v1393
      %v1442 = vunpack.c.l.b16 %v1394
      %v1443 = vunpack.c.l.b16 %v1395
      %v1444 = vunpack.c.l.b16 %v1396
      %v1445 = vunpack.c.l.b16 %v1397
      %v1446 = vpack.c.b16 %v1431, %v1430
      %v1447 = vpack.c.b16 %v1433, %v1432
      %v1448 = vpack.c.b16 %v1435, %v1434
      %v1449 = vpack.c.b16 %v1437, %v1436
      %v1450 = vpack.c.b16 %v1439, %v1438
      %v1451 = vpack.c.b16 %v1441, %v1440
      %v1452 = vpack.c.b16 %v1443, %v1442
      %v1453 = vpack.c.b16 %v1445, %v1444
      %1462 = vmatprep.subr.bf16.mxu0 0
      %1463 = vmatpush1.bf16.msra.mxu0 %v1446
      %1464 = vmatprep.subr.bf16.mxu0 0
      %1465 = vmatpush1.bf16.msra.mxu0 %v1447
      %1466 = vmatprep.subr.bf16.mxu0 0
      %1467 = vmatpush1.bf16.msra.mxu0 %v1448
      %1468 = vmatprep.subr.bf16.mxu0 0
      %1469 = vmatpush1.bf16.msra.mxu0 %v1449
      %1470 = vmatprep.subr.bf16.mxu0 0
      %1471 = vmatpush1.bf16.msra.mxu0 %v1450
      %1472 = vmatprep.subr.bf16.mxu0 0
      %1473 = vmatpush1.bf16.msra.mxu0 %v1451
      %1474 = vmatprep.subr.bf16.mxu0 0
      %1475 = vmatpush1.bf16.msra.mxu0 %v1452
      %1476 = vmatprep.subr.bf16.mxu0 0
      %1477 = vmatpush1.bf16.msra.mxu0 %v1453
      %1478 = vmatprep.subr.bf16.mxu0 0
      %1479 = vmatpush1.bf16.msra.mxu0 0
      %1480 = vmatprep.subr.bf16.mxu0 0
      %1481 = vmatpush1.bf16.msra.mxu0 0
      %1482 = vmatprep.subr.bf16.mxu0 0
      %1483 = vmatpush1.bf16.msra.mxu0 0
      %1484 = vmatprep.subr.bf16.mxu0 0
      %1485 = vmatpush1.bf16.msra.mxu0 0
      %1486 = vmatprep.subr.bf16.mxu0 0
      %1487 = vmatpush1.bf16.msra.mxu0 0
      %1488 = vmatprep.subr.bf16.mxu0 0
      %1489 = vmatpush1.bf16.msra.mxu0 0
      %1490 = vmatprep.subr.bf16.mxu0 0
      %1491 = vmatpush1.bf16.msra.mxu0 0
      %1492 = vmatprep.subr.bf16.mxu0 0
      %1493 = vmatpush1.bf16.msra.mxu0 0
      %1494 = vmatprep.mubr.bf16.mxu0 0
      %1495 = vmatmul.mubr.bf16.gmra.mrb[0].mxu0 %v1412
      %v1496 = vpop.f32.mrb[0].mxu0
      %v1497 = vadd.f32 0.0, %v1496
      %v1498 = vpop.f32.mrb[0].mxu0
      %v1499 = vpop.f32.mrb[0].mxu0
      %v1500 = vpop.f32.mrb[0].mxu0
      %1501 = vdwg.mxu0
      %v1502 = vadd.f32 %v1312, %v1497
      %s1503 = scalar_lea.vmem %s164, 8
      %v1504 = vld [vmem:[%s1503] sm:$0x1]
      %v1505 = vld [vmem:[%s1503 + $0x4] sm:$0x1]
      %s1506 = scalar_lea.vmem %s1, 512
      %v1507 = vld [vmem:[%s1506] sm:$0xf]
      %v1508 = vld [vmem:[%s1506 + $0x4] sm:$0xf]
      %v1509 = vld [vmem:[%s1506 + $0x8] sm:$0xf]
      %v1510 = vld [vmem:[%s1506 + $0xc] sm:$0xf]
      %v1511 = vld [vmem:[%s1506 + $0x10] sm:$0xf]
      %v1512 = vld [vmem:[%s1506 + $0x14] sm:$0xf]
      %v1513 = vld [vmem:[%s1506 + $0x18] sm:$0xf]
      %v1514 = vld [vmem:[%s1506 + $0x1c] sm:$0xf]
      %v1515 = vld [vmem:[%s1506 + $0x20] sm:$0xf]
      %v1516 = vld [vmem:[%s1506 + $0x24] sm:$0xf]
      %v1517 = vld [vmem:[%s1506 + $0x28] sm:$0xf]
      %v1518 = vld [vmem:[%s1506 + $0x2c] sm:$0xf]
      %v1519 = vld [vmem:[%s1506 + $0x30] sm:$0xf]
      %v1520 = vld [vmem:[%s1506 + $0x34] sm:$0xf]
      %v1521 = vld [vmem:[%s1506 + $0x38] sm:$0xf]
      %v1522 = vld [vmem:[%s1506 + $0x3c] sm:$0xf]
      %v1525 = vcombine.low %v1504, %v1505
      %v1527 = vunpack.c.l.s4 1966171168
      %v1528 = vunpack.c.0.s8 %v1527
      %v1529 = vlaneseq
      %v1530 = vshrl.u32 %v1529, 7
      %v1531 = vsub.s32 %v1528, %v1530
      %v1532 = vrot.slane %v1525, %v1531
      %v1534 = vunpack.c.l.s4 1966171168
      %v1535 = vunpack.c.0.s8 %v1534
      %v1536 = vlaneseq
      %v1537 = vshrl.u32 %v1536, 7
      %v1538 = vsub.s32 %v1535, %v1537
      %v1539 = vrot.slane %v1532, %v1538
      %v1557 = vunpack.c.l.b16 %v1507
      %v1558 = vunpack.c.l.b16 %v1508
      %v1559 = vunpack.c.l.b16 %v1509
      %v1560 = vunpack.c.l.b16 %v1510
      %v1561 = vunpack.c.l.b16 %v1511
      %v1562 = vunpack.c.l.b16 %v1512
      %v1563 = vunpack.c.l.b16 %v1513
      %v1564 = vunpack.c.l.b16 %v1514
      %v1565 = vunpack.c.l.b16 %v1515
      %v1566 = vunpack.c.l.b16 %v1516
      %v1567 = vunpack.c.l.b16 %v1517
      %v1568 = vunpack.c.l.b16 %v1518
      %v1569 = vunpack.c.l.b16 %v1519
      %v1570 = vunpack.c.l.b16 %v1520
      %v1571 = vunpack.c.l.b16 %v1521
      %v1572 = vunpack.c.l.b16 %v1522
      %v1573 = vpack.c.b16 %v1558, %v1557
      %v1574 = vpack.c.b16 %v1560, %v1559
      %v1575 = vpack.c.b16 %v1562, %v1561
      %v1576 = vpack.c.b16 %v1564, %v1563
      %v1577 = vpack.c.b16 %v1566, %v1565
      %v1578 = vpack.c.b16 %v1568, %v1567
      %v1579 = vpack.c.b16 %v1570, %v1569
      %v1580 = vpack.c.b16 %v1572, %v1571
      %1589 = vmatprep.subr.bf16.mxu0 0
      %1590 = vmatpush1.bf16.msra.mxu0 %v1573
      %1591 = vmatprep.subr.bf16.mxu0 0
      %1592 = vmatpush1.bf16.msra.mxu0 %v1574
      %1593 = vmatprep.subr.bf16.mxu0 0
      %1594 = vmatpush1.bf16.msra.mxu0 %v1575
      %1595 = vmatprep.subr.bf16.mxu0 0
      %1596 = vmatpush1.bf16.msra.mxu0 %v1576
      %1597 = vmatprep.subr.bf16.mxu0 0
      %1598 = vmatpush1.bf16.msra.mxu0 %v1577
      %1599 = vmatprep.subr.bf16.mxu0 0
      %1600 = vmatpush1.bf16.msra.mxu0 %v1578
      %1601 = vmatprep.subr.bf16.mxu0 0
      %1602 = vmatpush1.bf16.msra.mxu0 %v1579
      %1603 = vmatprep.subr.bf16.mxu0 0
      %1604 = vmatpush1.bf16.msra.mxu0 %v1580
      %1605 = vmatprep.subr.bf16.mxu0 0
      %1606 = vmatpush1.bf16.msra.mxu0 0
      %1607 = vmatprep.subr.bf16.mxu0 0
      %1608 = vmatpush1.bf16.msra.mxu0 0
      %1609 = vmatprep.subr.bf16.mxu0 0
      %1610 = vmatpush1.bf16.msra.mxu0 0
      %1611 = vmatprep.subr.bf16.mxu0 0
      %1612 = vmatpush1.bf16.msra.mxu0 0
      %1613 = vmatprep.subr.bf16.mxu0 0
      %1614 = vmatpush1.bf16.msra.mxu0 0
      %1615 = vmatprep.subr.bf16.mxu0 0
      %1616 = vmatpush1.bf16.msra.mxu0 0
      %1617 = vmatprep.subr.bf16.mxu0 0
      %1618 = vmatpush1.bf16.msra.mxu0 0
      %1619 = vmatprep.subr.bf16.mxu0 0
      %1620 = vmatpush1.bf16.msra.mxu0 0
      %1621 = vmatprep.mubr.bf16.mxu0 0
      %1622 = vmatmul.mubr.bf16.gmra.mrb[0].mxu0 %v1539
      %v1623 = vpop.f32.mrb[0].mxu0
      %v1624 = vadd.f32 0.0, %v1623
      %v1625 = vpop.f32.mrb[0].mxu0
      %v1626 = vpop.f32.mrb[0].mxu0
      %v1627 = vpop.f32.mrb[0].mxu0
      %1628 = vdwg.mxu0
      %v1629 = vadd.f32 %v1502, %v1624
      %v1630 = vld [vmem:[%s1503] sm:$0x3]
      %v1631 = vld [vmem:[%s1503 + $0x4] sm:$0x3]
      %v1635 = vunpack.c.l.s4 1966171168
      %v1636 = vunpack.c.0.s8 %v1635
      %v1637 = vlaneseq
      %v1638 = vshrl.u32 %v1637, 7
      %v1639 = vsub.s32 %v1636, %v1638
      %v1640 = vrot.slane %v1630, %v1639
      %v1641 = vcombine.high %v1640, %v1640
      %v1643 = vunpack.c.l.s4 1966171168
      %v1644 = vunpack.c.0.s8 %v1643
      %v1645 = vlaneseq
      %v1646 = vshrl.u32 %v1645, 7
      %v1647 = vsub.s32 %v1644, %v1646
      %v1648 = vrot.slane %v1640, %v1647
      %v1650 = vunpack.c.l.s4 1966171168
      %v1651 = vunpack.c.0.s8 %v1650
      %v1652 = vlaneseq
      %v1653 = vshrl.u32 %v1652, 7
      %v1654 = vsub.s32 %v1651, %v1653
      %v1655 = vrot.slane %v1641, %v1654
      %v1657 = vunpack.c.l.s4 1966171168
      %v1658 = vunpack.c.0.s8 %v1657
      %v1659 = vlaneseq
      %v1660 = vshrl.u32 %v1659, 7
      %v1661 = vsub.s32 %v1658, %v1660
      %v1662 = vrot.slane %v1631, %v1661
      %v1663 = vcombine.high %v1662, %v1662
      %v1665 = vunpack.c.l.s4 1966171168
      %v1666 = vunpack.c.0.s8 %v1665
      %v1667 = vlaneseq
      %v1668 = vshrl.u32 %v1667, 7
      %v1669 = vsub.s32 %v1666, %v1668
      %v1670 = vrot.slane %v1662, %v1669
      %v1672 = vunpack.c.l.s4 1966171168
      %v1673 = vunpack.c.0.s8 %v1672
      %v1674 = vlaneseq
      %v1675 = vshrl.u32 %v1674, 7
      %v1676 = vsub.s32 %v1673, %v1675
      %v1677 = vrot.slane %v1663, %v1676
      %v1679 = vshrl.u32 %v1648, 16
      %v1681 = vrot.slane %v1679, 7
      %v1682 = vrot.slane %v1681, 1
      %v1684 = vshll.u32 %v1655, 16
      %v1686 = vsel %vm250, %v1682, %v1684
      %v1688 = vshrl.u32 %v1670, 16
      %v1690 = vrot.slane %v1688, 7
      %v1691 = vrot.slane %v1690, 1
      %v1693 = vshll.u32 %v1677, 16
      %v1695 = vsel %vm250, %v1691, %v1693
      %s1696 = scalar_lea.vmem %s1, 576
      %v1697 = vld [vmem:[%s1696] sm:$0xf]
      %v1698 = vld [vmem:[%s1696 + $0x4] sm:$0xf]
      %v1699 = vld [vmem:[%s1696 + $0x8] sm:$0xf]
      %v1700 = vld [vmem:[%s1696 + $0xc] sm:$0xf]
      %v1701 = vld [vmem:[%s1696 + $0x10] sm:$0xf]
      %v1702 = vld [vmem:[%s1696 + $0x14] sm:$0xf]
      %v1703 = vld [vmem:[%s1696 + $0x18] sm:$0xf]
      %v1704 = vld [vmem:[%s1696 + $0x1c] sm:$0xf]
      %v1705 = vld [vmem:[%s1696 + $0x20] sm:$0xf]
      %v1706 = vld [vmem:[%s1696 + $0x24] sm:$0xf]
      %v1707 = vld [vmem:[%s1696 + $0x28] sm:$0xf]
      %v1708 = vld [vmem:[%s1696 + $0x2c] sm:$0xf]
      %v1709 = vld [vmem:[%s1696 + $0x30] sm:$0xf]
      %v1710 = vld [vmem:[%s1696 + $0x34] sm:$0xf]
      %v1711 = vld [vmem:[%s1696 + $0x38] sm:$0xf]
      %v1712 = vld [vmem:[%s1696 + $0x3c] sm:$0xf]
      %v1713 = vcombine.low %v1686, %v1695
      %v1715 = vunpack.c.l.s4 1966171168
      %v1716 = vunpack.c.0.s8 %v1715
      %v1717 = vlaneseq
      %v1718 = vshrl.u32 %v1717, 7
      %v1719 = vsub.s32 %v1716, %v1718
      %v1720 = vrot.slane %v1713, %v1719
      %v1722 = vunpack.c.l.s4 1966171168
      %v1723 = vunpack.c.0.s8 %v1722
      %v1724 = vlaneseq
      %v1725 = vshrl.u32 %v1724, 7
      %v1726 = vsub.s32 %v1723, %v1725
      %v1727 = vrot.slane %v1720, %v1726
      %v1745 = vunpack.c.l.b16 %v1697
      %v1746 = vunpack.c.l.b16 %v1698
      %v1747 = vunpack.c.l.b16 %v1699
      %v1748 = vunpack.c.l.b16 %v1700
      %v1749 = vunpack.c.l.b16 %v1701
      %v1750 = vunpack.c.l.b16 %v1702
      %v1751 = vunpack.c.l.b16 %v1703
      %v1752 = vunpack.c.l.b16 %v1704
      %v1753 = vunpack.c.l.b16 %v1705
      %v1754 = vunpack.c.l.b16 %v1706
      %v1755 = vunpack.c.l.b16 %v1707
      %v1756 = vunpack.c.l.b16 %v1708
      %v1757 = vunpack.c.l.b16 %v1709
      %v1758 = vunpack.c.l.b16 %v1710
      %v1759 = vunpack.c.l.b16 %v1711
      %v1760 = vunpack.c.l.b16 %v1712
      %v1761 = vpack.c.b16 %v1746, %v1745
      %v1762 = vpack.c.b16 %v1748, %v1747
      %v1763 = vpack.c.b16 %v1750, %v1749
      %v1764 = vpack.c.b16 %v1752, %v1751
      %v1765 = vpack.c.b16 %v1754, %v1753
      %v1766 = vpack.c.b16 %v1756, %v1755
      %v1767 = vpack.c.b16 %v1758, %v1757
      %v1768 = vpack.c.b16 %v1760, %v1759
      %1777 = vmatprep.subr.bf16.mxu0 0
      %1778 = vmatpush1.bf16.msra.mxu0 %v1761
      %1779 = vmatprep.subr.bf16.mxu0 0
      %1780 = vmatpush1.bf16.msra.mxu0 %v1762
      %1781 = vmatprep.subr.bf16.mxu0 0
      %1782 = vmatpush1.bf16.msra.mxu0 %v1763
      %1783 = vmatprep.subr.bf16.mxu0 0
      %1784 = vmatpush1.bf16.msra.mxu0 %v1764
      %1785 = vmatprep.subr.bf16.mxu0 0
      %1786 = vmatpush1.bf16.msra.mxu0 %v1765
      %1787 = vmatprep.subr.bf16.mxu0 0
      %1788 = vmatpush1.bf16.msra.mxu0 %v1766
      %1789 = vmatprep.subr.bf16.mxu0 0
      %1790 = vmatpush1.bf16.msra.mxu0 %v1767
      %1791 = vmatprep.subr.bf16.mxu0 0
      %1792 = vmatpush1.bf16.msra.mxu0 %v1768
      %1793 = vmatprep.subr.bf16.mxu0 0
      %1794 = vmatpush1.bf16.msra.mxu0 0
      %1795 = vmatprep.subr.bf16.mxu0 0
      %1796 = vmatpush1.bf16.msra.mxu0 0
      %1797 = vmatprep.subr.bf16.mxu0 0
      %1798 = vmatpush1.bf16.msra.mxu0 0
      %1799 = vmatprep.subr.bf16.mxu0 0
      %1800 = vmatpush1.bf16.msra.mxu0 0
      %1801 = vmatprep.subr.bf16.mxu0 0
      %1802 = vmatpush1.bf16.msra.mxu0 0
      %1803 = vmatprep.subr.bf16.mxu0 0
      %1804 = vmatpush1.bf16.msra.mxu0 0
      %1805 = vmatprep.subr.bf16.mxu0 0
      %1806 = vmatpush1.bf16.msra.mxu0 0
      %1807 = vmatprep.subr.bf16.mxu0 0
      %1808 = vmatpush1.bf16.msra.mxu0 0
      %1809 = vmatprep.mubr.bf16.mxu0 0
      %1810 = vmatmul.mubr.bf16.gmra.mrb[0].mxu0 %v1727
      %v1811 = vpop.f32.mrb[0].mxu0
      %v1812 = vadd.f32 0.0, %v1811
      %v1813 = vpop.f32.mrb[0].mxu0
      %v1814 = vpop.f32.mrb[0].mxu0
      %v1815 = vpop.f32.mrb[0].mxu0
      %1816 = vdwg.mxu0
      %v1817 = vadd.f32 %v1629, %v1812
      %v1818 = vld [vmem:[%s1503] sm:$0x2]
      %v1819 = vld [vmem:[%s1503 + $0x4] sm:$0x2]
      %v1823 = vunpack.c.l.s4 1966171168
      %v1824 = vunpack.c.0.s8 %v1823
      %v1825 = vlaneseq
      %v1826 = vshrl.u32 %v1825, 7
      %v1827 = vsub.s32 %v1824, %v1826
      %v1828 = vrot.slane %v1818, %v1827
      %v1829 = vcombine.high %v1828, %v1828
      %v1831 = vunpack.c.l.s4 1966171168
      %v1832 = vunpack.c.0.s8 %v1831
      %v1833 = vlaneseq
      %v1834 = vshrl.u32 %v1833, 7
      %v1835 = vsub.s32 %v1832, %v1834
      %v1836 = vrot.slane %v1829, %v1835
      %v1838 = vunpack.c.l.s4 1966171168
      %v1839 = vunpack.c.0.s8 %v1838
      %v1840 = vlaneseq
      %v1841 = vshrl.u32 %v1840, 7
      %v1842 = vsub.s32 %v1839, %v1841
      %v1843 = vrot.slane %v1819, %v1842
      %v1844 = vcombine.high %v1843, %v1843
      %v1846 = vunpack.c.l.s4 1966171168
      %v1847 = vunpack.c.0.s8 %v1846
      %v1848 = vlaneseq
      %v1849 = vshrl.u32 %v1848, 7
      %v1850 = vsub.s32 %v1847, %v1849
      %v1851 = vrot.slane %v1844, %v1850
      %s1852 = scalar_lea.vmem %s1, 640
      %v1853 = vld [vmem:[%s1852] sm:$0xf]
      %v1854 = vld [vmem:[%s1852 + $0x4] sm:$0xf]
      %v1855 = vld [vmem:[%s1852 + $0x8] sm:$0xf]
      %v1856 = vld [vmem:[%s1852 + $0xc] sm:$0xf]
      %v1857 = vld [vmem:[%s1852 + $0x10] sm:$0xf]
      %v1858 = vld [vmem:[%s1852 + $0x14] sm:$0xf]
      %v1859 = vld [vmem:[%s1852 + $0x18] sm:$0xf]
      %v1860 = vld [vmem:[%s1852 + $0x1c] sm:$0xf]
      %v1861 = vld [vmem:[%s1852 + $0x20] sm:$0xf]
      %v1862 = vld [vmem:[%s1852 + $0x24] sm:$0xf]
      %v1863 = vld [vmem:[%s1852 + $0x28] sm:$0xf]
      %v1864 = vld [vmem:[%s1852 + $0x2c] sm:$0xf]
      %v1865 = vld [vmem:[%s1852 + $0x30] sm:$0xf]
      %v1866 = vld [vmem:[%s1852 + $0x34] sm:$0xf]
      %v1867 = vld [vmem:[%s1852 + $0x38] sm:$0xf]
      %v1868 = vld [vmem:[%s1852 + $0x3c] sm:$0xf]
      %v1869 = vcombine.low %v1836, %v1851
      %v1871 = vunpack.c.l.s4 1966171168
      %v1872 = vunpack.c.0.s8 %v1871
      %v1873 = vlaneseq
      %v1874 = vshrl.u32 %v1873, 7
      %v1875 = vsub.s32 %v1872, %v1874
      %v1876 = vrot.slane %v1869, %v1875
      %v1878 = vunpack.c.l.s4 1966171168
      %v1879 = vunpack.c.0.s8 %v1878
      %v1880 = vlaneseq
      %v1881 = vshrl.u32 %v1880, 7
      %v1882 = vsub.s32 %v1879, %v1881
      %v1883 = vrot.slane %v1876, %v1882
      %v1901 = vunpack.c.l.b16 %v1853
      %v1902 = vunpack.c.l.b16 %v1854
      %v1903 = vunpack.c.l.b16 %v1855
      %v1904 = vunpack.c.l.b16 %v1856
      %v1905 = vunpack.c.l.b16 %v1857
      %v1906 = vunpack.c.l.b16 %v1858
      %v1907 = vunpack.c.l.b16 %v1859
      %v1908 = vunpack.c.l.b16 %v1860
      %v1909 = vunpack.c.l.b16 %v1861
      %v1910 = vunpack.c.l.b16 %v1862
      %v1911 = vunpack.c.l.b16 %v1863
      %v1912 = vunpack.c.l.b16 %v1864
      %v1913 = vunpack.c.l.b16 %v1865
      %v1914 = vunpack.c.l.b16 %v1866
      %v1915 = vunpack.c.l.b16 %v1867
      %v1916 = vunpack.c.l.b16 %v1868
      %v1917 = vpack.c.b16 %v1902, %v1901
      %v1918 = vpack.c.b16 %v1904, %v1903
      %v1919 = vpack.c.b16 %v1906, %v1905
      %v1920 = vpack.c.b16 %v1908, %v1907
      %v1921 = vpack.c.b16 %v1910, %v1909
      %v1922 = vpack.c.b16 %v1912, %v1911
      %v1923 = vpack.c.b16 %v1914, %v1913
      %v1924 = vpack.c.b16 %v1916, %v1915
      %1933 = vmatprep.subr.bf16.mxu0 0
      %1934 = vmatpush1.bf16.msra.mxu0 %v1917
      %1935 = vmatprep.subr.bf16.mxu0 0
      %1936 = vmatpush1.bf16.msra.mxu0 %v1918
      %1937 = vmatprep.subr.bf16.mxu0 0
      %1938 = vmatpush1.bf16.msra.mxu0 %v1919
      %1939 = vmatprep.subr.bf16.mxu0 0
      %1940 = vmatpush1.bf16.msra.mxu0 %v1920
      %1941 = vmatprep.subr.bf16.mxu0 0
      %1942 = vmatpush1.bf16.msra.mxu0 %v1921
      %1943 = vmatprep.subr.bf16.mxu0 0
      %1944 = vmatpush1.bf16.msra.mxu0 %v1922
      %1945 = vmatprep.subr.bf16.mxu0 0
      %1946 = vmatpush1.bf16.msra.mxu0 %v1923
      %1947 = vmatprep.subr.bf16.mxu0 0
      %1948 = vmatpush1.bf16.msra.mxu0 %v1924
      %1949 = vmatprep.subr.bf16.mxu0 0
      %1950 = vmatpush1.bf16.msra.mxu0 0
      %1951 = vmatprep.subr.bf16.mxu0 0
      %1952 = vmatpush1.bf16.msra.mxu0 0
      %1953 = vmatprep.subr.bf16.mxu0 0
      %1954 = vmatpush1.bf16.msra.mxu0 0
      %1955 = vmatprep.subr.bf16.mxu0 0
      %1956 = vmatpush1.bf16.msra.mxu0 0
      %1957 = vmatprep.subr.bf16.mxu0 0
      %1958 = vmatpush1.bf16.msra.mxu0 0
      %1959 = vmatprep.subr.bf16.mxu0 0
      %1960 = vmatpush1.bf16.msra.mxu0 0
      %1961 = vmatprep.subr.bf16.mxu0 0
      %1962 = vmatpush1.bf16.msra.mxu0 0
      %1963 = vmatprep.subr.bf16.mxu0 0
      %1964 = vmatpush1.bf16.msra.mxu0 0
      %1965 = vmatprep.mubr.bf16.mxu0 0
      %1966 = vmatmul.mubr.bf16.gmra.mrb[0].mxu0 %v1883
      %v1967 = vpop.f32.mrb[0].mxu0
      %v1968 = vadd.f32 0.0, %v1967
      %v1969 = vpop.f32.mrb[0].mxu0
      %v1970 = vpop.f32.mrb[0].mxu0
      %v1971 = vpop.f32.mrb[0].mxu0
      %1972 = vdwg.mxu0
      %v1973 = vadd.f32 %v1817, %v1968
      %v1974 = vld [vmem:[%s1503] sm:$0x6]
      %v1975 = vld [vmem:[%s1503 + $0x4] sm:$0x6]
      %v1979 = vunpack.c.l.s4 1966171168
      %v1980 = vunpack.c.0.s8 %v1979
      %v1981 = vlaneseq
      %v1982 = vshrl.u32 %v1981, 7
      %v1983 = vsub.s32 %v1980, %v1982
      %v1984 = vrot.slane %v1974, %v1983
      %v1985 = vcombine.high %v1984, %v1984
      %v1987 = vunpack.c.l.s4 1966171168
      %v1988 = vunpack.c.0.s8 %v1987
      %v1989 = vlaneseq
      %v1990 = vshrl.u32 %v1989, 7
      %v1991 = vsub.s32 %v1988, %v1990
      %v1992 = vrot.slane %v1984, %v1991
      %v1994 = vunpack.c.l.s4 1966171168
      %v1995 = vunpack.c.0.s8 %v1994
      %v1996 = vlaneseq
      %v1997 = vshrl.u32 %v1996, 7
      %v1998 = vsub.s32 %v1995, %v1997
      %v1999 = vrot.slane %v1985, %v1998
      %v2000 = vcombine.high %v1992, %v1992
      %v2002 = vunpack.c.l.s4 1966171168
      %v2003 = vunpack.c.0.s8 %v2002
      %v2004 = vlaneseq
      %v2005 = vshrl.u32 %v2004, 7
      %v2006 = vsub.s32 %v2003, %v2005
      %v2007 = vrot.slane %v1975, %v2006
      %v2008 = vcombine.high %v2007, %v2007
      %v2010 = vunpack.c.l.s4 1966171168
      %v2011 = vunpack.c.0.s8 %v2010
      %v2012 = vlaneseq
      %v2013 = vshrl.u32 %v2012, 7
      %v2014 = vsub.s32 %v2011, %v2013
      %v2015 = vrot.slane %v2007, %v2014
      %v2017 = vunpack.c.l.s4 1966171168
      %v2018 = vunpack.c.0.s8 %v2017
      %v2019 = vlaneseq
      %v2020 = vshrl.u32 %v2019, 7
      %v2021 = vsub.s32 %v2018, %v2020
      %v2022 = vrot.slane %v2008, %v2021
      %v2023 = vcombine.high %v2015, %v2015
      %v2025 = vshrl.u32 %v1999, 16
      %v2027 = vrot.slane %v2025, 7
      %v2028 = vrot.slane %v2027, 1
      %v2030 = vshll.u32 %v2000, 16
      %v2032 = vsel %vm250, %v2028, %v2030
      %v2034 = vshrl.u32 %v2022, 16
      %v2036 = vrot.slane %v2034, 7
      %v2037 = vrot.slane %v2036, 1
      %v2039 = vshll.u32 %v2023, 16
      %v2041 = vsel %vm250, %v2037, %v2039
      %s2042 = scalar_lea.vmem %s1, 704
      %v2043 = vld [vmem:[%s2042] sm:$0xf]
      %v2044 = vld [vmem:[%s2042 + $0x4] sm:$0xf]
      %v2045 = vld [vmem:[%s2042 + $0x8] sm:$0xf]
      %v2046 = vld [vmem:[%s2042 + $0xc] sm:$0xf]
      %v2047 = vld [vmem:[%s2042 + $0x10] sm:$0xf]
      %v2048 = vld [vmem:[%s2042 + $0x14] sm:$0xf]
      %v2049 = vld [vmem:[%s2042 + $0x18] sm:$0xf]
      %v2050 = vld [vmem:[%s2042 + $0x1c] sm:$0xf]
      %v2051 = vld [vmem:[%s2042 + $0x20] sm:$0xf]
      %v2052 = vld [vmem:[%s2042 + $0x24] sm:$0xf]
      %v2053 = vld [vmem:[%s2042 + $0x28] sm:$0xf]
      %v2054 = vld [vmem:[%s2042 + $0x2c] sm:$0xf]
      %v2055 = vld [vmem:[%s2042 + $0x30] sm:$0xf]
      %v2056 = vld [vmem:[%s2042 + $0x34] sm:$0xf]
      %v2057 = vld [vmem:[%s2042 + $0x38] sm:$0xf]
      %v2058 = vld [vmem:[%s2042 + $0x3c] sm:$0xf]
      %v2059 = vcombine.low %v2032, %v2041
      %v2061 = vunpack.c.l.s4 1966171168
      %v2062 = vunpack.c.0.s8 %v2061
      %v2063 = vlaneseq
      %v2064 = vshrl.u32 %v2063, 7
      %v2065 = vsub.s32 %v2062, %v2064
      %v2066 = vrot.slane %v2059, %v2065
      %v2068 = vunpack.c.l.s4 1966171168
      %v2069 = vunpack.c.0.s8 %v2068
      %v2070 = vlaneseq
      %v2071 = vshrl.u32 %v2070, 7
      %v2072 = vsub.s32 %v2069, %v2071
      %v2073 = vrot.slane %v2066, %v2072
      %v2091 = vunpack.c.l.b16 %v2043
      %v2092 = vunpack.c.l.b16 %v2044
      %v2093 = vunpack.c.l.b16 %v2045
      %v2094 = vunpack.c.l.b16 %v2046
      %v2095 = vunpack.c.l.b16 %v2047
      %v2096 = vunpack.c.l.b16 %v2048
      %v2097 = vunpack.c.l.b16 %v2049
      %v2098 = vunpack.c.l.b16 %v2050
      %v2099 = vunpack.c.l.b16 %v2051
      %v2100 = vunpack.c.l.b16 %v2052
      %v2101 = vunpack.c.l.b16 %v2053
      %v2102 = vunpack.c.l.b16 %v2054
      %v2103 = vunpack.c.l.b16 %v2055
      %v2104 = vunpack.c.l.b16 %v2056
      %v2105 = vunpack.c.l.b16 %v2057
      %v2106 = vunpack.c.l.b16 %v2058
      %v2107 = vpack.c.b16 %v2092, %v2091
      %v2108 = vpack.c.b16 %v2094, %v2093
      %v2109 = vpack.c.b16 %v2096, %v2095
      %v2110 = vpack.c.b16 %v2098, %v2097
      %v2111 = vpack.c.b16 %v2100, %v2099
      %v2112 = vpack.c.b16 %v2102, %v2101
      %v2113 = vpack.c.b16 %v2104, %v2103
      %v2114 = vpack.c.b16 %v2106, %v2105
      %2123 = vmatprep.subr.bf16.mxu0 0
      %2124 = vmatpush1.bf16.msra.mxu0 %v2107
      %2125 = vmatprep.subr.bf16.mxu0 0
      %2126 = vmatpush1.bf16.msra.mxu0 %v2108
      %2127 = vmatprep.subr.bf16.mxu0 0
      %2128 = vmatpush1.bf16.msra.mxu0 %v2109
      %2129 = vmatprep.subr.bf16.mxu0 0
      %2130 = vmatpush1.bf16.msra.mxu0 %v2110
      %2131 = vmatprep.subr.bf16.mxu0 0
      %2132 = vmatpush1.bf16.msra.mxu0 %v2111
      %2133 = vmatprep.subr.bf16.mxu0 0
      %2134 = vmatpush1.bf16.msra.mxu0 %v2112
      %2135 = vmatprep.subr.bf16.mxu0 0
      %2136 = vmatpush1.bf16.msra.mxu0 %v2113
      %2137 = vmatprep.subr.bf16.mxu0 0
      %2138 = vmatpush1.bf16.msra.mxu0 %v2114
      %2139 = vmatprep.subr.bf16.mxu0 0
      %2140 = vmatpush1.bf16.msra.mxu0 0
      %2141 = vmatprep.subr.bf16.mxu0 0
      %2142 = vmatpush1.bf16.msra.mxu0 0
      %2143 = vmatprep.subr.bf16.mxu0 0
      %2144 = vmatpush1.bf16.msra.mxu0 0
      %2145 = vmatprep.subr.bf16.mxu0 0
      %2146 = vmatpush1.bf16.msra.mxu0 0
      %2147 = vmatprep.subr.bf16.mxu0 0
      %2148 = vmatpush1.bf16.msra.mxu0 0
      %2149 = vmatprep.subr.bf16.mxu0 0
      %2150 = vmatpush1.bf16.msra.mxu0 0
      %2151 = vmatprep.subr.bf16.mxu0 0
      %2152 = vmatpush1.bf16.msra.mxu0 0
      %2153 = vmatprep.subr.bf16.mxu0 0
      %2154 = vmatpush1.bf16.msra.mxu0 0
      %2155 = vmatprep.mubr.bf16.mxu0 0
      %2156 = vmatmul.mubr.bf16.gmra.mrb[0].mxu0 %v2073
      %v2157 = vpop.f32.mrb[0].mxu0
      %v2158 = vadd.f32 0.0, %v2157
      %v2159 = vpop.f32.mrb[0].mxu0
      %v2160 = vpop.f32.mrb[0].mxu0
      %v2161 = vpop.f32.mrb[0].mxu0
      %2162 = vdwg.mxu0
      %v2163 = vadd.f32 %v1973, %v2158
      %s2164 = scalar_lea.vmem %s164, 12
      %v2165 = vld [vmem:[%s2164] sm:$0x1]
      %v2166 = vld [vmem:[%s2164 + $0x4] sm:$0x1]
      %s2167 = scalar_lea.vmem %s1, 768
      %v2168 = vld [vmem:[%s2167] sm:$0xf]
      %v2169 = vld [vmem:[%s2167 + $0x4] sm:$0xf]
      %v2170 = vld [vmem:[%s2167 + $0x8] sm:$0xf]
      %v2171 = vld [vmem:[%s2167 + $0xc] sm:$0xf]
      %v2172 = vld [vmem:[%s2167 + $0x10] sm:$0xf]
      %v2173 = vld [vmem:[%s2167 + $0x14] sm:$0xf]
      %v2174 = vld [vmem:[%s2167 + $0x18] sm:$0xf]
      %v2175 = vld [vmem:[%s2167 + $0x1c] sm:$0xf]
      %v2176 = vld [vmem:[%s2167 + $0x20] sm:$0xf]
      %v2177 = vld [vmem:[%s2167 + $0x24] sm:$0xf]
      %v2178 = vld [vmem:[%s2167 + $0x28] sm:$0xf]
      %v2179 = vld [vmem:[%s2167 + $0x2c] sm:$0xf]
      %v2180 = vld [vmem:[%s2167 + $0x30] sm:$0xf]
      %v2181 = vld [vmem:[%s2167 + $0x34] sm:$0xf]
      %v2182 = vld [vmem:[%s2167 + $0x38] sm:$0xf]
      %v2183 = vld [vmem:[%s2167 + $0x3c] sm:$0xf]
      %v2186 = vcombine.low %v2165, %v2166
      %v2188 = vunpack.c.l.s4 1966171168
      %v2189 = vunpack.c.0.s8 %v2188
      %v2190 = vlaneseq
      %v2191 = vshrl.u32 %v2190, 7
      %v2192 = vsub.s32 %v2189, %v2191
      %v2193 = vrot.slane %v2186, %v2192
      %v2195 = vunpack.c.l.s4 1966171168
      %v2196 = vunpack.c.0.s8 %v2195
      %v2197 = vlaneseq
      %v2198 = vshrl.u32 %v2197, 7
      %v2199 = vsub.s32 %v2196, %v2198
      %v2200 = vrot.slane %v2193, %v2199
      %v2218 = vunpack.c.l.b16 %v2168
      %v2219 = vunpack.c.l.b16 %v2169
      %v2220 = vunpack.c.l.b16 %v2170
      %v2221 = vunpack.c.l.b16 %v2171
      %v2222 = vunpack.c.l.b16 %v2172
      %v2223 = vunpack.c.l.b16 %v2173
      %v2224 = vunpack.c.l.b16 %v2174
      %v2225 = vunpack.c.l.b16 %v2175
      %v2226 = vunpack.c.l.b16 %v2176
      %v2227 = vunpack.c.l.b16 %v2177
      %v2228 = vunpack.c.l.b16 %v2178
      %v2229 = vunpack.c.l.b16 %v2179
      %v2230 = vunpack.c.l.b16 %v2180
      %v2231 = vunpack.c.l.b16 %v2181
      %v2232 = vunpack.c.l.b16 %v2182
      %v2233 = vunpack.c.l.b16 %v2183
      %v2234 = vpack.c.b16 %v2219, %v2218
      %v2235 = vpack.c.b16 %v2221, %v2220
      %v2236 = vpack.c.b16 %v2223, %v2222
      %v2237 = vpack.c.b16 %v2225, %v2224
      %v2238 = vpack.c.b16 %v2227, %v2226
      %v2239 = vpack.c.b16 %v2229, %v2228
      %v2240 = vpack.c.b16 %v2231, %v2230
      %v2241 = vpack.c.b16 %v2233, %v2232
      %2250 = vmatprep.subr.bf16.mxu0 0
      %2251 = vmatpush1.bf16.msra.mxu0 %v2234
      %2252 = vmatprep.subr.bf16.mxu0 0
      %2253 = vmatpush1.bf16.msra.mxu0 %v2235
      %2254 = vmatprep.subr.bf16.mxu0 0
      %2255 = vmatpush1.bf16.msra.mxu0 %v2236
      %2256 = vmatprep.subr.bf16.mxu0 0
      %2257 = vmatpush1.bf16.msra.mxu0 %v2237
      %2258 = vmatprep.subr.bf16.mxu0 0
      %2259 = vmatpush1.bf16.msra.mxu0 %v2238
      %2260 = vmatprep.subr.bf16.mxu0 0
      %2261 = vmatpush1.bf16.msra.mxu0 %v2239
      %2262 = vmatprep.subr.bf16.mxu0 0
      %2263 = vmatpush1.bf16.msra.mxu0 %v2240
      %2264 = vmatprep.subr.bf16.mxu0 0
      %2265 = vmatpush1.bf16.msra.mxu0 %v2241
      %2266 = vmatprep.subr.bf16.mxu0 0
      %2267 = vmatpush1.bf16.msra.mxu0 0
      %2268 = vmatprep.subr.bf16.mxu0 0
      %2269 = vmatpush1.bf16.msra.mxu0 0
      %2270 = vmatprep.subr.bf16.mxu0 0
      %2271 = vmatpush1.bf16.msra.mxu0 0
      %2272 = vmatprep.subr.bf16.mxu0 0
      %2273 = vmatpush1.bf16.msra.mxu0 0
      %2274 = vmatprep.subr.bf16.mxu0 0
      %2275 = vmatpush1.bf16.msra.mxu0 0
      %2276 = vmatprep.subr.bf16.mxu0 0
      %2277 = vmatpush1.bf16.msra.mxu0 0
      %2278 = vmatprep.subr.bf16.mxu0 0
      %2279 = vmatpush1.bf16.msra.mxu0 0
      %2280 = vmatprep.subr.bf16.mxu0 0
      %2281 = vmatpush1.bf16.msra.mxu0 0
      %2282 = vmatprep.mubr.bf16.mxu0 0
      %2283 = vmatmul.mubr.bf16.gmra.mrb[0].mxu0 %v2200
      %v2284 = vpop.f32.mrb[0].mxu0
      %v2285 = vadd.f32 0.0, %v2284
      %v2286 = vpop.f32.mrb[0].mxu0
      %v2287 = vpop.f32.mrb[0].mxu0
      %v2288 = vpop.f32.mrb[0].mxu0
      %2289 = vdwg.mxu0
      %v2290 = vadd.f32 %v2163, %v2285
      %v2291 = vld [vmem:[%s2164] sm:$0x3]
      %v2292 = vld [vmem:[%s2164 + $0x4] sm:$0x3]
      %v2296 = vunpack.c.l.s4 1966171168
      %v2297 = vunpack.c.0.s8 %v2296
      %v2298 = vlaneseq
      %v2299 = vshrl.u32 %v2298, 7
      %v2300 = vsub.s32 %v2297, %v2299
      %v2301 = vrot.slane %v2291, %v2300
      %v2302 = vcombine.high %v2301, %v2301
      %v2304 = vunpack.c.l.s4 1966171168
      %v2305 = vunpack.c.0.s8 %v2304
      %v2306 = vlaneseq
      %v2307 = vshrl.u32 %v2306, 7
      %v2308 = vsub.s32 %v2305, %v2307
      %v2309 = vrot.slane %v2301, %v2308
      %v2311 = vunpack.c.l.s4 1966171168
      %v2312 = vunpack.c.0.s8 %v2311
      %v2313 = vlaneseq
      %v2314 = vshrl.u32 %v2313, 7
      %v2315 = vsub.s32 %v2312, %v2314
      %v2316 = vrot.slane %v2302, %v2315
      %v2318 = vunpack.c.l.s4 1966171168
      %v2319 = vunpack.c.0.s8 %v2318
      %v2320 = vlaneseq
      %v2321 = vshrl.u32 %v2320, 7
      %v2322 = vsub.s32 %v2319, %v2321
      %v2323 = vrot.slane %v2292, %v2322
      %v2324 = vcombine.high %v2323, %v2323
      %v2326 = vunpack.c.l.s4 1966171168
      %v2327 = vunpack.c.0.s8 %v2326
      %v2328 = vlaneseq
      %v2329 = vshrl.u32 %v2328, 7
      %v2330 = vsub.s32 %v2327, %v2329
      %v2331 = vrot.slane %v2323, %v2330
      %v2333 = vunpack.c.l.s4 1966171168
      %v2334 = vunpack.c.0.s8 %v2333
      %v2335 = vlaneseq
      %v2336 = vshrl.u32 %v2335, 7
      %v2337 = vsub.s32 %v2334, %v2336
      %v2338 = vrot.slane %v2324, %v2337
      %v2340 = vshrl.u32 %v2309, 16
      %v2342 = vrot.slane %v2340, 7
      %v2343 = vrot.slane %v2342, 1
      %v2345 = vshll.u32 %v2316, 16
      %v2347 = vsel %vm250, %v2343, %v2345
      %v2349 = vshrl.u32 %v2331, 16
      %v2351 = vrot.slane %v2349, 7
      %v2352 = vrot.slane %v2351, 1
      %v2354 = vshll.u32 %v2338, 16
      %v2356 = vsel %vm250, %v2352, %v2354
      %s2357 = scalar_lea.vmem %s1, 832
      %v2358 = vld [vmem:[%s2357] sm:$0xf]
      %v2359 = vld [vmem:[%s2357 + $0x4] sm:$0xf]
      %v2360 = vld [vmem:[%s2357 + $0x8] sm:$0xf]
      %v2361 = vld [vmem:[%s2357 + $0xc] sm:$0xf]
      %v2362 = vld [vmem:[%s2357 + $0x10] sm:$0xf]
      %v2363 = vld [vmem:[%s2357 + $0x14] sm:$0xf]
      %v2364 = vld [vmem:[%s2357 + $0x18] sm:$0xf]
      %v2365 = vld [vmem:[%s2357 + $0x1c] sm:$0xf]
      %v2366 = vld [vmem:[%s2357 + $0x20] sm:$0xf]
      %v2367 = vld [vmem:[%s2357 + $0x24] sm:$0xf]
      %v2368 = vld [vmem:[%s2357 + $0x28] sm:$0xf]
      %v2369 = vld [vmem:[%s2357 + $0x2c] sm:$0xf]
      %v2370 = vld [vmem:[%s2357 + $0x30] sm:$0xf]
      %v2371 = vld [vmem:[%s2357 + $0x34] sm:$0xf]
      %v2372 = vld [vmem:[%s2357 + $0x38] sm:$0xf]
      %v2373 = vld [vmem:[%s2357 + $0x3c] sm:$0xf]
      %v2374 = vcombine.low %v2347, %v2356
      %v2376 = vunpack.c.l.s4 1966171168
      %v2377 = vunpack.c.0.s8 %v2376
      %v2378 = vlaneseq
      %v2379 = vshrl.u32 %v2378, 7
      %v2380 = vsub.s32 %v2377, %v2379
      %v2381 = vrot.slane %v2374, %v2380
      %v2383 = vunpack.c.l.s4 1966171168
      %v2384 = vunpack.c.0.s8 %v2383
      %v2385 = vlaneseq
      %v2386 = vshrl.u32 %v2385, 7
      %v2387 = vsub.s32 %v2384, %v2386
      %v2388 = vrot.slane %v2381, %v2387
      %v2406 = vunpack.c.l.b16 %v2358
      %v2407 = vunpack.c.l.b16 %v2359
      %v2408 = vunpack.c.l.b16 %v2360
      %v2409 = vunpack.c.l.b16 %v2361
      %v2410 = vunpack.c.l.b16 %v2362
      %v2411 = vunpack.c.l.b16 %v2363
      %v2412 = vunpack.c.l.b16 %v2364
      %v2413 = vunpack.c.l.b16 %v2365
      %v2414 = vunpack.c.l.b16 %v2366
      %v2415 = vunpack.c.l.b16 %v2367
      %v2416 = vunpack.c.l.b16 %v2368
      %v2417 = vunpack.c.l.b16 %v2369
      %v2418 = vunpack.c.l.b16 %v2370
      %v2419 = vunpack.c.l.b16 %v2371
      %v2420 = vunpack.c.l.b16 %v2372
      %v2421 = vunpack.c.l.b16 %v2373
      %v2422 = vpack.c.b16 %v2407, %v2406
      %v2423 = vpack.c.b16 %v2409, %v2408
      %v2424 = vpack.c.b16 %v2411, %v2410
      %v2425 = vpack.c.b16 %v2413, %v2412
      %v2426 = vpack.c.b16 %v2415, %v2414
      %v2427 = vpack.c.b16 %v2417, %v2416
      %v2428 = vpack.c.b16 %v2419, %v2418
      %v2429 = vpack.c.b16 %v2421, %v2420
      %2438 = vmatprep.subr.bf16.mxu0 0
      %2439 = vmatpush1.bf16.msra.mxu0 %v2422
      %2440 = vmatprep.subr.bf16.mxu0 0
      %2441 = vmatpush1.bf16.msra.mxu0 %v2423
      %2442 = vmatprep.subr.bf16.mxu0 0
      %2443 = vmatpush1.bf16.msra.mxu0 %v2424
      %2444 = vmatprep.subr.bf16.mxu0 0
      %2445 = vmatpush1.bf16.msra.mxu0 %v2425
      %2446 = vmatprep.subr.bf16.mxu0 0
      %2447 = vmatpush1.bf16.msra.mxu0 %v2426
      %2448 = vmatprep.subr.bf16.mxu0 0
      %2449 = vmatpush1.bf16.msra.mxu0 %v2427
      %2450 = vmatprep.subr.bf16.mxu0 0
      %2451 = vmatpush1.bf16.msra.mxu0 %v2428
      %2452 = vmatprep.subr.bf16.mxu0 0
      %2453 = vmatpush1.bf16.msra.mxu0 %v2429
      %2454 = vmatprep.subr.bf16.mxu0 0
      %2455 = vmatpush1.bf16.msra.mxu0 0
      %2456 = vmatprep.subr.bf16.mxu0 0
      %2457 = vmatpush1.bf16.msra.mxu0 0
      %2458 = vmatprep.subr.bf16.mxu0 0
      %2459 = vmatpush1.bf16.msra.mxu0 0
      %2460 = vmatprep.subr.bf16.mxu0 0
      %2461 = vmatpush1.bf16.msra.mxu0 0
      %2462 = vmatprep.subr.bf16.mxu0 0
      %2463 = vmatpush1.bf16.msra.mxu0 0
      %2464 = vmatprep.subr.bf16.mxu0 0
      %2465 = vmatpush1.bf16.msra.mxu0 0
      %2466 = vmatprep.subr.bf16.mxu0 0
      %2467 = vmatpush1.bf16.msra.mxu0 0
      %2468 = vmatprep.subr.bf16.mxu0 0
      %2469 = vmatpush1.bf16.msra.mxu0 0
      %2470 = vmatprep.mubr.bf16.mxu0 0
      %2471 = vmatmul.mubr.bf16.gmra.mrb[0].mxu0 %v2388
      %v2472 = vpop.f32.mrb[0].mxu0
      %v2473 = vadd.f32 0.0, %v2472
      %v2474 = vpop.f32.mrb[0].mxu0
      %v2475 = vpop.f32.mrb[0].mxu0
      %v2476 = vpop.f32.mrb[0].mxu0
      %2477 = vdwg.mxu0
      %v2478 = vadd.f32 %v2290, %v2473
      %v2479 = vld [vmem:[%s2164] sm:$0x2]
      %v2480 = vld [vmem:[%s2164 + $0x4] sm:$0x2]
      %v2484 = vunpack.c.l.s4 1966171168
      %v2485 = vunpack.c.0.s8 %v2484
      %v2486 = vlaneseq
      %v2487 = vshrl.u32 %v2486, 7
      %v2488 = vsub.s32 %v2485, %v2487
      %v2489 = vrot.slane %v2479, %v2488
      %v2490 = vcombine.high %v2489, %v2489
      %v2492 = vunpack.c.l.s4 1966171168
      %v2493 = vunpack.c.0.s8 %v2492
      %v2494 = vlaneseq
      %v2495 = vshrl.u32 %v2494, 7
      %v2496 = vsub.s32 %v2493, %v2495
      %v2497 = vrot.slane %v2490, %v2496
      %v2499 = vunpack.c.l.s4 1966171168
      %v2500 = vunpack.c.0.s8 %v2499
      %v2501 = vlaneseq
      %v2502 = vshrl.u32 %v2501, 7
      %v2503 = vsub.s32 %v2500, %v2502
      %v2504 = vrot.slane %v2480, %v2503
      %v2505 = vcombine.high %v2504, %v2504
      %v2507 = vunpack.c.l.s4 1966171168
      %v2508 = vunpack.c.0.s8 %v2507
      %v2509 = vlaneseq
      %v2510 = vshrl.u32 %v2509, 7
      %v2511 = vsub.s32 %v2508, %v2510
      %v2512 = vrot.slane %v2505, %v2511
      %s2513 = scalar_lea.vmem %s1, 896
      %v2514 = vld [vmem:[%s2513] sm:$0xf]
      %v2515 = vld [vmem:[%s2513 + $0x4] sm:$0xf]
      %v2516 = vld [vmem:[%s2513 + $0x8] sm:$0xf]
      %v2517 = vld [vmem:[%s2513 + $0xc] sm:$0xf]
      %v2518 = vld [vmem:[%s2513 + $0x10] sm:$0xf]
      %v2519 = vld [vmem:[%s2513 + $0x14] sm:$0xf]
      %v2520 = vld [vmem:[%s2513 + $0x18] sm:$0xf]
      %v2521 = vld [vmem:[%s2513 + $0x1c] sm:$0xf]
      %v2522 = vld [vmem:[%s2513 + $0x20] sm:$0xf]
      %v2523 = vld [vmem:[%s2513 + $0x24] sm:$0xf]
      %v2524 = vld [vmem:[%s2513 + $0x28] sm:$0xf]
      %v2525 = vld [vmem:[%s2513 + $0x2c] sm:$0xf]
      %v2526 = vld [vmem:[%s2513 + $0x30] sm:$0xf]
      %v2527 = vld [vmem:[%s2513 + $0x34] sm:$0xf]
      %v2528 = vld [vmem:[%s2513 + $0x38] sm:$0xf]
      %v2529 = vld [vmem:[%s2513 + $0x3c] sm:$0xf]
      %v2530 = vcombine.low %v2497, %v2512
      %v2532 = vunpack.c.l.s4 1966171168
      %v2533 = vunpack.c.0.s8 %v2532
      %v2534 = vlaneseq
      %v2535 = vshrl.u32 %v2534, 7
      %v2536 = vsub.s32 %v2533, %v2535
      %v2537 = vrot.slane %v2530, %v2536
      %v2539 = vunpack.c.l.s4 1966171168
      %v2540 = vunpack.c.0.s8 %v2539
      %v2541 = vlaneseq
      %v2542 = vshrl.u32 %v2541, 7
      %v2543 = vsub.s32 %v2540, %v2542
      %v2544 = vrot.slane %v2537, %v2543
      %v2562 = vunpack.c.l.b16 %v2514
      %v2563 = vunpack.c.l.b16 %v2515
      %v2564 = vunpack.c.l.b16 %v2516
      %v2565 = vunpack.c.l.b16 %v2517
      %v2566 = vunpack.c.l.b16 %v2518
      %v2567 = vunpack.c.l.b16 %v2519
      %v2568 = vunpack.c.l.b16 %v2520
      %v2569 = vunpack.c.l.b16 %v2521
      %v2570 = vunpack.c.l.b16 %v2522
      %v2571 = vunpack.c.l.b16 %v2523
      %v2572 = vunpack.c.l.b16 %v2524
      %v2573 = vunpack.c.l.b16 %v2525
      %v2574 = vunpack.c.l.b16 %v2526
      %v2575 = vunpack.c.l.b16 %v2527
      %v2576 = vunpack.c.l.b16 %v2528
      %v2577 = vunpack.c.l.b16 %v2529
      %v2578 = vpack.c.b16 %v2563, %v2562
      %v2579 = vpack.c.b16 %v2565, %v2564
      %v2580 = vpack.c.b16 %v2567, %v2566
      %v2581 = vpack.c.b16 %v2569, %v2568
      %v2582 = vpack.c.b16 %v2571, %v2570
      %v2583 = vpack.c.b16 %v2573, %v2572
      %v2584 = vpack.c.b16 %v2575, %v2574
      %v2585 = vpack.c.b16 %v2577, %v2576
      %2594 = vmatprep.subr.bf16.mxu0 0
      %2595 = vmatpush1.bf16.msra.mxu0 %v2578
      %2596 = vmatprep.subr.bf16.mxu0 0
      %2597 = vmatpush1.bf16.msra.mxu0 %v2579
      %2598 = vmatprep.subr.bf16.mxu0 0
      %2599 = vmatpush1.bf16.msra.mxu0 %v2580
      %2600 = vmatprep.subr.bf16.mxu0 0
      %2601 = vmatpush1.bf16.msra.mxu0 %v2581
      %2602 = vmatprep.subr.bf16.mxu0 0
      %2603 = vmatpush1.bf16.msra.mxu0 %v2582
      %2604 = vmatprep.subr.bf16.mxu0 0
      %2605 = vmatpush1.bf16.msra.mxu0 %v2583
      %2606 = vmatprep.subr.bf16.mxu0 0
      %2607 = vmatpush1.bf16.msra.mxu0 %v2584
      %2608 = vmatprep.subr.bf16.mxu0 0
      %2609 = vmatpush1.bf16.msra.mxu0 %v2585
      %2610 = vmatprep.subr.bf16.mxu0 0
      %2611 = vmatpush1.bf16.msra.mxu0 0
      %2612 = vmatprep.subr.bf16.mxu0 0
      %2613 = vmatpush1.bf16.msra.mxu0 0
      %2614 = vmatprep.subr.bf16.mxu0 0
      %2615 = vmatpush1.bf16.msra.mxu0 0
      %2616 = vmatprep.subr.bf16.mxu0 0
      %2617 = vmatpush1.bf16.msra.mxu0 0
      %2618 = vmatprep.subr.bf16.mxu0 0
      %2619 = vmatpush1.bf16.msra.mxu0 0
      %2620 = vmatprep.subr.bf16.mxu0 0
      %2621 = vmatpush1.bf16.msra.mxu0 0
      %2622 = vmatprep.subr.bf16.mxu0 0
      %2623 = vmatpush1.bf16.msra.mxu0 0
      %2624 = vmatprep.subr.bf16.mxu0 0
      %2625 = vmatpush1.bf16.msra.mxu0 0
      %2626 = vmatprep.mubr.bf16.mxu0 0
      %2627 = vmatmul.mubr.bf16.gmra.mrb[0].mxu0 %v2544
      %v2628 = vpop.f32.mrb[0].mxu0
      %v2629 = vadd.f32 0.0, %v2628
      %v2630 = vpop.f32.mrb[0].mxu0
      %v2631 = vpop.f32.mrb[0].mxu0
      %v2632 = vpop.f32.mrb[0].mxu0
      %2633 = vdwg.mxu0
      %v2634 = vadd.f32 %v2478, %v2629
      %v2635 = vld [vmem:[%s2164] sm:$0x6]
      %v2636 = vld [vmem:[%s2164 + $0x4] sm:$0x6]
      %v2640 = vunpack.c.l.s4 1966171168
      %v2641 = vunpack.c.0.s8 %v2640
      %v2642 = vlaneseq
      %v2643 = vshrl.u32 %v2642, 7
      %v2644 = vsub.s32 %v2641, %v2643
      %v2645 = vrot.slane %v2635, %v2644
      %v2646 = vcombine.high %v2645, %v2645
      %v2648 = vunpack.c.l.s4 1966171168
      %v2649 = vunpack.c.0.s8 %v2648
      %v2650 = vlaneseq
      %v2651 = vshrl.u32 %v2650, 7
      %v2652 = vsub.s32 %v2649, %v2651
      %v2653 = vrot.slane %v2645, %v2652
      %v2655 = vunpack.c.l.s4 1966171168
      %v2656 = vunpack.c.0.s8 %v2655
      %v2657 = vlaneseq
      %v2658 = vshrl.u32 %v2657, 7
      %v2659 = vsub.s32 %v2656, %v2658
      %v2660 = vrot.slane %v2646, %v2659
      %v2661 = vcombine.high %v2653, %v2653
      %v2663 = vunpack.c.l.s4 1966171168
      %v2664 = vunpack.c.0.s8 %v2663
      %v2665 = vlaneseq
      %v2666 = vshrl.u32 %v2665, 7
      %v2667 = vsub.s32 %v2664, %v2666
      %v2668 = vrot.slane %v2636, %v2667
      %v2669 = vcombine.high %v2668, %v2668
      %v2671 = vunpack.c.l.s4 1966171168
      %v2672 = vunpack.c.0.s8 %v2671
      %v2673 = vlaneseq
      %v2674 = vshrl.u32 %v2673, 7
      %v2675 = vsub.s32 %v2672, %v2674
      %v2676 = vrot.slane %v2668, %v2675
      %v2678 = vunpack.c.l.s4 1966171168
      %v2679 = vunpack.c.0.s8 %v2678
      %v2680 = vlaneseq
      %v2681 = vshrl.u32 %v2680, 7
      %v2682 = vsub.s32 %v2679, %v2681
      %v2683 = vrot.slane %v2669, %v2682
      %v2684 = vcombine.high %v2676, %v2676
      %v2686 = vshrl.u32 %v2660, 16
      %v2688 = vrot.slane %v2686, 7
      %v2689 = vrot.slane %v2688, 1
      %v2691 = vshll.u32 %v2661, 16
      %v2693 = vsel %vm250, %v2689, %v2691
      %v2695 = vshrl.u32 %v2683, 16
      %v2697 = vrot.slane %v2695, 7
      %v2698 = vrot.slane %v2697, 1
      %v2700 = vshll.u32 %v2684, 16
      %v2702 = vsel %vm250, %v2698, %v2700
      %s2703 = scalar_lea.vmem %s1, 960
      %v2704 = vld [vmem:[%s2703] sm:$0xf]
      %v2705 = vld [vmem:[%s2703 + $0x4] sm:$0xf]
      %v2706 = vld [vmem:[%s2703 + $0x8] sm:$0xf]
      %v2707 = vld [vmem:[%s2703 + $0xc] sm:$0xf]
      %v2708 = vld [vmem:[%s2703 + $0x10] sm:$0xf]
      %v2709 = vld [vmem:[%s2703 + $0x14] sm:$0xf]
      %v2710 = vld [vmem:[%s2703 + $0x18] sm:$0xf]
      %v2711 = vld [vmem:[%s2703 + $0x1c] sm:$0xf]
      %v2712 = vld [vmem:[%s2703 + $0x20] sm:$0xf]
      %v2713 = vld [vmem:[%s2703 + $0x24] sm:$0xf]
      %v2714 = vld [vmem:[%s2703 + $0x28] sm:$0xf]
      %v2715 = vld [vmem:[%s2703 + $0x2c] sm:$0xf]
      %v2716 = vld [vmem:[%s2703 + $0x30] sm:$0xf]
      %v2717 = vld [vmem:[%s2703 + $0x34] sm:$0xf]
      %v2718 = vld [vmem:[%s2703 + $0x38] sm:$0xf]
      %v2719 = vld [vmem:[%s2703 + $0x3c] sm:$0xf]
      %v2720 = vcombine.low %v2693, %v2702
      %v2722 = vunpack.c.l.s4 1966171168
      %v2723 = vunpack.c.0.s8 %v2722
      %v2724 = vlaneseq
      %v2725 = vshrl.u32 %v2724, 7
      %v2726 = vsub.s32 %v2723, %v2725
      %v2727 = vrot.slane %v2720, %v2726
      %v2729 = vunpack.c.l.s4 1966171168
      %v2730 = vunpack.c.0.s8 %v2729
      %v2731 = vlaneseq
      %v2732 = vshrl.u32 %v2731, 7
      %v2733 = vsub.s32 %v2730, %v2732
      %v2734 = vrot.slane %v2727, %v2733
      %v2752 = vunpack.c.l.b16 %v2704
      %v2753 = vunpack.c.l.b16 %v2705
      %v2754 = vunpack.c.l.b16 %v2706
      %v2755 = vunpack.c.l.b16 %v2707
      %v2756 = vunpack.c.l.b16 %v2708
      %v2757 = vunpack.c.l.b16 %v2709
      %v2758 = vunpack.c.l.b16 %v2710
      %v2759 = vunpack.c.l.b16 %v2711
      %v2760 = vunpack.c.l.b16 %v2712
      %v2761 = vunpack.c.l.b16 %v2713
      %v2762 = vunpack.c.l.b16 %v2714
      %v2763 = vunpack.c.l.b16 %v2715
      %v2764 = vunpack.c.l.b16 %v2716
      %v2765 = vunpack.c.l.b16 %v2717
      %v2766 = vunpack.c.l.b16 %v2718
      %v2767 = vunpack.c.l.b16 %v2719
      %v2768 = vpack.c.b16 %v2753, %v2752
      %v2769 = vpack.c.b16 %v2755, %v2754
      %v2770 = vpack.c.b16 %v2757, %v2756
      %v2771 = vpack.c.b16 %v2759, %v2758
      %v2772 = vpack.c.b16 %v2761, %v2760
      %v2773 = vpack.c.b16 %v2763, %v2762
      %v2774 = vpack.c.b16 %v2765, %v2764
      %v2775 = vpack.c.b16 %v2767, %v2766
      %2784 = vmatprep.subr.bf16.mxu0 0
      %2785 = vmatpush1.bf16.msra.mxu0 %v2768
      %2786 = vmatprep.subr.bf16.mxu0 0
      %2787 = vmatpush1.bf16.msra.mxu0 %v2769
      %2788 = vmatprep.subr.bf16.mxu0 0
      %2789 = vmatpush1.bf16.msra.mxu0 %v2770
      %2790 = vmatprep.subr.bf16.mxu0 0
      %2791 = vmatpush1.bf16.msra.mxu0 %v2771
      %2792 = vmatprep.subr.bf16.mxu0 0
      %2793 = vmatpush1.bf16.msra.mxu0 %v2772
      %2794 = vmatprep.subr.bf16.mxu0 0
      %2795 = vmatpush1.bf16.msra.mxu0 %v2773
      %2796 = vmatprep.subr.bf16.mxu0 0
      %2797 = vmatpush1.bf16.msra.mxu0 %v2774
      %2798 = vmatprep.subr.bf16.mxu0 0
      %2799 = vmatpush1.bf16.msra.mxu0 %v2775
      %2800 = vmatprep.subr.bf16.mxu0 0
      %2801 = vmatpush1.bf16.msra.mxu0 0
      %2802 = vmatprep.subr.bf16.mxu0 0
      %2803 = vmatpush1.bf16.msra.mxu0 0
      %2804 = vmatprep.subr.bf16.mxu0 0
      %2805 = vmatpush1.bf16.msra.mxu0 0
      %2806 = vmatprep.subr.bf16.mxu0 0
      %2807 = vmatpush1.bf16.msra.mxu0 0
      %2808 = vmatprep.subr.bf16.mxu0 0
      %2809 = vmatpush1.bf16.msra.mxu0 0
      %2810 = vmatprep.subr.bf16.mxu0 0
      %2811 = vmatpush1.bf16.msra.mxu0 0
      %2812 = vmatprep.subr.bf16.mxu0 0
      %2813 = vmatpush1.bf16.msra.mxu0 0
      %2814 = vmatprep.subr.bf16.mxu0 0
      %2815 = vmatpush1.bf16.msra.mxu0 0
      %2816 = vmatprep.mubr.bf16.mxu0 0
      %2817 = vmatmul.mubr.bf16.gmra.mrb[0].mxu0 %v2734
      %v2818 = vpop.f32.mrb[0].mxu0
      %v2819 = vadd.f32 0.0, %v2818
      %v2820 = vpop.f32.mrb[0].mxu0
      %v2821 = vpop.f32.mrb[0].mxu0
      %v2822 = vpop.f32.mrb[0].mxu0
      %2823 = vdwg.mxu0
      %v2824 = vadd.f32 %v2634, %v2819
      %v2825 = vld [vmem:[%s2] sm:$0x1]
      %v2827 = vlaneseq
      %v2828 = vshrl.u32 %v2827, 7
      %v2829 = vsub.s32 0, %v2828
      %v2830 = vrot.slane %v2825, %v2829
      %v2832 = vadd.f32 %v2824, %v2830
      %2833 = vst [vmem:[%s168] sm:$0xf] %v2832
      %p2834 = scmp.lt.s32.totalorder %s14, 1
      %s2835 = scalar_select %p2834, %s14, 1
      %s2836 = smul.addr %s2835, 4
      %s2837 = scalar_lea.vmem %s3, %s2836
      // Predicated region
      $region33: #{_lambda_.15} parent=31 // pred_check
        %p2838 = pneg %p100
      $region34: #{_lambda_.15} parent=31 // pred_check_branch
        %2840 = sbr.rel (%p2838) target = $region36
      $region35: #{_lambda_.15} parent=31 // pred_region
        _
      $region36: #{_lambda_.15} parent=31 // pred_fallthru
        _
    $region32: #{_lambda_.15} parent=5 // pred_fallthru
      _
    %p2841 = scmp.le.s32.totalorder 2, %s9
    // Predicated region
    $region37: #{_lambda_.15} parent=5 // pred_check
      %p2842 = pneg %p2841
    $region38: #{_lambda_.15} parent=5 // pred_check_branch
      %2844 = sbr.rel (%p2842) target = $region40
    $region39: #{_lambda_.15} parent=5 // pred_region
      %s2845 = ssub.s32 %s9, 2
      // Predicated region
      $region41: #{_lambda_.15} parent=39 // pred_check
        %p2846 = pneg %p106
      $region42: #{_lambda_.15} parent=39 // pred_check_branch
        %2848 = sbr.rel (%p2846) target = $region44
      $region43: #{_lambda_.15} parent=39 // pred_region
        %p2849 = scmp.lt.s32.totalorder %s15, 1
        %s2850 = scalar_select %p2849, %s15, 1
        %s2851 = smul.addr %s2850, 4
        %s2852 = scalar_lea.vmem %s3, %s2851
      $region44: #{_lambda_.15} parent=39 // pred_fallthru
        _
    $region40: #{_lambda_.15} parent=5 // pred_fallthru
      _
  $region6: #{_lambda_.15} parent=0 // loop_footer
    %s13 = sadd.s32 1, %s9
  $region7: #{_lambda_.15} parent=0 // loop_footer_branch
    %8 = sbr.rel target = $region3
  $region8: #{_lambda_.15} parent=0 // loop_exit
    _

</llo_original>
